<compile_context>
chip_gen: v6e
topology: v6e:2x2x1
jax: 0.10.0
libtpu: 0.0.40
codegen_flags: <defaults>
</compile_context>

<pallas_src>
import functools

import jax
import jax.numpy as jnp
from jax import lax
from jax.experimental import pallas as pl
from jax.experimental.pallas import tpu as pltpu

HISTORY_WINDOW = 8  # my_parameter.HISTORY_WINDOW  (T_1)
_LANE = 128


def _rup(n, m=_LANE):
    return -(-n // m) * m


def _pack_lane_slab(arrays):
    """Concatenate 2-D arrays along lanes; every segment except the last is
    zero-padded to a multiple of 128 lanes so in-kernel slices are lane-aligned."""
    segs = []
    for k, a in enumerate(arrays):
        if k != len(arrays) - 1:
            pad = _rup(a.shape[-1]) - a.shape[-1]
            if pad:
                a = jnp.pad(a, ((0, 0), (0, pad)))
        segs.append(a)
    return jnp.concatenate(segs, axis=-1)


def _slab_offsets(widths):
    """Static lane offsets matching _pack_lane_slab (pure Python ints)."""
    offs, cur = [], 0
    for w in widths:
        offs.append(cur)
        cur += _rup(w)
    return offs


def prepare_params(params):
    """One-time algebraic refold + packing of the Decoder weights.

    * Hidden-side weights fused with layer1 into one lane-dense RHS, columns
      ordered [W_hr | W_hz | W_hn | layer1].
    * layer4 folded through the GRU input gates (mathematically exact).
    * Everything packed into 4 operands to cut DMA descriptor count.
    """
    # hidden-side fused RHS / bias: [r | z | n | layer1]
    w_h_all = jnp.concatenate([params["whh"][0], params["whh"][1],
                               params["whh"][2], params["w1"]], axis=1)      # (H, 4H)
    b_h_all = jnp.concatenate([params["bhh"][0], params["bhh"][1],
                               params["bhh"][2], params["b1"]], axis=1)      # (1, 4H)
    # input-to-hidden gates (r | z | n) and the layer4 fold through them
    wih_all = jnp.concatenate([params["wih"][0], params["wih"][1],
                               params["wih"][2]], axis=1)                    # (H, 3H)
    bih_all = jnp.concatenate([params["bih"][0], params["bih"][1],
                               params["bih"][2]], axis=1)                    # (1, 3H)
    w_c = params["w4a"] @ wih_all                                            # (I, 3H)
    w_x = params["w4b"] @ wih_all                                            # (3, 3H)
    b_fold = params["b4"] @ wih_all + bih_all                                # (1, 3H)

    return {
        "slab_h": _pack_lane_slab([w_h_all, params["wfc"]]),                 # rows = H
        "slab_i": _pack_lane_slab([params["w2"], w_c]),                      # rows = I
        "w_x": w_x,                                                          # rows = 3
        "slab_b": _pack_lane_slab([params["b2"], params["w3"], params["b3"],
                                   b_fold, b_h_all, params["bfc"]]),         # rows = 1
    }


def _decoder_kernel(dx_ref, xt_ref, h0_ref, wh_ref, wi_ref, wx_ref, b_ref,
                    out_ref, g0_ref):
    Bt, T1, I = dx_ref.shape
    H = h0_ref.shape[1]
    H2, H3, H4 = 2 * H, 3 * H, 4 * H
    O = wh_ref.shape[1] - _rup(H4)              # wfc is the (unpadded) last segment
    f32 = jnp.float32

    # static lane offsets inside the packed slabs (Python ints at trace time)
    o_whall, o_wfc = _slab_offsets([H4, O])
    o_w2, o_wc = _slab_offsets([H, H3])
    o_b2, o_w3, o_b3, o_bf, o_bh, o_bfc = _slab_offsets([H, H, 1, H3, H4, O])

    # ---- hoisted slab loads (static, lane-aligned slices) ----
    w_h_all = wh_ref[:, o_whall:o_whall + H4]   # (H, 4H)  cols = [r | z | n | layer1]
    w_fc = wh_ref[:, o_wfc:o_wfc + O]           # (H, O)
    w2 = wi_ref[:, o_w2:o_w2 + H]               # (I, H)
    w_c = wi_ref[:, o_wc:o_wc + H3]             # (I, 3H)
    w_x = wx_ref[...]                           # (3, 3H)
    b2 = b_ref[:, o_b2:o_b2 + H]                # (1, H)
    w3r = b_ref[:, o_w3:o_w3 + H].reshape(1, 1, H)
    b3 = b_ref[:, o_b3:o_b3 + 1]                # (1, 1)
    b_fold = b_ref[:, o_bf:o_bf + H3]           # (1, 3H)
    b_h = b_ref[:, o_bh:o_bh + H4]              # (1, 4H)
    b_fc = b_ref[:, o_bfc:o_bfc + O]            # (1, O)

    # ---- step-invariant precompute (all hoisted out of the recurrence) ----
    dx = dx_ref[...]                            # (Bt, T1, I)
    dx2 = dx.reshape(Bt * T1, I)
    # layer2(decoder_x): step independent
    w2p = (jnp.dot(dx2, w2, preferred_element_type=f32) + b2).reshape(Bt, T1, H)
    # decoder_x pre-projected through the folded layer4 / GRU input gates
    dxp = jnp.dot(dx2, w_c, preferred_element_type=f32).reshape(Bt, T1, H3)
    # x-side of the fold: G0[step] = x[:, step] @ (w4b @ Wih) + (b4 @ Wih + b_ih)
    xt = xt_ref[...]                            # (T1, Bt, 3)
    g0_ref[...] = (jnp.dot(xt.reshape(T1 * Bt, 3), w_x,
                           preferred_element_type=f32)
                   + b_fold).reshape(T1, Bt, H3)

    # ---- T1-step recurrence: ONE serial MXU dispatch per step (h @ w_h_all) ----
    def step_body(step, carry):
        h, _ = carry
        hh = jnp.dot(h, w_h_all, preferred_element_type=f32) + b_h       # (Bt, 4H)

        # temporal attention conditioned on the current hidden state
        s = jnp.tanh(hh[:, H3:H4][:, None, :] + w2p)                      # (Bt, T1, H)
        logits = jnp.sum(s * w3r, axis=-1) + b3                           # (Bt, T1)
        m = jnp.max(logits, axis=1, keepdims=True)
        e = jnp.exp(logits - m)
        inv = pl.reciprocal(jnp.sum(e, axis=1, keepdims=True), approx=True)
        wa = e * inv                                                      # softmax(T1)

        # GRU input gates via the folded projection: no per-step MXU needed
        gi = jnp.sum(dxp * wa[:, :, None], axis=1) + g0_ref[step]         # (Bt, 3H)

        rz = jax.nn.sigmoid(gi[:, :H2] + hh[:, :H2])                      # lane-aligned
        r, z = rz[:, :H], rz[:, H:H2]
        n = jnp.tanh(gi[:, H2:H3] + r * hh[:, H2:H3])
        h_new = (1.0 - z) * n + z * h
        return h_new, wa

    h0 = h0_ref[...]
    wa0 = jnp.zeros((Bt, T1), f32)
    h, wa = lax.fori_loop(0, T1, step_body, (h0, wa0), unroll=True)

    # ---- single lane-dense output store: [re | alpha | zero pad] ----
    re = jnp.dot(h, w_fc, preferred_element_type=f32) + b_fc              # (Bt, O)
    pad_w = out_ref.shape[1] - (O + T1)
    parts = [re, wa]
    if pad_w:
        parts.append(jnp.zeros((Bt, pad_w), f32))
    out_ref[...] = jnp.concatenate(parts, axis=1)


@functools.partial(jax.jit, static_argnames=("batch_tile",))
def decoder_forward(decoder_x, x, h0, prep, *, batch_tile=None):
    B, T1, I = decoder_x.shape
    H = h0.shape[-1]
    O = prep["slab_h"].shape[1] - _rup(4 * H)
    out_w = max(_LANE, _rup(O + T1))

    # pad batch to a multiple of 8 sublanes (padded rows are free, avoid masked ops)
    Bp = _rup(B, 8)
    if Bp != B:
        pad = Bp - B
        decoder_x = jnp.pad(decoder_x, ((0, pad), (0, 0), (0, 0)))
        x = jnp.pad(x, ((0, pad), (0, 0), (0, 0)))
        h0 = jnp.pad(h0, ((0, pad), (0, 0)))

    # Batch-tiling policy:
    #   v5e / v6e (1 TensorCore): single full-batch tile (default) -> no per-grid-step
    #     overhead.
    #   v7x (2 TensorCores): pass batch_tile = Bp // 2 (multiple of 8) when B >= 16 so
    #     the "parallel" grid axis has >= 2 steps and both cores are used.
    Bt = Bp if batch_tile is None else batch_tile
    assert Bp % Bt == 0 and Bt % 8 == 0

    xt = jnp.transpose(x, (1, 0, 2))            # (T1, Bp, 3): step on the leading axis

    args = (decoder_x, xt, h0,
            prep["slab_h"], prep["slab_i"], prep["w_x"], prep["slab_b"])
    in_specs = [
        pl.BlockSpec((Bt, T1, I), lambda b: (b, 0, 0)),
        pl.BlockSpec((T1, Bt, 3), lambda b: (0, b, 0)),
        pl.BlockSpec((Bt, H), lambda b: (b, 0)),
    ] + [pl.BlockSpec(a.shape, lambda b: (0, 0)) for a in args[3:]]

    out = pl.pallas_call(
        _decoder_kernel,
        out_shape=jax.ShapeDtypeStruct((Bp, out_w), jnp.float32),
        grid=(Bp // Bt,),
        in_specs=in_specs,
        out_specs=pl.BlockSpec((Bt, out_w), lambda b: (b, 0)),
        scratch_shapes=[pltpu.VMEM((T1, Bt, 3 * H), jnp.float32)],
        compiler_params=pltpu.CompilerParams(
            dimension_semantics=("parallel",),
            vmem_limit_bytes=32 * 1024 * 1024),   # explicit, v7x-safe (64 MiB physical)
    )(*args)

    re = out[:B, :O]
    alpha = out[:B, O:O + T1].reshape(B, T1, 1)
    return re, alpha


def decoder_reference(decoder_x, x, h0, params):
    """Pure-JAX reference with identical math (for correctness check)."""
    B, T1, I = decoder_x.shape
    H = h0.shape[-1]
    h = h0
    w2 = (decoder_x.reshape(B * T1, I) @ params["w2"] + params["b2"]).reshape(B, T1, H)
    for step in range(T1):
        w1 = h @ params["w1"] + params["b1"]
        s = jnp.tanh(w1[:, None, :] + w2)
        logits = jnp.sum(s * params["w3"][None, :, :], axis=-1) + params["b3"]
        wa = jax.nn.softmax(logits, axis=1)
        weighted_c = jnp.sum(decoder_x * wa[:, :, None], axis=1)
        y0 = weighted_c @ params["w4a"] + x[:, step, :] @ params["w4b"] + params["b4"]
        r = jax.nn.sigmoid(y0 @ params["wih"][0] + params["bih"][0]
                           + h @ params["whh"][0] + params["bhh"][0])
        z = jax.nn.sigmoid(y0 @ params["wih"][1] + params["bih"][1]
                           + h @ params["whh"][1] + params["bhh"][1])
        n = jnp.tanh(y0 @ params["wih"][2] + params["bih"][2]
                     + r * (h @ params["whh"][2] + params["bhh"][2]))
        h = (1.0 - z) * n + z * h
    re = h @ params["wfc"] + params["bfc"]
    return re, wa.reshape(B, T1, 1)


def init_params(key, input_size, hidden_size, output_size):
    """Deterministic PyTorch-style (uniform +-1/sqrt(fan_in)) parameter init."""
    H, I, O = hidden_size, input_size, output_size
    ks = jax.random.split(key, 12)

    def lin(k, fan_in, fan_out):
        bound = 1.0 / (fan_in ** 0.5)
        kw, kb = jax.random.split(k)
        w = jax.random.uniform(kw, (fan_in, fan_out), jnp.float32, -bound, bound)
        b = jax.random.uniform(kb, (1, fan_out), jnp.float32, -bound, bound)
        return w, b

    p = {}
    p["w1"], p["b1"] = lin(ks[0], H, H)            # layer1: Linear(H, H)
    p["w2"], p["b2"] = lin(ks[1], I, H)            # layer2: Linear(I, H)
    w3t, p["b3"] = lin(ks[2], H, 1)                # layer3: Linear(H, 1)
    p["w3"] = w3t.T                                # (1, H)
    w4t, p["b4"] = lin(ks[3], I + 3, H)            # layer4: Linear(I+3, H)
    p["w4a"] = w4t[:I, :]                          # (I, H)
    p["w4b"] = w4t[I:, :]                          # (3, H)
    bound = 1.0 / (H ** 0.5)                       # GRU(H, H), gates stacked (r, z, n)
    p["wih"] = jax.random.uniform(ks[4], (3, H, H), jnp.float32, -bound, bound)
    p["whh"] = jax.random.uniform(ks[5], (3, H, H), jnp.float32, -bound, bound)
    p["bih"] = jax.random.uniform(ks[6], (3, 1, H), jnp.float32, -bound, bound)
    p["bhh"] = jax.random.uniform(ks[7], (3, 1, H), jnp.float32, -bound, bound)
    p["wfc"], p["bfc"] = lin(ks[8], H, O)          # fc: Linear(H, O)
    return p


if __name__ == "__main__":
    B, T1, I, H, O = 4, HISTORY_WINDOW, 16, 32, 1
    key = jax.random.PRNGKey(0)
    k_dx, k_x, k_h, k_p = jax.random.split(key, 4)

    decoder_x = jax.random.normal(k_dx, (B, T1, I), jnp.float32)
    x = jax.random.normal(k_x, (B, T1, 3), jnp.float32)
    # PyTorch draws h_0 ~ xavier_normal_ at every forward call (non-deterministic);
    # here we draw it once deterministically and feed it in as an input.
    h0 = jax.random.normal(k_h, (B, H), jnp.float32) * (2.0 / (B + H)) ** 0.5
    params = init_params(k_p, I, H, O)

    prep = prepare_params(params)      # one-time weight refold / slab packing
    re, alpha = decoder_forward(decoder_x, x, h0, prep)
    jax.block_until_ready((re, alpha))

    re_ref, alpha_ref = decoder_reference(decoder_x, x, h0, params)
    assert re.shape == (B, O) and alpha.shape == (B, T1, 1)
    # Tolerance is a bit looser than 1e-4: the in-kernel softmax uses the approximate
    # EUP reciprocal and the layer4->GRU fold re-associates f32 accumulation.
    assert jnp.allclose(re, re_ref, atol=1e-2, rtol=1e-2)
    assert jnp.allclose(alpha, alpha_ref, atol=1e-2, rtol=1e-2)
    print("KERNEL_OK")
</pallas_src>

<mosaic_0001>
module attributes {stable_mosaic.version = 11 : i64} {
  func.func @_decoder_kernel(%arg0: i32, %arg1: memref<8x8x16xf32, #tpu.memory_space<vmem>>, %arg2: memref<8x8x3xf32, #tpu.memory_space<vmem>>, %arg3: memref<8x32xf32, #tpu.memory_space<vmem>>, %arg4: memref<32x129xf32, #tpu.memory_space<vmem>>, %arg5: memref<16x224xf32, #tpu.memory_space<vmem>>, %arg6: memref<3x96xf32, #tpu.memory_space<vmem>>, %arg7: memref<1x641xf32, #tpu.memory_space<vmem>>, %arg8: memref<8x128xf32, #tpu.memory_space<vmem>>, %arg9: memref<8x8x96xf32, #tpu.memory_space<vmem>>) attributes {dimension_semantics = [#tpu.dimension_semantics<parallel>], iteration_bounds = array<i64: 1>, scalar_prefetch = 0 : i64, scratch_operands = 1 : i64, tpu.core_type = #tpu.core_type<tc>, window_params = [{transform_indices = @transform_0, window_bounds = array<i64: 8, 8, 16>}, {transform_indices = @transform_1, window_bounds = array<i64: 8, 8, 3>}, {transform_indices = @transform_2, window_bounds = array<i64: 8, 32>}, {pipeline_mode = #tpu.pipeline_mode<synchronous>, transform_indices = @transform_3, window_bounds = array<i64: 32, 129>}, {pipeline_mode = #tpu.pipeline_mode<synchronous>, transform_indices = @transform_4, window_bounds = array<i64: 16, 224>}, {pipeline_mode = #tpu.pipeline_mode<synchronous>, transform_indices = @transform_5, window_bounds = array<i64: 3, 96>}, {pipeline_mode = #tpu.pipeline_mode<synchronous>, transform_indices = @transform_6, window_bounds = array<i64: 1, 641>}, {transform_indices = @transform_7, window_bounds = array<i64: 8, 128>}]} {
    %c0 = arith.constant 0 : index
    %c0_0 = arith.constant 0 : index
    %0 = vector.load %arg4[%c0, %c0_0] : memref<32x129xf32, #tpu.memory_space<vmem>>, vector<32x128xf32>
    %c0_1 = arith.constant 0 : index
    %c128 = arith.constant 128 : index
    %1 = vector.load %arg4[%c0_1, %c128] : memref<32x129xf32, #tpu.memory_space<vmem>>, vector<32x1xf32>
    %c0_2 = arith.constant 0 : index
    %c0_3 = arith.constant 0 : index
    %2 = vector.load %arg5[%c0_2, %c0_3] : memref<16x224xf32, #tpu.memory_space<vmem>>, vector<16x32xf32>
    %c0_4 = arith.constant 0 : index
    %c128_5 = arith.constant 128 : index
    %3 = vector.load %arg5[%c0_4, %c128_5] : memref<16x224xf32, #tpu.memory_space<vmem>>, vector<16x96xf32>
    %c0_6 = arith.constant 0 : index
    %c0_7 = arith.constant 0 : index
    %4 = vector.load %arg6[%c0_6, %c0_7] : memref<3x96xf32, #tpu.memory_space<vmem>>, vector<3x96xf32>
    %c0_8 = arith.constant 0 : index
    %c0_9 = arith.constant 0 : index
    %5 = vector.load %arg7[%c0_8, %c0_9] : memref<1x641xf32, #tpu.memory_space<vmem>>, vector<1x32xf32>
    %c0_10 = arith.constant 0 : index
    %c128_11 = arith.constant 128 : index
    %6 = vector.load %arg7[%c0_10, %c128_11] : memref<1x641xf32, #tpu.memory_space<vmem>>, vector<1x32xf32>
    %7 = vector.shape_cast %6 : vector<1x32xf32> to vector<1x1x32xf32>
    %c0_12 = arith.constant 0 : index
    %c256 = arith.constant 256 : index
    %8 = vector.load %arg7[%c0_12, %c256] : memref<1x641xf32, #tpu.memory_space<vmem>>, vector<1x1xf32>
    %c0_13 = arith.constant 0 : index
    %c384 = arith.constant 384 : index
    %9 = vector.load %arg7[%c0_13, %c384] : memref<1x641xf32, #tpu.memory_space<vmem>>, vector<1x96xf32>
    %c0_14 = arith.constant 0 : index
    %c512 = arith.constant 512 : index
    %10 = vector.load %arg7[%c0_14, %c512] : memref<1x641xf32, #tpu.memory_space<vmem>>, vector<1x128xf32>
    %c0_15 = arith.constant 0 : index
    %c640 = arith.constant 640 : index
    %11 = vector.load %arg7[%c0_15, %c640] : memref<1x641xf32, #tpu.memory_space<vmem>>, vector<1x1xf32>
    %c0_16 = arith.constant 0 : index
    %c0_17 = arith.constant 0 : index
    %c0_18 = arith.constant 0 : index
    %12 = vector.load %arg1[%c0_16, %c0_17, %c0_18] : memref<8x8x16xf32, #tpu.memory_space<vmem>>, vector<8x8x16xf32>
    %13 = vector.shape_cast %12 : vector<8x8x16xf32> to vector<64x16xf32>
    %cst = arith.constant dense<0.000000e+00> : vector<64x32xf32>
    %14 = tpu.matmul %13, %2, %cst {dimension_numbers = #tpu.dot_dimension_numbers<[1], [0], [0], [1], [0, 0, 1, 1], [], []>} : vector<64x16xf32>, vector<16x32xf32>, vector<64x32xf32> -> vector<64x32xf32>
    %15 = vector.broadcast %5 : vector<1x32xf32> to vector<64x32xf32>
    %16 = arith.addf %14, %15 : vector<64x32xf32>
    %17 = vector.shape_cast %16 : vector<64x32xf32> to vector<8x8x32xf32>
    %cst_19 = arith.constant dense<0.000000e+00> : vector<64x96xf32>
    %18 = tpu.matmul %13, %3, %cst_19 {dimension_numbers = #tpu.dot_dimension_numbers<[1], [0], [0], [1], [0, 0, 1, 1], [], []>} : vector<64x16xf32>, vector<16x96xf32>, vector<64x96xf32> -> vector<64x96xf32>
    %19 = vector.shape_cast %18 : vector<64x96xf32> to vector<8x8x96xf32>
    %c0_20 = arith.constant 0 : index
    %c0_21 = arith.constant 0 : index
    %c0_22 = arith.constant 0 : index
    %20 = vector.load %arg2[%c0_20, %c0_21, %c0_22] : memref<8x8x3xf32, #tpu.memory_space<vmem>>, vector<8x8x3xf32>
    %21 = vector.shape_cast %20 : vector<8x8x3xf32> to vector<64x3xf32>
    %cst_23 = arith.constant dense<0.000000e+00> : vector<64x96xf32>
    %22 = tpu.matmul %21, %4, %cst_23 {dimension_numbers = #tpu.dot_dimension_numbers<[1], [0], [0], [1], [0, 0, 1, 1], [], []>} : vector<64x3xf32>, vector<3x96xf32>, vector<64x96xf32> -> vector<64x96xf32>
    %23 = vector.broadcast %9 : vector<1x96xf32> to vector<64x96xf32>
    %24 = arith.addf %22, %23 : vector<64x96xf32>
    %25 = vector.shape_cast %24 : vector<64x96xf32> to vector<8x8x96xf32>
    %c0_24 = arith.constant 0 : index
    %c0_25 = arith.constant 0 : index
    %c0_26 = arith.constant 0 : index
    %26 = vector.load %arg9[%c0_24, %c0_25, %c0_26] : memref<8x8x96xf32, #tpu.memory_space<vmem>>, vector<8x8x96xf32>
    tpu.vector_store %arg9[%c0_24, %c0_25, %c0_26], %25 {strides = array<i32>} : memref<8x8x96xf32, #tpu.memory_space<vmem>>, vector<8x8x96xf32>,
    %c0_27 = arith.constant 0 : index
    %c0_28 = arith.constant 0 : index
    %27 = vector.load %arg3[%c0_27, %c0_28] : memref<8x32xf32, #tpu.memory_space<vmem>>, vector<8x32xf32>
    %cst_29 = arith.constant 0.000000e+00 : f32
    %28 = vector.broadcast %cst_29 : f32 to vector<8x8xf32>
    %c0_i32 = arith.constant 0 : i32
    %cst_30 = arith.constant dense<0.000000e+00> : vector<8x128xf32>
    %29 = tpu.matmul %27, %0, %cst_30 {dimension_numbers = #tpu.dot_dimension_numbers<[1], [0], [0], [1], [0, 0, 1, 1], [], []>} : vector<8x32xf32>, vector<32x128xf32>, vector<8x128xf32> -> vector<8x128xf32>
    %30 = vector.broadcast %10 : vector<1x128xf32> to vector<8x128xf32>
    %31 = arith.addf %29, %30 : vector<8x128xf32>
    %32 = vector.extract_strided_slice %31 {offsets = [0, 96], sizes = [8, 32], strides = [1, 1]} : vector<8x128xf32> to vector<8x32xf32>
    %33 = vector.shape_cast %32 : vector<8x32xf32> to vector<8x1x32xf32>
    %34 = vector.broadcast %33 : vector<8x1x32xf32> to vector<8x8x32xf32>
    %35 = arith.addf %34, %17 : vector<8x8x32xf32>
    %36 = math.tanh %35 : vector<8x8x32xf32>
    %37 = vector.broadcast %7 : vector<1x1x32xf32> to vector<8x8x32xf32>
    %38 = arith.mulf %36, %37 : vector<8x8x32xf32>
    %cst_31 = arith.constant dense<0.000000e+00> : vector<8x8xf32>
    %39 = vector.multi_reduction <add>, %38, %cst_31 [2] : vector<8x8x32xf32> to vector<8x8xf32>
    %40 = vector.broadcast %8 : vector<1x1xf32> to vector<8x8xf32>
    %41 = arith.addf %39, %40 : vector<8x8xf32>
    %cst_32 = arith.constant dense<0xFF800000> : vector<8xf32>
    %42 = vector.multi_reduction <maximumf>, %41, %cst_32 [1] : vector<8x8xf32> to vector<8xf32>
    %43 = vector.shape_cast %42 : vector<8xf32> to vector<8x1xf32>
    %44 = vector.broadcast %43 : vector<8x1xf32> to vector<8x8xf32>
    %45 = arith.subf %41, %44 : vector<8x8xf32>
    %46 = math.exp %45 : vector<8x8xf32>
    %cst_33 = arith.constant dense<0.000000e+00> : vector<8xf32>
    %47 = vector.multi_reduction <add>, %46, %cst_33 [1] : vector<8x8xf32> to vector<8xf32>
    %48 = vector.shape_cast %47 : vector<8xf32> to vector<8x1xf32>
    %49 = tpu.reciprocal %48 {approx = true} : vector<8x1xf32> -> vector<8x1xf32>
    %50 = vector.broadcast %49 : vector<8x1xf32> to vector<8x8xf32>
    %51 = arith.mulf %46, %50 : vector<8x8xf32>
    %52 = vector.shape_cast %51 : vector<8x8xf32> to vector<8x8x1xf32>
    %53 = vector.broadcast %52 : vector<8x8x1xf32> to vector<8x8x96xf32>
    %54 = arith.mulf %19, %53 : vector<8x8x96xf32>
    %cst_34 = arith.constant dense<0.000000e+00> : vector<8x96xf32>
    %55 = vector.multi_reduction <add>, %54, %cst_34 [1] : vector<8x8x96xf32> to vector<8x96xf32>
    %56 = arith.index_cast %c0_i32 : i32 to index
    %c0_35 = arith.constant 0 : index
    %c0_36 = arith.constant 0 : index
    %57 = vector.load %arg9[%56, %c0_35, %c0_36] : memref<8x8x96xf32, #tpu.memory_space<vmem>>, vector<1x8x96xf32>
    %58 = vector.shape_cast %57 : vector<1x8x96xf32> to vector<8x96xf32>
    %59 = arith.addf %55, %58 : vector<8x96xf32>
    %60 = vector.extract_strided_slice %59 {offsets = [0, 0], sizes = [8, 64], strides = [1, 1]} : vector<8x96xf32> to vector<8x64xf32>
    %61 = vector.extract_strided_slice %31 {offsets = [0, 0], sizes = [8, 64], strides = [1, 1]} : vector<8x128xf32> to vector<8x64xf32>
    %62 = arith.addf %60, %61 : vector<8x64xf32>
    %63 = arith.negf %62 : vector<8x64xf32>
    %64 = math.exp %63 : vector<8x64xf32>
    %cst_37 = arith.constant 1.000000e+00 : f32
    %65 = vector.broadcast %cst_37 : f32 to vector<8x64xf32>
    %66 = arith.addf %65, %64 : vector<8x64xf32>
    %67 = arith.divf %65, %66 : vector<8x64xf32>
    %68 = vector.extract_strided_slice %67 {offsets = [0, 0], sizes = [8, 32], strides = [1, 1]} : vector<8x64xf32> to vector<8x32xf32>
    %69 = vector.extract_strided_slice %67 {offsets = [0, 32], sizes = [8, 32], strides = [1, 1]} : vector<8x64xf32> to vector<8x32xf32>
    %70 = vector.extract_strided_slice %59 {offsets = [0, 64], sizes = [8, 32], strides = [1, 1]} : vector<8x96xf32> to vector<8x32xf32>
    %71 = vector.extract_strided_slice %31 {offsets = [0, 64], sizes = [8, 32], strides = [1, 1]} : vector<8x128xf32> to vector<8x32xf32>
    %72 = arith.mulf %68, %71 : vector<8x32xf32>
    %73 = arith.addf %70, %72 : vector<8x32xf32>
    %74 = math.tanh %73 : vector<8x32xf32>
    %cst_38 = arith.constant 1.000000e+00 : f32
    %75 = vector.broadcast %cst_38 : f32 to vector<8x32xf32>
    %76 = arith.subf %75, %69 : vector<8x32xf32>
    %77 = arith.mulf %76, %74 : vector<8x32xf32>
    %78 = arith.mulf %69, %27 : vector<8x32xf32>
    %79 = arith.addf %77, %78 : vector<8x32xf32>
    %c1_i32 = arith.constant 1 : i32
    %cst_39 = arith.constant dense<0.000000e+00> : vector<8x128xf32>
    %80 = tpu.matmul %79, %0, %cst_39 {dimension_numbers = #tpu.dot_dimension_numbers<[1], [0], [0], [1], [0, 0, 1, 1], [], []>} : vector<8x32xf32>, vector<32x128xf32>, vector<8x128xf32> -> vector<8x128xf32>
    %81 = vector.broadcast %10 : vector<1x128xf32> to vector<8x128xf32>
    %82 = arith.addf %80, %81 : vector<8x128xf32>
    %83 = vector.extract_strided_slice %82 {offsets = [0, 96], sizes = [8, 32], strides = [1, 1]} : vector<8x128xf32> to vector<8x32xf32>
    %84 = vector.shape_cast %83 : vector<8x32xf32> to vector<8x1x32xf32>
    %85 = vector.broadcast %84 : vector<8x1x32xf32> to vector<8x8x32xf32>
    %86 = arith.addf %85, %17 : vector<8x8x32xf32>
    %87 = math.tanh %86 : vector<8x8x32xf32>
    %88 = vector.broadcast %7 : vector<1x1x32xf32> to vector<8x8x32xf32>
    %89 = arith.mulf %87, %88 : vector<8x8x32xf32>
    %cst_40 = arith.constant dense<0.000000e+00> : vector<8x8xf32>
    %90 = vector.multi_reduction <add>, %89, %cst_40 [2] : vector<8x8x32xf32> to vector<8x8xf32>
    %91 = vector.broadcast %8 : vector<1x1xf32> to vector<8x8xf32>
    %92 = arith.addf %90, %91 : vector<8x8xf32>
    %cst_41 = arith.constant dense<0xFF800000> : vector<8xf32>
    %93 = vector.multi_reduction <maximumf>, %92, %cst_41 [1] : vector<8x8xf32> to vector<8xf32>
    %94 = vector.shape_cast %93 : vector<8xf32> to vector<8x1xf32>
    %95 = vector.broadcast %94 : vector<8x1xf32> to vector<8x8xf32>
    %96 = arith.subf %92, %95 : vector<8x8xf32>
    %97 = math.exp %96 : vector<8x8xf32>
    %cst_42 = arith.constant dense<0.000000e+00> : vector<8xf32>
    %98 = vector.multi_reduction <add>, %97, %cst_42 [1] : vector<8x8xf32> to vector<8xf32>
    %99 = vector.shape_cast %98 : vector<8xf32> to vector<8x1xf32>
    %100 = tpu.reciprocal %99 {approx = true} : vector<8x1xf32> -> vector<8x1xf32>
    %101 = vector.broadcast %100 : vector<8x1xf32> to vector<8x8xf32>
    %102 = arith.mulf %97, %101 : vector<8x8xf32>
    %103 = vector.shape_cast %102 : vector<8x8xf32> to vector<8x8x1xf32>
    %104 = vector.broadcast %103 : vector<8x8x1xf32> to vector<8x8x96xf32>
    %105 = arith.mulf %19, %104 : vector<8x8x96xf32>
    %cst_43 = arith.constant dense<0.000000e+00> : vector<8x96xf32>
    %106 = vector.multi_reduction <add>, %105, %cst_43 [1] : vector<8x8x96xf32> to vector<8x96xf32>
    %107 = arith.index_cast %c1_i32 : i32 to index
    %c0_44 = arith.constant 0 : index
    %c0_45 = arith.constant 0 : index
    %108 = vector.load %arg9[%107, %c0_44, %c0_45] : memref<8x8x96xf32, #tpu.memory_space<vmem>>, vector<1x8x96xf32>
    %109 = vector.shape_cast %108 : vector<1x8x96xf32> to vector<8x96xf32>
    %110 = arith.addf %106, %109 : vector<8x96xf32>
    %111 = vector.extract_strided_slice %110 {offsets = [0, 0], sizes = [8, 64], strides = [1, 1]} : vector<8x96xf32> to vector<8x64xf32>
    %112 = vector.extract_strided_slice %82 {offsets = [0, 0], sizes = [8, 64], strides = [1, 1]} : vector<8x128xf32> to vector<8x64xf32>
    %113 = arith.addf %111, %112 : vector<8x64xf32>
    %114 = arith.negf %113 : vector<8x64xf32>
    %115 = math.exp %114 : vector<8x64xf32>
    %cst_46 = arith.constant 1.000000e+00 : f32
    %116 = vector.broadcast %cst_46 : f32 to vector<8x64xf32>
    %117 = arith.addf %116, %115 : vector<8x64xf32>
    %118 = arith.divf %116, %117 : vector<8x64xf32>
    %119 = vector.extract_strided_slice %118 {offsets = [0, 0], sizes = [8, 32], strides = [1, 1]} : vector<8x64xf32> to vector<8x32xf32>
    %120 = vector.extract_strided_slice %118 {offsets = [0, 32], sizes = [8, 32], strides = [1, 1]} : vector<8x64xf32> to vector<8x32xf32>
    %121 = vector.extract_strided_slice %110 {offsets = [0, 64], sizes = [8, 32], strides = [1, 1]} : vector<8x96xf32> to vector<8x32xf32>
    %122 = vector.extract_strided_slice %82 {offsets = [0, 64], sizes = [8, 32], strides = [1, 1]} : vector<8x128xf32> to vector<8x32xf32>
    %123 = arith.mulf %119, %122 : vector<8x32xf32>
    %124 = arith.addf %121, %123 : vector<8x32xf32>
    %125 = math.tanh %124 : vector<8x32xf32>
    %cst_47 = arith.constant 1.000000e+00 : f32
    %126 = vector.broadcast %cst_47 : f32 to vector<8x32xf32>
    %127 = arith.subf %126, %120 : vector<8x32xf32>
    %128 = arith.mulf %127, %125 : vector<8x32xf32>
    %129 = arith.mulf %120, %79 : vector<8x32xf32>
    %130 = arith.addf %128, %129 : vector<8x32xf32>
    %c2_i32 = arith.constant 2 : i32
    %cst_48 = arith.constant dense<0.000000e+00> : vector<8x128xf32>
    %131 = tpu.matmul %130, %0, %cst_48 {dimension_numbers = #tpu.dot_dimension_numbers<[1], [0], [0], [1], [0, 0, 1, 1], [], []>} : vector<8x32xf32>, vector<32x128xf32>, vector<8x128xf32> -> vector<8x128xf32>
    %132 = vector.broadcast %10 : vector<1x128xf32> to vector<8x128xf32>
    %133 = arith.addf %131, %132 : vector<8x128xf32>
    %134 = vector.extract_strided_slice %133 {offsets = [0, 96], sizes = [8, 32], strides = [1, 1]} : vector<8x128xf32> to vector<8x32xf32>
    %135 = vector.shape_cast %134 : vector<8x32xf32> to vector<8x1x32xf32>
    %136 = vector.broadcast %135 : vector<8x1x32xf32> to vector<8x8x32xf32>
    %137 = arith.addf %136, %17 : vector<8x8x32xf32>
    %138 = math.tanh %137 : vector<8x8x32xf32>
    %139 = vector.broadcast %7 : vector<1x1x32xf32> to vector<8x8x32xf32>
    %140 = arith.mulf %138, %139 : vector<8x8x32xf32>
    %cst_49 = arith.constant dense<0.000000e+00> : vector<8x8xf32>
    %141 = vector.multi_reduction <add>, %140, %cst_49 [2] : vector<8x8x32xf32> to vector<8x8xf32>
    %142 = vector.broadcast %8 : vector<1x1xf32> to vector<8x8xf32>
    %143 = arith.addf %141, %142 : vector<8x8xf32>
    %cst_50 = arith.constant dense<0xFF800000> : vector<8xf32>
    %144 = vector.multi_reduction <maximumf>, %143, %cst_50 [1] : vector<8x8xf32> to vector<8xf32>
    %145 = vector.shape_cast %144 : vector<8xf32> to vector<8x1xf32>
    %146 = vector.broadcast %145 : vector<8x1xf32> to vector<8x8xf32>
    %147 = arith.subf %143, %146 : vector<8x8xf32>
    %148 = math.exp %147 : vector<8x8xf32>
    %cst_51 = arith.constant dense<0.000000e+00> : vector<8xf32>
    %149 = vector.multi_reduction <add>, %148, %cst_51 [1] : vector<8x8xf32> to vector<8xf32>
    %150 = vector.shape_cast %149 : vector<8xf32> to vector<8x1xf32>
    %151 = tpu.reciprocal %150 {approx = true} : vector<8x1xf32> -> vector<8x1xf32>
    %152 = vector.broadcast %151 : vector<8x1xf32> to vector<8x8xf32>
    %153 = arith.mulf %148, %152 : vector<8x8xf32>
    %154 = vector.shape_cast %153 : vector<8x8xf32> to vector<8x8x1xf32>
    %155 = vector.broadcast %154 : vector<8x8x1xf32> to vector<8x8x96xf32>
    %156 = arith.mulf %19, %155 : vector<8x8x96xf32>
    %cst_52 = arith.constant dense<0.000000e+00> : vector<8x96xf32>
    %157 = vector.multi_reduction <add>, %156, %cst_52 [1] : vector<8x8x96xf32> to vector<8x96xf32>
    %158 = arith.index_cast %c2_i32 : i32 to index
    %c0_53 = arith.constant 0 : index
    %c0_54 = arith.constant 0 : index
    %159 = vector.load %arg9[%158, %c0_53, %c0_54] : memref<8x8x96xf32, #tpu.memory_space<vmem>>, vector<1x8x96xf32>
    %160 = vector.shape_cast %159 : vector<1x8x96xf32> to vector<8x96xf32>
    %161 = arith.addf %157, %160 : vector<8x96xf32>
    %162 = vector.extract_strided_slice %161 {offsets = [0, 0], sizes = [8, 64], strides = [1, 1]} : vector<8x96xf32> to vector<8x64xf32>
    %163 = vector.extract_strided_slice %133 {offsets = [0, 0], sizes = [8, 64], strides = [1, 1]} : vector<8x128xf32> to vector<8x64xf32>
    %164 = arith.addf %162, %163 : vector<8x64xf32>
    %165 = arith.negf %164 : vector<8x64xf32>
    %166 = math.exp %165 : vector<8x64xf32>
    %cst_55 = arith.constant 1.000000e+00 : f32
    %167 = vector.broadcast %cst_55 : f32 to vector<8x64xf32>
    %168 = arith.addf %167, %166 : vector<8x64xf32>
    %169 = arith.divf %167, %168 : vector<8x64xf32>
    %170 = vector.extract_strided_slice %169 {offsets = [0, 0], sizes = [8, 32], strides = [1, 1]} : vector<8x64xf32> to vector<8x32xf32>
    %171 = vector.extract_strided_slice %169 {offsets = [0, 32], sizes = [8, 32], strides = [1, 1]} : vector<8x64xf32> to vector<8x32xf32>
    %172 = vector.extract_strided_slice %161 {offsets = [0, 64], sizes = [8, 32], strides = [1, 1]} : vector<8x96xf32> to vector<8x32xf32>
    %173 = vector.extract_strided_slice %133 {offsets = [0, 64], sizes = [8, 32], strides = [1, 1]} : vector<8x128xf32> to vector<8x32xf32>
    %174 = arith.mulf %170, %173 : vector<8x32xf32>
    %175 = arith.addf %172, %174 : vector<8x32xf32>
    %176 = math.tanh %175 : vector<8x32xf32>
    %cst_56 = arith.constant 1.000000e+00 : f32
    %177 = vector.broadcast %cst_56 : f32 to vector<8x32xf32>
    %178 = arith.subf %177, %171 : vector<8x32xf32>
    %179 = arith.mulf %178, %176 : vector<8x32xf32>
    %180 = arith.mulf %171, %130 : vector<8x32xf32>
    %181 = arith.addf %179, %180 : vector<8x32xf32>
    %c3_i32 = arith.constant 3 : i32
    %cst_57 = arith.constant dense<0.000000e+00> : vector<8x128xf32>
    %182 = tpu.matmul %181, %0, %cst_57 {dimension_numbers = #tpu.dot_dimension_numbers<[1], [0], [0], [1], [0, 0, 1, 1], [], []>} : vector<8x32xf32>, vector<32x128xf32>, vector<8x128xf32> -> vector<8x128xf32>
    %183 = vector.broadcast %10 : vector<1x128xf32> to vector<8x128xf32>
    %184 = arith.addf %182, %183 : vector<8x128xf32>
    %185 = vector.extract_strided_slice %184 {offsets = [0, 96], sizes = [8, 32], strides = [1, 1]} : vector<8x128xf32> to vector<8x32xf32>
    %186 = vector.shape_cast %185 : vector<8x32xf32> to vector<8x1x32xf32>
    %187 = vector.broadcast %186 : vector<8x1x32xf32> to vector<8x8x32xf32>
    %188 = arith.addf %187, %17 : vector<8x8x32xf32>
    %189 = math.tanh %188 : vector<8x8x32xf32>
    %190 = vector.broadcast %7 : vector<1x1x32xf32> to vector<8x8x32xf32>
    %191 = arith.mulf %189, %190 : vector<8x8x32xf32>
    %cst_58 = arith.constant dense<0.000000e+00> : vector<8x8xf32>
    %192 = vector.multi_reduction <add>, %191, %cst_58 [2] : vector<8x8x32xf32> to vector<8x8xf32>
    %193 = vector.broadcast %8 : vector<1x1xf32> to vector<8x8xf32>
    %194 = arith.addf %192, %193 : vector<8x8xf32>
    %cst_59 = arith.constant dense<0xFF800000> : vector<8xf32>
    %195 = vector.multi_reduction <maximumf>, %194, %cst_59 [1] : vector<8x8xf32> to vector<8xf32>
    %196 = vector.shape_cast %195 : vector<8xf32> to vector<8x1xf32>
    %197 = vector.broadcast %196 : vector<8x1xf32> to vector<8x8xf32>
    %198 = arith.subf %194, %197 : vector<8x8xf32>
    %199 = math.exp %198 : vector<8x8xf32>
    %cst_60 = arith.constant dense<0.000000e+00> : vector<8xf32>
    %200 = vector.multi_reduction <add>, %199, %cst_60 [1] : vector<8x8xf32> to vector<8xf32>
    %201 = vector.shape_cast %200 : vector<8xf32> to vector<8x1xf32>
    %202 = tpu.reciprocal %201 {approx = true} : vector<8x1xf32> -> vector<8x1xf32>
    %203 = vector.broadcast %202 : vector<8x1xf32> to vector<8x8xf32>
    %204 = arith.mulf %199, %203 : vector<8x8xf32>
    %205 = vector.shape_cast %204 : vector<8x8xf32> to vector<8x8x1xf32>
    %206 = vector.broadcast %205 : vector<8x8x1xf32> to vector<8x8x96xf32>
    %207 = arith.mulf %19, %206 : vector<8x8x96xf32>
    %cst_61 = arith.constant dense<0.000000e+00> : vector<8x96xf32>
    %208 = vector.multi_reduction <add>, %207, %cst_61 [1] : vector<8x8x96xf32> to vector<8x96xf32>
    %209 = arith.index_cast %c3_i32 : i32 to index
    %c0_62 = arith.constant 0 : index
    %c0_63 = arith.constant 0 : index
    %210 = vector.load %arg9[%209, %c0_62, %c0_63] : memref<8x8x96xf32, #tpu.memory_space<vmem>>, vector<1x8x96xf32>
    %211 = vector.shape_cast %210 : vector<1x8x96xf32> to vector<8x96xf32>
    %212 = arith.addf %208, %211 : vector<8x96xf32>
    %213 = vector.extract_strided_slice %212 {offsets = [0, 0], sizes = [8, 64], strides = [1, 1]} : vector<8x96xf32> to vector<8x64xf32>
    %214 = vector.extract_strided_slice %184 {offsets = [0, 0], sizes = [8, 64], strides = [1, 1]} : vector<8x128xf32> to vector<8x64xf32>
    %215 = arith.addf %213, %214 : vector<8x64xf32>
    %216 = arith.negf %215 : vector<8x64xf32>
    %217 = math.exp %216 : vector<8x64xf32>
    %cst_64 = arith.constant 1.000000e+00 : f32
    %218 = vector.broadcast %cst_64 : f32 to vector<8x64xf32>
    %219 = arith.addf %218, %217 : vector<8x64xf32>
    %220 = arith.divf %218, %219 : vector<8x64xf32>
    %221 = vector.extract_strided_slice %220 {offsets = [0, 0], sizes = [8, 32], strides = [1, 1]} : vector<8x64xf32> to vector<8x32xf32>
    %222 = vector.extract_strided_slice %220 {offsets = [0, 32], sizes = [8, 32], strides = [1, 1]} : vector<8x64xf32> to vector<8x32xf32>
    %223 = vector.extract_strided_slice %212 {offsets = [0, 64], sizes = [8, 32], strides = [1, 1]} : vector<8x96xf32> to vector<8x32xf32>
    %224 = vector.extract_strided_slice %184 {offsets = [0, 64], sizes = [8, 32], strides = [1, 1]} : vector<8x128xf32> to vector<8x32xf32>
    %225 = arith.mulf %221, %224 : vector<8x32xf32>
    %226 = arith.addf %223, %225 : vector<8x32xf32>
    %227 = math.tanh %226 : vector<8x32xf32>
    %cst_65 = arith.constant 1.000000e+00 : f32
    %228 = vector.broadcast %cst_65 : f32 to vector<8x32xf32>
    %229 = arith.subf %228, %222 : vector<8x32xf32>
    %230 = arith.mulf %229, %227 : vector<8x32xf32>
    %231 = arith.mulf %222, %181 : vector<8x32xf32>
    %232 = arith.addf %230, %231 : vector<8x32xf32>
    %c4_i32 = arith.constant 4 : i32
    %cst_66 = arith.constant dense<0.000000e+00> : vector<8x128xf32>
    %233 = tpu.matmul %232, %0, %cst_66 {dimension_numbers = #tpu.dot_dimension_numbers<[1], [0], [0], [1], [0, 0, 1, 1], [], []>} : vector<8x32xf32>, vector<32x128xf32>, vector<8x128xf32> -> vector<8x128xf32>
    %234 = vector.broadcast %10 : vector<1x128xf32> to vector<8x128xf32>
    %235 = arith.addf %233, %234 : vector<8x128xf32>
    %236 = vector.extract_strided_slice %235 {offsets = [0, 96], sizes = [8, 32], strides = [1, 1]} : vector<8x128xf32> to vector<8x32xf32>
    %237 = vector.shape_cast %236 : vector<8x32xf32> to vector<8x1x32xf32>
    %238 = vector.broadcast %237 : vector<8x1x32xf32> to vector<8x8x32xf32>
    %239 = arith.addf %238, %17 : vector<8x8x32xf32>
    %240 = math.tanh %239 : vector<8x8x32xf32>
    %241 = vector.broadcast %7 : vector<1x1x32xf32> to vector<8x8x32xf32>
    %242 = arith.mulf %240, %241 : vector<8x8x32xf32>
    %cst_67 = arith.constant dense<0.000000e+00> : vector<8x8xf32>
    %243 = vector.multi_reduction <add>, %242, %cst_67 [2] : vector<8x8x32xf32> to vector<8x8xf32>
    %244 = vector.broadcast %8 : vector<1x1xf32> to vector<8x8xf32>
    %245 = arith.addf %243, %244 : vector<8x8xf32>
    %cst_68 = arith.constant dense<0xFF800000> : vector<8xf32>
    %246 = vector.multi_reduction <maximumf>, %245, %cst_68 [1] : vector<8x8xf32> to vector<8xf32>
    %247 = vector.shape_cast %246 : vector<8xf32> to vector<8x1xf32>
    %248 = vector.broadcast %247 : vector<8x1xf32> to vector<8x8xf32>
    %249 = arith.subf %245, %248 : vector<8x8xf32>
    %250 = math.exp %249 : vector<8x8xf32>
    %cst_69 = arith.constant dense<0.000000e+00> : vector<8xf32>
    %251 = vector.multi_reduction <add>, %250, %cst_69 [1] : vector<8x8xf32> to vector<8xf32>
    %252 = vector.shape_cast %251 : vector<8xf32> to vector<8x1xf32>
    %253 = tpu.reciprocal %252 {approx = true} : vector<8x1xf32> -> vector<8x1xf32>
    %254 = vector.broadcast %253 : vector<8x1xf32> to vector<8x8xf32>
    %255 = arith.mulf %250, %254 : vector<8x8xf32>
    %256 = vector.shape_cast %255 : vector<8x8xf32> to vector<8x8x1xf32>
    %257 = vector.broadcast %256 : vector<8x8x1xf32> to vector<8x8x96xf32>
    %258 = arith.mulf %19, %257 : vector<8x8x96xf32>
    %cst_70 = arith.constant dense<0.000000e+00> : vector<8x96xf32>
    %259 = vector.multi_reduction <add>, %258, %cst_70 [1] : vector<8x8x96xf32> to vector<8x96xf32>
    %260 = arith.index_cast %c4_i32 : i32 to index
    %c0_71 = arith.constant 0 : index
    %c0_72 = arith.constant 0 : index
    %261 = vector.load %arg9[%260, %c0_71, %c0_72] : memref<8x8x96xf32, #tpu.memory_space<vmem>>, vector<1x8x96xf32>
    %262 = vector.shape_cast %261 : vector<1x8x96xf32> to vector<8x96xf32>
    %263 = arith.addf %259, %262 : vector<8x96xf32>
    %264 = vector.extract_strided_slice %263 {offsets = [0, 0], sizes = [8, 64], strides = [1, 1]} : vector<8x96xf32> to vector<8x64xf32>
    %265 = vector.extract_strided_slice %235 {offsets = [0, 0], sizes = [8, 64], strides = [1, 1]} : vector<8x128xf32> to vector<8x64xf32>
    %266 = arith.addf %264, %265 : vector<8x64xf32>
    %267 = arith.negf %266 : vector<8x64xf32>
    %268 = math.exp %267 : vector<8x64xf32>
    %cst_73 = arith.constant 1.000000e+00 : f32
    %269 = vector.broadcast %cst_73 : f32 to vector<8x64xf32>
    %270 = arith.addf %269, %268 : vector<8x64xf32>
    %271 = arith.divf %269, %270 : vector<8x64xf32>
    %272 = vector.extract_strided_slice %271 {offsets = [0, 0], sizes = [8, 32], strides = [1, 1]} : vector<8x64xf32> to vector<8x32xf32>
    %273 = vector.extract_strided_slice %271 {offsets = [0, 32], sizes = [8, 32], strides = [1, 1]} : vector<8x64xf32> to vector<8x32xf32>
    %274 = vector.extract_strided_slice %263 {offsets = [0, 64], sizes = [8, 32], strides = [1, 1]} : vector<8x96xf32> to vector<8x32xf32>
    %275 = vector.extract_strided_slice %235 {offsets = [0, 64], sizes = [8, 32], strides = [1, 1]} : vector<8x128xf32> to vector<8x32xf32>
    %276 = arith.mulf %272, %275 : vector<8x32xf32>
    %277 = arith.addf %274, %276 : vector<8x32xf32>
    %278 = math.tanh %277 : vector<8x32xf32>
    %cst_74 = arith.constant 1.000000e+00 : f32
    %279 = vector.broadcast %cst_74 : f32 to vector<8x32xf32>
    %280 = arith.subf %279, %273 : vector<8x32xf32>
    %281 = arith.mulf %280, %278 : vector<8x32xf32>
    %282 = arith.mulf %273, %232 : vector<8x32xf32>
    %283 = arith.addf %281, %282 : vector<8x32xf32>
    %c5_i32 = arith.constant 5 : i32
    %cst_75 = arith.constant dense<0.000000e+00> : vector<8x128xf32>
    %284 = tpu.matmul %283, %0, %cst_75 {dimension_numbers = #tpu.dot_dimension_numbers<[1], [0], [0], [1], [0, 0, 1, 1], [], []>} : vector<8x32xf32>, vector<32x128xf32>, vector<8x128xf32> -> vector<8x128xf32>
    %285 = vector.broadcast %10 : vector<1x128xf32> to vector<8x128xf32>
    %286 = arith.addf %284, %285 : vector<8x128xf32>
    %287 = vector.extract_strided_slice %286 {offsets = [0, 96], sizes = [8, 32], strides = [1, 1]} : vector<8x128xf32> to vector<8x32xf32>
    %288 = vector.shape_cast %287 : vector<8x32xf32> to vector<8x1x32xf32>
    %289 = vector.broadcast %288 : vector<8x1x32xf32> to vector<8x8x32xf32>
    %290 = arith.addf %289, %17 : vector<8x8x32xf32>
    %291 = math.tanh %290 : vector<8x8x32xf32>
    %292 = vector.broadcast %7 : vector<1x1x32xf32> to vector<8x8x32xf32>
    %293 = arith.mulf %291, %292 : vector<8x8x32xf32>
    %cst_76 = arith.constant dense<0.000000e+00> : vector<8x8xf32>
    %294 = vector.multi_reduction <add>, %293, %cst_76 [2] : vector<8x8x32xf32> to vector<8x8xf32>
    %295 = vector.broadcast %8 : vector<1x1xf32> to vector<8x8xf32>
    %296 = arith.addf %294, %295 : vector<8x8xf32>
    %cst_77 = arith.constant dense<0xFF800000> : vector<8xf32>
    %297 = vector.multi_reduction <maximumf>, %296, %cst_77 [1] : vector<8x8xf32> to vector<8xf32>
    %298 = vector.shape_cast %297 : vector<8xf32> to vector<8x1xf32>
    %299 = vector.broadcast %298 : vector<8x1xf32> to vector<8x8xf32>
    %300 = arith.subf %296, %299 : vector<8x8xf32>
    %301 = math.exp %300 : vector<8x8xf32>
    %cst_78 = arith.constant dense<0.000000e+00> : vector<8xf32>
    %302 = vector.multi_reduction <add>, %301, %cst_78 [1] : vector<8x8xf32> to vector<8xf32>
    %303 = vector.shape_cast %302 : vector<8xf32> to vector<8x1xf32>
    %304 = tpu.reciprocal %303 {approx = true} : vector<8x1xf32> -> vector<8x1xf32>
    %305 = vector.broadcast %304 : vector<8x1xf32> to vector<8x8xf32>
    %306 = arith.mulf %301, %305 : vector<8x8xf32>
    %307 = vector.shape_cast %306 : vector<8x8xf32> to vector<8x8x1xf32>
    %308 = vector.broadcast %307 : vector<8x8x1xf32> to vector<8x8x96xf32>
    %309 = arith.mulf %19, %308 : vector<8x8x96xf32>
    %cst_79 = arith.constant dense<0.000000e+00> : vector<8x96xf32>
    %310 = vector.multi_reduction <add>, %309, %cst_79 [1] : vector<8x8x96xf32> to vector<8x96xf32>
    %311 = arith.index_cast %c5_i32 : i32 to index
    %c0_80 = arith.constant 0 : index
    %c0_81 = arith.constant 0 : index
    %312 = vector.load %arg9[%311, %c0_80, %c0_81] : memref<8x8x96xf32, #tpu.memory_space<vmem>>, vector<1x8x96xf32>
    %313 = vector.shape_cast %312 : vector<1x8x96xf32> to vector<8x96xf32>
    %314 = arith.addf %310, %313 : vector<8x96xf32>
    %315 = vector.extract_strided_slice %314 {offsets = [0, 0], sizes = [8, 64], strides = [1, 1]} : vector<8x96xf32> to vector<8x64xf32>
    %316 = vector.extract_strided_slice %286 {offsets = [0, 0], sizes = [8, 64], strides = [1, 1]} : vector<8x128xf32> to vector<8x64xf32>
    %317 = arith.addf %315, %316 : vector<8x64xf32>
    %318 = arith.negf %317 : vector<8x64xf32>
    %319 = math.exp %318 : vector<8x64xf32>
    %cst_82 = arith.constant 1.000000e+00 : f32
    %320 = vector.broadcast %cst_82 : f32 to vector<8x64xf32>
    %321 = arith.addf %320, %319 : vector<8x64xf32>
    %322 = arith.divf %320, %321 : vector<8x64xf32>
    %323 = vector.extract_strided_slice %322 {offsets = [0, 0], sizes = [8, 32], strides = [1, 1]} : vector<8x64xf32> to vector<8x32xf32>
    %324 = vector.extract_strided_slice %322 {offsets = [0, 32], sizes = [8, 32], strides = [1, 1]} : vector<8x64xf32> to vector<8x32xf32>
    %325 = vector.extract_strided_slice %314 {offsets = [0, 64], sizes = [8, 32], strides = [1, 1]} : vector<8x96xf32> to vector<8x32xf32>
    %326 = vector.extract_strided_slice %286 {offsets = [0, 64], sizes = [8, 32], strides = [1, 1]} : vector<8x128xf32> to vector<8x32xf32>
    %327 = arith.mulf %323, %326 : vector<8x32xf32>
    %328 = arith.addf %325, %327 : vector<8x32xf32>
    %329 = math.tanh %328 : vector<8x32xf32>
    %cst_83 = arith.constant 1.000000e+00 : f32
    %330 = vector.broadcast %cst_83 : f32 to vector<8x32xf32>
    %331 = arith.subf %330, %324 : vector<8x32xf32>
    %332 = arith.mulf %331, %329 : vector<8x32xf32>
    %333 = arith.mulf %324, %283 : vector<8x32xf32>
    %334 = arith.addf %332, %333 : vector<8x32xf32>
    %c6_i32 = arith.constant 6 : i32
    %cst_84 = arith.constant dense<0.000000e+00> : vector<8x128xf32>
    %335 = tpu.matmul %334, %0, %cst_84 {dimension_numbers = #tpu.dot_dimension_numbers<[1], [0], [0], [1], [0, 0, 1, 1], [], []>} : vector<8x32xf32>, vector<32x128xf32>, vector<8x128xf32> -> vector<8x128xf32>
    %336 = vector.broadcast %10 : vector<1x128xf32> to vector<8x128xf32>
    %337 = arith.addf %335, %336 : vector<8x128xf32>
    %338 = vector.extract_strided_slice %337 {offsets = [0, 96], sizes = [8, 32], strides = [1, 1]} : vector<8x128xf32> to vector<8x32xf32>
    %339 = vector.shape_cast %338 : vector<8x32xf32> to vector<8x1x32xf32>
    %340 = vector.broadcast %339 : vector<8x1x32xf32> to vector<8x8x32xf32>
    %341 = arith.addf %340, %17 : vector<8x8x32xf32>
    %342 = math.tanh %341 : vector<8x8x32xf32>
    %343 = vector.broadcast %7 : vector<1x1x32xf32> to vector<8x8x32xf32>
    %344 = arith.mulf %342, %343 : vector<8x8x32xf32>
    %cst_85 = arith.constant dense<0.000000e+00> : vector<8x8xf32>
    %345 = vector.multi_reduction <add>, %344, %cst_85 [2] : vector<8x8x32xf32> to vector<8x8xf32>
    %346 = vector.broadcast %8 : vector<1x1xf32> to vector<8x8xf32>
    %347 = arith.addf %345, %346 : vector<8x8xf32>
    %cst_86 = arith.constant dense<0xFF800000> : vector<8xf32>
    %348 = vector.multi_reduction <maximumf>, %347, %cst_86 [1] : vector<8x8xf32> to vector<8xf32>
    %349 = vector.shape_cast %348 : vector<8xf32> to vector<8x1xf32>
    %350 = vector.broadcast %349 : vector<8x1xf32> to vector<8x8xf32>
    %351 = arith.subf %347, %350 : vector<8x8xf32>
    %352 = math.exp %351 : vector<8x8xf32>
    %cst_87 = arith.constant dense<0.000000e+00> : vector<8xf32>
    %353 = vector.multi_reduction <add>, %352, %cst_87 [1] : vector<8x8xf32> to vector<8xf32>
    %354 = vector.shape_cast %353 : vector<8xf32> to vector<8x1xf32>
    %355 = tpu.reciprocal %354 {approx = true} : vector<8x1xf32> -> vector<8x1xf32>
    %356 = vector.broadcast %355 : vector<8x1xf32> to vector<8x8xf32>
    %357 = arith.mulf %352, %356 : vector<8x8xf32>
    %358 = vector.shape_cast %357 : vector<8x8xf32> to vector<8x8x1xf32>
    %359 = vector.broadcast %358 : vector<8x8x1xf32> to vector<8x8x96xf32>
    %360 = arith.mulf %19, %359 : vector<8x8x96xf32>
    %cst_88 = arith.constant dense<0.000000e+00> : vector<8x96xf32>
    %361 = vector.multi_reduction <add>, %360, %cst_88 [1] : vector<8x8x96xf32> to vector<8x96xf32>
    %362 = arith.index_cast %c6_i32 : i32 to index
    %c0_89 = arith.constant 0 : index
    %c0_90 = arith.constant 0 : index
    %363 = vector.load %arg9[%362, %c0_89, %c0_90] : memref<8x8x96xf32, #tpu.memory_space<vmem>>, vector<1x8x96xf32>
    %364 = vector.shape_cast %363 : vector<1x8x96xf32> to vector<8x96xf32>
    %365 = arith.addf %361, %364 : vector<8x96xf32>
    %366 = vector.extract_strided_slice %365 {offsets = [0, 0], sizes = [8, 64], strides = [1, 1]} : vector<8x96xf32> to vector<8x64xf32>
    %367 = vector.extract_strided_slice %337 {offsets = [0, 0], sizes = [8, 64], strides = [1, 1]} : vector<8x128xf32> to vector<8x64xf32>
    %368 = arith.addf %366, %367 : vector<8x64xf32>
    %369 = arith.negf %368 : vector<8x64xf32>
    %370 = math.exp %369 : vector<8x64xf32>
    %cst_91 = arith.constant 1.000000e+00 : f32
    %371 = vector.broadcast %cst_91 : f32 to vector<8x64xf32>
    %372 = arith.addf %371, %370 : vector<8x64xf32>
    %373 = arith.divf %371, %372 : vector<8x64xf32>
    %374 = vector.extract_strided_slice %373 {offsets = [0, 0], sizes = [8, 32], strides = [1, 1]} : vector<8x64xf32> to vector<8x32xf32>
    %375 = vector.extract_strided_slice %373 {offsets = [0, 32], sizes = [8, 32], strides = [1, 1]} : vector<8x64xf32> to vector<8x32xf32>
    %376 = vector.extract_strided_slice %365 {offsets = [0, 64], sizes = [8, 32], strides = [1, 1]} : vector<8x96xf32> to vector<8x32xf32>
    %377 = vector.extract_strided_slice %337 {offsets = [0, 64], sizes = [8, 32], strides = [1, 1]} : vector<8x128xf32> to vector<8x32xf32>
    %378 = arith.mulf %374, %377 : vector<8x32xf32>
    %379 = arith.addf %376, %378 : vector<8x32xf32>
    %380 = math.tanh %379 : vector<8x32xf32>
    %cst_92 = arith.constant 1.000000e+00 : f32
    %381 = vector.broadcast %cst_92 : f32 to vector<8x32xf32>
    %382 = arith.subf %381, %375 : vector<8x32xf32>
    %383 = arith.mulf %382, %380 : vector<8x32xf32>
    %384 = arith.mulf %375, %334 : vector<8x32xf32>
    %385 = arith.addf %383, %384 : vector<8x32xf32>
    %c7_i32 = arith.constant 7 : i32
    %cst_93 = arith.constant dense<0.000000e+00> : vector<8x128xf32>
    %386 = tpu.matmul %385, %0, %cst_93 {dimension_numbers = #tpu.dot_dimension_numbers<[1], [0], [0], [1], [0, 0, 1, 1], [], []>} : vector<8x32xf32>, vector<32x128xf32>, vector<8x128xf32> -> vector<8x128xf32>
    %387 = vector.broadcast %10 : vector<1x128xf32> to vector<8x128xf32>
    %388 = arith.addf %386, %387 : vector<8x128xf32>
    %389 = vector.extract_strided_slice %388 {offsets = [0, 96], sizes = [8, 32], strides = [1, 1]} : vector<8x128xf32> to vector<8x32xf32>
    %390 = vector.shape_cast %389 : vector<8x32xf32> to vector<8x1x32xf32>
    %391 = vector.broadcast %390 : vector<8x1x32xf32> to vector<8x8x32xf32>
    %392 = arith.addf %391, %17 : vector<8x8x32xf32>
    %393 = math.tanh %392 : vector<8x8x32xf32>
    %394 = vector.broadcast %7 : vector<1x1x32xf32> to vector<8x8x32xf32>
    %395 = arith.mulf %393, %394 : vector<8x8x32xf32>
    %cst_94 = arith.constant dense<0.000000e+00> : vector<8x8xf32>
    %396 = vector.multi_reduction <add>, %395, %cst_94 [2] : vector<8x8x32xf32> to vector<8x8xf32>
    %397 = vector.broadcast %8 : vector<1x1xf32> to vector<8x8xf32>
    %398 = arith.addf %396, %397 : vector<8x8xf32>
    %cst_95 = arith.constant dense<0xFF800000> : vector<8xf32>
    %399 = vector.multi_reduction <maximumf>, %398, %cst_95 [1] : vector<8x8xf32> to vector<8xf32>
    %400 = vector.shape_cast %399 : vector<8xf32> to vector<8x1xf32>
    %401 = vector.broadcast %400 : vector<8x1xf32> to vector<8x8xf32>
    %402 = arith.subf %398, %401 : vector<8x8xf32>
    %403 = math.exp %402 : vector<8x8xf32>
    %cst_96 = arith.constant dense<0.000000e+00> : vector<8xf32>
    %404 = vector.multi_reduction <add>, %403, %cst_96 [1] : vector<8x8xf32> to vector<8xf32>
    %405 = vector.shape_cast %404 : vector<8xf32> to vector<8x1xf32>
    %406 = tpu.reciprocal %405 {approx = true} : vector<8x1xf32> -> vector<8x1xf32>
    %407 = vector.broadcast %406 : vector<8x1xf32> to vector<8x8xf32>
    %408 = arith.mulf %403, %407 : vector<8x8xf32>
    %409 = vector.shape_cast %408 : vector<8x8xf32> to vector<8x8x1xf32>
    %410 = vector.broadcast %409 : vector<8x8x1xf32> to vector<8x8x96xf32>
    %411 = arith.mulf %19, %410 : vector<8x8x96xf32>
    %cst_97 = arith.constant dense<0.000000e+00> : vector<8x96xf32>
    %412 = vector.multi_reduction <add>, %411, %cst_97 [1] : vector<8x8x96xf32> to vector<8x96xf32>
    %413 = arith.index_cast %c7_i32 : i32 to index
    %c0_98 = arith.constant 0 : index
    %c0_99 = arith.constant 0 : index
    %414 = vector.load %arg9[%413, %c0_98, %c0_99] : memref<8x8x96xf32, #tpu.memory_space<vmem>>, vector<1x8x96xf32>
    %415 = vector.shape_cast %414 : vector<1x8x96xf32> to vector<8x96xf32>
    %416 = arith.addf %412, %415 : vector<8x96xf32>
    %417 = vector.extract_strided_slice %416 {offsets = [0, 0], sizes = [8, 64], strides = [1, 1]} : vector<8x96xf32> to vector<8x64xf32>
    %418 = vector.extract_strided_slice %388 {offsets = [0, 0], sizes = [8, 64], strides = [1, 1]} : vector<8x128xf32> to vector<8x64xf32>
    %419 = arith.addf %417, %418 : vector<8x64xf32>
    %420 = arith.negf %419 : vector<8x64xf32>
    %421 = math.exp %420 : vector<8x64xf32>
    %cst_100 = arith.constant 1.000000e+00 : f32
    %422 = vector.broadcast %cst_100 : f32 to vector<8x64xf32>
    %423 = arith.addf %422, %421 : vector<8x64xf32>
    %424 = arith.divf %422, %423 : vector<8x64xf32>
    %425 = vector.extract_strided_slice %424 {offsets = [0, 0], sizes = [8, 32], strides = [1, 1]} : vector<8x64xf32> to vector<8x32xf32>
    %426 = vector.extract_strided_slice %424 {offsets = [0, 32], sizes = [8, 32], strides = [1, 1]} : vector<8x64xf32> to vector<8x32xf32>
    %427 = vector.extract_strided_slice %416 {offsets = [0, 64], sizes = [8, 32], strides = [1, 1]} : vector<8x96xf32> to vector<8x32xf32>
    %428 = vector.extract_strided_slice %388 {offsets = [0, 64], sizes = [8, 32], strides = [1, 1]} : vector<8x128xf32> to vector<8x32xf32>
    %429 = arith.mulf %425, %428 : vector<8x32xf32>
    %430 = arith.addf %427, %429 : vector<8x32xf32>
    %431 = math.tanh %430 : vector<8x32xf32>
    %cst_101 = arith.constant 1.000000e+00 : f32
    %432 = vector.broadcast %cst_101 : f32 to vector<8x32xf32>
    %433 = arith.subf %432, %426 : vector<8x32xf32>
    %434 = arith.mulf %433, %431 : vector<8x32xf32>
    %435 = arith.mulf %426, %385 : vector<8x32xf32>
    %436 = arith.addf %434, %435 : vector<8x32xf32>
    %c8_i32 = arith.constant 8 : i32
    %cst_102 = arith.constant dense<0.000000e+00> : vector<8x1xf32>
    %437 = tpu.matmul %436, %1, %cst_102 {dimension_numbers = #tpu.dot_dimension_numbers<[1], [0], [0], [1], [0, 0, 1, 1], [], []>} : vector<8x32xf32>, vector<32x1xf32>, vector<8x1xf32> -> vector<8x1xf32>
    %438 = vector.broadcast %11 : vector<1x1xf32> to vector<8x1xf32>
    %439 = arith.addf %437, %438 : vector<8x1xf32>
    %cst_103 = arith.constant 0.000000e+00 : f32
    %440 = vector.broadcast %cst_103 : f32 to vector<8x119xf32>
    %441 = tpu.concatenate %439, %408, %440 in 1 : vector<8x1xf32>, vector<8x8xf32>, vector<8x119xf32> -> vector<8x128xf32>
    %c0_104 = arith.constant 0 : index
    %c0_105 = arith.constant 0 : index
    %442 = vector.load %arg8[%c0_104, %c0_105] : memref<8x128xf32, #tpu.memory_space<vmem>>, vector<8x128xf32>
    tpu.vector_store %arg8[%c0_104, %c0_105], %441 {strides = array<i32>} : memref<8x128xf32, #tpu.memory_space<vmem>>, vector<8x128xf32>,
    return
  }
  func.func @transform_0(%arg0: i32) -> (i32, i32, i32) {
    %c0_i32 = arith.constant 0 : i32
    %c0_i32_0 = arith.constant 0 : i32
    %c0_i32_1 = arith.constant 0 : i32
    return %arg0, %c0_i32, %c0_i32_0 : i32, i32, i32
  }
  func.func @transform_1(%arg0: i32) -> (i32, i32, i32) {
    %c0_i32 = arith.constant 0 : i32
    %c0_i32_0 = arith.constant 0 : i32
    %c0_i32_1 = arith.constant 0 : i32
    return %c0_i32, %arg0, %c0_i32_0 : i32, i32, i32
  }
  func.func @transform_2(%arg0: i32) -> (i32, i32) {
    %c0_i32 = arith.constant 0 : i32
    %c0_i32_0 = arith.constant 0 : i32
    return %arg0, %c0_i32 : i32, i32
  }
  func.func @transform_3(%arg0: i32) -> (i32, i32) {
    %c0_i32 = arith.constant 0 : i32
    %c0_i32_0 = arith.constant 0 : i32
    %c0_i32_1 = arith.constant 0 : i32
    return %c0_i32, %c0_i32_0 : i32, i32
  }
  func.func @transform_4(%arg0: i32) -> (i32, i32) {
    %c0_i32 = arith.constant 0 : i32
    %c0_i32_0 = arith.constant 0 : i32
    %c0_i32_1 = arith.constant 0 : i32
    return %c0_i32, %c0_i32_0 : i32, i32
  }
  func.func @transform_5(%arg0: i32) -> (i32, i32) {
    %c0_i32 = arith.constant 0 : i32
    %c0_i32_0 = arith.constant 0 : i32
    %c0_i32_1 = arith.constant 0 : i32
    return %c0_i32, %c0_i32_0 : i32, i32
  }
  func.func @transform_6(%arg0: i32) -> (i32, i32) {
    %c0_i32 = arith.constant 0 : i32
    %c0_i32_0 = arith.constant 0 : i32
    %c0_i32_1 = arith.constant 0 : i32
    return %c0_i32, %c0_i32_0 : i32, i32
  }
  func.func @transform_7(%arg0: i32) -> (i32, i32) {
    %c0_i32 = arith.constant 0 : i32
    %c0_i32_0 = arith.constant 0 : i32
    return %arg0, %c0_i32 : i32, i32
  }
}

</mosaic_0001>

<llo_original>
// kernel: decoder_forward.1
$region0: #{decoder_forward.1}
  #allocation0 [shape = 'u32[]', space=smem, size = 0x4, offset = 0x4, fixed_abs, tag = 'smem constant byte address 0x4 - core index']
  #allocation1 [shape = 'u32[144,128]{1,0:T(1,128)}', space=vmem, size = 0x12000, scoped, tag = 'internal scratch']
  #allocation2 [shape = 'f32[8,8,96]{2,1,0:T(8,128)}', space=vmem, size = 0x8000, scoped, tag = 'scratch operand']
  %s0 = inlined_call_operand.vmem [shape: f32[8,8,16], index: 0, kind: input, shape index: {}]
  %s1 = inlined_call_operand.vmem [shape: f32[8,8,3], index: 1, kind: input, shape index: {}]
  %s2 = inlined_call_operand.vmem [shape: f32[8,32], index: 2, kind: input, shape index: {}]
  %s3 = inlined_call_operand.vmem [shape: f32[32,129], index: 3, kind: input, shape index: {}]
  %s4 = inlined_call_operand.vmem [shape: f32[16,224], index: 4, kind: input, shape index: {}]
  %s5 = inlined_call_operand.vmem [shape: f32[3,96], index: 5, kind: input, shape index: {}]
  %s6 = inlined_call_operand.vmem [shape: f32[1,641], index: 6, kind: input, shape index: {}]
  %s7 = inlined_call_operand.vmem [shape: f32[8,128], index: 7, kind: output, shape index: {}]
  %s8 = sld [smem:[#allocation0]]
  $region38: #{decoder_forward.1} parent=0
    _
  %s10 = ssub.s32 1, %s8
  %s11 = scalar_select 0, %s10, %s8
  // Predicated region
  $region2: #{decoder_forward.1} parent=0 // pred_check
    _
  $region3: #{decoder_forward.1} parent=0 // pred_check_branch
    %13 = sbr.rel (0) target = $region5
  $region4: #{decoder_forward.1} parent=0 // pred_region
    _
  $region5: #{decoder_forward.1} parent=0 // pred_fallthru
    _
  // Predicated region
  $region6: #{decoder_forward.1} parent=0 // pred_check
    _
  $region7: #{decoder_forward.1} parent=0 // pred_check_branch
    %15 = sbr.rel (0) target = $region9
  $region8: #{decoder_forward.1} parent=0 // pred_region
    _
  $region9: #{decoder_forward.1} parent=0 // pred_fallthru
    _
  // Predicated region
  $region10: #{decoder_forward.1} parent=0 // pred_check
    _
  $region11: #{decoder_forward.1} parent=0 // pred_check_branch
    %17 = sbr.rel (0) target = $region13
  $region12: #{decoder_forward.1} parent=0 // pred_region
    _
  $region13: #{decoder_forward.1} parent=0 // pred_fallthru
    _
  // Predicated region
  $region14: #{decoder_forward.1} parent=0 // pred_check
    _
  $region15: #{decoder_forward.1} parent=0 // pred_check_branch
    %19 = sbr.rel (0) target = $region17
  $region16: #{decoder_forward.1} parent=0 // pred_region
    _
  $region17: #{decoder_forward.1} parent=0 // pred_fallthru
    _
  // Predicated region
  $region18: #{decoder_forward.1} parent=0 // pred_check
    _
  $region19: #{decoder_forward.1} parent=0 // pred_check_branch
    %21 = sbr.rel (0) target = $region21
  $region20: #{decoder_forward.1} parent=0 // pred_region
    _
  $region21: #{decoder_forward.1} parent=0 // pred_fallthru
    _
  // Predicated region
  $region22: #{decoder_forward.1} parent=0 // pred_check
    _
  $region23: #{decoder_forward.1} parent=0 // pred_check_branch
    %23 = sbr.rel (0) target = $region25
  $region24: #{decoder_forward.1} parent=0 // pred_region
    _
  $region25: #{decoder_forward.1} parent=0 // pred_fallthru
    _
  // Predicated region
  $region26: #{decoder_forward.1} parent=0 // pred_check
    _
  $region27: #{decoder_forward.1} parent=0 // pred_check_branch
    %25 = sbr.rel (0) target = $region29
  $region28: #{decoder_forward.1} parent=0 // pred_region
    _
  $region29: #{decoder_forward.1} parent=0 // pred_fallthru
    _
  %v26 = vld [vmem:[%s3] sm:$0xff]
  %v27 = vld [vmem:[%s3 + $0x10] sm:$0xff]
  %v28 = vld [vmem:[%s3 + $0x20] sm:$0xff]
  %v29 = vld [vmem:[%s3 + $0x30] sm:$0xff]
  %v30 = vld [vmem:[%s3 + $0x8] sm:$0xff]
  %v31 = vld [vmem:[%s3 + $0x18] sm:$0xff]
  %v32 = vld [vmem:[%s3 + $0x28] sm:$0xff]
  %v33 = vld [vmem:[%s3 + $0x38] sm:$0xff]
  %v34 = vld [vmem:[%s4] sm:$0xff]
  %v35 = vld [vmem:[%s4 + $0x10] sm:$0xff]
  %v36 = vld [vmem:[%s4 + $0x8] sm:$0xff]
  %v37 = vld [vmem:[%s4 + $0x18] sm:$0xff]
  %v38 = vld [vmem:[%s5] sm:$0x7]
  %v39 = vld [vmem:[%s6] sm:$0x1]
  %v40 = vld [vmem:[%s6 + $0x1] sm:$0x1]
  %v41 = vld [vmem:[%s6 + $0x2] sm:$0x1]
  %v42 = vld [vmem:[%s6 + $0x3] sm:$0x1]
  %v43 = vld [vmem:[%s6 + $0x4] sm:$0x1]
  %v44 = vld [vmem:[%s6 + $0x5] sm:$0x1]
  %v45 = vld [vmem:[%s0] sm:$0xff]
  %v46 = vld [vmem:[%s0 + $0x8] sm:$0xff]
  %v47 = vld [vmem:[%s0 + $0x10] sm:$0xff]
  %v48 = vld [vmem:[%s0 + $0x18] sm:$0xff]
  %v49 = vld [vmem:[%s0 + $0x20] sm:$0xff]
  %v50 = vld [vmem:[%s0 + $0x28] sm:$0xff]
  %v51 = vld [vmem:[%s0 + $0x30] sm:$0xff]
  %v52 = vld [vmem:[%s0 + $0x38] sm:$0xff]
  %v54 = vlaneseq
  %v55 = vshrl.u32 %v54, 7
  %v56 = vsub.s32 0, %v55
  %v57 = vrot.slane %v39, %v56
  %vm59 = vcmask 130048
  %v61 = vsel %vm59, %v45, 0
  %v64 = vsel %vm59, %v46, 0
  %v67 = vsel %vm59, %v47, 0
  %v70 = vsel %vm59, %v48, 0
  %v73 = vsel %vm59, %v49, 0
  %v76 = vsel %vm59, %v50, 0
  %v79 = vsel %vm59, %v51, 0
  %v82 = vsel %vm59, %v52, 0
  %84 = vmatprep.subr.mxu0 0.0
  %85 = vmatpush1.msra.mxu0 0.0
  %86 = vmatprep.subr.mxu0 0.0
  %87 = vmatpush1.msra.mxu0 0.0
  %88 = vmatprep.subr.mxu0 0.0
  %89 = vmatpush1.msra.mxu0 0.0
  %90 = vmatprep.subr.mxu0 0.0
  %91 = vmatpush1.msra.mxu0 0.0
  %92 = vmatprep.subr.mxu0 0.0
  %93 = vmatpush1.msra.mxu0 0.0
  %94 = vmatprep.subr.mxu0 0.0
  %95 = vmatpush1.msra.mxu0 0.0
  %96 = vmatprep.subr.mxu0 0.0
  %97 = vmatpush1.msra.mxu0 0.0
  %98 = vmatprep.subr.mxu0 0.0
  %99 = vmatpush1.msra.mxu0 0.0
  %100 = vmatprep.subr.mxu0 0.0
  %101 = vmatpush1.msra.mxu0 0.0
  %102 = vmatprep.subr.mxu0 0.0
  %103 = vmatpush1.msra.mxu0 0.0
  %104 = vmatprep.subr.mxu0 0.0
  %105 = vmatpush1.msra.mxu0 0.0
  %106 = vmatprep.subr.mxu0 0.0
  %107 = vmatpush1.msra.mxu0 0.0
  %108 = vmatprep.subr.mxu0 0.0
  %109 = vmatpush1.msra.mxu0 0.0
  %110 = vmatprep.subr.mxu0 0.0
  %111 = vmatpush1.msra.mxu0 0.0
  %112 = vmatprep.subr.mxu0 0.0
  %113 = vmatpush1.msra.mxu0 %v35
  %114 = vmatprep.subr.mxu0 0.0
  %115 = vmatpush1.msra.mxu0 %v34
  %116 = vmatprep.subr.mxu0 0.0
  %117 = vmatpush2.msra.mxu0 0.0
  %118 = vmatprep.subr.mxu0 0.0
  %119 = vmatpush2.msra.mxu0 0.0
  %120 = vmatprep.subr.mxu0 0.0
  %121 = vmatpush2.msra.mxu0 0.0
  %122 = vmatprep.subr.mxu0 0.0
  %123 = vmatpush2.msra.mxu0 0.0
  %124 = vmatprep.subr.mxu0 0.0
  %125 = vmatpush2.msra.mxu0 0.0
  %126 = vmatprep.subr.mxu0 0.0
  %127 = vmatpush2.msra.mxu0 0.0
  %128 = vmatprep.subr.mxu0 0.0
  %129 = vmatpush2.msra.mxu0 0.0
  %130 = vmatprep.subr.mxu0 0.0
  %131 = vmatpush2.msra.mxu0 0.0
  %132 = vmatprep.subr.mxu0 0.0
  %133 = vmatpush2.msra.mxu0 0.0
  %134 = vmatprep.subr.mxu0 0.0
  %135 = vmatpush2.msra.mxu0 0.0
  %136 = vmatprep.subr.mxu0 0.0
  %137 = vmatpush2.msra.mxu0 0.0
  %138 = vmatprep.subr.mxu0 0.0
  %139 = vmatpush2.msra.mxu0 0.0
  %140 = vmatprep.subr.mxu0 0.0
  %141 = vmatpush2.msra.mxu0 0.0
  %142 = vmatprep.subr.mxu0 0.0
  %143 = vmatpush2.msra.mxu0 0.0
  %144 = vmatprep.subr.mxu0 0.0
  %145 = vmatpush2.msra.mxu0 0.0
  %146 = vmatprep.subr.mxu0 0.0
  %147 = vmatpush2.msra.mxu0 0.0
  %148 = vmatprep.mubr.f32.mxu0 0.0
  %149 = vmatmul.mubr.f32.gmra.mxu0 %v61
  %v150 = vpop.f32.mrf.mxu0
  %v151 = vadd.f32 %v57, %v150
  %v152 = vpop.f32.mrf.mxu0
  %153 = vmatprep.mubr.f32.mxu0 0.0
  %154 = vmatmul.mubr.f32.gmra.mxu0 %v64
  %v155 = vpop.f32.mrf.mxu0
  %v156 = vadd.f32 %v57, %v155
  %v157 = vpop.f32.mrf.mxu0
  %158 = vmatprep.mubr.f32.mxu0 0.0
  %159 = vmatmul.mubr.f32.gmra.mxu0 %v67
  %v160 = vpop.f32.mrf.mxu0
  %v161 = vadd.f32 %v57, %v160
  %v162 = vpop.f32.mrf.mxu0
  %163 = vmatprep.mubr.f32.mxu0 0.0
  %164 = vmatmul.mubr.f32.gmra.mxu0 %v70
  %v165 = vpop.f32.mrf.mxu0
  %v166 = vadd.f32 %v57, %v165
  %v167 = vpop.f32.mrf.mxu0
  %168 = vmatprep.mubr.f32.mxu0 0.0
  %169 = vmatmul.mubr.f32.gmra.mxu0 %v73
  %v170 = vpop.f32.mrf.mxu0
  %v171 = vadd.f32 %v57, %v170
  %v172 = vpop.f32.mrf.mxu0
  %173 = vmatprep.mubr.f32.mxu0 0.0
  %174 = vmatmul.mubr.f32.gmra.mxu0 %v76
  %v175 = vpop.f32.mrf.mxu0
  %v176 = vadd.f32 %v57, %v175
  %v177 = vpop.f32.mrf.mxu0
  %178 = vmatprep.mubr.f32.mxu0 0.0
  %179 = vmatmul.mubr.f32.gmra.mxu0 %v79
  %v180 = vpop.f32.mrf.mxu0
  %v181 = vadd.f32 %v57, %v180
  %v182 = vpop.f32.mrf.mxu0
  %183 = vmatprep.mubr.f32.mxu0 0.0
  %184 = vmatmul.mubr.f32.gmra.mxu0 %v82
  %v185 = vpop.f32.mrf.mxu0
  %v186 = vadd.f32 %v57, %v185
  %v187 = vpop.f32.mrf.mxu0
  %188 = vdwg.mxu0
  %189 = vmatprep.subr.mxu0 0.0
  %190 = vmatpush1.msra.mxu0 0.0
  %191 = vmatprep.subr.mxu0 0.0
  %192 = vmatpush1.msra.mxu0 0.0
  %193 = vmatprep.subr.mxu0 0.0
  %194 = vmatpush1.msra.mxu0 0.0
  %195 = vmatprep.subr.mxu0 0.0
  %196 = vmatpush1.msra.mxu0 0.0
  %197 = vmatprep.subr.mxu0 0.0
  %198 = vmatpush1.msra.mxu0 0.0
  %199 = vmatprep.subr.mxu0 0.0
  %200 = vmatpush1.msra.mxu0 0.0
  %201 = vmatprep.subr.mxu0 0.0
  %202 = vmatpush1.msra.mxu0 0.0
  %203 = vmatprep.subr.mxu0 0.0
  %204 = vmatpush1.msra.mxu0 0.0
  %205 = vmatprep.subr.mxu0 0.0
  %206 = vmatpush1.msra.mxu0 0.0
  %207 = vmatprep.subr.mxu0 0.0
  %208 = vmatpush1.msra.mxu0 0.0
  %209 = vmatprep.subr.mxu0 0.0
  %210 = vmatpush1.msra.mxu0 0.0
  %211 = vmatprep.subr.mxu0 0.0
  %212 = vmatpush1.msra.mxu0 0.0
  %213 = vmatprep.subr.mxu0 0.0
  %214 = vmatpush1.msra.mxu0 0.0
  %215 = vmatprep.subr.mxu0 0.0
  %216 = vmatpush1.msra.mxu0 0.0
  %217 = vmatprep.subr.mxu0 0.0
  %218 = vmatpush1.msra.mxu0 %v37
  %219 = vmatprep.subr.mxu0 0.0
  %220 = vmatpush1.msra.mxu0 %v36
  %221 = vmatprep.subr.mxu0 0.0
  %222 = vmatpush2.msra.mxu0 0.0
  %223 = vmatprep.subr.mxu0 0.0
  %224 = vmatpush2.msra.mxu0 0.0
  %225 = vmatprep.subr.mxu0 0.0
  %226 = vmatpush2.msra.mxu0 0.0
  %227 = vmatprep.subr.mxu0 0.0
  %228 = vmatpush2.msra.mxu0 0.0
  %229 = vmatprep.subr.mxu0 0.0
  %230 = vmatpush2.msra.mxu0 0.0
  %231 = vmatprep.subr.mxu0 0.0
  %232 = vmatpush2.msra.mxu0 0.0
  %233 = vmatprep.subr.mxu0 0.0
  %234 = vmatpush2.msra.mxu0 0.0
  %235 = vmatprep.subr.mxu0 0.0
  %236 = vmatpush2.msra.mxu0 0.0
  %237 = vmatprep.subr.mxu0 0.0
  %238 = vmatpush2.msra.mxu0 0.0
  %239 = vmatprep.subr.mxu0 0.0
  %240 = vmatpush2.msra.mxu0 0.0
  %241 = vmatprep.subr.mxu0 0.0
  %242 = vmatpush2.msra.mxu0 0.0
  %243 = vmatprep.subr.mxu0 0.0
  %244 = vmatpush2.msra.mxu0 0.0
  %245 = vmatprep.subr.mxu0 0.0
  %246 = vmatpush2.msra.mxu0 0.0
  %247 = vmatprep.subr.mxu0 0.0
  %248 = vmatpush2.msra.mxu0 0.0
  %249 = vmatprep.subr.mxu0 0.0
  %250 = vmatpush2.msra.mxu0 0.0
  %251 = vmatprep.subr.mxu0 0.0
  %252 = vmatpush2.msra.mxu0 0.0
  %253 = vmatprep.mubr.f32.mxu0 0.0
  %254 = vmatmul.mubr.f32.gmra.mxu0 %v61
  %v255 = vpop.f32.mrf.mxu0
  %v256 = vadd.f32 0.0, %v255
  %v257 = vpop.f32.mrf.mxu0
  %258 = vmatprep.mubr.f32.mxu0 0.0
  %259 = vmatmul.mubr.f32.gmra.mxu0 %v64
  %v260 = vpop.f32.mrf.mxu0
  %v261 = vadd.f32 0.0, %v260
  %v262 = vpop.f32.mrf.mxu0
  %263 = vmatprep.mubr.f32.mxu0 0.0
  %264 = vmatmul.mubr.f32.gmra.mxu0 %v67
  %v265 = vpop.f32.mrf.mxu0
  %v266 = vadd.f32 0.0, %v265
  %v267 = vpop.f32.mrf.mxu0
  %268 = vmatprep.mubr.f32.mxu0 0.0
  %269 = vmatmul.mubr.f32.gmra.mxu0 %v70
  %v270 = vpop.f32.mrf.mxu0
  %v271 = vadd.f32 0.0, %v270
  %v272 = vpop.f32.mrf.mxu0
  %273 = vmatprep.mubr.f32.mxu0 0.0
  %274 = vmatmul.mubr.f32.gmra.mxu0 %v73
  %v275 = vpop.f32.mrf.mxu0
  %v276 = vadd.f32 0.0, %v275
  %v277 = vpop.f32.mrf.mxu0
  %278 = vmatprep.mubr.f32.mxu0 0.0
  %279 = vmatmul.mubr.f32.gmra.mxu0 %v76
  %v280 = vpop.f32.mrf.mxu0
  %v281 = vadd.f32 0.0, %v280
  %v282 = vpop.f32.mrf.mxu0
  %283 = vmatprep.mubr.f32.mxu0 0.0
  %284 = vmatmul.mubr.f32.gmra.mxu0 %v79
  %v285 = vpop.f32.mrf.mxu0
  %v286 = vadd.f32 0.0, %v285
  %v287 = vpop.f32.mrf.mxu0
  %288 = vmatprep.mubr.f32.mxu0 0.0
  %289 = vmatmul.mubr.f32.gmra.mxu0 %v82
  %v290 = vpop.f32.mrf.mxu0
  %v291 = vadd.f32 0.0, %v290
  %v292 = vpop.f32.mrf.mxu0
  %293 = vdwg.mxu0
  %v294 = vld [vmem:[%s1] sm:$0xff]
  %v295 = vld [vmem:[%s1 + $0x8] sm:$0xff]
  %v296 = vld [vmem:[%s1 + $0x10] sm:$0xff]
  %v297 = vld [vmem:[%s1 + $0x18] sm:$0xff]
  %v298 = vld [vmem:[%s1 + $0x20] sm:$0xff]
  %v299 = vld [vmem:[%s1 + $0x28] sm:$0xff]
  %v300 = vld [vmem:[%s1 + $0x30] sm:$0xff]
  %v301 = vld [vmem:[%s1 + $0x38] sm:$0xff]
  %v303 = vlaneseq
  %v304 = vshrl.u32 %v303, 7
  %v305 = vsub.s32 0, %v304
  %v306 = vrot.slane %v42, %v305
  %vm308 = vcmask 23552
  %v310 = vsel %vm308, %v294, 0
  %v313 = vsel %vm308, %v295, 0
  %v316 = vsel %vm308, %v296, 0
  %v319 = vsel %vm308, %v297, 0
  %v322 = vsel %vm308, %v298, 0
  %v325 = vsel %vm308, %v299, 0
  %v328 = vsel %vm308, %v300, 0
  %v331 = vsel %vm308, %v301, 0
  %vm333 = vcmask 1042432
  %v335 = vsel %vm333, %v38, 0
  %337 = vmatprep.subr.mxu0 0.0
  %338 = vmatpush1.msra.mxu0 0.0
  %339 = vmatprep.subr.mxu0 0.0
  %340 = vmatpush1.msra.mxu0 0.0
  %341 = vmatprep.subr.mxu0 0.0
  %342 = vmatpush1.msra.mxu0 0.0
  %343 = vmatprep.subr.mxu0 0.0
  %344 = vmatpush1.msra.mxu0 0.0
  %345 = vmatprep.subr.mxu0 0.0
  %346 = vmatpush1.msra.mxu0 0.0
  %347 = vmatprep.subr.mxu0 0.0
  %348 = vmatpush1.msra.mxu0 0.0
  %349 = vmatprep.subr.mxu0 0.0
  %350 = vmatpush1.msra.mxu0 0.0
  %351 = vmatprep.subr.mxu0 0.0
  %352 = vmatpush1.msra.mxu0 0.0
  %353 = vmatprep.subr.mxu0 0.0
  %354 = vmatpush1.msra.mxu0 0.0
  %355 = vmatprep.subr.mxu0 0.0
  %356 = vmatpush1.msra.mxu0 0.0
  %357 = vmatprep.subr.mxu0 0.0
  %358 = vmatpush1.msra.mxu0 0.0
  %359 = vmatprep.subr.mxu0 0.0
  %360 = vmatpush1.msra.mxu0 0.0
  %361 = vmatprep.subr.mxu0 0.0
  %362 = vmatpush1.msra.mxu0 0.0
  %363 = vmatprep.subr.mxu0 0.0
  %364 = vmatpush1.msra.mxu0 0.0
  %365 = vmatprep.subr.mxu0 0.0
  %366 = vmatpush1.msra.mxu0 0.0
  %367 = vmatprep.subr.mxu0 0.0
  %368 = vmatpush1.msra.mxu0 %v335
  %369 = vmatprep.subr.mxu0 0.0
  %370 = vmatpush2.msra.mxu0 0.0
  %371 = vmatprep.subr.mxu0 0.0
  %372 = vmatpush2.msra.mxu0 0.0
  %373 = vmatprep.subr.mxu0 0.0
  %374 = vmatpush2.msra.mxu0 0.0
  %375 = vmatprep.subr.mxu0 0.0
  %376 = vmatpush2.msra.mxu0 0.0
  %377 = vmatprep.subr.mxu0 0.0
  %378 = vmatpush2.msra.mxu0 0.0
  %379 = vmatprep.subr.mxu0 0.0
  %380 = vmatpush2.msra.mxu0 0.0
  %381 = vmatprep.subr.mxu0 0.0
  %382 = vmatpush2.msra.mxu0 0.0
  %383 = vmatprep.subr.mxu0 0.0
  %384 = vmatpush2.msra.mxu0 0.0
  %385 = vmatprep.subr.mxu0 0.0
  %386 = vmatpush2.msra.mxu0 0.0
  %387 = vmatprep.subr.mxu0 0.0
  %388 = vmatpush2.msra.mxu0 0.0
  %389 = vmatprep.subr.mxu0 0.0
  %390 = vmatpush2.msra.mxu0 0.0
  %391 = vmatprep.subr.mxu0 0.0
  %392 = vmatpush2.msra.mxu0 0.0
  %393 = vmatprep.subr.mxu0 0.0
  %394 = vmatpush2.msra.mxu0 0.0
  %395 = vmatprep.subr.mxu0 0.0
  %396 = vmatpush2.msra.mxu0 0.0
  %397 = vmatprep.subr.mxu0 0.0
  %398 = vmatpush2.msra.mxu0 0.0
  %399 = vmatprep.subr.mxu0 0.0
  %400 = vmatpush2.msra.mxu0 0.0
  %401 = vmatprep.mubr.f32.mxu0 0.0
  %402 = vmatmul.mubr.f32.gmra.mxu0 %v310
  %v403 = vpop.f32.mrf.mxu0
  %v404 = vadd.f32 %v306, %v403
  %v405 = vpop.f32.mrf.mxu0
  %406 = vmatprep.mubr.f32.mxu0 0.0
  %407 = vmatmul.mubr.f32.gmra.mxu0 %v313
  %v408 = vpop.f32.mrf.mxu0
  %v409 = vadd.f32 %v306, %v408
  %v410 = vpop.f32.mrf.mxu0
  %411 = vmatprep.mubr.f32.mxu0 0.0
  %412 = vmatmul.mubr.f32.gmra.mxu0 %v316
  %v413 = vpop.f32.mrf.mxu0
  %v414 = vadd.f32 %v306, %v413
  %v415 = vpop.f32.mrf.mxu0
  %416 = vmatprep.mubr.f32.mxu0 0.0
  %417 = vmatmul.mubr.f32.gmra.mxu0 %v319
  %v418 = vpop.f32.mrf.mxu0
  %v419 = vadd.f32 %v306, %v418
  %v420 = vpop.f32.mrf.mxu0
  %421 = vmatprep.mubr.f32.mxu0 0.0
  %422 = vmatmul.mubr.f32.gmra.mxu0 %v322
  %v423 = vpop.f32.mrf.mxu0
  %v424 = vadd.f32 %v306, %v423
  %v425 = vpop.f32.mrf.mxu0
  %426 = vmatprep.mubr.f32.mxu0 0.0
  %427 = vmatmul.mubr.f32.gmra.mxu0 %v325
  %v428 = vpop.f32.mrf.mxu0
  %v429 = vadd.f32 %v306, %v428
  %v430 = vpop.f32.mrf.mxu0
  %431 = vmatprep.mubr.f32.mxu0 0.0
  %432 = vmatmul.mubr.f32.gmra.mxu0 %v328
  %v433 = vpop.f32.mrf.mxu0
  %v434 = vadd.f32 %v306, %v433
  %v435 = vpop.f32.mrf.mxu0
  %436 = vmatprep.mubr.f32.mxu0 0.0
  %437 = vmatmul.mubr.f32.gmra.mxu0 %v331
  %v438 = vpop.f32.mrf.mxu0
  %v439 = vadd.f32 %v306, %v438
  %v440 = vpop.f32.mrf.mxu0
  %441 = vdwg.mxu0
  %vm442 = vcmask 785408
  %443 = vst.msk [vmem:[#allocation2] sm:$0xff] %vm442, %v404
  %444 = vst.msk [vmem:[#allocation2 + $0x8] sm:$0xff] %vm442, %v409
  %445 = vst.msk [vmem:[#allocation2 + $0x10] sm:$0xff] %vm442, %v414
  %446 = vst.msk [vmem:[#allocation2 + $0x18] sm:$0xff] %vm442, %v419
  %447 = vst.msk [vmem:[#allocation2 + $0x20] sm:$0xff] %vm442, %v424
  %448 = vst.msk [vmem:[#allocation2 + $0x28] sm:$0xff] %vm442, %v429
  %449 = vst.msk [vmem:[#allocation2 + $0x30] sm:$0xff] %vm442, %v434
  %450 = vst.msk [vmem:[#allocation2 + $0x38] sm:$0xff] %vm442, %v439
  %v451 = vld [vmem:[%s2] sm:$0xff]
  %v453 = vlaneseq
  %v454 = vshrl.u32 %v453, 7
  %v455 = vsub.s32 0, %v454
  %v456 = vrot.slane %v43, %v455
  %vm458 = vcmask 261120
  %v460 = vsel %vm458, %v451, 0
  %462 = vmatprep.subr.mxu0 0.0
  %463 = vmatpush1.msra.mxu0 0.0
  %464 = vmatprep.subr.mxu0 0.0
  %465 = vmatpush1.msra.mxu0 0.0
  %466 = vmatprep.subr.mxu0 0.0
  %467 = vmatpush1.msra.mxu0 0.0
  %468 = vmatprep.subr.mxu0 0.0
  %469 = vmatpush1.msra.mxu0 0.0
  %470 = vmatprep.subr.mxu0 0.0
  %471 = vmatpush1.msra.mxu0 0.0
  %472 = vmatprep.subr.mxu0 0.0
  %473 = vmatpush1.msra.mxu0 0.0
  %474 = vmatprep.subr.mxu0 0.0
  %475 = vmatpush1.msra.mxu0 0.0
  %476 = vmatprep.subr.mxu0 0.0
  %477 = vmatpush1.msra.mxu0 0.0
  %478 = vmatprep.subr.mxu0 0.0
  %479 = vmatpush1.msra.mxu0 0.0
  %480 = vmatprep.subr.mxu0 0.0
  %481 = vmatpush1.msra.mxu0 0.0
  %482 = vmatprep.subr.mxu0 0.0
  %483 = vmatpush1.msra.mxu0 0.0
  %484 = vmatprep.subr.mxu0 0.0
  %485 = vmatpush1.msra.mxu0 0.0
  %486 = vmatprep.subr.mxu0 0.0
  %487 = vmatpush1.msra.mxu0 %v29
  %488 = vmatprep.subr.mxu0 0.0
  %489 = vmatpush1.msra.mxu0 %v28
  %490 = vmatprep.subr.mxu0 0.0
  %491 = vmatpush1.msra.mxu0 %v27
  %492 = vmatprep.subr.mxu0 0.0
  %493 = vmatpush1.msra.mxu0 %v26
  %494 = vmatprep.subr.mxu0 0.0
  %495 = vmatpush2.msra.mxu0 0.0
  %496 = vmatprep.subr.mxu0 0.0
  %497 = vmatpush2.msra.mxu0 0.0
  %498 = vmatprep.subr.mxu0 0.0
  %499 = vmatpush2.msra.mxu0 0.0
  %500 = vmatprep.subr.mxu0 0.0
  %501 = vmatpush2.msra.mxu0 0.0
  %502 = vmatprep.subr.mxu0 0.0
  %503 = vmatpush2.msra.mxu0 0.0
  %504 = vmatprep.subr.mxu0 0.0
  %505 = vmatpush2.msra.mxu0 0.0
  %506 = vmatprep.subr.mxu0 0.0
  %507 = vmatpush2.msra.mxu0 0.0
  %508 = vmatprep.subr.mxu0 0.0
  %509 = vmatpush2.msra.mxu0 0.0
  %510 = vmatprep.subr.mxu0 0.0
  %511 = vmatpush2.msra.mxu0 0.0
  %512 = vmatprep.subr.mxu0 0.0
  %513 = vmatpush2.msra.mxu0 0.0
  %514 = vmatprep.subr.mxu0 0.0
  %515 = vmatpush2.msra.mxu0 0.0
  %516 = vmatprep.subr.mxu0 0.0
  %517 = vmatpush2.msra.mxu0 0.0
  %518 = vmatprep.subr.mxu0 0.0
  %519 = vmatpush2.msra.mxu0 0.0
  %520 = vmatprep.subr.mxu0 0.0
  %521 = vmatpush2.msra.mxu0 0.0
  %522 = vmatprep.subr.mxu0 0.0
  %523 = vmatpush2.msra.mxu0 0.0
  %524 = vmatprep.subr.mxu0 0.0
  %525 = vmatpush2.msra.mxu0 0.0
  %526 = vmatprep.mubr.f32.mxu0 0.0
  %527 = vmatmul.mubr.f32.gmra.mxu0 %v460
  %v528 = vpop.f32.mrf.mxu0
  %v529 = vadd.f32 %v456, %v528
  %v530 = vpop.f32.mrf.mxu0
  %531 = vdwg.mxu0
  %v533 = vcombine.high %v529, %v529
  %v535 = vunpack.c.l.s4 1966171168
  %v536 = vunpack.c.0.s8 %v535
  %v537 = vlaneseq
  %v538 = vshrl.u32 %v537, 7
  %v539 = vsub.s32 %v536, %v538
  %v540 = vrot.slane %v529, %v539
  %v542 = vunpack.c.l.s4 1966171168
  %v543 = vunpack.c.0.s8 %v542
  %v544 = vlaneseq
  %v545 = vshrl.u32 %v544, 7
  %v546 = vsub.s32 %v543, %v545
  %v547 = vrot.slane %v533, %v546
  %v548 = vcombine.high %v540, %v540
  %v549 = vcombine.high %v547, %v547
  %v551 = vunpack.c.l.s4 1966171168
  %v552 = vunpack.c.0.s8 %v551
  %v553 = vlaneseq
  %v554 = vshrl.u32 %v553, 7
  %v555 = vsub.s32 %v552, %v554
  %v556 = vrot.slane %v540, %v555
  %v558 = vunpack.c.l.s4 1966171168
  %v559 = vunpack.c.0.s8 %v558
  %v560 = vlaneseq
  %v561 = vshrl.u32 %v560, 7
  %v562 = vsub.s32 %v559, %v561
  %v563 = vrot.slane %v547, %v562
  %v565 = vunpack.c.l.s4 1966171168
  %v566 = vunpack.c.0.s8 %v565
  %v567 = vlaneseq
  %v568 = vshrl.u32 %v567, 7
  %v569 = vsub.s32 %v566, %v568
  %v570 = vrot.slane %v548, %v569
  %v572 = vunpack.c.l.s4 1966171168
  %v573 = vunpack.c.0.s8 %v572
  %v574 = vlaneseq
  %v575 = vshrl.u32 %v574, 7
  %v576 = vsub.s32 %v573, %v575
  %v577 = vrot.slane %v549, %v576
  %v578 = vcombine.high %v556, %v556
  %v579 = vcombine.high %v563, %v563
  %v580 = vcombine.high %v570, %v570
  %v581 = vcombine.high %v577, %v577
  %v582 = vlaneseq
  %v583 = vshrl.u32 %v582, 7
  %v584 = vsub.s32 0, %v583
  %v585 = vrot.slane %v556, %v584
  %v586 = vlaneseq
  %v587 = vshrl.u32 %v586, 7
  %v588 = vsub.s32 0, %v587
  %v589 = vrot.slane %v570, %v588
  %v590 = vlaneseq
  %v591 = vshrl.u32 %v590, 7
  %v592 = vsub.s32 0, %v591
  %v593 = vrot.slane %v578, %v592
  %v594 = vlaneseq
  %v595 = vshrl.u32 %v594, 7
  %v596 = vsub.s32 0, %v595
  %v597 = vrot.slane %v580, %v596
  %v598 = vlaneseq
  %v599 = vshrl.u32 %v598, 7
  %v600 = vsub.s32 0, %v599
  %v601 = vrot.slane %v563, %v600
  %v602 = vlaneseq
  %v603 = vshrl.u32 %v602, 7
  %v604 = vsub.s32 0, %v603
  %v605 = vrot.slane %v577, %v604
  %v606 = vlaneseq
  %v607 = vshrl.u32 %v606, 7
  %v608 = vsub.s32 0, %v607
  %v609 = vrot.slane %v579, %v608
  %v610 = vlaneseq
  %v611 = vshrl.u32 %v610, 7
  %v612 = vsub.s32 0, %v611
  %v613 = vrot.slane %v581, %v612
  %630 = vrot.lane.b32.xlu0 %v151, 96
  %v631 = vpop.permute.xlu0 %630
  %632 = vrot.lane.b32.xlu0 %v156, 96
  %v633 = vpop.permute.xlu0 %632
  %634 = vrot.lane.b32.xlu0 %v161, 96
  %v635 = vpop.permute.xlu0 %634
  %636 = vrot.lane.b32.xlu0 %v166, 96
  %v637 = vpop.permute.xlu0 %636
  %638 = vrot.lane.b32.xlu0 %v171, 96
  %v639 = vpop.permute.xlu0 %638
  %640 = vrot.lane.b32.xlu0 %v176, 96
  %v641 = vpop.permute.xlu0 %640
  %642 = vrot.lane.b32.xlu0 %v181, 96
  %v643 = vpop.permute.xlu0 %642
  %644 = vrot.lane.b32.xlu0 %v186, 96
  %v645 = vpop.permute.xlu0 %644
  %v654 = vadd.f32 %v585, %v631
  %v655 = vadd.f32 %v589, %v633
  %v656 = vadd.f32 %v593, %v635
  %v657 = vadd.f32 %v597, %v637
  %v658 = vadd.f32 %v601, %v639
  %v659 = vadd.f32 %v605, %v641
  %v660 = vadd.f32 %v609, %v643
  %v661 = vadd.f32 %v613, %v645
  %v662 = vtanh.pop %v654
  %v663 = vtanh.pop %v655
  %v664 = vtanh.pop %v656
  %v665 = vtanh.pop %v657
  %v666 = vtanh.pop %v658
  %v667 = vtanh.pop %v659
  %v668 = vtanh.pop %v660
  %v669 = vtanh.pop %v661
  %v671 = vlaneseq
  %v672 = vshrl.u32 %v671, 7
  %v673 = vsub.s32 0, %v672
  %v674 = vrot.slane %v40, %v673
  %675 = vrot.lane.b32.xlu0 %v674, 96
  %v676 = vpop.permute.xlu0 %675
  %v678 = vmul.f32 %v662, %v676
  %v679 = vmul.f32 %v663, %v676
  %v680 = vmul.f32 %v664, %v676
  %v681 = vmul.f32 %v665, %v676
  %v682 = vmul.f32 %v666, %v676
  %v683 = vmul.f32 %v667, %v676
  %v684 = vmul.f32 %v668, %v676
  %v685 = vmul.f32 %v669, %v676
  %694 = vrot.lane.b32.xlu0 %v678, 32
  %v695 = vpop.permute.xlu0 %694
  %696 = vrot.lane.b32.xlu0 %v679, 32
  %v697 = vpop.permute.xlu0 %696
  %698 = vrot.lane.b32.xlu0 %v680, 32
  %v699 = vpop.permute.xlu0 %698
  %700 = vrot.lane.b32.xlu0 %v681, 32
  %v701 = vpop.permute.xlu0 %700
  %702 = vrot.lane.b32.xlu0 %v682, 32
  %v703 = vpop.permute.xlu0 %702
  %704 = vrot.lane.b32.xlu0 %v683, 32
  %v705 = vpop.permute.xlu0 %704
  %706 = vrot.lane.b32.xlu0 %v684, 32
  %v707 = vpop.permute.xlu0 %706
  %708 = vrot.lane.b32.xlu0 %v685, 32
  %v709 = vpop.permute.xlu0 %708
  %v718 = vsel %vm458, %v695, 0.0
  %719 = vadd.xlane.f32.xlu0 %v718
  %v720 = vpop.xlane.xlu0 %719
  %v721 = vsel %vm458, %v697, 0.0
  %722 = vadd.xlane.f32.xlu0 %v721
  %v723 = vpop.xlane.xlu0 %722
  %v724 = vsel %vm458, %v699, 0.0
  %725 = vadd.xlane.f32.xlu0 %v724
  %v726 = vpop.xlane.xlu0 %725
  %v727 = vsel %vm458, %v701, 0.0
  %728 = vadd.xlane.f32.xlu0 %v727
  %v729 = vpop.xlane.xlu0 %728
  %v730 = vsel %vm458, %v703, 0.0
  %731 = vadd.xlane.f32.xlu0 %v730
  %v732 = vpop.xlane.xlu0 %731
  %v733 = vsel %vm458, %v705, 0.0
  %734 = vadd.xlane.f32.xlu0 %v733
  %v735 = vpop.xlane.xlu0 %734
  %v736 = vsel %vm458, %v707, 0.0
  %737 = vadd.xlane.f32.xlu0 %v736
  %v738 = vpop.xlane.xlu0 %737
  %v739 = vsel %vm458, %v709, 0.0
  %740 = vadd.xlane.f32.xlu0 %v739
  %v741 = vpop.xlane.xlu0 %740
  %v743 = vlaneseq
  %v744 = vshrl.u32 %v743, 7
  %v745 = vsub.s32 0, %v744
  %v746 = vrot.slane %v41, %v745
  %747 = vset.pattern.permute.xlu0 0
  %748 = vperm.xlu0 %747, %v746
  %v749 = vpop.permute.xlu0 %748
  %v751 = vadd.f32 %v720, %v749
  %v752 = vadd.f32 %v723, %v749
  %v753 = vadd.f32 %v726, %v749
  %v754 = vadd.f32 %v729, %v749
  %v755 = vadd.f32 %v732, %v749
  %v756 = vadd.f32 %v735, %v749
  %v757 = vadd.f32 %v738, %v749
  %v758 = vadd.f32 %v741, %v749
  %v767 = vlaneseq
  %v768 = vand.u32 %v767, 127
  %v769 = vlaneseq
  %v770 = vshrl.u32 %v769, 7
  %v771 = vsub.s32 %v768, %v770
  %v772 = vrot.slane %v751, %v771
  %v773 = vlaneseq
  %v774 = vshrl.u32 %v773, 7
  %v775 = vsub.s32 %v768, %v774
  %v776 = vrot.slane %v752, %v775
  %v777 = vlaneseq
  %v778 = vshrl.u32 %v777, 7
  %v779 = vsub.s32 %v768, %v778
  %v780 = vrot.slane %v753, %v779
  %v781 = vlaneseq
  %v782 = vshrl.u32 %v781, 7
  %v783 = vsub.s32 %v768, %v782
  %v784 = vrot.slane %v754, %v783
  %v785 = vlaneseq
  %v786 = vshrl.u32 %v785, 7
  %v787 = vsub.s32 %v768, %v786
  %v788 = vrot.slane %v755, %v787
  %v789 = vlaneseq
  %v790 = vshrl.u32 %v789, 7
  %v791 = vsub.s32 %v768, %v790
  %v792 = vrot.slane %v756, %v791
  %v793 = vlaneseq
  %v794 = vshrl.u32 %v793, 7
  %v795 = vsub.s32 %v768, %v794
  %v796 = vrot.slane %v757, %v795
  %v797 = vlaneseq
  %v798 = vshrl.u32 %v797, 7
  %v799 = vsub.s32 %v768, %v798
  %v800 = vrot.slane %v758, %v799
  %vm801 = vcmask 1041409
  %v802 = vsel %vm801, %v776, %v772
  %vm803 = vcmask 1042434
  %v804 = vsel %vm803, %v780, %v802
  %vm805 = vcmask 1043459
  %v806 = vsel %vm805, %v784, %v804
  %vm807 = vcmask 1044484
  %v808 = vsel %vm807, %v788, %v806
  %vm809 = vcmask 1045509
  %v810 = vsel %vm809, %v792, %v808
  %vm811 = vcmask 1046534
  %v812 = vsel %vm811, %v796, %v810
  %vm813 = vcmask 1047559
  %v814 = vsel %vm813, %v800, %v812
  %vm816 = vcmask 64512
  %v817 = vsel %vm816, %v814, -inf
  %818 = vmax.xlane.f32.xlu0 %v817
  %v819 = vpop.xlane.xlu0 %818
  %v821 = vlaneseq
  %v822 = vshrl.u32 %v821, 7
  %v823 = vsub.s32 0, %v822
  %v824 = vrot.slane %v819, %v823
  %v825 = vlaneseq
  %v826 = vshrl.u32 %v825, 7
  %v827 = vsub.s32 1, %v826
  %v828 = vrot.slane %v819, %v827
  %v829 = vlaneseq
  %v830 = vshrl.u32 %v829, 7
  %v831 = vsub.s32 2, %v830
  %v832 = vrot.slane %v819, %v831
  %v833 = vlaneseq
  %v834 = vshrl.u32 %v833, 7
  %v835 = vsub.s32 3, %v834
  %v836 = vrot.slane %v819, %v835
  %v837 = vlaneseq
  %v838 = vshrl.u32 %v837, 7
  %v839 = vsub.s32 4, %v838
  %v840 = vrot.slane %v819, %v839
  %v841 = vlaneseq
  %v842 = vshrl.u32 %v841, 7
  %v843 = vsub.s32 5, %v842
  %v844 = vrot.slane %v819, %v843
  %v845 = vlaneseq
  %v846 = vshrl.u32 %v845, 7
  %v847 = vsub.s32 6, %v846
  %v848 = vrot.slane %v819, %v847
  %v849 = vlaneseq
  %v850 = vshrl.u32 %v849, 7
  %v851 = vsub.s32 7, %v850
  %v852 = vrot.slane %v819, %v851
  %v861 = vsub.f32 %v751, %v824
  %v862 = vsub.f32 %v752, %v828
  %v863 = vsub.f32 %v753, %v832
  %v864 = vsub.f32 %v754, %v836
  %v865 = vsub.f32 %v755, %v840
  %v866 = vsub.f32 %v756, %v844
  %v867 = vsub.f32 %v757, %v848
  %v868 = vsub.f32 %v758, %v852
  %v869 = vmul.f32 %v861, 1.442695
  %v870 = vpow.pop %v869
  %v871 = vmul.f32 %v862, 1.442695
  %v872 = vpow.pop %v871
  %v873 = vmul.f32 %v863, 1.442695
  %v874 = vpow.pop %v873
  %v875 = vmul.f32 %v864, 1.442695
  %v876 = vpow.pop %v875
  %v877 = vmul.f32 %v865, 1.442695
  %v878 = vpow.pop %v877
  %v879 = vmul.f32 %v866, 1.442695
  %v880 = vpow.pop %v879
  %v881 = vmul.f32 %v867, 1.442695
  %v882 = vpow.pop %v881
  %v883 = vmul.f32 %v868, 1.442695
  %v884 = vpow.pop %v883
  %893 = vset.pattern.permute.xlu0 0
  %894 = vperm.xlu0 %893, %v870
  %v895 = vpop.permute.xlu0 %894
  %896 = vset.pattern.permute.xlu0 0
  %897 = vperm.xlu0 %896, %v872
  %v898 = vpop.permute.xlu0 %897
  %899 = vset.pattern.permute.xlu0 0
  %900 = vperm.xlu0 %899, %v874
  %v901 = vpop.permute.xlu0 %900
  %902 = vset.pattern.permute.xlu0 0
  %903 = vperm.xlu0 %902, %v876
  %v904 = vpop.permute.xlu0 %903
  %905 = vset.pattern.permute.xlu0 0
  %906 = vperm.xlu0 %905, %v878
  %v907 = vpop.permute.xlu0 %906
  %908 = vset.pattern.permute.xlu0 0
  %909 = vperm.xlu0 %908, %v880
  %v910 = vpop.permute.xlu0 %909
  %911 = vset.pattern.permute.xlu0 0
  %912 = vperm.xlu0 %911, %v882
  %v913 = vpop.permute.xlu0 %912
  %914 = vset.pattern.permute.xlu0 0
  %915 = vperm.xlu0 %914, %v884
  %v916 = vpop.permute.xlu0 %915
  %v917 = vlaneseq
  %v918 = vshrl.u32 %v917, 7
  %v919 = vsub.s32 %v768, %v918
  %v920 = vrot.slane %v895, %v919
  %v921 = vlaneseq
  %v922 = vshrl.u32 %v921, 7
  %v923 = vsub.s32 %v768, %v922
  %v924 = vrot.slane %v898, %v923
  %v925 = vlaneseq
  %v926 = vshrl.u32 %v925, 7
  %v927 = vsub.s32 %v768, %v926
  %v928 = vrot.slane %v901, %v927
  %v929 = vlaneseq
  %v930 = vshrl.u32 %v929, 7
  %v931 = vsub.s32 %v768, %v930
  %v932 = vrot.slane %v904, %v931
  %v933 = vlaneseq
  %v934 = vshrl.u32 %v933, 7
  %v935 = vsub.s32 %v768, %v934
  %v936 = vrot.slane %v907, %v935
  %v937 = vlaneseq
  %v938 = vshrl.u32 %v937, 7
  %v939 = vsub.s32 %v768, %v938
  %v940 = vrot.slane %v910, %v939
  %v941 = vlaneseq
  %v942 = vshrl.u32 %v941, 7
  %v943 = vsub.s32 %v768, %v942
  %v944 = vrot.slane %v913, %v943
  %v945 = vlaneseq
  %v946 = vshrl.u32 %v945, 7
  %v947 = vsub.s32 %v768, %v946
  %v948 = vrot.slane %v916, %v947
  %v949 = vsel %vm801, %v924, %v920
  %v950 = vsel %vm803, %v928, %v949
  %v951 = vsel %vm805, %v932, %v950
  %v952 = vsel %vm807, %v936, %v951
  %v953 = vsel %vm809, %v940, %v952
  %v954 = vsel %vm811, %v944, %v953
  %v955 = vsel %vm813, %v948, %v954
  %v957 = vsel %vm816, %v955, 0.0
  %958 = vadd.xlane.f32.xlu0 %v957
  %v959 = vpop.xlane.xlu0 %958
  %v960 = vrcp.pop %v959
  %v962 = vlaneseq
  %v963 = vshrl.u32 %v962, 7
  %v964 = vsub.s32 0, %v963
  %v965 = vrot.slane %v960, %v964
  %v966 = vlaneseq
  %v967 = vshrl.u32 %v966, 7
  %v968 = vsub.s32 1, %v967
  %v969 = vrot.slane %v960, %v968
  %v970 = vlaneseq
  %v971 = vshrl.u32 %v970, 7
  %v972 = vsub.s32 2, %v971
  %v973 = vrot.slane %v960, %v972
  %v974 = vlaneseq
  %v975 = vshrl.u32 %v974, 7
  %v976 = vsub.s32 3, %v975
  %v977 = vrot.slane %v960, %v976
  %v978 = vlaneseq
  %v979 = vshrl.u32 %v978, 7
  %v980 = vsub.s32 4, %v979
  %v981 = vrot.slane %v960, %v980
  %v982 = vlaneseq
  %v983 = vshrl.u32 %v982, 7
  %v984 = vsub.s32 5, %v983
  %v985 = vrot.slane %v960, %v984
  %v986 = vlaneseq
  %v987 = vshrl.u32 %v986, 7
  %v988 = vsub.s32 6, %v987
  %v989 = vrot.slane %v960, %v988
  %v990 = vlaneseq
  %v991 = vshrl.u32 %v990, 7
  %v992 = vsub.s32 7, %v991
  %v993 = vrot.slane %v960, %v992
  %v1002 = vmul.f32 %v870, %v965
  %v1003 = vmul.f32 %v872, %v969
  %v1004 = vmul.f32 %v874, %v973
  %v1005 = vmul.f32 %v876, %v977
  %v1006 = vmul.f32 %v878, %v981
  %v1007 = vmul.f32 %v880, %v985
  %v1008 = vmul.f32 %v882, %v989
  %v1009 = vmul.f32 %v884, %v993
  %1011 = vset.pattern.permute.xlu0 0
  %1012 = vperm.xlu0 %1011, %v1002
  %v1013 = vpop.permute.xlu0 %1012
  %1016 = vset.pattern.permute.xlu0 0
  %1017 = vperm.xlu0 %1016, %v1003
  %v1018 = vpop.permute.xlu0 %1017
  %1021 = vset.pattern.permute.xlu0 0
  %1022 = vperm.xlu0 %1021, %v1004
  %v1023 = vpop.permute.xlu0 %1022
  %1026 = vset.pattern.permute.xlu0 0
  %1027 = vperm.xlu0 %1026, %v1005
  %v1028 = vpop.permute.xlu0 %1027
  %1031 = vset.pattern.permute.xlu0 0
  %1032 = vperm.xlu0 %1031, %v1006
  %v1033 = vpop.permute.xlu0 %1032
  %1036 = vset.pattern.permute.xlu0 0
  %1037 = vperm.xlu0 %1036, %v1007
  %v1038 = vpop.permute.xlu0 %1037
  %1041 = vset.pattern.permute.xlu0 0
  %1042 = vperm.xlu0 %1041, %v1008
  %v1043 = vpop.permute.xlu0 %1042
  %1046 = vset.pattern.permute.xlu0 0
  %1047 = vperm.xlu0 %1046, %v1009
  %v1048 = vpop.permute.xlu0 %1047
  %v1050 = vmul.f32 %v256, %v1013
  %v1051 = vmul.f32 %v261, %v1018
  %v1052 = vmul.f32 %v266, %v1023
  %v1053 = vmul.f32 %v271, %v1028
  %v1054 = vmul.f32 %v276, %v1033
  %v1055 = vmul.f32 %v281, %v1038
  %v1056 = vmul.f32 %v286, %v1043
  %v1057 = vmul.f32 %v291, %v1048
  %v1058 = vsel %vm442, %v1050, 0.0
  %v1059 = vrot.slane %v1058, 4
  %v1060 = vadd.f32 %v1058, %v1059
  %v1061 = vrot.slane %v1060, 2
  %v1062 = vadd.f32 %v1060, %v1061
  %v1063 = vrot.slane %v1062, 1
  %v1064 = vadd.f32 %v1062, %v1063
  %v1065 = vsel %vm442, %v1051, 0.0
  %v1066 = vrot.slane %v1065, 4
  %v1067 = vadd.f32 %v1065, %v1066
  %v1068 = vrot.slane %v1067, 2
  %v1069 = vadd.f32 %v1067, %v1068
  %v1070 = vrot.slane %v1069, 1
  %v1071 = vadd.f32 %v1069, %v1070
  %v1072 = vsel %vm442, %v1052, 0.0
  %v1073 = vrot.slane %v1072, 4
  %v1074 = vadd.f32 %v1072, %v1073
  %v1075 = vrot.slane %v1074, 2
  %v1076 = vadd.f32 %v1074, %v1075
  %v1077 = vrot.slane %v1076, 1
  %v1078 = vadd.f32 %v1076, %v1077
  %v1079 = vsel %vm442, %v1053, 0.0
  %v1080 = vrot.slane %v1079, 4
  %v1081 = vadd.f32 %v1079, %v1080
  %v1082 = vrot.slane %v1081, 2
  %v1083 = vadd.f32 %v1081, %v1082
  %v1084 = vrot.slane %v1083, 1
  %v1085 = vadd.f32 %v1083, %v1084
  %v1086 = vsel %vm442, %v1054, 0.0
  %v1087 = vrot.slane %v1086, 4
  %v1088 = vadd.f32 %v1086, %v1087
  %v1089 = vrot.slane %v1088, 2
  %v1090 = vadd.f32 %v1088, %v1089
  %v1091 = vrot.slane %v1090, 1
  %v1092 = vadd.f32 %v1090, %v1091
  %v1093 = vsel %vm442, %v1055, 0.0
  %v1094 = vrot.slane %v1093, 4
  %v1095 = vadd.f32 %v1093, %v1094
  %v1096 = vrot.slane %v1095, 2
  %v1097 = vadd.f32 %v1095, %v1096
  %v1098 = vrot.slane %v1097, 1
  %v1099 = vadd.f32 %v1097, %v1098
  %v1100 = vsel %vm442, %v1056, 0.0
  %v1101 = vrot.slane %v1100, 4
  %v1102 = vadd.f32 %v1100, %v1101
  %v1103 = vrot.slane %v1102, 2
  %v1104 = vadd.f32 %v1102, %v1103
  %v1105 = vrot.slane %v1104, 1
  %v1106 = vadd.f32 %v1104, %v1105
  %v1107 = vsel %vm442, %v1057, 0.0
  %v1108 = vrot.slane %v1107, 4
  %v1109 = vadd.f32 %v1107, %v1108
  %v1110 = vrot.slane %v1109, 2
  %v1111 = vadd.f32 %v1109, %v1110
  %v1112 = vrot.slane %v1111, 1
  %v1113 = vadd.f32 %v1111, %v1112
  %v1114 = vld [vmem:[#allocation2] sm:$0xff]
  %v1116 = vrot.slane %v1114, 1
  %v1117 = vrot.slane %v1114, 2
  %v1118 = vrot.slane %v1114, 3
  %v1119 = vrot.slane %v1114, 4
  %v1120 = vrot.slane %v1114, 5
  %v1121 = vrot.slane %v1114, 6
  %v1122 = vrot.slane %v1114, 7
  %v1131 = vadd.f32 %v1064, %v1114
  %v1132 = vadd.f32 %v1071, %v1116
  %v1133 = vadd.f32 %v1078, %v1117
  %v1134 = vadd.f32 %v1085, %v1118
  %v1135 = vadd.f32 %v1092, %v1119
  %v1136 = vadd.f32 %v1099, %v1120
  %v1137 = vadd.f32 %v1106, %v1121
  %v1138 = vadd.f32 %v1113, %v1122
  %v1139 = vrot.slane %v529, 1
  %v1140 = vrot.slane %v529, 2
  %v1141 = vrot.slane %v529, 3
  %v1142 = vrot.slane %v529, 4
  %v1143 = vrot.slane %v529, 5
  %v1144 = vrot.slane %v529, 6
  %v1145 = vrot.slane %v529, 7
  %v1154 = vadd.f32 %v1131, %v529
  %v1155 = vadd.f32 %v1132, %v1139
  %v1156 = vadd.f32 %v1133, %v1140
  %v1157 = vadd.f32 %v1134, %v1141
  %v1158 = vadd.f32 %v1135, %v1142
  %v1159 = vadd.f32 %v1136, %v1143
  %v1160 = vadd.f32 %v1137, %v1144
  %v1161 = vadd.f32 %v1138, %v1145
  %v1162 = vxor.u32 %v1154, 2147483648
  %v1163 = vxor.u32 %v1155, 2147483648
  %v1164 = vxor.u32 %v1156, 2147483648
  %v1165 = vxor.u32 %v1157, 2147483648
  %v1166 = vxor.u32 %v1158, 2147483648
  %v1167 = vxor.u32 %v1159, 2147483648
  %v1168 = vxor.u32 %v1160, 2147483648
  %v1169 = vxor.u32 %v1161, 2147483648
  %v1170 = vmul.f32 %v1162, 1.442695
  %v1171 = vpow.pop %v1170
  %v1172 = vmul.f32 %v1163, 1.442695
  %v1173 = vpow.pop %v1172
  %v1174 = vmul.f32 %v1164, 1.442695
  %v1175 = vpow.pop %v1174
  %v1176 = vmul.f32 %v1165, 1.442695
  %v1177 = vpow.pop %v1176
  %v1178 = vmul.f32 %v1166, 1.442695
  %v1179 = vpow.pop %v1178
  %v1180 = vmul.f32 %v1167, 1.442695
  %v1181 = vpow.pop %v1180
  %v1182 = vmul.f32 %v1168, 1.442695
  %v1183 = vpow.pop %v1182
  %v1184 = vmul.f32 %v1169, 1.442695
  %v1185 = vpow.pop %v1184
  %v1186 = vadd.f32 %v1171, 1.0
  %v1187 = vadd.f32 %v1173, 1.0
  %v1188 = vadd.f32 %v1175, 1.0
  %v1189 = vadd.f32 %v1177, 1.0
  %v1190 = vadd.f32 %v1179, 1.0
  %v1191 = vadd.f32 %v1181, 1.0
  %v1192 = vadd.f32 %v1183, 1.0
  %v1193 = vadd.f32 %v1185, 1.0
  %v1194 = vrcp.pop %v1186
  %v1195 = vmul.f32 1.0, %v1194
  %v1196 = vrcp.pop %v1187
  %v1197 = vmul.f32 1.0, %v1196
  %v1198 = vrcp.pop %v1188
  %v1199 = vmul.f32 1.0, %v1198
  %v1200 = vrcp.pop %v1189
  %v1201 = vmul.f32 1.0, %v1200
  %v1202 = vrcp.pop %v1190
  %v1203 = vmul.f32 1.0, %v1202
  %v1204 = vrcp.pop %v1191
  %v1205 = vmul.f32 1.0, %v1204
  %v1206 = vrcp.pop %v1192
  %v1207 = vmul.f32 1.0, %v1206
  %v1208 = vrcp.pop %v1193
  %v1209 = vmul.f32 1.0, %v1208
  %1210 = vrot.lane.b32.xlu0 %v529, 64
  %v1211 = vpop.permute.xlu0 %1210
  %1212 = vrot.lane.b32.xlu0 %v1139, 64
  %v1213 = vpop.permute.xlu0 %1212
  %1214 = vrot.lane.b32.xlu0 %v1140, 64
  %v1215 = vpop.permute.xlu0 %1214
  %1216 = vrot.lane.b32.xlu0 %v1141, 64
  %v1217 = vpop.permute.xlu0 %1216
  %1218 = vrot.lane.b32.xlu0 %v1142, 64
  %v1219 = vpop.permute.xlu0 %1218
  %1220 = vrot.lane.b32.xlu0 %v1143, 64
  %v1221 = vpop.permute.xlu0 %1220
  %1222 = vrot.lane.b32.xlu0 %v1144, 64
  %v1223 = vpop.permute.xlu0 %1222
  %1224 = vrot.lane.b32.xlu0 %v1145, 64
  %v1225 = vpop.permute.xlu0 %1224
  %v1234 = vmul.f32 %v1195, %v1211
  %v1235 = vmul.f32 %v1197, %v1213
  %v1236 = vmul.f32 %v1199, %v1215
  %v1237 = vmul.f32 %v1201, %v1217
  %v1238 = vmul.f32 %v1203, %v1219
  %v1239 = vmul.f32 %v1205, %v1221
  %v1240 = vmul.f32 %v1207, %v1223
  %v1241 = vmul.f32 %v1209, %v1225
  %1250 = vrot.lane.b32.xlu0 %v1234, 64
  %v1251 = vpop.permute.xlu0 %1250
  %1252 = vrot.lane.b32.xlu0 %v1235, 64
  %v1253 = vpop.permute.xlu0 %1252
  %1254 = vrot.lane.b32.xlu0 %v1236, 64
  %v1255 = vpop.permute.xlu0 %1254
  %1256 = vrot.lane.b32.xlu0 %v1237, 64
  %v1257 = vpop.permute.xlu0 %1256
  %1258 = vrot.lane.b32.xlu0 %v1238, 64
  %v1259 = vpop.permute.xlu0 %1258
  %1260 = vrot.lane.b32.xlu0 %v1239, 64
  %v1261 = vpop.permute.xlu0 %1260
  %1262 = vrot.lane.b32.xlu0 %v1240, 64
  %v1263 = vpop.permute.xlu0 %1262
  %1264 = vrot.lane.b32.xlu0 %v1241, 64
  %v1265 = vpop.permute.xlu0 %1264
  %v1274 = vadd.f32 %v1131, %v1251
  %v1275 = vadd.f32 %v1132, %v1253
  %v1276 = vadd.f32 %v1133, %v1255
  %v1277 = vadd.f32 %v1134, %v1257
  %v1278 = vadd.f32 %v1135, %v1259
  %v1279 = vadd.f32 %v1136, %v1261
  %v1280 = vadd.f32 %v1137, %v1263
  %v1281 = vadd.f32 %v1138, %v1265
  %v1282 = vtanh.pop %v1274
  %v1283 = vtanh.pop %v1275
  %v1284 = vtanh.pop %v1276
  %v1285 = vtanh.pop %v1277
  %v1286 = vtanh.pop %v1278
  %v1287 = vtanh.pop %v1279
  %v1288 = vtanh.pop %v1280
  %v1289 = vtanh.pop %v1281
  %v1290 = vsub.f32 1.0, %v1195
  %v1291 = vsub.f32 1.0, %v1197
  %v1292 = vsub.f32 1.0, %v1199
  %v1293 = vsub.f32 1.0, %v1201
  %v1294 = vsub.f32 1.0, %v1203
  %v1295 = vsub.f32 1.0, %v1205
  %v1296 = vsub.f32 1.0, %v1207
  %v1297 = vsub.f32 1.0, %v1209
  %1306 = vrot.lane.b32.xlu0 %v1282, 96
  %v1307 = vpop.permute.xlu0 %1306
  %1308 = vrot.lane.b32.xlu0 %v1283, 96
  %v1309 = vpop.permute.xlu0 %1308
  %1310 = vrot.lane.b32.xlu0 %v1284, 96
  %v1311 = vpop.permute.xlu0 %1310
  %1312 = vrot.lane.b32.xlu0 %v1285, 96
  %v1313 = vpop.permute.xlu0 %1312
  %1314 = vrot.lane.b32.xlu0 %v1286, 96
  %v1315 = vpop.permute.xlu0 %1314
  %1316 = vrot.lane.b32.xlu0 %v1287, 96
  %v1317 = vpop.permute.xlu0 %1316
  %1318 = vrot.lane.b32.xlu0 %v1288, 96
  %v1319 = vpop.permute.xlu0 %1318
  %1320 = vrot.lane.b32.xlu0 %v1289, 96
  %v1321 = vpop.permute.xlu0 %1320
  %v1330 = vmul.f32 %v1290, %v1307
  %v1331 = vmul.f32 %v1291, %v1309
  %v1332 = vmul.f32 %v1292, %v1311
  %v1333 = vmul.f32 %v1293, %v1313
  %v1334 = vmul.f32 %v1294, %v1315
  %v1335 = vmul.f32 %v1295, %v1317
  %v1336 = vmul.f32 %v1296, %v1319
  %v1337 = vmul.f32 %v1297, %v1321
  %v1338 = vrot.slane %v451, 1
  %v1339 = vrot.slane %v451, 2
  %v1340 = vrot.slane %v451, 3
  %v1341 = vrot.slane %v451, 4
  %v1342 = vrot.slane %v451, 5
  %v1343 = vrot.slane %v451, 6
  %v1344 = vrot.slane %v451, 7
  %1345 = vrot.lane.b32.xlu0 %v451, 32
  %v1346 = vpop.permute.xlu0 %1345
  %1347 = vrot.lane.b32.xlu0 %v1338, 32
  %v1348 = vpop.permute.xlu0 %1347
  %1349 = vrot.lane.b32.xlu0 %v1339, 32
  %v1350 = vpop.permute.xlu0 %1349
  %1351 = vrot.lane.b32.xlu0 %v1340, 32
  %v1352 = vpop.permute.xlu0 %1351
  %1353 = vrot.lane.b32.xlu0 %v1341, 32
  %v1354 = vpop.permute.xlu0 %1353
  %1355 = vrot.lane.b32.xlu0 %v1342, 32
  %v1356 = vpop.permute.xlu0 %1355
  %1357 = vrot.lane.b32.xlu0 %v1343, 32
  %v1358 = vpop.permute.xlu0 %1357
  %1359 = vrot.lane.b32.xlu0 %v1344, 32
  %v1360 = vpop.permute.xlu0 %1359
  %v1369 = vmul.f32 %v1195, %v1346
  %v1370 = vmul.f32 %v1197, %v1348
  %v1371 = vmul.f32 %v1199, %v1350
  %v1372 = vmul.f32 %v1201, %v1352
  %v1373 = vmul.f32 %v1203, %v1354
  %v1374 = vmul.f32 %v1205, %v1356
  %v1375 = vmul.f32 %v1207, %v1358
  %v1376 = vmul.f32 %v1209, %v1360
  %v1377 = vadd.f32 %v1330, %v1369
  %v1378 = vadd.f32 %v1331, %v1370
  %v1379 = vadd.f32 %v1332, %v1371
  %v1380 = vadd.f32 %v1333, %v1372
  %v1381 = vadd.f32 %v1334, %v1373
  %v1382 = vadd.f32 %v1335, %v1374
  %v1383 = vadd.f32 %v1336, %v1375
  %v1384 = vadd.f32 %v1337, %v1376
  %v1393 = vrot.slane %v1378, 7
  %v1394 = vsel %vm801, %v1393, %v1377
  %v1395 = vrot.slane %v1379, 6
  %v1396 = vsel %vm803, %v1395, %v1394
  %v1397 = vrot.slane %v1380, 5
  %v1398 = vsel %vm805, %v1397, %v1396
  %v1399 = vrot.slane %v1381, 4
  %v1400 = vsel %vm807, %v1399, %v1398
  %v1401 = vrot.slane %v1382, 3
  %v1402 = vsel %vm809, %v1401, %v1400
  %v1403 = vrot.slane %v1383, 2
  %v1404 = vsel %vm811, %v1403, %v1402
  %v1405 = vrot.slane %v1384, 1
  %v1406 = vsel %vm813, %v1405, %v1404
  %1407 = vrot.lane.b32.xlu0 %v1406, 96
  %v1408 = vpop.permute.xlu0 %1407
  %v1409 = vsel %vm458, %v1408, 0
  %1411 = vmatprep.subr.mxu0 0.0
  %1412 = vmatpush1.msra.mxu0 0.0
  %1413 = vmatprep.subr.mxu0 0.0
  %1414 = vmatpush1.msra.mxu0 0.0
  %1415 = vmatprep.subr.mxu0 0.0
  %1416 = vmatpush1.msra.mxu0 0.0
  %1417 = vmatprep.subr.mxu0 0.0
  %1418 = vmatpush1.msra.mxu0 0.0
  %1419 = vmatprep.subr.mxu0 0.0
  %1420 = vmatpush1.msra.mxu0 0.0
  %1421 = vmatprep.subr.mxu0 0.0
  %1422 = vmatpush1.msra.mxu0 0.0
  %1423 = vmatprep.subr.mxu0 0.0
  %1424 = vmatpush1.msra.mxu0 0.0
  %1425 = vmatprep.subr.mxu0 0.0
  %1426 = vmatpush1.msra.mxu0 0.0
  %1427 = vmatprep.subr.mxu0 0.0
  %1428 = vmatpush1.msra.mxu0 0.0
  %1429 = vmatprep.subr.mxu0 0.0
  %1430 = vmatpush1.msra.mxu0 0.0
  %1431 = vmatprep.subr.mxu0 0.0
  %1432 = vmatpush1.msra.mxu0 0.0
  %1433 = vmatprep.subr.mxu0 0.0
  %1434 = vmatpush1.msra.mxu0 0.0
  %1435 = vmatprep.subr.mxu0 0.0
  %1436 = vmatpush1.msra.mxu0 %v29
  %1437 = vmatprep.subr.mxu0 0.0
  %1438 = vmatpush1.msra.mxu0 %v28
  %1439 = vmatprep.subr.mxu0 0.0
  %1440 = vmatpush1.msra.mxu0 %v27
  %1441 = vmatprep.subr.mxu0 0.0
  %1442 = vmatpush1.msra.mxu0 %v26
  %1443 = vmatprep.subr.mxu0 0.0
  %1444 = vmatpush2.msra.mxu0 0.0
  %1445 = vmatprep.subr.mxu0 0.0
  %1446 = vmatpush2.msra.mxu0 0.0
  %1447 = vmatprep.subr.mxu0 0.0
  %1448 = vmatpush2.msra.mxu0 0.0
  %1449 = vmatprep.subr.mxu0 0.0
  %1450 = vmatpush2.msra.mxu0 0.0
  %1451 = vmatprep.subr.mxu0 0.0
  %1452 = vmatpush2.msra.mxu0 0.0
  %1453 = vmatprep.subr.mxu0 0.0
  %1454 = vmatpush2.msra.mxu0 0.0
  %1455 = vmatprep.subr.mxu0 0.0
  %1456 = vmatpush2.msra.mxu0 0.0
  %1457 = vmatprep.subr.mxu0 0.0
  %1458 = vmatpush2.msra.mxu0 0.0
  %1459 = vmatprep.subr.mxu0 0.0
  %1460 = vmatpush2.msra.mxu0 0.0
  %1461 = vmatprep.subr.mxu0 0.0
  %1462 = vmatpush2.msra.mxu0 0.0
  %1463 = vmatprep.subr.mxu0 0.0
  %1464 = vmatpush2.msra.mxu0 0.0
  %1465 = vmatprep.subr.mxu0 0.0
  %1466 = vmatpush2.msra.mxu0 0.0
  %1467 = vmatprep.subr.mxu0 0.0
  %1468 = vmatpush2.msra.mxu0 0.0
  %1469 = vmatprep.subr.mxu0 0.0
  %1470 = vmatpush2.msra.mxu0 0.0
  %1471 = vmatprep.subr.mxu0 0.0
  %1472 = vmatpush2.msra.mxu0 0.0
  %1473 = vmatprep.subr.mxu0 0.0
  %1474 = vmatpush2.msra.mxu0 0.0
  %1475 = vmatprep.mubr.f32.mxu0 0.0
  %1476 = vmatmul.mubr.f32.gmra.mxu0 %v1409
  %v1477 = vpop.f32.mrf.mxu0
  %v1478 = vadd.f32 %v456, %v1477
  %v1479 = vpop.f32.mrf.mxu0
  %1480 = vdwg.mxu0
  %v1482 = vcombine.high %v1478, %v1478
  %v1484 = vunpack.c.l.s4 1966171168
  %v1485 = vunpack.c.0.s8 %v1484
  %v1486 = vlaneseq
  %v1487 = vshrl.u32 %v1486, 7
  %v1488 = vsub.s32 %v1485, %v1487
  %v1489 = vrot.slane %v1478, %v1488
  %v1491 = vunpack.c.l.s4 1966171168
  %v1492 = vunpack.c.0.s8 %v1491
  %v1493 = vlaneseq
  %v1494 = vshrl.u32 %v1493, 7
  %v1495 = vsub.s32 %v1492, %v1494
  %v1496 = vrot.slane %v1482, %v1495
  %v1497 = vcombine.high %v1489, %v1489
  %v1498 = vcombine.high %v1496, %v1496
  %v1500 = vunpack.c.l.s4 1966171168
  %v1501 = vunpack.c.0.s8 %v1500
  %v1502 = vlaneseq
  %v1503 = vshrl.u32 %v1502, 7
  %v1504 = vsub.s32 %v1501, %v1503
  %v1505 = vrot.slane %v1489, %v1504
  %v1507 = vunpack.c.l.s4 1966171168
  %v1508 = vunpack.c.0.s8 %v1507
  %v1509 = vlaneseq
  %v1510 = vshrl.u32 %v1509, 7
  %v1511 = vsub.s32 %v1508, %v1510
  %v1512 = vrot.slane %v1496, %v1511
  %v1514 = vunpack.c.l.s4 1966171168
  %v1515 = vunpack.c.0.s8 %v1514
  %v1516 = vlaneseq
  %v1517 = vshrl.u32 %v1516, 7
  %v1518 = vsub.s32 %v1515, %v1517
  %v1519 = vrot.slane %v1497, %v1518
  %v1521 = vunpack.c.l.s4 1966171168
  %v1522 = vunpack.c.0.s8 %v1521
  %v1523 = vlaneseq
  %v1524 = vshrl.u32 %v1523, 7
  %v1525 = vsub.s32 %v1522, %v1524
  %v1526 = vrot.slane %v1498, %v1525
  %v1527 = vcombine.high %v1505, %v1505
  %v1528 = vcombine.high %v1512, %v1512
  %v1529 = vcombine.high %v1519, %v1519
  %v1530 = vcombine.high %v1526, %v1526
  %v1531 = vlaneseq
  %v1532 = vshrl.u32 %v1531, 7
  %v1533 = vsub.s32 0, %v1532
  %v1534 = vrot.slane %v1505, %v1533
  %v1535 = vlaneseq
  %v1536 = vshrl.u32 %v1535, 7
  %v1537 = vsub.s32 0, %v1536
  %v1538 = vrot.slane %v1519, %v1537
  %v1539 = vlaneseq
  %v1540 = vshrl.u32 %v1539, 7
  %v1541 = vsub.s32 0, %v1540
  %v1542 = vrot.slane %v1527, %v1541
  %v1543 = vlaneseq
  %v1544 = vshrl.u32 %v1543, 7
  %v1545 = vsub.s32 0, %v1544
  %v1546 = vrot.slane %v1529, %v1545
  %v1547 = vlaneseq
  %v1548 = vshrl.u32 %v1547, 7
  %v1549 = vsub.s32 0, %v1548
  %v1550 = vrot.slane %v1512, %v1549
  %v1551 = vlaneseq
  %v1552 = vshrl.u32 %v1551, 7
  %v1553 = vsub.s32 0, %v1552
  %v1554 = vrot.slane %v1526, %v1553
  %v1555 = vlaneseq
  %v1556 = vshrl.u32 %v1555, 7
  %v1557 = vsub.s32 0, %v1556
  %v1558 = vrot.slane %v1528, %v1557
  %v1559 = vlaneseq
  %v1560 = vshrl.u32 %v1559, 7
  %v1561 = vsub.s32 0, %v1560
  %v1562 = vrot.slane %v1530, %v1561
  %v1571 = vadd.f32 %v1534, %v631
  %v1572 = vadd.f32 %v1538, %v633
  %v1573 = vadd.f32 %v1542, %v635
  %v1574 = vadd.f32 %v1546, %v637
  %v1575 = vadd.f32 %v1550, %v639
  %v1576 = vadd.f32 %v1554, %v641
  %v1577 = vadd.f32 %v1558, %v643
  %v1578 = vadd.f32 %v1562, %v645
  %v1579 = vtanh.pop %v1571
  %v1580 = vtanh.pop %v1572
  %v1581 = vtanh.pop %v1573
  %v1582 = vtanh.pop %v1574
  %v1583 = vtanh.pop %v1575
  %v1584 = vtanh.pop %v1576
  %v1585 = vtanh.pop %v1577
  %v1586 = vtanh.pop %v1578
  %v1587 = vmul.f32 %v1579, %v676
  %v1588 = vmul.f32 %v1580, %v676
  %v1589 = vmul.f32 %v1581, %v676
  %v1590 = vmul.f32 %v1582, %v676
  %v1591 = vmul.f32 %v1583, %v676
  %v1592 = vmul.f32 %v1584, %v676
  %v1593 = vmul.f32 %v1585, %v676
  %v1594 = vmul.f32 %v1586, %v676
  %1603 = vrot.lane.b32.xlu0 %v1587, 32
  %v1604 = vpop.permute.xlu0 %1603
  %1605 = vrot.lane.b32.xlu0 %v1588, 32
  %v1606 = vpop.permute.xlu0 %1605
  %1607 = vrot.lane.b32.xlu0 %v1589, 32
  %v1608 = vpop.permute.xlu0 %1607
  %1609 = vrot.lane.b32.xlu0 %v1590, 32
  %v1610 = vpop.permute.xlu0 %1609
  %1611 = vrot.lane.b32.xlu0 %v1591, 32
  %v1612 = vpop.permute.xlu0 %1611
  %1613 = vrot.lane.b32.xlu0 %v1592, 32
  %v1614 = vpop.permute.xlu0 %1613
  %1615 = vrot.lane.b32.xlu0 %v1593, 32
  %v1616 = vpop.permute.xlu0 %1615
  %1617 = vrot.lane.b32.xlu0 %v1594, 32
  %v1618 = vpop.permute.xlu0 %1617
  %v1627 = vsel %vm458, %v1604, 0.0
  %1628 = vadd.xlane.f32.xlu0 %v1627
  %v1629 = vpop.xlane.xlu0 %1628
  %v1630 = vsel %vm458, %v1606, 0.0
  %1631 = vadd.xlane.f32.xlu0 %v1630
  %v1632 = vpop.xlane.xlu0 %1631
  %v1633 = vsel %vm458, %v1608, 0.0
  %1634 = vadd.xlane.f32.xlu0 %v1633
  %v1635 = vpop.xlane.xlu0 %1634
  %v1636 = vsel %vm458, %v1610, 0.0
  %1637 = vadd.xlane.f32.xlu0 %v1636
  %v1638 = vpop.xlane.xlu0 %1637
  %v1639 = vsel %vm458, %v1612, 0.0
  %1640 = vadd.xlane.f32.xlu0 %v1639
  %v1641 = vpop.xlane.xlu0 %1640
  %v1642 = vsel %vm458, %v1614, 0.0
  %1643 = vadd.xlane.f32.xlu0 %v1642
  %v1644 = vpop.xlane.xlu0 %1643
  %v1645 = vsel %vm458, %v1616, 0.0
  %1646 = vadd.xlane.f32.xlu0 %v1645
  %v1647 = vpop.xlane.xlu0 %1646
  %v1648 = vsel %vm458, %v1618, 0.0
  %1649 = vadd.xlane.f32.xlu0 %v1648
  %v1650 = vpop.xlane.xlu0 %1649
  %v1651 = vadd.f32 %v1629, %v749
  %v1652 = vadd.f32 %v1632, %v749
  %v1653 = vadd.f32 %v1635, %v749
  %v1654 = vadd.f32 %v1638, %v749
  %v1655 = vadd.f32 %v1641, %v749
  %v1656 = vadd.f32 %v1644, %v749
  %v1657 = vadd.f32 %v1647, %v749
  %v1658 = vadd.f32 %v1650, %v749
  %v1667 = vlaneseq
  %v1668 = vshrl.u32 %v1667, 7
  %v1669 = vsub.s32 %v768, %v1668
  %v1670 = vrot.slane %v1651, %v1669
  %v1671 = vlaneseq
  %v1672 = vshrl.u32 %v1671, 7
  %v1673 = vsub.s32 %v768, %v1672
  %v1674 = vrot.slane %v1652, %v1673
  %v1675 = vlaneseq
  %v1676 = vshrl.u32 %v1675, 7
  %v1677 = vsub.s32 %v768, %v1676
  %v1678 = vrot.slane %v1653, %v1677
  %v1679 = vlaneseq
  %v1680 = vshrl.u32 %v1679, 7
  %v1681 = vsub.s32 %v768, %v1680
  %v1682 = vrot.slane %v1654, %v1681
  %v1683 = vlaneseq
  %v1684 = vshrl.u32 %v1683, 7
  %v1685 = vsub.s32 %v768, %v1684
  %v1686 = vrot.slane %v1655, %v1685
  %v1687 = vlaneseq
  %v1688 = vshrl.u32 %v1687, 7
  %v1689 = vsub.s32 %v768, %v1688
  %v1690 = vrot.slane %v1656, %v1689
  %v1691 = vlaneseq
  %v1692 = vshrl.u32 %v1691, 7
  %v1693 = vsub.s32 %v768, %v1692
  %v1694 = vrot.slane %v1657, %v1693
  %v1695 = vlaneseq
  %v1696 = vshrl.u32 %v1695, 7
  %v1697 = vsub.s32 %v768, %v1696
  %v1698 = vrot.slane %v1658, %v1697
  %v1699 = vsel %vm801, %v1674, %v1670
  %v1700 = vsel %vm803, %v1678, %v1699
  %v1701 = vsel %vm805, %v1682, %v1700
  %v1702 = vsel %vm807, %v1686, %v1701
  %v1703 = vsel %vm809, %v1690, %v1702
  %v1704 = vsel %vm811, %v1694, %v1703
  %v1705 = vsel %vm813, %v1698, %v1704
  %v1707 = vsel %vm816, %v1705, -inf
  %1708 = vmax.xlane.f32.xlu0 %v1707
  %v1709 = vpop.xlane.xlu0 %1708
  %v1711 = vlaneseq
  %v1712 = vshrl.u32 %v1711, 7
  %v1713 = vsub.s32 0, %v1712
  %v1714 = vrot.slane %v1709, %v1713
  %v1715 = vlaneseq
  %v1716 = vshrl.u32 %v1715, 7
  %v1717 = vsub.s32 1, %v1716
  %v1718 = vrot.slane %v1709, %v1717
  %v1719 = vlaneseq
  %v1720 = vshrl.u32 %v1719, 7
  %v1721 = vsub.s32 2, %v1720
  %v1722 = vrot.slane %v1709, %v1721
  %v1723 = vlaneseq
  %v1724 = vshrl.u32 %v1723, 7
  %v1725 = vsub.s32 3, %v1724
  %v1726 = vrot.slane %v1709, %v1725
  %v1727 = vlaneseq
  %v1728 = vshrl.u32 %v1727, 7
  %v1729 = vsub.s32 4, %v1728
  %v1730 = vrot.slane %v1709, %v1729
  %v1731 = vlaneseq
  %v1732 = vshrl.u32 %v1731, 7
  %v1733 = vsub.s32 5, %v1732
  %v1734 = vrot.slane %v1709, %v1733
  %v1735 = vlaneseq
  %v1736 = vshrl.u32 %v1735, 7
  %v1737 = vsub.s32 6, %v1736
  %v1738 = vrot.slane %v1709, %v1737
  %v1739 = vlaneseq
  %v1740 = vshrl.u32 %v1739, 7
  %v1741 = vsub.s32 7, %v1740
  %v1742 = vrot.slane %v1709, %v1741
  %v1751 = vsub.f32 %v1651, %v1714
  %v1752 = vsub.f32 %v1652, %v1718
  %v1753 = vsub.f32 %v1653, %v1722
  %v1754 = vsub.f32 %v1654, %v1726
  %v1755 = vsub.f32 %v1655, %v1730
  %v1756 = vsub.f32 %v1656, %v1734
  %v1757 = vsub.f32 %v1657, %v1738
  %v1758 = vsub.f32 %v1658, %v1742
  %v1759 = vmul.f32 %v1751, 1.442695
  %v1760 = vpow.pop %v1759
  %v1761 = vmul.f32 %v1752, 1.442695
  %v1762 = vpow.pop %v1761
  %v1763 = vmul.f32 %v1753, 1.442695
  %v1764 = vpow.pop %v1763
  %v1765 = vmul.f32 %v1754, 1.442695
  %v1766 = vpow.pop %v1765
  %v1767 = vmul.f32 %v1755, 1.442695
  %v1768 = vpow.pop %v1767
  %v1769 = vmul.f32 %v1756, 1.442695
  %v1770 = vpow.pop %v1769
  %v1771 = vmul.f32 %v1757, 1.442695
  %v1772 = vpow.pop %v1771
  %v1773 = vmul.f32 %v1758, 1.442695
  %v1774 = vpow.pop %v1773
  %1783 = vset.pattern.permute.xlu0 0
  %1784 = vperm.xlu0 %1783, %v1760
  %v1785 = vpop.permute.xlu0 %1784
  %1786 = vset.pattern.permute.xlu0 0
  %1787 = vperm.xlu0 %1786, %v1762
  %v1788 = vpop.permute.xlu0 %1787
  %1789 = vset.pattern.permute.xlu0 0
  %1790 = vperm.xlu0 %1789, %v1764
  %v1791 = vpop.permute.xlu0 %1790
  %1792 = vset.pattern.permute.xlu0 0
  %1793 = vperm.xlu0 %1792, %v1766
  %v1794 = vpop.permute.xlu0 %1793
  %1795 = vset.pattern.permute.xlu0 0
  %1796 = vperm.xlu0 %1795, %v1768
  %v1797 = vpop.permute.xlu0 %1796
  %1798 = vset.pattern.permute.xlu0 0
  %1799 = vperm.xlu0 %1798, %v1770
  %v1800 = vpop.permute.xlu0 %1799
  %1801 = vset.pattern.permute.xlu0 0
  %1802 = vperm.xlu0 %1801, %v1772
  %v1803 = vpop.permute.xlu0 %1802
  %1804 = vset.pattern.permute.xlu0 0
  %1805 = vperm.xlu0 %1804, %v1774
  %v1806 = vpop.permute.xlu0 %1805
  %v1807 = vlaneseq
  %v1808 = vshrl.u32 %v1807, 7
  %v1809 = vsub.s32 %v768, %v1808
  %v1810 = vrot.slane %v1785, %v1809
  %v1811 = vlaneseq
  %v1812 = vshrl.u32 %v1811, 7
  %v1813 = vsub.s32 %v768, %v1812
  %v1814 = vrot.slane %v1788, %v1813
  %v1815 = vlaneseq
  %v1816 = vshrl.u32 %v1815, 7
  %v1817 = vsub.s32 %v768, %v1816
  %v1818 = vrot.slane %v1791, %v1817
  %v1819 = vlaneseq
  %v1820 = vshrl.u32 %v1819, 7
  %v1821 = vsub.s32 %v768, %v1820
  %v1822 = vrot.slane %v1794, %v1821
  %v1823 = vlaneseq
  %v1824 = vshrl.u32 %v1823, 7
  %v1825 = vsub.s32 %v768, %v1824
  %v1826 = vrot.slane %v1797, %v1825
  %v1827 = vlaneseq
  %v1828 = vshrl.u32 %v1827, 7
  %v1829 = vsub.s32 %v768, %v1828
  %v1830 = vrot.slane %v1800, %v1829
  %v1831 = vlaneseq
  %v1832 = vshrl.u32 %v1831, 7
  %v1833 = vsub.s32 %v768, %v1832
  %v1834 = vrot.slane %v1803, %v1833
  %v1835 = vlaneseq
  %v1836 = vshrl.u32 %v1835, 7
  %v1837 = vsub.s32 %v768, %v1836
  %v1838 = vrot.slane %v1806, %v1837
  %v1839 = vsel %vm801, %v1814, %v1810
  %v1840 = vsel %vm803, %v1818, %v1839
  %v1841 = vsel %vm805, %v1822, %v1840
  %v1842 = vsel %vm807, %v1826, %v1841
  %v1843 = vsel %vm809, %v1830, %v1842
  %v1844 = vsel %vm811, %v1834, %v1843
  %v1845 = vsel %vm813, %v1838, %v1844
  %v1847 = vsel %vm816, %v1845, 0.0
  %1848 = vadd.xlane.f32.xlu0 %v1847
  %v1849 = vpop.xlane.xlu0 %1848
  %v1850 = vrcp.pop %v1849
  %v1852 = vlaneseq
  %v1853 = vshrl.u32 %v1852, 7
  %v1854 = vsub.s32 0, %v1853
  %v1855 = vrot.slane %v1850, %v1854
  %v1856 = vlaneseq
  %v1857 = vshrl.u32 %v1856, 7
  %v1858 = vsub.s32 1, %v1857
  %v1859 = vrot.slane %v1850, %v1858
  %v1860 = vlaneseq
  %v1861 = vshrl.u32 %v1860, 7
  %v1862 = vsub.s32 2, %v1861
  %v1863 = vrot.slane %v1850, %v1862
  %v1864 = vlaneseq
  %v1865 = vshrl.u32 %v1864, 7
  %v1866 = vsub.s32 3, %v1865
  %v1867 = vrot.slane %v1850, %v1866
  %v1868 = vlaneseq
  %v1869 = vshrl.u32 %v1868, 7
  %v1870 = vsub.s32 4, %v1869
  %v1871 = vrot.slane %v1850, %v1870
  %v1872 = vlaneseq
  %v1873 = vshrl.u32 %v1872, 7
  %v1874 = vsub.s32 5, %v1873
  %v1875 = vrot.slane %v1850, %v1874
  %v1876 = vlaneseq
  %v1877 = vshrl.u32 %v1876, 7
  %v1878 = vsub.s32 6, %v1877
  %v1879 = vrot.slane %v1850, %v1878
  %v1880 = vlaneseq
  %v1881 = vshrl.u32 %v1880, 7
  %v1882 = vsub.s32 7, %v1881
  %v1883 = vrot.slane %v1850, %v1882
  %v1892 = vmul.f32 %v1760, %v1855
  %v1893 = vmul.f32 %v1762, %v1859
  %v1894 = vmul.f32 %v1764, %v1863
  %v1895 = vmul.f32 %v1766, %v1867
  %v1896 = vmul.f32 %v1768, %v1871
  %v1897 = vmul.f32 %v1770, %v1875
  %v1898 = vmul.f32 %v1772, %v1879
  %v1899 = vmul.f32 %v1774, %v1883
  %1901 = vset.pattern.permute.xlu0 0
  %1902 = vperm.xlu0 %1901, %v1892
  %v1903 = vpop.permute.xlu0 %1902
  %1906 = vset.pattern.permute.xlu0 0
  %1907 = vperm.xlu0 %1906, %v1893
  %v1908 = vpop.permute.xlu0 %1907
  %1911 = vset.pattern.permute.xlu0 0
  %1912 = vperm.xlu0 %1911, %v1894
  %v1913 = vpop.permute.xlu0 %1912
  %1916 = vset.pattern.permute.xlu0 0
  %1917 = vperm.xlu0 %1916, %v1895
  %v1918 = vpop.permute.xlu0 %1917
  %1921 = vset.pattern.permute.xlu0 0
  %1922 = vperm.xlu0 %1921, %v1896
  %v1923 = vpop.permute.xlu0 %1922
  %1926 = vset.pattern.permute.xlu0 0
  %1927 = vperm.xlu0 %1926, %v1897
  %v1928 = vpop.permute.xlu0 %1927
  %1931 = vset.pattern.permute.xlu0 0
  %1932 = vperm.xlu0 %1931, %v1898
  %v1933 = vpop.permute.xlu0 %1932
  %1936 = vset.pattern.permute.xlu0 0
  %1937 = vperm.xlu0 %1936, %v1899
  %v1938 = vpop.permute.xlu0 %1937
  %v1940 = vmul.f32 %v256, %v1903
  %v1941 = vmul.f32 %v261, %v1908
  %v1942 = vmul.f32 %v266, %v1913
  %v1943 = vmul.f32 %v271, %v1918
  %v1944 = vmul.f32 %v276, %v1923
  %v1945 = vmul.f32 %v281, %v1928
  %v1946 = vmul.f32 %v286, %v1933
  %v1947 = vmul.f32 %v291, %v1938
  %v1948 = vsel %vm442, %v1940, 0.0
  %v1949 = vrot.slane %v1948, 4
  %v1950 = vadd.f32 %v1948, %v1949
  %v1951 = vrot.slane %v1950, 2
  %v1952 = vadd.f32 %v1950, %v1951
  %v1953 = vrot.slane %v1952, 1
  %v1954 = vadd.f32 %v1952, %v1953
  %v1955 = vsel %vm442, %v1941, 0.0
  %v1956 = vrot.slane %v1955, 4
  %v1957 = vadd.f32 %v1955, %v1956
  %v1958 = vrot.slane %v1957, 2
  %v1959 = vadd.f32 %v1957, %v1958
  %v1960 = vrot.slane %v1959, 1
  %v1961 = vadd.f32 %v1959, %v1960
  %v1962 = vsel %vm442, %v1942, 0.0
  %v1963 = vrot.slane %v1962, 4
  %v1964 = vadd.f32 %v1962, %v1963
  %v1965 = vrot.slane %v1964, 2
  %v1966 = vadd.f32 %v1964, %v1965
  %v1967 = vrot.slane %v1966, 1
  %v1968 = vadd.f32 %v1966, %v1967
  %v1969 = vsel %vm442, %v1943, 0.0
  %v1970 = vrot.slane %v1969, 4
  %v1971 = vadd.f32 %v1969, %v1970
  %v1972 = vrot.slane %v1971, 2
  %v1973 = vadd.f32 %v1971, %v1972
  %v1974 = vrot.slane %v1973, 1
  %v1975 = vadd.f32 %v1973, %v1974
  %v1976 = vsel %vm442, %v1944, 0.0
  %v1977 = vrot.slane %v1976, 4
  %v1978 = vadd.f32 %v1976, %v1977
  %v1979 = vrot.slane %v1978, 2
  %v1980 = vadd.f32 %v1978, %v1979
  %v1981 = vrot.slane %v1980, 1
  %v1982 = vadd.f32 %v1980, %v1981
  %v1983 = vsel %vm442, %v1945, 0.0
  %v1984 = vrot.slane %v1983, 4
  %v1985 = vadd.f32 %v1983, %v1984
  %v1986 = vrot.slane %v1985, 2
  %v1987 = vadd.f32 %v1985, %v1986
  %v1988 = vrot.slane %v1987, 1
  %v1989 = vadd.f32 %v1987, %v1988
  %v1990 = vsel %vm442, %v1946, 0.0
  %v1991 = vrot.slane %v1990, 4
  %v1992 = vadd.f32 %v1990, %v1991
  %v1993 = vrot.slane %v1992, 2
  %v1994 = vadd.f32 %v1992, %v1993
  %v1995 = vrot.slane %v1994, 1
  %v1996 = vadd.f32 %v1994, %v1995
  %v1997 = vsel %vm442, %v1947, 0.0
  %v1998 = vrot.slane %v1997, 4
  %v1999 = vadd.f32 %v1997, %v1998
  %v2000 = vrot.slane %v1999, 2
  %v2001 = vadd.f32 %v1999, %v2000
  %v2002 = vrot.slane %v2001, 1
  %v2003 = vadd.f32 %v2001, %v2002
  %s2004 = scalar_lea.vmem [#allocation2], 8
  %v2005 = vld [vmem:[%s2004] sm:$0xff]
  %v2007 = vrot.slane %v2005, 1
  %v2008 = vrot.slane %v2005, 2
  %v2009 = vrot.slane %v2005, 3
  %v2010 = vrot.slane %v2005, 4
  %v2011 = vrot.slane %v2005, 5
  %v2012 = vrot.slane %v2005, 6
  %v2013 = vrot.slane %v2005, 7
  %v2022 = vadd.f32 %v1954, %v2005
  %v2023 = vadd.f32 %v1961, %v2007
  %v2024 = vadd.f32 %v1968, %v2008
  %v2025 = vadd.f32 %v1975, %v2009
  %v2026 = vadd.f32 %v1982, %v2010
  %v2027 = vadd.f32 %v1989, %v2011
  %v2028 = vadd.f32 %v1996, %v2012
  %v2029 = vadd.f32 %v2003, %v2013
  %v2030 = vrot.slane %v1478, 1
  %v2031 = vrot.slane %v1478, 2
  %v2032 = vrot.slane %v1478, 3
  %v2033 = vrot.slane %v1478, 4
  %v2034 = vrot.slane %v1478, 5
  %v2035 = vrot.slane %v1478, 6
  %v2036 = vrot.slane %v1478, 7
  %v2045 = vadd.f32 %v2022, %v1478
  %v2046 = vadd.f32 %v2023, %v2030
  %v2047 = vadd.f32 %v2024, %v2031
  %v2048 = vadd.f32 %v2025, %v2032
  %v2049 = vadd.f32 %v2026, %v2033
  %v2050 = vadd.f32 %v2027, %v2034
  %v2051 = vadd.f32 %v2028, %v2035
  %v2052 = vadd.f32 %v2029, %v2036
  %v2053 = vxor.u32 %v2045, 2147483648
  %v2054 = vxor.u32 %v2046, 2147483648
  %v2055 = vxor.u32 %v2047, 2147483648
  %v2056 = vxor.u32 %v2048, 2147483648
  %v2057 = vxor.u32 %v2049, 2147483648
  %v2058 = vxor.u32 %v2050, 2147483648
  %v2059 = vxor.u32 %v2051, 2147483648
  %v2060 = vxor.u32 %v2052, 2147483648
  %v2061 = vmul.f32 %v2053, 1.442695
  %v2062 = vpow.pop %v2061
  %v2063 = vmul.f32 %v2054, 1.442695
  %v2064 = vpow.pop %v2063
  %v2065 = vmul.f32 %v2055, 1.442695
  %v2066 = vpow.pop %v2065
  %v2067 = vmul.f32 %v2056, 1.442695
  %v2068 = vpow.pop %v2067
  %v2069 = vmul.f32 %v2057, 1.442695
  %v2070 = vpow.pop %v2069
  %v2071 = vmul.f32 %v2058, 1.442695
  %v2072 = vpow.pop %v2071
  %v2073 = vmul.f32 %v2059, 1.442695
  %v2074 = vpow.pop %v2073
  %v2075 = vmul.f32 %v2060, 1.442695
  %v2076 = vpow.pop %v2075
  %v2077 = vadd.f32 %v2062, 1.0
  %v2078 = vadd.f32 %v2064, 1.0
  %v2079 = vadd.f32 %v2066, 1.0
  %v2080 = vadd.f32 %v2068, 1.0
  %v2081 = vadd.f32 %v2070, 1.0
  %v2082 = vadd.f32 %v2072, 1.0
  %v2083 = vadd.f32 %v2074, 1.0
  %v2084 = vadd.f32 %v2076, 1.0
  %v2085 = vrcp.pop %v2077
  %v2086 = vmul.f32 1.0, %v2085
  %v2087 = vrcp.pop %v2078
  %v2088 = vmul.f32 1.0, %v2087
  %v2089 = vrcp.pop %v2079
  %v2090 = vmul.f32 1.0, %v2089
  %v2091 = vrcp.pop %v2080
  %v2092 = vmul.f32 1.0, %v2091
  %v2093 = vrcp.pop %v2081
  %v2094 = vmul.f32 1.0, %v2093
  %v2095 = vrcp.pop %v2082
  %v2096 = vmul.f32 1.0, %v2095
  %v2097 = vrcp.pop %v2083
  %v2098 = vmul.f32 1.0, %v2097
  %v2099 = vrcp.pop %v2084
  %v2100 = vmul.f32 1.0, %v2099
  %2101 = vrot.lane.b32.xlu0 %v1478, 64
  %v2102 = vpop.permute.xlu0 %2101
  %2103 = vrot.lane.b32.xlu0 %v2030, 64
  %v2104 = vpop.permute.xlu0 %2103
  %2105 = vrot.lane.b32.xlu0 %v2031, 64
  %v2106 = vpop.permute.xlu0 %2105
  %2107 = vrot.lane.b32.xlu0 %v2032, 64
  %v2108 = vpop.permute.xlu0 %2107
  %2109 = vrot.lane.b32.xlu0 %v2033, 64
  %v2110 = vpop.permute.xlu0 %2109
  %2111 = vrot.lane.b32.xlu0 %v2034, 64
  %v2112 = vpop.permute.xlu0 %2111
  %2113 = vrot.lane.b32.xlu0 %v2035, 64
  %v2114 = vpop.permute.xlu0 %2113
  %2115 = vrot.lane.b32.xlu0 %v2036, 64
  %v2116 = vpop.permute.xlu0 %2115
  %v2125 = vmul.f32 %v2086, %v2102
  %v2126 = vmul.f32 %v2088, %v2104
  %v2127 = vmul.f32 %v2090, %v2106
  %v2128 = vmul.f32 %v2092, %v2108
  %v2129 = vmul.f32 %v2094, %v2110
  %v2130 = vmul.f32 %v2096, %v2112
  %v2131 = vmul.f32 %v2098, %v2114
  %v2132 = vmul.f32 %v2100, %v2116
  %2141 = vrot.lane.b32.xlu0 %v2125, 64
  %v2142 = vpop.permute.xlu0 %2141
  %2143 = vrot.lane.b32.xlu0 %v2126, 64
  %v2144 = vpop.permute.xlu0 %2143
  %2145 = vrot.lane.b32.xlu0 %v2127, 64
  %v2146 = vpop.permute.xlu0 %2145
  %2147 = vrot.lane.b32.xlu0 %v2128, 64
  %v2148 = vpop.permute.xlu0 %2147
  %2149 = vrot.lane.b32.xlu0 %v2129, 64
  %v2150 = vpop.permute.xlu0 %2149
  %2151 = vrot.lane.b32.xlu0 %v2130, 64
  %v2152 = vpop.permute.xlu0 %2151
  %2153 = vrot.lane.b32.xlu0 %v2131, 64
  %v2154 = vpop.permute.xlu0 %2153
  %2155 = vrot.lane.b32.xlu0 %v2132, 64
  %v2156 = vpop.permute.xlu0 %2155
  %v2165 = vadd.f32 %v2022, %v2142
  %v2166 = vadd.f32 %v2023, %v2144
  %v2167 = vadd.f32 %v2024, %v2146
  %v2168 = vadd.f32 %v2025, %v2148
  %v2169 = vadd.f32 %v2026, %v2150
  %v2170 = vadd.f32 %v2027, %v2152
  %v2171 = vadd.f32 %v2028, %v2154
  %v2172 = vadd.f32 %v2029, %v2156
  %v2173 = vtanh.pop %v2165
  %v2174 = vtanh.pop %v2166
  %v2175 = vtanh.pop %v2167
  %v2176 = vtanh.pop %v2168
  %v2177 = vtanh.pop %v2169
  %v2178 = vtanh.pop %v2170
  %v2179 = vtanh.pop %v2171
  %v2180 = vtanh.pop %v2172
  %v2181 = vsub.f32 1.0, %v2086
  %v2182 = vsub.f32 1.0, %v2088
  %v2183 = vsub.f32 1.0, %v2090
  %v2184 = vsub.f32 1.0, %v2092
  %v2185 = vsub.f32 1.0, %v2094
  %v2186 = vsub.f32 1.0, %v2096
  %v2187 = vsub.f32 1.0, %v2098
  %v2188 = vsub.f32 1.0, %v2100
  %2197 = vrot.lane.b32.xlu0 %v2173, 96
  %v2198 = vpop.permute.xlu0 %2197
  %2199 = vrot.lane.b32.xlu0 %v2174, 96
  %v2200 = vpop.permute.xlu0 %2199
  %2201 = vrot.lane.b32.xlu0 %v2175, 96
  %v2202 = vpop.permute.xlu0 %2201
  %2203 = vrot.lane.b32.xlu0 %v2176, 96
  %v2204 = vpop.permute.xlu0 %2203
  %2205 = vrot.lane.b32.xlu0 %v2177, 96
  %v2206 = vpop.permute.xlu0 %2205
  %2207 = vrot.lane.b32.xlu0 %v2178, 96
  %v2208 = vpop.permute.xlu0 %2207
  %2209 = vrot.lane.b32.xlu0 %v2179, 96
  %v2210 = vpop.permute.xlu0 %2209
  %2211 = vrot.lane.b32.xlu0 %v2180, 96
  %v2212 = vpop.permute.xlu0 %2211
  %v2221 = vmul.f32 %v2181, %v2198
  %v2222 = vmul.f32 %v2182, %v2200
  %v2223 = vmul.f32 %v2183, %v2202
  %v2224 = vmul.f32 %v2184, %v2204
  %v2225 = vmul.f32 %v2185, %v2206
  %v2226 = vmul.f32 %v2186, %v2208
  %v2227 = vmul.f32 %v2187, %v2210
  %v2228 = vmul.f32 %v2188, %v2212
  %v2229 = vmul.f32 %v2086, %v1377
  %v2230 = vmul.f32 %v2088, %v1378
  %v2231 = vmul.f32 %v2090, %v1379
  %v2232 = vmul.f32 %v2092, %v1380
  %v2233 = vmul.f32 %v2094, %v1381
  %v2234 = vmul.f32 %v2096, %v1382
  %v2235 = vmul.f32 %v2098, %v1383
  %v2236 = vmul.f32 %v2100, %v1384
  %v2237 = vadd.f32 %v2221, %v2229
  %v2238 = vadd.f32 %v2222, %v2230
  %v2239 = vadd.f32 %v2223, %v2231
  %v2240 = vadd.f32 %v2224, %v2232
  %v2241 = vadd.f32 %v2225, %v2233
  %v2242 = vadd.f32 %v2226, %v2234
  %v2243 = vadd.f32 %v2227, %v2235
  %v2244 = vadd.f32 %v2228, %v2236
  %v2253 = vrot.slane %v2238, 7
  %v2254 = vsel %vm801, %v2253, %v2237
  %v2255 = vrot.slane %v2239, 6
  %v2256 = vsel %vm803, %v2255, %v2254
  %v2257 = vrot.slane %v2240, 5
  %v2258 = vsel %vm805, %v2257, %v2256
  %v2259 = vrot.slane %v2241, 4
  %v2260 = vsel %vm807, %v2259, %v2258
  %v2261 = vrot.slane %v2242, 3
  %v2262 = vsel %vm809, %v2261, %v2260
  %v2263 = vrot.slane %v2243, 2
  %v2264 = vsel %vm811, %v2263, %v2262
  %v2265 = vrot.slane %v2244, 1
  %v2266 = vsel %vm813, %v2265, %v2264
  %2267 = vrot.lane.b32.xlu0 %v2266, 96
  %v2268 = vpop.permute.xlu0 %2267
  %v2269 = vsel %vm458, %v2268, 0
  %2271 = vmatprep.subr.mxu0 0.0
  %2272 = vmatpush1.msra.mxu0 0.0
  %2273 = vmatprep.subr.mxu0 0.0
  %2274 = vmatpush1.msra.mxu0 0.0
  %2275 = vmatprep.subr.mxu0 0.0
  %2276 = vmatpush1.msra.mxu0 0.0
  %2277 = vmatprep.subr.mxu0 0.0
  %2278 = vmatpush1.msra.mxu0 0.0
  %2279 = vmatprep.subr.mxu0 0.0
  %2280 = vmatpush1.msra.mxu0 0.0
  %2281 = vmatprep.subr.mxu0 0.0
  %2282 = vmatpush1.msra.mxu0 0.0
  %2283 = vmatprep.subr.mxu0 0.0
  %2284 = vmatpush1.msra.mxu0 0.0
  %2285 = vmatprep.subr.mxu0 0.0
  %2286 = vmatpush1.msra.mxu0 0.0
  %2287 = vmatprep.subr.mxu0 0.0
  %2288 = vmatpush1.msra.mxu0 0.0
  %2289 = vmatprep.subr.mxu0 0.0
  %2290 = vmatpush1.msra.mxu0 0.0
  %2291 = vmatprep.subr.mxu0 0.0
  %2292 = vmatpush1.msra.mxu0 0.0
  %2293 = vmatprep.subr.mxu0 0.0
  %2294 = vmatpush1.msra.mxu0 0.0
  %2295 = vmatprep.subr.mxu0 0.0
  %2296 = vmatpush1.msra.mxu0 %v29
  %2297 = vmatprep.subr.mxu0 0.0
  %2298 = vmatpush1.msra.mxu0 %v28
  %2299 = vmatprep.subr.mxu0 0.0
  %2300 = vmatpush1.msra.mxu0 %v27
  %2301 = vmatprep.subr.mxu0 0.0
  %2302 = vmatpush1.msra.mxu0 %v26
  %2303 = vmatprep.subr.mxu0 0.0
  %2304 = vmatpush2.msra.mxu0 0.0
  %2305 = vmatprep.subr.mxu0 0.0
  %2306 = vmatpush2.msra.mxu0 0.0
  %2307 = vmatprep.subr.mxu0 0.0
  %2308 = vmatpush2.msra.mxu0 0.0
  %2309 = vmatprep.subr.mxu0 0.0
  %2310 = vmatpush2.msra.mxu0 0.0
  %2311 = vmatprep.subr.mxu0 0.0
  %2312 = vmatpush2.msra.mxu0 0.0
  %2313 = vmatprep.subr.mxu0 0.0
  %2314 = vmatpush2.msra.mxu0 0.0
  %2315 = vmatprep.subr.mxu0 0.0
  %2316 = vmatpush2.msra.mxu0 0.0
  %2317 = vmatprep.subr.mxu0 0.0
  %2318 = vmatpush2.msra.mxu0 0.0
  %2319 = vmatprep.subr.mxu0 0.0
  %2320 = vmatpush2.msra.mxu0 0.0
  %2321 = vmatprep.subr.mxu0 0.0
  %2322 = vmatpush2.msra.mxu0 0.0
  %2323 = vmatprep.subr.mxu0 0.0
  %2324 = vmatpush2.msra.mxu0 0.0
  %2325 = vmatprep.subr.mxu0 0.0
  %2326 = vmatpush2.msra.mxu0 0.0
  %2327 = vmatprep.subr.mxu0 0.0
  %2328 = vmatpush2.msra.mxu0 0.0
  %2329 = vmatprep.subr.mxu0 0.0
  %2330 = vmatpush2.msra.mxu0 0.0
  %2331 = vmatprep.subr.mxu0 0.0
  %2332 = vmatpush2.msra.mxu0 0.0
  %2333 = vmatprep.subr.mxu0 0.0
  %2334 = vmatpush2.msra.mxu0 0.0
  %2335 = vmatprep.mubr.f32.mxu0 0.0
  %2336 = vmatmul.mubr.f32.gmra.mxu0 %v2269
  %v2337 = vpop.f32.mrf.mxu0
  %v2338 = vadd.f32 %v456, %v2337
  %v2339 = vpop.f32.mrf.mxu0
  %2340 = vdwg.mxu0
  %v2342 = vcombine.high %v2338, %v2338
  %v2344 = vunpack.c.l.s4 1966171168
  %v2345 = vunpack.c.0.s8 %v2344
  %v2346 = vlaneseq
  %v2347 = vshrl.u32 %v2346, 7
  %v2348 = vsub.s32 %v2345, %v2347
  %v2349 = vrot.slane %v2338, %v2348
  %v2351 = vunpack.c.l.s4 1966171168
  %v2352 = vunpack.c.0.s8 %v2351
  %v2353 = vlaneseq
  %v2354 = vshrl.u32 %v2353, 7
  %v2355 = vsub.s32 %v2352, %v2354
  %v2356 = vrot.slane %v2342, %v2355
  %v2357 = vcombine.high %v2349, %v2349
  %v2358 = vcombine.high %v2356, %v2356
  %v2360 = vunpack.c.l.s4 1966171168
  %v2361 = vunpack.c.0.s8 %v2360
  %v2362 = vlaneseq
  %v2363 = vshrl.u32 %v2362, 7
  %v2364 = vsub.s32 %v2361, %v2363
  %v2365 = vrot.slane %v2349, %v2364
  %v2367 = vunpack.c.l.s4 1966171168
  %v2368 = vunpack.c.0.s8 %v2367
  %v2369 = vlaneseq
  %v2370 = vshrl.u32 %v2369, 7
  %v2371 = vsub.s32 %v2368, %v2370
  %v2372 = vrot.slane %v2356, %v2371
  %v2374 = vunpack.c.l.s4 1966171168
  %v2375 = vunpack.c.0.s8 %v2374
  %v2376 = vlaneseq
  %v2377 = vshrl.u32 %v2376, 7
  %v2378 = vsub.s32 %v2375, %v2377
  %v2379 = vrot.slane %v2357, %v2378
  %v2381 = vunpack.c.l.s4 1966171168
  %v2382 = vunpack.c.0.s8 %v2381
  %v2383 = vlaneseq
  %v2384 = vshrl.u32 %v2383, 7
  %v2385 = vsub.s32 %v2382, %v2384
  %v2386 = vrot.slane %v2358, %v2385
  %v2387 = vcombine.high %v2365, %v2365
  %v2388 = vcombine.high %v2372, %v2372
  %v2389 = vcombine.high %v2379, %v2379
  %v2390 = vcombine.high %v2386, %v2386
  %v2391 = vlaneseq
  %v2392 = vshrl.u32 %v2391, 7
  %v2393 = vsub.s32 0, %v2392
  %v2394 = vrot.slane %v2365, %v2393
  %v2395 = vlaneseq
  %v2396 = vshrl.u32 %v2395, 7
  %v2397 = vsub.s32 0, %v2396
  %v2398 = vrot.slane %v2379, %v2397
  %v2399 = vlaneseq
  %v2400 = vshrl.u32 %v2399, 7
  %v2401 = vsub.s32 0, %v2400
  %v2402 = vrot.slane %v2387, %v2401
  %v2403 = vlaneseq
  %v2404 = vshrl.u32 %v2403, 7
  %v2405 = vsub.s32 0, %v2404
  %v2406 = vrot.slane %v2389, %v2405
  %v2407 = vlaneseq
  %v2408 = vshrl.u32 %v2407, 7
  %v2409 = vsub.s32 0, %v2408
  %v2410 = vrot.slane %v2372, %v2409
  %v2411 = vlaneseq
  %v2412 = vshrl.u32 %v2411, 7
  %v2413 = vsub.s32 0, %v2412
  %v2414 = vrot.slane %v2386, %v2413
  %v2415 = vlaneseq
  %v2416 = vshrl.u32 %v2415, 7
  %v2417 = vsub.s32 0, %v2416
  %v2418 = vrot.slane %v2388, %v2417
  %v2419 = vlaneseq
  %v2420 = vshrl.u32 %v2419, 7
  %v2421 = vsub.s32 0, %v2420
  %v2422 = vrot.slane %v2390, %v2421
  %v2431 = vadd.f32 %v2394, %v631
  %v2432 = vadd.f32 %v2398, %v633
  %v2433 = vadd.f32 %v2402, %v635
  %v2434 = vadd.f32 %v2406, %v637
  %v2435 = vadd.f32 %v2410, %v639
  %v2436 = vadd.f32 %v2414, %v641
  %v2437 = vadd.f32 %v2418, %v643
  %v2438 = vadd.f32 %v2422, %v645
  %v2439 = vtanh.pop %v2431
  %v2440 = vtanh.pop %v2432
  %v2441 = vtanh.pop %v2433
  %v2442 = vtanh.pop %v2434
  %v2443 = vtanh.pop %v2435
  %v2444 = vtanh.pop %v2436
  %v2445 = vtanh.pop %v2437
  %v2446 = vtanh.pop %v2438
  %v2447 = vmul.f32 %v2439, %v676
  %v2448 = vmul.f32 %v2440, %v676
  %v2449 = vmul.f32 %v2441, %v676
  %v2450 = vmul.f32 %v2442, %v676
  %v2451 = vmul.f32 %v2443, %v676
  %v2452 = vmul.f32 %v2444, %v676
  %v2453 = vmul.f32 %v2445, %v676
  %v2454 = vmul.f32 %v2446, %v676
  %2463 = vrot.lane.b32.xlu0 %v2447, 32
  %v2464 = vpop.permute.xlu0 %2463
  %2465 = vrot.lane.b32.xlu0 %v2448, 32
  %v2466 = vpop.permute.xlu0 %2465
  %2467 = vrot.lane.b32.xlu0 %v2449, 32
  %v2468 = vpop.permute.xlu0 %2467
  %2469 = vrot.lane.b32.xlu0 %v2450, 32
  %v2470 = vpop.permute.xlu0 %2469
  %2471 = vrot.lane.b32.xlu0 %v2451, 32
  %v2472 = vpop.permute.xlu0 %2471
  %2473 = vrot.lane.b32.xlu0 %v2452, 32
  %v2474 = vpop.permute.xlu0 %2473
  %2475 = vrot.lane.b32.xlu0 %v2453, 32
  %v2476 = vpop.permute.xlu0 %2475
  %2477 = vrot.lane.b32.xlu0 %v2454, 32
  %v2478 = vpop.permute.xlu0 %2477
  %v2487 = vsel %vm458, %v2464, 0.0
  %2488 = vadd.xlane.f32.xlu0 %v2487
  %v2489 = vpop.xlane.xlu0 %2488
  %v2490 = vsel %vm458, %v2466, 0.0
  %2491 = vadd.xlane.f32.xlu0 %v2490
  %v2492 = vpop.xlane.xlu0 %2491
  %v2493 = vsel %vm458, %v2468, 0.0
  %2494 = vadd.xlane.f32.xlu0 %v2493
  %v2495 = vpop.xlane.xlu0 %2494
  %v2496 = vsel %vm458, %v2470, 0.0
  %2497 = vadd.xlane.f32.xlu0 %v2496
  %v2498 = vpop.xlane.xlu0 %2497
  %v2499 = vsel %vm458, %v2472, 0.0
  %2500 = vadd.xlane.f32.xlu0 %v2499
  %v2501 = vpop.xlane.xlu0 %2500
  %v2502 = vsel %vm458, %v2474, 0.0
  %2503 = vadd.xlane.f32.xlu0 %v2502
  %v2504 = vpop.xlane.xlu0 %2503
  %v2505 = vsel %vm458, %v2476, 0.0
  %2506 = vadd.xlane.f32.xlu0 %v2505
  %v2507 = vpop.xlane.xlu0 %2506
  %v2508 = vsel %vm458, %v2478, 0.0
  %2509 = vadd.xlane.f32.xlu0 %v2508
  %v2510 = vpop.xlane.xlu0 %2509
  %v2511 = vadd.f32 %v2489, %v749
  %v2512 = vadd.f32 %v2492, %v749
  %v2513 = vadd.f32 %v2495, %v749
  %v2514 = vadd.f32 %v2498, %v749
  %v2515 = vadd.f32 %v2501, %v749
  %v2516 = vadd.f32 %v2504, %v749
  %v2517 = vadd.f32 %v2507, %v749
  %v2518 = vadd.f32 %v2510, %v749
  %v2527 = vlaneseq
  %v2528 = vshrl.u32 %v2527, 7
  %v2529 = vsub.s32 %v768, %v2528
  %v2530 = vrot.slane %v2511, %v2529
  %v2531 = vlaneseq
  %v2532 = vshrl.u32 %v2531, 7
  %v2533 = vsub.s32 %v768, %v2532
  %v2534 = vrot.slane %v2512, %v2533
  %v2535 = vlaneseq
  %v2536 = vshrl.u32 %v2535, 7
  %v2537 = vsub.s32 %v768, %v2536
  %v2538 = vrot.slane %v2513, %v2537
  %v2539 = vlaneseq
  %v2540 = vshrl.u32 %v2539, 7
  %v2541 = vsub.s32 %v768, %v2540
  %v2542 = vrot.slane %v2514, %v2541
  %v2543 = vlaneseq
  %v2544 = vshrl.u32 %v2543, 7
  %v2545 = vsub.s32 %v768, %v2544
  %v2546 = vrot.slane %v2515, %v2545
  %v2547 = vlaneseq
  %v2548 = vshrl.u32 %v2547, 7
  %v2549 = vsub.s32 %v768, %v2548
  %v2550 = vrot.slane %v2516, %v2549
  %v2551 = vlaneseq
  %v2552 = vshrl.u32 %v2551, 7
  %v2553 = vsub.s32 %v768, %v2552
  %v2554 = vrot.slane %v2517, %v2553
  %v2555 = vlaneseq
  %v2556 = vshrl.u32 %v2555, 7
  %v2557 = vsub.s32 %v768, %v2556
  %v2558 = vrot.slane %v2518, %v2557
  %v2559 = vsel %vm801, %v2534, %v2530
  %v2560 = vsel %vm803, %v2538, %v2559
  %v2561 = vsel %vm805, %v2542, %v2560
  %v2562 = vsel %vm807, %v2546, %v2561
  %v2563 = vsel %vm809, %v2550, %v2562
  %v2564 = vsel %vm811, %v2554, %v2563
  %v2565 = vsel %vm813, %v2558, %v2564
  %v2567 = vsel %vm816, %v2565, -inf
  %2568 = vmax.xlane.f32.xlu0 %v2567
  %v2569 = vpop.xlane.xlu0 %2568
  %v2571 = vlaneseq
  %v2572 = vshrl.u32 %v2571, 7
  %v2573 = vsub.s32 0, %v2572
  %v2574 = vrot.slane %v2569, %v2573
  %v2575 = vlaneseq
  %v2576 = vshrl.u32 %v2575, 7
  %v2577 = vsub.s32 1, %v2576
  %v2578 = vrot.slane %v2569, %v2577
  %v2579 = vlaneseq
  %v2580 = vshrl.u32 %v2579, 7
  %v2581 = vsub.s32 2, %v2580
  %v2582 = vrot.slane %v2569, %v2581
  %v2583 = vlaneseq
  %v2584 = vshrl.u32 %v2583, 7
  %v2585 = vsub.s32 3, %v2584
  %v2586 = vrot.slane %v2569, %v2585
  %v2587 = vlaneseq
  %v2588 = vshrl.u32 %v2587, 7
  %v2589 = vsub.s32 4, %v2588
  %v2590 = vrot.slane %v2569, %v2589
  %v2591 = vlaneseq
  %v2592 = vshrl.u32 %v2591, 7
  %v2593 = vsub.s32 5, %v2592
  %v2594 = vrot.slane %v2569, %v2593
  %v2595 = vlaneseq
  %v2596 = vshrl.u32 %v2595, 7
  %v2597 = vsub.s32 6, %v2596
  %v2598 = vrot.slane %v2569, %v2597
  %v2599 = vlaneseq
  %v2600 = vshrl.u32 %v2599, 7
  %v2601 = vsub.s32 7, %v2600
  %v2602 = vrot.slane %v2569, %v2601
  %v2611 = vsub.f32 %v2511, %v2574
  %v2612 = vsub.f32 %v2512, %v2578
  %v2613 = vsub.f32 %v2513, %v2582
  %v2614 = vsub.f32 %v2514, %v2586
  %v2615 = vsub.f32 %v2515, %v2590
  %v2616 = vsub.f32 %v2516, %v2594
  %v2617 = vsub.f32 %v2517, %v2598
  %v2618 = vsub.f32 %v2518, %v2602
  %v2619 = vmul.f32 %v2611, 1.442695
  %v2620 = vpow.pop %v2619
  %v2621 = vmul.f32 %v2612, 1.442695
  %v2622 = vpow.pop %v2621
  %v2623 = vmul.f32 %v2613, 1.442695
  %v2624 = vpow.pop %v2623
  %v2625 = vmul.f32 %v2614, 1.442695
  %v2626 = vpow.pop %v2625
  %v2627 = vmul.f32 %v2615, 1.442695
  %v2628 = vpow.pop %v2627
  %v2629 = vmul.f32 %v2616, 1.442695
  %v2630 = vpow.pop %v2629
  %v2631 = vmul.f32 %v2617, 1.442695
  %v2632 = vpow.pop %v2631
  %v2633 = vmul.f32 %v2618, 1.442695
  %v2634 = vpow.pop %v2633
  %2643 = vset.pattern.permute.xlu0 0
  %2644 = vperm.xlu0 %2643, %v2620
  %v2645 = vpop.permute.xlu0 %2644
  %2646 = vset.pattern.permute.xlu0 0
  %2647 = vperm.xlu0 %2646, %v2622
  %v2648 = vpop.permute.xlu0 %2647
  %2649 = vset.pattern.permute.xlu0 0
  %2650 = vperm.xlu0 %2649, %v2624
  %v2651 = vpop.permute.xlu0 %2650
  %2652 = vset.pattern.permute.xlu0 0
  %2653 = vperm.xlu0 %2652, %v2626
  %v2654 = vpop.permute.xlu0 %2653
  %2655 = vset.pattern.permute.xlu0 0
  %2656 = vperm.xlu0 %2655, %v2628
  %v2657 = vpop.permute.xlu0 %2656
  %2658 = vset.pattern.permute.xlu0 0
  %2659 = vperm.xlu0 %2658, %v2630
  %v2660 = vpop.permute.xlu0 %2659
  %2661 = vset.pattern.permute.xlu0 0
  %2662 = vperm.xlu0 %2661, %v2632
  %v2663 = vpop.permute.xlu0 %2662
  %2664 = vset.pattern.permute.xlu0 0
  %2665 = vperm.xlu0 %2664, %v2634
  %v2666 = vpop.permute.xlu0 %2665
  %v2667 = vlaneseq
  %v2668 = vshrl.u32 %v2667, 7
  %v2669 = vsub.s32 %v768, %v2668
  %v2670 = vrot.slane %v2645, %v2669
  %v2671 = vlaneseq
  %v2672 = vshrl.u32 %v2671, 7
  %v2673 = vsub.s32 %v768, %v2672
  %v2674 = vrot.slane %v2648, %v2673
  %v2675 = vlaneseq
  %v2676 = vshrl.u32 %v2675, 7
  %v2677 = vsub.s32 %v768, %v2676
  %v2678 = vrot.slane %v2651, %v2677
  %v2679 = vlaneseq
  %v2680 = vshrl.u32 %v2679, 7
  %v2681 = vsub.s32 %v768, %v2680
  %v2682 = vrot.slane %v2654, %v2681
  %v2683 = vlaneseq
  %v2684 = vshrl.u32 %v2683, 7
  %v2685 = vsub.s32 %v768, %v2684
  %v2686 = vrot.slane %v2657, %v2685
  %v2687 = vlaneseq
  %v2688 = vshrl.u32 %v2687, 7
  %v2689 = vsub.s32 %v768, %v2688
  %v2690 = vrot.slane %v2660, %v2689
  %v2691 = vlaneseq
  %v2692 = vshrl.u32 %v2691, 7
  %v2693 = vsub.s32 %v768, %v2692
  %v2694 = vrot.slane %v2663, %v2693
  %v2695 = vlaneseq
  %v2696 = vshrl.u32 %v2695, 7
  %v2697 = vsub.s32 %v768, %v2696
  %v2698 = vrot.slane %v2666, %v2697
  %v2699 = vsel %vm801, %v2674, %v2670
  %v2700 = vsel %vm803, %v2678, %v2699
  %v2701 = vsel %vm805, %v2682, %v2700
  %v2702 = vsel %vm807, %v2686, %v2701
  %v2703 = vsel %vm809, %v2690, %v2702
  %v2704 = vsel %vm811, %v2694, %v2703
  %v2705 = vsel %vm813, %v2698, %v2704
  %v2707 = vsel %vm816, %v2705, 0.0
  %2708 = vadd.xlane.f32.xlu0 %v2707
  %v2709 = vpop.xlane.xlu0 %2708
  %v2710 = vrcp.pop %v2709
  %v2712 = vlaneseq
  %v2713 = vshrl.u32 %v2712, 7
  %v2714 = vsub.s32 0, %v2713
  %v2715 = vrot.slane %v2710, %v2714
  %v2716 = vlaneseq
  %v2717 = vshrl.u32 %v2716, 7
  %v2718 = vsub.s32 1, %v2717
  %v2719 = vrot.slane %v2710, %v2718
  %v2720 = vlaneseq
  %v2721 = vshrl.u32 %v2720, 7
  %v2722 = vsub.s32 2, %v2721
  %v2723 = vrot.slane %v2710, %v2722
  %v2724 = vlaneseq
  %v2725 = vshrl.u32 %v2724, 7
  %v2726 = vsub.s32 3, %v2725
  %v2727 = vrot.slane %v2710, %v2726
  %v2728 = vlaneseq
  %v2729 = vshrl.u32 %v2728, 7
  %v2730 = vsub.s32 4, %v2729
  %v2731 = vrot.slane %v2710, %v2730
  %v2732 = vlaneseq
  %v2733 = vshrl.u32 %v2732, 7
  %v2734 = vsub.s32 5, %v2733
  %v2735 = vrot.slane %v2710, %v2734
  %v2736 = vlaneseq
  %v2737 = vshrl.u32 %v2736, 7
  %v2738 = vsub.s32 6, %v2737
  %v2739 = vrot.slane %v2710, %v2738
  %v2740 = vlaneseq
  %v2741 = vshrl.u32 %v2740, 7
  %v2742 = vsub.s32 7, %v2741
  %v2743 = vrot.slane %v2710, %v2742
  %v2752 = vmul.f32 %v2620, %v2715
  %v2753 = vmul.f32 %v2622, %v2719
  %v2754 = vmul.f32 %v2624, %v2723
  %v2755 = vmul.f32 %v2626, %v2727
  %v2756 = vmul.f32 %v2628, %v2731
  %v2757 = vmul.f32 %v2630, %v2735
  %v2758 = vmul.f32 %v2632, %v2739
  %v2759 = vmul.f32 %v2634, %v2743
  %2761 = vset.pattern.permute.xlu0 0
  %2762 = vperm.xlu0 %2761, %v2752
  %v2763 = vpop.permute.xlu0 %2762
  %2766 = vset.pattern.permute.xlu0 0
  %2767 = vperm.xlu0 %2766, %v2753
  %v2768 = vpop.permute.xlu0 %2767
  %2771 = vset.pattern.permute.xlu0 0
  %2772 = vperm.xlu0 %2771, %v2754
  %v2773 = vpop.permute.xlu0 %2772
  %2776 = vset.pattern.permute.xlu0 0
  %2777 = vperm.xlu0 %2776, %v2755
  %v2778 = vpop.permute.xlu0 %2777
  %2781 = vset.pattern.permute.xlu0 0
  %2782 = vperm.xlu0 %2781, %v2756
  %v2783 = vpop.permute.xlu0 %2782
  %2786 = vset.pattern.permute.xlu0 0
  %2787 = vperm.xlu0 %2786, %v2757
  %v2788 = vpop.permute.xlu0 %2787
  %2791 = vset.pattern.permute.xlu0 0
  %2792 = vperm.xlu0 %2791, %v2758
  %v2793 = vpop.permute.xlu0 %2792
  %2796 = vset.pattern.permute.xlu0 0
  %2797 = vperm.xlu0 %2796, %v2759
  %v2798 = vpop.permute.xlu0 %2797
  %v2800 = vmul.f32 %v256, %v2763
  %v2801 = vmul.f32 %v261, %v2768
  %v2802 = vmul.f32 %v266, %v2773
  %v2803 = vmul.f32 %v271, %v2778
  %v2804 = vmul.f32 %v276, %v2783
  %v2805 = vmul.f32 %v281, %v2788
  %v2806 = vmul.f32 %v286, %v2793
  %v2807 = vmul.f32 %v291, %v2798
  %v2808 = vsel %vm442, %v2800, 0.0
  %v2809 = vrot.slane %v2808, 4
  %v2810 = vadd.f32 %v2808, %v2809
  %v2811 = vrot.slane %v2810, 2
  %v2812 = vadd.f32 %v2810, %v2811
  %v2813 = vrot.slane %v2812, 1
  %v2814 = vadd.f32 %v2812, %v2813
  %v2815 = vsel %vm442, %v2801, 0.0
  %v2816 = vrot.slane %v2815, 4
  %v2817 = vadd.f32 %v2815, %v2816
  %v2818 = vrot.slane %v2817, 2
  %v2819 = vadd.f32 %v2817, %v2818
  %v2820 = vrot.slane %v2819, 1
  %v2821 = vadd.f32 %v2819, %v2820
  %v2822 = vsel %vm442, %v2802, 0.0
  %v2823 = vrot.slane %v2822, 4
  %v2824 = vadd.f32 %v2822, %v2823
  %v2825 = vrot.slane %v2824, 2
  %v2826 = vadd.f32 %v2824, %v2825
  %v2827 = vrot.slane %v2826, 1
  %v2828 = vadd.f32 %v2826, %v2827
  %v2829 = vsel %vm442, %v2803, 0.0
  %v2830 = vrot.slane %v2829, 4
  %v2831 = vadd.f32 %v2829, %v2830
  %v2832 = vrot.slane %v2831, 2
  %v2833 = vadd.f32 %v2831, %v2832
  %v2834 = vrot.slane %v2833, 1
  %v2835 = vadd.f32 %v2833, %v2834
  %v2836 = vsel %vm442, %v2804, 0.0
  %v2837 = vrot.slane %v2836, 4
  %v2838 = vadd.f32 %v2836, %v2837
  %v2839 = vrot.slane %v2838, 2
  %v2840 = vadd.f32 %v2838, %v2839
  %v2841 = vrot.slane %v2840, 1
  %v2842 = vadd.f32 %v2840, %v2841
  %v2843 = vsel %vm442, %v2805, 0.0
  %v2844 = vrot.slane %v2843, 4
  %v2845 = vadd.f32 %v2843, %v2844
  %v2846 = vrot.slane %v2845, 2
  %v2847 = vadd.f32 %v2845, %v2846
  %v2848 = vrot.slane %v2847, 1
  %v2849 = vadd.f32 %v2847, %v2848
  %v2850 = vsel %vm442, %v2806, 0.0
  %v2851 = vrot.slane %v2850, 4
  %v2852 = vadd.f32 %v2850, %v2851
  %v2853 = vrot.slane %v2852, 2
  %v2854 = vadd.f32 %v2852, %v2853
  %v2855 = vrot.slane %v2854, 1
  %v2856 = vadd.f32 %v2854, %v2855
  %v2857 = vsel %vm442, %v2807, 0.0
  %v2858 = vrot.slane %v2857, 4
  %v2859 = vadd.f32 %v2857, %v2858
  %v2860 = vrot.slane %v2859, 2
  %v2861 = vadd.f32 %v2859, %v2860
  %v2862 = vrot.slane %v2861, 1
  %v2863 = vadd.f32 %v2861, %v2862
  %s2864 = scalar_lea.vmem [#allocation2], 16
  %v2865 = vld [vmem:[%s2864] sm:$0xff]
  %v2867 = vrot.slane %v2865, 1
  %v2868 = vrot.slane %v2865, 2
  %v2869 = vrot.slane %v2865, 3
  %v2870 = vrot.slane %v2865, 4
  %v2871 = vrot.slane %v2865, 5
  %v2872 = vrot.slane %v2865, 6
  %v2873 = vrot.slane %v2865, 7
  %v2882 = vadd.f32 %v2814, %v2865
  %v2883 = vadd.f32 %v2821, %v2867
  %v2884 = vadd.f32 %v2828, %v2868
  %v2885 = vadd.f32 %v2835, %v2869
  %v2886 = vadd.f32 %v2842, %v2870
  %v2887 = vadd.f32 %v2849, %v2871
  %v2888 = vadd.f32 %v2856, %v2872
  %v2889 = vadd.f32 %v2863, %v2873
  %v2890 = vrot.slane %v2338, 1
  %v2891 = vrot.slane %v2338, 2
  %v2892 = vrot.slane %v2338, 3
  %v2893 = vrot.slane %v2338, 4
  %v2894 = vrot.slane %v2338, 5
  %v2895 = vrot.slane %v2338, 6
  %v2896 = vrot.slane %v2338, 7
  %v2905 = vadd.f32 %v2882, %v2338
  %v2906 = vadd.f32 %v2883, %v2890
  %v2907 = vadd.f32 %v2884, %v2891
  %v2908 = vadd.f32 %v2885, %v2892
  %v2909 = vadd.f32 %v2886, %v2893
  %v2910 = vadd.f32 %v2887, %v2894
  %v2911 = vadd.f32 %v2888, %v2895
  %v2912 = vadd.f32 %v2889, %v2896
  %v2913 = vxor.u32 %v2905, 2147483648
  %v2914 = vxor.u32 %v2906, 2147483648
  %v2915 = vxor.u32 %v2907, 2147483648
  %v2916 = vxor.u32 %v2908, 2147483648
  %v2917 = vxor.u32 %v2909, 2147483648
  %v2918 = vxor.u32 %v2910, 2147483648
  %v2919 = vxor.u32 %v2911, 2147483648
  %v2920 = vxor.u32 %v2912, 2147483648
  %v2921 = vmul.f32 %v2913, 1.442695
  %v2922 = vpow.pop %v2921
  %v2923 = vmul.f32 %v2914, 1.442695
  %v2924 = vpow.pop %v2923
  %v2925 = vmul.f32 %v2915, 1.442695
  %v2926 = vpow.pop %v2925
  %v2927 = vmul.f32 %v2916, 1.442695
  %v2928 = vpow.pop %v2927
  %v2929 = vmul.f32 %v2917, 1.442695
  %v2930 = vpow.pop %v2929
  %v2931 = vmul.f32 %v2918, 1.442695
  %v2932 = vpow.pop %v2931
  %v2933 = vmul.f32 %v2919, 1.442695
  %v2934 = vpow.pop %v2933
  %v2935 = vmul.f32 %v2920, 1.442695
  %v2936 = vpow.pop %v2935
  %v2937 = vadd.f32 %v2922, 1.0
  %v2938 = vadd.f32 %v2924, 1.0
  %v2939 = vadd.f32 %v2926, 1.0
  %v2940 = vadd.f32 %v2928, 1.0
  %v2941 = vadd.f32 %v2930, 1.0
  %v2942 = vadd.f32 %v2932, 1.0
  %v2943 = vadd.f32 %v2934, 1.0
  %v2944 = vadd.f32 %v2936, 1.0
  %v2945 = vrcp.pop %v2937
  %v2946 = vmul.f32 1.0, %v2945
  %v2947 = vrcp.pop %v2938
  %v2948 = vmul.f32 1.0, %v2947
  %v2949 = vrcp.pop %v2939
  %v2950 = vmul.f32 1.0, %v2949
  %v2951 = vrcp.pop %v2940
  %v2952 = vmul.f32 1.0, %v2951
  %v2953 = vrcp.pop %v2941
  %v2954 = vmul.f32 1.0, %v2953
  %v2955 = vrcp.pop %v2942
  %v2956 = vmul.f32 1.0, %v2955
  %v2957 = vrcp.pop %v2943
  %v2958 = vmul.f32 1.0, %v2957
  %v2959 = vrcp.pop %v2944
  %v2960 = vmul.f32 1.0, %v2959
  %2961 = vrot.lane.b32.xlu0 %v2338, 64
  %v2962 = vpop.permute.xlu0 %2961
  %2963 = vrot.lane.b32.xlu0 %v2890, 64
  %v2964 = vpop.permute.xlu0 %2963
  %2965 = vrot.lane.b32.xlu0 %v2891, 64
  %v2966 = vpop.permute.xlu0 %2965
  %2967 = vrot.lane.b32.xlu0 %v2892, 64
  %v2968 = vpop.permute.xlu0 %2967
  %2969 = vrot.lane.b32.xlu0 %v2893, 64
  %v2970 = vpop.permute.xlu0 %2969
  %2971 = vrot.lane.b32.xlu0 %v2894, 64
  %v2972 = vpop.permute.xlu0 %2971
  %2973 = vrot.lane.b32.xlu0 %v2895, 64
  %v2974 = vpop.permute.xlu0 %2973
  %2975 = vrot.lane.b32.xlu0 %v2896, 64
  %v2976 = vpop.permute.xlu0 %2975
  %v2985 = vmul.f32 %v2946, %v2962
  %v2986 = vmul.f32 %v2948, %v2964
  %v2987 = vmul.f32 %v2950, %v2966
  %v2988 = vmul.f32 %v2952, %v2968
  %v2989 = vmul.f32 %v2954, %v2970
  %v2990 = vmul.f32 %v2956, %v2972
  %v2991 = vmul.f32 %v2958, %v2974
  %v2992 = vmul.f32 %v2960, %v2976
  %3001 = vrot.lane.b32.xlu0 %v2985, 64
  %v3002 = vpop.permute.xlu0 %3001
  %3003 = vrot.lane.b32.xlu0 %v2986, 64
  %v3004 = vpop.permute.xlu0 %3003
  %3005 = vrot.lane.b32.xlu0 %v2987, 64
  %v3006 = vpop.permute.xlu0 %3005
  %3007 = vrot.lane.b32.xlu0 %v2988, 64
  %v3008 = vpop.permute.xlu0 %3007
  %3009 = vrot.lane.b32.xlu0 %v2989, 64
  %v3010 = vpop.permute.xlu0 %3009
  %3011 = vrot.lane.b32.xlu0 %v2990, 64
  %v3012 = vpop.permute.xlu0 %3011
  %3013 = vrot.lane.b32.xlu0 %v2991, 64
  %v3014 = vpop.permute.xlu0 %3013
  %3015 = vrot.lane.b32.xlu0 %v2992, 64
  %v3016 = vpop.permute.xlu0 %3015
  %v3025 = vadd.f32 %v2882, %v3002
  %v3026 = vadd.f32 %v2883, %v3004
  %v3027 = vadd.f32 %v2884, %v3006
  %v3028 = vadd.f32 %v2885, %v3008
  %v3029 = vadd.f32 %v2886, %v3010
  %v3030 = vadd.f32 %v2887, %v3012
  %v3031 = vadd.f32 %v2888, %v3014
  %v3032 = vadd.f32 %v2889, %v3016
  %v3033 = vtanh.pop %v3025
  %v3034 = vtanh.pop %v3026
  %v3035 = vtanh.pop %v3027
  %v3036 = vtanh.pop %v3028
  %v3037 = vtanh.pop %v3029
  %v3038 = vtanh.pop %v3030
  %v3039 = vtanh.pop %v3031
  %v3040 = vtanh.pop %v3032
  %v3041 = vsub.f32 1.0, %v2946
  %v3042 = vsub.f32 1.0, %v2948
  %v3043 = vsub.f32 1.0, %v2950
  %v3044 = vsub.f32 1.0, %v2952
  %v3045 = vsub.f32 1.0, %v2954
  %v3046 = vsub.f32 1.0, %v2956
  %v3047 = vsub.f32 1.0, %v2958
  %v3048 = vsub.f32 1.0, %v2960
  %3057 = vrot.lane.b32.xlu0 %v3033, 96
  %v3058 = vpop.permute.xlu0 %3057
  %3059 = vrot.lane.b32.xlu0 %v3034, 96
  %v3060 = vpop.permute.xlu0 %3059
  %3061 = vrot.lane.b32.xlu0 %v3035, 96
  %v3062 = vpop.permute.xlu0 %3061
  %3063 = vrot.lane.b32.xlu0 %v3036, 96
  %v3064 = vpop.permute.xlu0 %3063
  %3065 = vrot.lane.b32.xlu0 %v3037, 96
  %v3066 = vpop.permute.xlu0 %3065
  %3067 = vrot.lane.b32.xlu0 %v3038, 96
  %v3068 = vpop.permute.xlu0 %3067
  %3069 = vrot.lane.b32.xlu0 %v3039, 96
  %v3070 = vpop.permute.xlu0 %3069
  %3071 = vrot.lane.b32.xlu0 %v3040, 96
  %v3072 = vpop.permute.xlu0 %3071
  %v3081 = vmul.f32 %v3041, %v3058
  %v3082 = vmul.f32 %v3042, %v3060
  %v3083 = vmul.f32 %v3043, %v3062
  %v3084 = vmul.f32 %v3044, %v3064
  %v3085 = vmul.f32 %v3045, %v3066
  %v3086 = vmul.f32 %v3046, %v3068
  %v3087 = vmul.f32 %v3047, %v3070
  %v3088 = vmul.f32 %v3048, %v3072
  %v3089 = vmul.f32 %v2946, %v2237
  %v3090 = vmul.f32 %v2948, %v2238
  %v3091 = vmul.f32 %v2950, %v2239
  %v3092 = vmul.f32 %v2952, %v2240
  %v3093 = vmul.f32 %v2954, %v2241
  %v3094 = vmul.f32 %v2956, %v2242
  %v3095 = vmul.f32 %v2958, %v2243
  %v3096 = vmul.f32 %v2960, %v2244
  %v3097 = vadd.f32 %v3081, %v3089
  %v3098 = vadd.f32 %v3082, %v3090
  %v3099 = vadd.f32 %v3083, %v3091
  %v3100 = vadd.f32 %v3084, %v3092
  %v3101 = vadd.f32 %v3085, %v3093
  %v3102 = vadd.f32 %v3086, %v3094
  %v3103 = vadd.f32 %v3087, %v3095
  %v3104 = vadd.f32 %v3088, %v3096
  %v3113 = vrot.slane %v3098, 7
  %v3114 = vsel %vm801, %v3113, %v3097
  %v3115 = vrot.slane %v3099, 6
  %v3116 = vsel %vm803, %v3115, %v3114
  %v3117 = vrot.slane %v3100, 5
  %v3118 = vsel %vm805, %v3117, %v3116
  %v3119 = vrot.slane %v3101, 4
  %v3120 = vsel %vm807, %v3119, %v3118
  %v3121 = vrot.slane %v3102, 3
  %v3122 = vsel %vm809, %v3121, %v3120
  %v3123 = vrot.slane %v3103, 2
  %v3124 = vsel %vm811, %v3123, %v3122
  %v3125 = vrot.slane %v3104, 1
  %v3126 = vsel %vm813, %v3125, %v3124
  %3127 = vrot.lane.b32.xlu0 %v3126, 96
  %v3128 = vpop.permute.xlu0 %3127
  %v3129 = vsel %vm458, %v3128, 0
  %3131 = vmatprep.subr.mxu0 0.0
  %3132 = vmatpush1.msra.mxu0 0.0
  %3133 = vmatprep.subr.mxu0 0.0
  %3134 = vmatpush1.msra.mxu0 0.0
  %3135 = vmatprep.subr.mxu0 0.0
  %3136 = vmatpush1.msra.mxu0 0.0
  %3137 = vmatprep.subr.mxu0 0.0
  %3138 = vmatpush1.msra.mxu0 0.0
  %3139 = vmatprep.subr.mxu0 0.0
  %3140 = vmatpush1.msra.mxu0 0.0
  %3141 = vmatprep.subr.mxu0 0.0
  %3142 = vmatpush1.msra.mxu0 0.0
  %3143 = vmatprep.subr.mxu0 0.0
  %3144 = vmatpush1.msra.mxu0 0.0
  %3145 = vmatprep.subr.mxu0 0.0
  %3146 = vmatpush1.msra.mxu0 0.0
  %3147 = vmatprep.subr.mxu0 0.0
  %3148 = vmatpush1.msra.mxu0 0.0
  %3149 = vmatprep.subr.mxu0 0.0
  %3150 = vmatpush1.msra.mxu0 0.0
  %3151 = vmatprep.subr.mxu0 0.0
  %3152 = vmatpush1.msra.mxu0 0.0
  %3153 = vmatprep.subr.mxu0 0.0
  %3154 = vmatpush1.msra.mxu0 0.0
  %3155 = vmatprep.subr.mxu0 0.0
  %3156 = vmatpush1.msra.mxu0 %v29
  %3157 = vmatprep.subr.mxu0 0.0
  %3158 = vmatpush1.msra.mxu0 %v28
  %3159 = vmatprep.subr.mxu0 0.0
  %3160 = vmatpush1.msra.mxu0 %v27
  %3161 = vmatprep.subr.mxu0 0.0
  %3162 = vmatpush1.msra.mxu0 %v26
  %3163 = vmatprep.subr.mxu0 0.0
  %3164 = vmatpush2.msra.mxu0 0.0
  %3165 = vmatprep.subr.mxu0 0.0
  %3166 = vmatpush2.msra.mxu0 0.0
  %3167 = vmatprep.subr.mxu0 0.0
  %3168 = vmatpush2.msra.mxu0 0.0
  %3169 = vmatprep.subr.mxu0 0.0
  %3170 = vmatpush2.msra.mxu0 0.0
  %3171 = vmatprep.subr.mxu0 0.0
  %3172 = vmatpush2.msra.mxu0 0.0
  %3173 = vmatprep.subr.mxu0 0.0
  %3174 = vmatpush2.msra.mxu0 0.0
  %3175 = vmatprep.subr.mxu0 0.0
  %3176 = vmatpush2.msra.mxu0 0.0
  %3177 = vmatprep.subr.mxu0 0.0
  %3178 = vmatpush2.msra.mxu0 0.0
  %3179 = vmatprep.subr.mxu0 0.0
  %3180 = vmatpush2.msra.mxu0 0.0
  %3181 = vmatprep.subr.mxu0 0.0
  %3182 = vmatpush2.msra.mxu0 0.0
  %3183 = vmatprep.subr.mxu0 0.0
  %3184 = vmatpush2.msra.mxu0 0.0
  %3185 = vmatprep.subr.mxu0 0.0
  %3186 = vmatpush2.msra.mxu0 0.0
  %3187 = vmatprep.subr.mxu0 0.0
  %3188 = vmatpush2.msra.mxu0 0.0
  %3189 = vmatprep.subr.mxu0 0.0
  %3190 = vmatpush2.msra.mxu0 0.0
  %3191 = vmatprep.subr.mxu0 0.0
  %3192 = vmatpush2.msra.mxu0 0.0
  %3193 = vmatprep.subr.mxu0 0.0
  %3194 = vmatpush2.msra.mxu0 0.0
  %3195 = vmatprep.mubr.f32.mxu0 0.0
  %3196 = vmatmul.mubr.f32.gmra.mxu0 %v3129
  %v3197 = vpop.f32.mrf.mxu0
  %v3198 = vadd.f32 %v456, %v3197
  %v3199 = vpop.f32.mrf.mxu0
  %3200 = vdwg.mxu0
  %v3202 = vcombine.high %v3198, %v3198
  %v3204 = vunpack.c.l.s4 1966171168
  %v3205 = vunpack.c.0.s8 %v3204
  %v3206 = vlaneseq
  %v3207 = vshrl.u32 %v3206, 7
  %v3208 = vsub.s32 %v3205, %v3207
  %v3209 = vrot.slane %v3198, %v3208
  %v3211 = vunpack.c.l.s4 1966171168
  %v3212 = vunpack.c.0.s8 %v3211
  %v3213 = vlaneseq
  %v3214 = vshrl.u32 %v3213, 7
  %v3215 = vsub.s32 %v3212, %v3214
  %v3216 = vrot.slane %v3202, %v3215
  %v3217 = vcombine.high %v3209, %v3209
  %v3218 = vcombine.high %v3216, %v3216
  %v3220 = vunpack.c.l.s4 1966171168
  %v3221 = vunpack.c.0.s8 %v3220
  %v3222 = vlaneseq
  %v3223 = vshrl.u32 %v3222, 7
  %v3224 = vsub.s32 %v3221, %v3223
  %v3225 = vrot.slane %v3209, %v3224
  %v3227 = vunpack.c.l.s4 1966171168
  %v3228 = vunpack.c.0.s8 %v3227
  %v3229 = vlaneseq
  %v3230 = vshrl.u32 %v3229, 7
  %v3231 = vsub.s32 %v3228, %v3230
  %v3232 = vrot.slane %v3216, %v3231
  %v3234 = vunpack.c.l.s4 1966171168
  %v3235 = vunpack.c.0.s8 %v3234
  %v3236 = vlaneseq
  %v3237 = vshrl.u32 %v3236, 7
  %v3238 = vsub.s32 %v3235, %v3237
  %v3239 = vrot.slane %v3217, %v3238
  %v3241 = vunpack.c.l.s4 1966171168
  %v3242 = vunpack.c.0.s8 %v3241
  %v3243 = vlaneseq
  %v3244 = vshrl.u32 %v3243, 7
  %v3245 = vsub.s32 %v3242, %v3244
  %v3246 = vrot.slane %v3218, %v3245
  %v3247 = vcombine.high %v3225, %v3225
  %v3248 = vcombine.high %v3232, %v3232
  %v3249 = vcombine.high %v3239, %v3239
  %v3250 = vcombine.high %v3246, %v3246
  %v3251 = vlaneseq
  %v3252 = vshrl.u32 %v3251, 7
  %v3253 = vsub.s32 0, %v3252
  %v3254 = vrot.slane %v3225, %v3253
  %v3255 = vlaneseq
  %v3256 = vshrl.u32 %v3255, 7
  %v3257 = vsub.s32 0, %v3256
  %v3258 = vrot.slane %v3239, %v3257
  %v3259 = vlaneseq
  %v3260 = vshrl.u32 %v3259, 7
  %v3261 = vsub.s32 0, %v3260
  %v3262 = vrot.slane %v3247, %v3261
  %v3263 = vlaneseq
  %v3264 = vshrl.u32 %v3263, 7
  %v3265 = vsub.s32 0, %v3264
  %v3266 = vrot.slane %v3249, %v3265
  %v3267 = vlaneseq
  %v3268 = vshrl.u32 %v3267, 7
  %v3269 = vsub.s32 0, %v3268
  %v3270 = vrot.slane %v3232, %v3269
  %v3271 = vlaneseq
  %v3272 = vshrl.u32 %v3271, 7
  %v3273 = vsub.s32 0, %v3272
  %v3274 = vrot.slane %v3246, %v3273
  %v3275 = vlaneseq
  %v3276 = vshrl.u32 %v3275, 7
  %v3277 = vsub.s32 0, %v3276
  %v3278 = vrot.slane %v3248, %v3277
  %v3279 = vlaneseq
  %v3280 = vshrl.u32 %v3279, 7
  %v3281 = vsub.s32 0, %v3280
  %v3282 = vrot.slane %v3250, %v3281
  %v3291 = vadd.f32 %v3254, %v631
  %v3292 = vadd.f32 %v3258, %v633
  %v3293 = vadd.f32 %v3262, %v635
  %v3294 = vadd.f32 %v3266, %v637
  %v3295 = vadd.f32 %v3270, %v639
  %v3296 = vadd.f32 %v3274, %v641
  %v3297 = vadd.f32 %v3278, %v643
  %v3298 = vadd.f32 %v3282, %v645
  %v3299 = vtanh.pop %v3291
  %v3300 = vtanh.pop %v3292
  %v3301 = vtanh.pop %v3293
  %v3302 = vtanh.pop %v3294
  %v3303 = vtanh.pop %v3295
  %v3304 = vtanh.pop %v3296
  %v3305 = vtanh.pop %v3297
  %v3306 = vtanh.pop %v3298
  %v3307 = vmul.f32 %v3299, %v676
  %v3308 = vmul.f32 %v3300, %v676
  %v3309 = vmul.f32 %v3301, %v676
  %v3310 = vmul.f32 %v3302, %v676
  %v3311 = vmul.f32 %v3303, %v676
  %v3312 = vmul.f32 %v3304, %v676
  %v3313 = vmul.f32 %v3305, %v676
  %v3314 = vmul.f32 %v3306, %v676
  %3323 = vrot.lane.b32.xlu0 %v3307, 32
  %v3324 = vpop.permute.xlu0 %3323
  %3325 = vrot.lane.b32.xlu0 %v3308, 32
  %v3326 = vpop.permute.xlu0 %3325
  %3327 = vrot.lane.b32.xlu0 %v3309, 32
  %v3328 = vpop.permute.xlu0 %3327
  %3329 = vrot.lane.b32.xlu0 %v3310, 32
  %v3330 = vpop.permute.xlu0 %3329
  %3331 = vrot.lane.b32.xlu0 %v3311, 32
  %v3332 = vpop.permute.xlu0 %3331
  %3333 = vrot.lane.b32.xlu0 %v3312, 32
  %v3334 = vpop.permute.xlu0 %3333
  %3335 = vrot.lane.b32.xlu0 %v3313, 32
  %v3336 = vpop.permute.xlu0 %3335
  %3337 = vrot.lane.b32.xlu0 %v3314, 32
  %v3338 = vpop.permute.xlu0 %3337
  %v3347 = vsel %vm458, %v3324, 0.0
  %3348 = vadd.xlane.f32.xlu0 %v3347
  %v3349 = vpop.xlane.xlu0 %3348
  %v3350 = vsel %vm458, %v3326, 0.0
  %3351 = vadd.xlane.f32.xlu0 %v3350
  %v3352 = vpop.xlane.xlu0 %3351
  %v3353 = vsel %vm458, %v3328, 0.0
  %3354 = vadd.xlane.f32.xlu0 %v3353
  %v3355 = vpop.xlane.xlu0 %3354
  %v3356 = vsel %vm458, %v3330, 0.0
  %3357 = vadd.xlane.f32.xlu0 %v3356
  %v3358 = vpop.xlane.xlu0 %3357
  %v3359 = vsel %vm458, %v3332, 0.0
  %3360 = vadd.xlane.f32.xlu0 %v3359
  %v3361 = vpop.xlane.xlu0 %3360
  %v3362 = vsel %vm458, %v3334, 0.0
  %3363 = vadd.xlane.f32.xlu0 %v3362
  %v3364 = vpop.xlane.xlu0 %3363
  %v3365 = vsel %vm458, %v3336, 0.0
  %3366 = vadd.xlane.f32.xlu0 %v3365
  %v3367 = vpop.xlane.xlu0 %3366
  %v3368 = vsel %vm458, %v3338, 0.0
  %3369 = vadd.xlane.f32.xlu0 %v3368
  %v3370 = vpop.xlane.xlu0 %3369
  %v3371 = vadd.f32 %v3349, %v749
  %v3372 = vadd.f32 %v3352, %v749
  %v3373 = vadd.f32 %v3355, %v749
  %v3374 = vadd.f32 %v3358, %v749
  %v3375 = vadd.f32 %v3361, %v749
  %v3376 = vadd.f32 %v3364, %v749
  %v3377 = vadd.f32 %v3367, %v749
  %v3378 = vadd.f32 %v3370, %v749
  %v3387 = vlaneseq
  %v3388 = vshrl.u32 %v3387, 7
  %v3389 = vsub.s32 %v768, %v3388
  %v3390 = vrot.slane %v3371, %v3389
  %v3391 = vlaneseq
  %v3392 = vshrl.u32 %v3391, 7
  %v3393 = vsub.s32 %v768, %v3392
  %v3394 = vrot.slane %v3372, %v3393
  %v3395 = vlaneseq
  %v3396 = vshrl.u32 %v3395, 7
  %v3397 = vsub.s32 %v768, %v3396
  %v3398 = vrot.slane %v3373, %v3397
  %v3399 = vlaneseq
  %v3400 = vshrl.u32 %v3399, 7
  %v3401 = vsub.s32 %v768, %v3400
  %v3402 = vrot.slane %v3374, %v3401
  %v3403 = vlaneseq
  %v3404 = vshrl.u32 %v3403, 7
  %v3405 = vsub.s32 %v768, %v3404
  %v3406 = vrot.slane %v3375, %v3405
  %v3407 = vlaneseq
  %v3408 = vshrl.u32 %v3407, 7
  %v3409 = vsub.s32 %v768, %v3408
  %v3410 = vrot.slane %v3376, %v3409
  %v3411 = vlaneseq
  %v3412 = vshrl.u32 %v3411, 7
  %v3413 = vsub.s32 %v768, %v3412
  %v3414 = vrot.slane %v3377, %v3413
  %v3415 = vlaneseq
  %v3416 = vshrl.u32 %v3415, 7
  %v3417 = vsub.s32 %v768, %v3416
  %v3418 = vrot.slane %v3378, %v3417
  %v3419 = vsel %vm801, %v3394, %v3390
  %v3420 = vsel %vm803, %v3398, %v3419
  %v3421 = vsel %vm805, %v3402, %v3420
  %v3422 = vsel %vm807, %v3406, %v3421
  %v3423 = vsel %vm809, %v3410, %v3422
  %v3424 = vsel %vm811, %v3414, %v3423
  %v3425 = vsel %vm813, %v3418, %v3424
  %v3427 = vsel %vm816, %v3425, -inf
  %3428 = vmax.xlane.f32.xlu0 %v3427
  %v3429 = vpop.xlane.xlu0 %3428
  %v3431 = vlaneseq
  %v3432 = vshrl.u32 %v3431, 7
  %v3433 = vsub.s32 0, %v3432
  %v3434 = vrot.slane %v3429, %v3433
  %v3435 = vlaneseq
  %v3436 = vshrl.u32 %v3435, 7
  %v3437 = vsub.s32 1, %v3436
  %v3438 = vrot.slane %v3429, %v3437
  %v3439 = vlaneseq
  %v3440 = vshrl.u32 %v3439, 7
  %v3441 = vsub.s32 2, %v3440
  %v3442 = vrot.slane %v3429, %v3441
  %v3443 = vlaneseq
  %v3444 = vshrl.u32 %v3443, 7
  %v3445 = vsub.s32 3, %v3444
  %v3446 = vrot.slane %v3429, %v3445
  %v3447 = vlaneseq
  %v3448 = vshrl.u32 %v3447, 7
  %v3449 = vsub.s32 4, %v3448
  %v3450 = vrot.slane %v3429, %v3449
  %v3451 = vlaneseq
  %v3452 = vshrl.u32 %v3451, 7
  %v3453 = vsub.s32 5, %v3452
  %v3454 = vrot.slane %v3429, %v3453
  %v3455 = vlaneseq
  %v3456 = vshrl.u32 %v3455, 7
  %v3457 = vsub.s32 6, %v3456
  %v3458 = vrot.slane %v3429, %v3457
  %v3459 = vlaneseq
  %v3460 = vshrl.u32 %v3459, 7
  %v3461 = vsub.s32 7, %v3460
  %v3462 = vrot.slane %v3429, %v3461
  %v3471 = vsub.f32 %v3371, %v3434
  %v3472 = vsub.f32 %v3372, %v3438
  %v3473 = vsub.f32 %v3373, %v3442
  %v3474 = vsub.f32 %v3374, %v3446
  %v3475 = vsub.f32 %v3375, %v3450
  %v3476 = vsub.f32 %v3376, %v3454
  %v3477 = vsub.f32 %v3377, %v3458
  %v3478 = vsub.f32 %v3378, %v3462
  %v3479 = vmul.f32 %v3471, 1.442695
  %v3480 = vpow.pop %v3479
  %v3481 = vmul.f32 %v3472, 1.442695
  %v3482 = vpow.pop %v3481
  %v3483 = vmul.f32 %v3473, 1.442695
  %v3484 = vpow.pop %v3483
  %v3485 = vmul.f32 %v3474, 1.442695
  %v3486 = vpow.pop %v3485
  %v3487 = vmul.f32 %v3475, 1.442695
  %v3488 = vpow.pop %v3487
  %v3489 = vmul.f32 %v3476, 1.442695
  %v3490 = vpow.pop %v3489
  %v3491 = vmul.f32 %v3477, 1.442695
  %v3492 = vpow.pop %v3491
  %v3493 = vmul.f32 %v3478, 1.442695
  %v3494 = vpow.pop %v3493
  %3503 = vset.pattern.permute.xlu0 0
  %3504 = vperm.xlu0 %3503, %v3480
  %v3505 = vpop.permute.xlu0 %3504
  %3506 = vset.pattern.permute.xlu0 0
  %3507 = vperm.xlu0 %3506, %v3482
  %v3508 = vpop.permute.xlu0 %3507
  %3509 = vset.pattern.permute.xlu0 0
  %3510 = vperm.xlu0 %3509, %v3484
  %v3511 = vpop.permute.xlu0 %3510
  %3512 = vset.pattern.permute.xlu0 0
  %3513 = vperm.xlu0 %3512, %v3486
  %v3514 = vpop.permute.xlu0 %3513
  %3515 = vset.pattern.permute.xlu0 0
  %3516 = vperm.xlu0 %3515, %v3488
  %v3517 = vpop.permute.xlu0 %3516
  %3518 = vset.pattern.permute.xlu0 0
  %3519 = vperm.xlu0 %3518, %v3490
  %v3520 = vpop.permute.xlu0 %3519
  %3521 = vset.pattern.permute.xlu0 0
  %3522 = vperm.xlu0 %3521, %v3492
  %v3523 = vpop.permute.xlu0 %3522
  %3524 = vset.pattern.permute.xlu0 0
  %3525 = vperm.xlu0 %3524, %v3494
  %v3526 = vpop.permute.xlu0 %3525
  %v3527 = vlaneseq
  %v3528 = vshrl.u32 %v3527, 7
  %v3529 = vsub.s32 %v768, %v3528
  %v3530 = vrot.slane %v3505, %v3529
  %v3531 = vlaneseq
  %v3532 = vshrl.u32 %v3531, 7
  %v3533 = vsub.s32 %v768, %v3532
  %v3534 = vrot.slane %v3508, %v3533
  %v3535 = vlaneseq
  %v3536 = vshrl.u32 %v3535, 7
  %v3537 = vsub.s32 %v768, %v3536
  %v3538 = vrot.slane %v3511, %v3537
  %v3539 = vlaneseq
  %v3540 = vshrl.u32 %v3539, 7
  %v3541 = vsub.s32 %v768, %v3540
  %v3542 = vrot.slane %v3514, %v3541
  %v3543 = vlaneseq
  %v3544 = vshrl.u32 %v3543, 7
  %v3545 = vsub.s32 %v768, %v3544
  %v3546 = vrot.slane %v3517, %v3545
  %v3547 = vlaneseq
  %v3548 = vshrl.u32 %v3547, 7
  %v3549 = vsub.s32 %v768, %v3548
  %v3550 = vrot.slane %v3520, %v3549
  %v3551 = vlaneseq
  %v3552 = vshrl.u32 %v3551, 7
  %v3553 = vsub.s32 %v768, %v3552
  %v3554 = vrot.slane %v3523, %v3553
  %v3555 = vlaneseq
  %v3556 = vshrl.u32 %v3555, 7
  %v3557 = vsub.s32 %v768, %v3556
  %v3558 = vrot.slane %v3526, %v3557
  %v3559 = vsel %vm801, %v3534, %v3530
  %v3560 = vsel %vm803, %v3538, %v3559
  %v3561 = vsel %vm805, %v3542, %v3560
  %v3562 = vsel %vm807, %v3546, %v3561
  %v3563 = vsel %vm809, %v3550, %v3562
  %v3564 = vsel %vm811, %v3554, %v3563
  %v3565 = vsel %vm813, %v3558, %v3564
  %v3567 = vsel %vm816, %v3565, 0.0
  %3568 = vadd.xlane.f32.xlu0 %v3567
  %v3569 = vpop.xlane.xlu0 %3568
  %v3570 = vrcp.pop %v3569
  %v3572 = vlaneseq
  %v3573 = vshrl.u32 %v3572, 7
  %v3574 = vsub.s32 0, %v3573
  %v3575 = vrot.slane %v3570, %v3574
  %v3576 = vlaneseq
  %v3577 = vshrl.u32 %v3576, 7
  %v3578 = vsub.s32 1, %v3577
  %v3579 = vrot.slane %v3570, %v3578
  %v3580 = vlaneseq
  %v3581 = vshrl.u32 %v3580, 7
  %v3582 = vsub.s32 2, %v3581
  %v3583 = vrot.slane %v3570, %v3582
  %v3584 = vlaneseq
  %v3585 = vshrl.u32 %v3584, 7
  %v3586 = vsub.s32 3, %v3585
  %v3587 = vrot.slane %v3570, %v3586
  %v3588 = vlaneseq
  %v3589 = vshrl.u32 %v3588, 7
  %v3590 = vsub.s32 4, %v3589
  %v3591 = vrot.slane %v3570, %v3590
  %v3592 = vlaneseq
  %v3593 = vshrl.u32 %v3592, 7
  %v3594 = vsub.s32 5, %v3593
  %v3595 = vrot.slane %v3570, %v3594
  %v3596 = vlaneseq
  %v3597 = vshrl.u32 %v3596, 7
  %v3598 = vsub.s32 6, %v3597
  %v3599 = vrot.slane %v3570, %v3598
  %v3600 = vlaneseq
  %v3601 = vshrl.u32 %v3600, 7
  %v3602 = vsub.s32 7, %v3601
  %v3603 = vrot.slane %v3570, %v3602
  %v3612 = vmul.f32 %v3480, %v3575
  %v3613 = vmul.f32 %v3482, %v3579
  %v3614 = vmul.f32 %v3484, %v3583
  %v3615 = vmul.f32 %v3486, %v3587
  %v3616 = vmul.f32 %v3488, %v3591
  %v3617 = vmul.f32 %v3490, %v3595
  %v3618 = vmul.f32 %v3492, %v3599
  %v3619 = vmul.f32 %v3494, %v3603
  %3621 = vset.pattern.permute.xlu0 0
  %3622 = vperm.xlu0 %3621, %v3612
  %v3623 = vpop.permute.xlu0 %3622
  %3626 = vset.pattern.permute.xlu0 0
  %3627 = vperm.xlu0 %3626, %v3613
  %v3628 = vpop.permute.xlu0 %3627
  %3631 = vset.pattern.permute.xlu0 0
  %3632 = vperm.xlu0 %3631, %v3614
  %v3633 = vpop.permute.xlu0 %3632
  %3636 = vset.pattern.permute.xlu0 0
  %3637 = vperm.xlu0 %3636, %v3615
  %v3638 = vpop.permute.xlu0 %3637
  %3641 = vset.pattern.permute.xlu0 0
  %3642 = vperm.xlu0 %3641, %v3616
  %v3643 = vpop.permute.xlu0 %3642
  %3646 = vset.pattern.permute.xlu0 0
  %3647 = vperm.xlu0 %3646, %v3617
  %v3648 = vpop.permute.xlu0 %3647
  %3651 = vset.pattern.permute.xlu0 0
  %3652 = vperm.xlu0 %3651, %v3618
  %v3653 = vpop.permute.xlu0 %3652
  %3656 = vset.pattern.permute.xlu0 0
  %3657 = vperm.xlu0 %3656, %v3619
  %v3658 = vpop.permute.xlu0 %3657
  %v3660 = vmul.f32 %v256, %v3623
  %v3661 = vmul.f32 %v261, %v3628
  %v3662 = vmul.f32 %v266, %v3633
  %v3663 = vmul.f32 %v271, %v3638
  %v3664 = vmul.f32 %v276, %v3643
  %v3665 = vmul.f32 %v281, %v3648
  %v3666 = vmul.f32 %v286, %v3653
  %v3667 = vmul.f32 %v291, %v3658
  %v3668 = vsel %vm442, %v3660, 0.0
  %v3669 = vrot.slane %v3668, 4
  %v3670 = vadd.f32 %v3668, %v3669
  %v3671 = vrot.slane %v3670, 2
  %v3672 = vadd.f32 %v3670, %v3671
  %v3673 = vrot.slane %v3672, 1
  %v3674 = vadd.f32 %v3672, %v3673
  %v3675 = vsel %vm442, %v3661, 0.0
  %v3676 = vrot.slane %v3675, 4
  %v3677 = vadd.f32 %v3675, %v3676
  %v3678 = vrot.slane %v3677, 2
  %v3679 = vadd.f32 %v3677, %v3678
  %v3680 = vrot.slane %v3679, 1
  %v3681 = vadd.f32 %v3679, %v3680
  %v3682 = vsel %vm442, %v3662, 0.0
  %v3683 = vrot.slane %v3682, 4
  %v3684 = vadd.f32 %v3682, %v3683
  %v3685 = vrot.slane %v3684, 2
  %v3686 = vadd.f32 %v3684, %v3685
  %v3687 = vrot.slane %v3686, 1
  %v3688 = vadd.f32 %v3686, %v3687
  %v3689 = vsel %vm442, %v3663, 0.0
  %v3690 = vrot.slane %v3689, 4
  %v3691 = vadd.f32 %v3689, %v3690
  %v3692 = vrot.slane %v3691, 2
  %v3693 = vadd.f32 %v3691, %v3692
  %v3694 = vrot.slane %v3693, 1
  %v3695 = vadd.f32 %v3693, %v3694
  %v3696 = vsel %vm442, %v3664, 0.0
  %v3697 = vrot.slane %v3696, 4
  %v3698 = vadd.f32 %v3696, %v3697
  %v3699 = vrot.slane %v3698, 2
  %v3700 = vadd.f32 %v3698, %v3699
  %v3701 = vrot.slane %v3700, 1
  %v3702 = vadd.f32 %v3700, %v3701
  %v3703 = vsel %vm442, %v3665, 0.0
  %v3704 = vrot.slane %v3703, 4
  %v3705 = vadd.f32 %v3703, %v3704
  %v3706 = vrot.slane %v3705, 2
  %v3707 = vadd.f32 %v3705, %v3706
  %v3708 = vrot.slane %v3707, 1
  %v3709 = vadd.f32 %v3707, %v3708
  %v3710 = vsel %vm442, %v3666, 0.0
  %v3711 = vrot.slane %v3710, 4
  %v3712 = vadd.f32 %v3710, %v3711
  %v3713 = vrot.slane %v3712, 2
  %v3714 = vadd.f32 %v3712, %v3713
  %v3715 = vrot.slane %v3714, 1
  %v3716 = vadd.f32 %v3714, %v3715
  %v3717 = vsel %vm442, %v3667, 0.0
  %v3718 = vrot.slane %v3717, 4
  %v3719 = vadd.f32 %v3717, %v3718
  %v3720 = vrot.slane %v3719, 2
  %v3721 = vadd.f32 %v3719, %v3720
  %v3722 = vrot.slane %v3721, 1
  %v3723 = vadd.f32 %v3721, %v3722
  %s3724 = scalar_lea.vmem [#allocation2], 24
  %v3725 = vld [vmem:[%s3724] sm:$0xff]
  %v3727 = vrot.slane %v3725, 1
  %v3728 = vrot.slane %v3725, 2
  %v3729 = vrot.slane %v3725, 3
  %v3730 = vrot.slane %v3725, 4
  %v3731 = vrot.slane %v3725, 5
  %v3732 = vrot.slane %v3725, 6
  %v3733 = vrot.slane %v3725, 7
  %v3742 = vadd.f32 %v3674, %v3725
  %v3743 = vadd.f32 %v3681, %v3727
  %v3744 = vadd.f32 %v3688, %v3728
  %v3745 = vadd.f32 %v3695, %v3729
  %v3746 = vadd.f32 %v3702, %v3730
  %v3747 = vadd.f32 %v3709, %v3731
  %v3748 = vadd.f32 %v3716, %v3732
  %v3749 = vadd.f32 %v3723, %v3733
  %v3750 = vrot.slane %v3198, 1
  %v3751 = vrot.slane %v3198, 2
  %v3752 = vrot.slane %v3198, 3
  %v3753 = vrot.slane %v3198, 4
  %v3754 = vrot.slane %v3198, 5
  %v3755 = vrot.slane %v3198, 6
  %v3756 = vrot.slane %v3198, 7
  %v3765 = vadd.f32 %v3742, %v3198
  %v3766 = vadd.f32 %v3743, %v3750
  %v3767 = vadd.f32 %v3744, %v3751
  %v3768 = vadd.f32 %v3745, %v3752
  %v3769 = vadd.f32 %v3746, %v3753
  %v3770 = vadd.f32 %v3747, %v3754
  %v3771 = vadd.f32 %v3748, %v3755
  %v3772 = vadd.f32 %v3749, %v3756
  %v3773 = vxor.u32 %v3765, 2147483648
  %v3774 = vxor.u32 %v3766, 2147483648
  %v3775 = vxor.u32 %v3767, 2147483648
  %v3776 = vxor.u32 %v3768, 2147483648
  %v3777 = vxor.u32 %v3769, 2147483648
  %v3778 = vxor.u32 %v3770, 2147483648
  %v3779 = vxor.u32 %v3771, 2147483648
  %v3780 = vxor.u32 %v3772, 2147483648
  %v3781 = vmul.f32 %v3773, 1.442695
  %v3782 = vpow.pop %v3781
  %v3783 = vmul.f32 %v3774, 1.442695
  %v3784 = vpow.pop %v3783
  %v3785 = vmul.f32 %v3775, 1.442695
  %v3786 = vpow.pop %v3785
  %v3787 = vmul.f32 %v3776, 1.442695
  %v3788 = vpow.pop %v3787
  %v3789 = vmul.f32 %v3777, 1.442695
  %v3790 = vpow.pop %v3789
  %v3791 = vmul.f32 %v3778, 1.442695
  %v3792 = vpow.pop %v3791
  %v3793 = vmul.f32 %v3779, 1.442695
  %v3794 = vpow.pop %v3793
  %v3795 = vmul.f32 %v3780, 1.442695
  %v3796 = vpow.pop %v3795
  %v3797 = vadd.f32 %v3782, 1.0
  %v3798 = vadd.f32 %v3784, 1.0
  %v3799 = vadd.f32 %v3786, 1.0
  %v3800 = vadd.f32 %v3788, 1.0
  %v3801 = vadd.f32 %v3790, 1.0
  %v3802 = vadd.f32 %v3792, 1.0
  %v3803 = vadd.f32 %v3794, 1.0
  %v3804 = vadd.f32 %v3796, 1.0
  %v3805 = vrcp.pop %v3797
  %v3806 = vmul.f32 1.0, %v3805
  %v3807 = vrcp.pop %v3798
  %v3808 = vmul.f32 1.0, %v3807
  %v3809 = vrcp.pop %v3799
  %v3810 = vmul.f32 1.0, %v3809
  %v3811 = vrcp.pop %v3800
  %v3812 = vmul.f32 1.0, %v3811
  %v3813 = vrcp.pop %v3801
  %v3814 = vmul.f32 1.0, %v3813
  %v3815 = vrcp.pop %v3802
  %v3816 = vmul.f32 1.0, %v3815
  %v3817 = vrcp.pop %v3803
  %v3818 = vmul.f32 1.0, %v3817
  %v3819 = vrcp.pop %v3804
  %v3820 = vmul.f32 1.0, %v3819
  %3821 = vrot.lane.b32.xlu0 %v3198, 64
  %v3822 = vpop.permute.xlu0 %3821
  %3823 = vrot.lane.b32.xlu0 %v3750, 64
  %v3824 = vpop.permute.xlu0 %3823
  %3825 = vrot.lane.b32.xlu0 %v3751, 64
  %v3826 = vpop.permute.xlu0 %3825
  %3827 = vrot.lane.b32.xlu0 %v3752, 64
  %v3828 = vpop.permute.xlu0 %3827
  %3829 = vrot.lane.b32.xlu0 %v3753, 64
  %v3830 = vpop.permute.xlu0 %3829
  %3831 = vrot.lane.b32.xlu0 %v3754, 64
  %v3832 = vpop.permute.xlu0 %3831
  %3833 = vrot.lane.b32.xlu0 %v3755, 64
  %v3834 = vpop.permute.xlu0 %3833
  %3835 = vrot.lane.b32.xlu0 %v3756, 64
  %v3836 = vpop.permute.xlu0 %3835
  %v3845 = vmul.f32 %v3806, %v3822
  %v3846 = vmul.f32 %v3808, %v3824
  %v3847 = vmul.f32 %v3810, %v3826
  %v3848 = vmul.f32 %v3812, %v3828
  %v3849 = vmul.f32 %v3814, %v3830
  %v3850 = vmul.f32 %v3816, %v3832
  %v3851 = vmul.f32 %v3818, %v3834
  %v3852 = vmul.f32 %v3820, %v3836
  %3861 = vrot.lane.b32.xlu0 %v3845, 64
  %v3862 = vpop.permute.xlu0 %3861
  %3863 = vrot.lane.b32.xlu0 %v3846, 64
  %v3864 = vpop.permute.xlu0 %3863
  %3865 = vrot.lane.b32.xlu0 %v3847, 64
  %v3866 = vpop.permute.xlu0 %3865
  %3867 = vrot.lane.b32.xlu0 %v3848, 64
  %v3868 = vpop.permute.xlu0 %3867
  %3869 = vrot.lane.b32.xlu0 %v3849, 64
  %v3870 = vpop.permute.xlu0 %3869
  %3871 = vrot.lane.b32.xlu0 %v3850, 64
  %v3872 = vpop.permute.xlu0 %3871
  %3873 = vrot.lane.b32.xlu0 %v3851, 64
  %v3874 = vpop.permute.xlu0 %3873
  %3875 = vrot.lane.b32.xlu0 %v3852, 64
  %v3876 = vpop.permute.xlu0 %3875
  %v3885 = vadd.f32 %v3742, %v3862
  %v3886 = vadd.f32 %v3743, %v3864
  %v3887 = vadd.f32 %v3744, %v3866
  %v3888 = vadd.f32 %v3745, %v3868
  %v3889 = vadd.f32 %v3746, %v3870
  %v3890 = vadd.f32 %v3747, %v3872
  %v3891 = vadd.f32 %v3748, %v3874
  %v3892 = vadd.f32 %v3749, %v3876
  %v3893 = vtanh.pop %v3885
  %v3894 = vtanh.pop %v3886
  %v3895 = vtanh.pop %v3887
  %v3896 = vtanh.pop %v3888
  %v3897 = vtanh.pop %v3889
  %v3898 = vtanh.pop %v3890
  %v3899 = vtanh.pop %v3891
  %v3900 = vtanh.pop %v3892
  %v3901 = vsub.f32 1.0, %v3806
  %v3902 = vsub.f32 1.0, %v3808
  %v3903 = vsub.f32 1.0, %v3810
  %v3904 = vsub.f32 1.0, %v3812
  %v3905 = vsub.f32 1.0, %v3814
  %v3906 = vsub.f32 1.0, %v3816
  %v3907 = vsub.f32 1.0, %v3818
  %v3908 = vsub.f32 1.0, %v3820
  %3917 = vrot.lane.b32.xlu0 %v3893, 96
  %v3918 = vpop.permute.xlu0 %3917
  %3919 = vrot.lane.b32.xlu0 %v3894, 96
  %v3920 = vpop.permute.xlu0 %3919
  %3921 = vrot.lane.b32.xlu0 %v3895, 96
  %v3922 = vpop.permute.xlu0 %3921
  %3923 = vrot.lane.b32.xlu0 %v3896, 96
  %v3924 = vpop.permute.xlu0 %3923
  %3925 = vrot.lane.b32.xlu0 %v3897, 96
  %v3926 = vpop.permute.xlu0 %3925
  %3927 = vrot.lane.b32.xlu0 %v3898, 96
  %v3928 = vpop.permute.xlu0 %3927
  %3929 = vrot.lane.b32.xlu0 %v3899, 96
  %v3930 = vpop.permute.xlu0 %3929
  %3931 = vrot.lane.b32.xlu0 %v3900, 96
  %v3932 = vpop.permute.xlu0 %3931
  %v3941 = vmul.f32 %v3901, %v3918
  %v3942 = vmul.f32 %v3902, %v3920
  %v3943 = vmul.f32 %v3903, %v3922
  %v3944 = vmul.f32 %v3904, %v3924
  %v3945 = vmul.f32 %v3905, %v3926
  %v3946 = vmul.f32 %v3906, %v3928
  %v3947 = vmul.f32 %v3907, %v3930
  %v3948 = vmul.f32 %v3908, %v3932
  %v3949 = vmul.f32 %v3806, %v3097
  %v3950 = vmul.f32 %v3808, %v3098
  %v3951 = vmul.f32 %v3810, %v3099
  %v3952 = vmul.f32 %v3812, %v3100
  %v3953 = vmul.f32 %v3814, %v3101
  %v3954 = vmul.f32 %v3816, %v3102
  %v3955 = vmul.f32 %v3818, %v3103
  %v3956 = vmul.f32 %v3820, %v3104
  %v3957 = vadd.f32 %v3941, %v3949
  %v3958 = vadd.f32 %v3942, %v3950
  %v3959 = vadd.f32 %v3943, %v3951
  %v3960 = vadd.f32 %v3944, %v3952
  %v3961 = vadd.f32 %v3945, %v3953
  %v3962 = vadd.f32 %v3946, %v3954
  %v3963 = vadd.f32 %v3947, %v3955
  %v3964 = vadd.f32 %v3948, %v3956
  %v3973 = vrot.slane %v3958, 7
  %v3974 = vsel %vm801, %v3973, %v3957
  %v3975 = vrot.slane %v3959, 6
  %v3976 = vsel %vm803, %v3975, %v3974
  %v3977 = vrot.slane %v3960, 5
  %v3978 = vsel %vm805, %v3977, %v3976
  %v3979 = vrot.slane %v3961, 4
  %v3980 = vsel %vm807, %v3979, %v3978
  %v3981 = vrot.slane %v3962, 3
  %v3982 = vsel %vm809, %v3981, %v3980
  %v3983 = vrot.slane %v3963, 2
  %v3984 = vsel %vm811, %v3983, %v3982
  %v3985 = vrot.slane %v3964, 1
  %v3986 = vsel %vm813, %v3985, %v3984
  %3987 = vrot.lane.b32.xlu0 %v3986, 96
  %v3988 = vpop.permute.xlu0 %3987
  %v3989 = vsel %vm458, %v3988, 0
  %3991 = vmatprep.subr.mxu0 0.0
  %3992 = vmatpush1.msra.mxu0 0.0
  %3993 = vmatprep.subr.mxu0 0.0
  %3994 = vmatpush1.msra.mxu0 0.0
  %3995 = vmatprep.subr.mxu0 0.0
  %3996 = vmatpush1.msra.mxu0 0.0
  %3997 = vmatprep.subr.mxu0 0.0
  %3998 = vmatpush1.msra.mxu0 0.0
  %3999 = vmatprep.subr.mxu0 0.0
  %4000 = vmatpush1.msra.mxu0 0.0
  %4001 = vmatprep.subr.mxu0 0.0
  %4002 = vmatpush1.msra.mxu0 0.0
  %4003 = vmatprep.subr.mxu0 0.0
  %4004 = vmatpush1.msra.mxu0 0.0
  %4005 = vmatprep.subr.mxu0 0.0
  %4006 = vmatpush1.msra.mxu0 0.0
  %4007 = vmatprep.subr.mxu0 0.0
  %4008 = vmatpush1.msra.mxu0 0.0
  %4009 = vmatprep.subr.mxu0 0.0
  %4010 = vmatpush1.msra.mxu0 0.0
  %4011 = vmatprep.subr.mxu0 0.0
  %4012 = vmatpush1.msra.mxu0 0.0
  %4013 = vmatprep.subr.mxu0 0.0
  %4014 = vmatpush1.msra.mxu0 0.0
  %4015 = vmatprep.subr.mxu0 0.0
  %4016 = vmatpush1.msra.mxu0 %v29
  %4017 = vmatprep.subr.mxu0 0.0
  %4018 = vmatpush1.msra.mxu0 %v28
  %4019 = vmatprep.subr.mxu0 0.0
  %4020 = vmatpush1.msra.mxu0 %v27
  %4021 = vmatprep.subr.mxu0 0.0
  %4022 = vmatpush1.msra.mxu0 %v26
  %4023 = vmatprep.subr.mxu0 0.0
  %4024 = vmatpush2.msra.mxu0 0.0
  %4025 = vmatprep.subr.mxu0 0.0
  %4026 = vmatpush2.msra.mxu0 0.0
  %4027 = vmatprep.subr.mxu0 0.0
  %4028 = vmatpush2.msra.mxu0 0.0
  %4029 = vmatprep.subr.mxu0 0.0
  %4030 = vmatpush2.msra.mxu0 0.0
  %4031 = vmatprep.subr.mxu0 0.0
  %4032 = vmatpush2.msra.mxu0 0.0
  %4033 = vmatprep.subr.mxu0 0.0
  %4034 = vmatpush2.msra.mxu0 0.0
  %4035 = vmatprep.subr.mxu0 0.0
  %4036 = vmatpush2.msra.mxu0 0.0
  %4037 = vmatprep.subr.mxu0 0.0
  %4038 = vmatpush2.msra.mxu0 0.0
  %4039 = vmatprep.subr.mxu0 0.0
  %4040 = vmatpush2.msra.mxu0 0.0
  %4041 = vmatprep.subr.mxu0 0.0
  %4042 = vmatpush2.msra.mxu0 0.0
  %4043 = vmatprep.subr.mxu0 0.0
  %4044 = vmatpush2.msra.mxu0 0.0
  %4045 = vmatprep.subr.mxu0 0.0
  %4046 = vmatpush2.msra.mxu0 0.0
  %4047 = vmatprep.subr.mxu0 0.0
  %4048 = vmatpush2.msra.mxu0 0.0
  %4049 = vmatprep.subr.mxu0 0.0
  %4050 = vmatpush2.msra.mxu0 0.0
  %4051 = vmatprep.subr.mxu0 0.0
  %4052 = vmatpush2.msra.mxu0 0.0
  %4053 = vmatprep.subr.mxu0 0.0
  %4054 = vmatpush2.msra.mxu0 0.0
  %4055 = vmatprep.mubr.f32.mxu0 0.0
  %4056 = vmatmul.mubr.f32.gmra.mxu0 %v3989
  %v4057 = vpop.f32.mrf.mxu0
  %v4058 = vadd.f32 %v456, %v4057
  %v4059 = vpop.f32.mrf.mxu0
  %4060 = vdwg.mxu0
  %v4062 = vcombine.high %v4058, %v4058
  %v4064 = vunpack.c.l.s4 1966171168
  %v4065 = vunpack.c.0.s8 %v4064
  %v4066 = vlaneseq
  %v4067 = vshrl.u32 %v4066, 7
  %v4068 = vsub.s32 %v4065, %v4067
  %v4069 = vrot.slane %v4058, %v4068
  %v4071 = vunpack.c.l.s4 1966171168
  %v4072 = vunpack.c.0.s8 %v4071
  %v4073 = vlaneseq
  %v4074 = vshrl.u32 %v4073, 7
  %v4075 = vsub.s32 %v4072, %v4074
  %v4076 = vrot.slane %v4062, %v4075
  %v4077 = vcombine.high %v4069, %v4069
  %v4078 = vcombine.high %v4076, %v4076
  %v4080 = vunpack.c.l.s4 1966171168
  %v4081 = vunpack.c.0.s8 %v4080
  %v4082 = vlaneseq
  %v4083 = vshrl.u32 %v4082, 7
  %v4084 = vsub.s32 %v4081, %v4083
  %v4085 = vrot.slane %v4069, %v4084
  %v4087 = vunpack.c.l.s4 1966171168
  %v4088 = vunpack.c.0.s8 %v4087
  %v4089 = vlaneseq
  %v4090 = vshrl.u32 %v4089, 7
  %v4091 = vsub.s32 %v4088, %v4090
  %v4092 = vrot.slane %v4076, %v4091
  %v4094 = vunpack.c.l.s4 1966171168
  %v4095 = vunpack.c.0.s8 %v4094
  %v4096 = vlaneseq
  %v4097 = vshrl.u32 %v4096, 7
  %v4098 = vsub.s32 %v4095, %v4097
  %v4099 = vrot.slane %v4077, %v4098
  %v4101 = vunpack.c.l.s4 1966171168
  %v4102 = vunpack.c.0.s8 %v4101
  %v4103 = vlaneseq
  %v4104 = vshrl.u32 %v4103, 7
  %v4105 = vsub.s32 %v4102, %v4104
  %v4106 = vrot.slane %v4078, %v4105
  %v4107 = vcombine.high %v4085, %v4085
  %v4108 = vcombine.high %v4092, %v4092
  %v4109 = vcombine.high %v4099, %v4099
  %v4110 = vcombine.high %v4106, %v4106
  %v4111 = vlaneseq
  %v4112 = vshrl.u32 %v4111, 7
  %v4113 = vsub.s32 0, %v4112
  %v4114 = vrot.slane %v4085, %v4113
  %v4115 = vlaneseq
  %v4116 = vshrl.u32 %v4115, 7
  %v4117 = vsub.s32 0, %v4116
  %v4118 = vrot.slane %v4099, %v4117
  %v4119 = vlaneseq
  %v4120 = vshrl.u32 %v4119, 7
  %v4121 = vsub.s32 0, %v4120
  %v4122 = vrot.slane %v4107, %v4121
  %v4123 = vlaneseq
  %v4124 = vshrl.u32 %v4123, 7
  %v4125 = vsub.s32 0, %v4124
  %v4126 = vrot.slane %v4109, %v4125
  %v4127 = vlaneseq
  %v4128 = vshrl.u32 %v4127, 7
  %v4129 = vsub.s32 0, %v4128
  %v4130 = vrot.slane %v4092, %v4129
  %v4131 = vlaneseq
  %v4132 = vshrl.u32 %v4131, 7
  %v4133 = vsub.s32 0, %v4132
  %v4134 = vrot.slane %v4106, %v4133
  %v4135 = vlaneseq
  %v4136 = vshrl.u32 %v4135, 7
  %v4137 = vsub.s32 0, %v4136
  %v4138 = vrot.slane %v4108, %v4137
  %v4139 = vlaneseq
  %v4140 = vshrl.u32 %v4139, 7
  %v4141 = vsub.s32 0, %v4140
  %v4142 = vrot.slane %v4110, %v4141
  %v4151 = vadd.f32 %v4114, %v631
  %v4152 = vadd.f32 %v4118, %v633
  %v4153 = vadd.f32 %v4122, %v635
  %v4154 = vadd.f32 %v4126, %v637
  %v4155 = vadd.f32 %v4130, %v639
  %v4156 = vadd.f32 %v4134, %v641
  %v4157 = vadd.f32 %v4138, %v643
  %v4158 = vadd.f32 %v4142, %v645
  %v4159 = vtanh.pop %v4151
  %v4160 = vtanh.pop %v4152
  %v4161 = vtanh.pop %v4153
  %v4162 = vtanh.pop %v4154
  %v4163 = vtanh.pop %v4155
  %v4164 = vtanh.pop %v4156
  %v4165 = vtanh.pop %v4157
  %v4166 = vtanh.pop %v4158
  %v4167 = vmul.f32 %v4159, %v676
  %v4168 = vmul.f32 %v4160, %v676
  %v4169 = vmul.f32 %v4161, %v676
  %v4170 = vmul.f32 %v4162, %v676
  %v4171 = vmul.f32 %v4163, %v676
  %v4172 = vmul.f32 %v4164, %v676
  %v4173 = vmul.f32 %v4165, %v676
  %v4174 = vmul.f32 %v4166, %v676
  %4183 = vrot.lane.b32.xlu0 %v4167, 32
  %v4184 = vpop.permute.xlu0 %4183
  %4185 = vrot.lane.b32.xlu0 %v4168, 32
  %v4186 = vpop.permute.xlu0 %4185
  %4187 = vrot.lane.b32.xlu0 %v4169, 32
  %v4188 = vpop.permute.xlu0 %4187
  %4189 = vrot.lane.b32.xlu0 %v4170, 32
  %v4190 = vpop.permute.xlu0 %4189
  %4191 = vrot.lane.b32.xlu0 %v4171, 32
  %v4192 = vpop.permute.xlu0 %4191
  %4193 = vrot.lane.b32.xlu0 %v4172, 32
  %v4194 = vpop.permute.xlu0 %4193
  %4195 = vrot.lane.b32.xlu0 %v4173, 32
  %v4196 = vpop.permute.xlu0 %4195
  %4197 = vrot.lane.b32.xlu0 %v4174, 32
  %v4198 = vpop.permute.xlu0 %4197
  %v4207 = vsel %vm458, %v4184, 0.0
  %4208 = vadd.xlane.f32.xlu0 %v4207
  %v4209 = vpop.xlane.xlu0 %4208
  %v4210 = vsel %vm458, %v4186, 0.0
  %4211 = vadd.xlane.f32.xlu0 %v4210
  %v4212 = vpop.xlane.xlu0 %4211
  %v4213 = vsel %vm458, %v4188, 0.0
  %4214 = vadd.xlane.f32.xlu0 %v4213
  %v4215 = vpop.xlane.xlu0 %4214
  %v4216 = vsel %vm458, %v4190, 0.0
  %4217 = vadd.xlane.f32.xlu0 %v4216
  %v4218 = vpop.xlane.xlu0 %4217
  %v4219 = vsel %vm458, %v4192, 0.0
  %4220 = vadd.xlane.f32.xlu0 %v4219
  %v4221 = vpop.xlane.xlu0 %4220
  %v4222 = vsel %vm458, %v4194, 0.0
  %4223 = vadd.xlane.f32.xlu0 %v4222
  %v4224 = vpop.xlane.xlu0 %4223
  %v4225 = vsel %vm458, %v4196, 0.0
  %4226 = vadd.xlane.f32.xlu0 %v4225
  %v4227 = vpop.xlane.xlu0 %4226
  %v4228 = vsel %vm458, %v4198, 0.0
  %4229 = vadd.xlane.f32.xlu0 %v4228
  %v4230 = vpop.xlane.xlu0 %4229
  %v4231 = vadd.f32 %v4209, %v749
  %v4232 = vadd.f32 %v4212, %v749
  %v4233 = vadd.f32 %v4215, %v749
  %v4234 = vadd.f32 %v4218, %v749
  %v4235 = vadd.f32 %v4221, %v749
  %v4236 = vadd.f32 %v4224, %v749
  %v4237 = vadd.f32 %v4227, %v749
  %v4238 = vadd.f32 %v4230, %v749
  %v4247 = vlaneseq
  %v4248 = vshrl.u32 %v4247, 7
  %v4249 = vsub.s32 %v768, %v4248
  %v4250 = vrot.slane %v4231, %v4249
  %v4251 = vlaneseq
  %v4252 = vshrl.u32 %v4251, 7
  %v4253 = vsub.s32 %v768, %v4252
  %v4254 = vrot.slane %v4232, %v4253
  %v4255 = vlaneseq
  %v4256 = vshrl.u32 %v4255, 7
  %v4257 = vsub.s32 %v768, %v4256
  %v4258 = vrot.slane %v4233, %v4257
  %v4259 = vlaneseq
  %v4260 = vshrl.u32 %v4259, 7
  %v4261 = vsub.s32 %v768, %v4260
  %v4262 = vrot.slane %v4234, %v4261
  %v4263 = vlaneseq
  %v4264 = vshrl.u32 %v4263, 7
  %v4265 = vsub.s32 %v768, %v4264
  %v4266 = vrot.slane %v4235, %v4265
  %v4267 = vlaneseq
  %v4268 = vshrl.u32 %v4267, 7
  %v4269 = vsub.s32 %v768, %v4268
  %v4270 = vrot.slane %v4236, %v4269
  %v4271 = vlaneseq
  %v4272 = vshrl.u32 %v4271, 7
  %v4273 = vsub.s32 %v768, %v4272
  %v4274 = vrot.slane %v4237, %v4273
  %v4275 = vlaneseq
  %v4276 = vshrl.u32 %v4275, 7
  %v4277 = vsub.s32 %v768, %v4276
  %v4278 = vrot.slane %v4238, %v4277
  %v4279 = vsel %vm801, %v4254, %v4250
  %v4280 = vsel %vm803, %v4258, %v4279
  %v4281 = vsel %vm805, %v4262, %v4280
  %v4282 = vsel %vm807, %v4266, %v4281
  %v4283 = vsel %vm809, %v4270, %v4282
  %v4284 = vsel %vm811, %v4274, %v4283
  %v4285 = vsel %vm813, %v4278, %v4284
  %v4287 = vsel %vm816, %v4285, -inf
  %4288 = vmax.xlane.f32.xlu0 %v4287
  %v4289 = vpop.xlane.xlu0 %4288
  %v4291 = vlaneseq
  %v4292 = vshrl.u32 %v4291, 7
  %v4293 = vsub.s32 0, %v4292
  %v4294 = vrot.slane %v4289, %v4293
  %v4295 = vlaneseq
  %v4296 = vshrl.u32 %v4295, 7
  %v4297 = vsub.s32 1, %v4296
  %v4298 = vrot.slane %v4289, %v4297
  %v4299 = vlaneseq
  %v4300 = vshrl.u32 %v4299, 7
  %v4301 = vsub.s32 2, %v4300
  %v4302 = vrot.slane %v4289, %v4301
  %v4303 = vlaneseq
  %v4304 = vshrl.u32 %v4303, 7
  %v4305 = vsub.s32 3, %v4304
  %v4306 = vrot.slane %v4289, %v4305
  %v4307 = vlaneseq
  %v4308 = vshrl.u32 %v4307, 7
  %v4309 = vsub.s32 4, %v4308
  %v4310 = vrot.slane %v4289, %v4309
  %v4311 = vlaneseq
  %v4312 = vshrl.u32 %v4311, 7
  %v4313 = vsub.s32 5, %v4312
  %v4314 = vrot.slane %v4289, %v4313
  %v4315 = vlaneseq
  %v4316 = vshrl.u32 %v4315, 7
  %v4317 = vsub.s32 6, %v4316
  %v4318 = vrot.slane %v4289, %v4317
  %v4319 = vlaneseq
  %v4320 = vshrl.u32 %v4319, 7
  %v4321 = vsub.s32 7, %v4320
  %v4322 = vrot.slane %v4289, %v4321
  %v4331 = vsub.f32 %v4231, %v4294
  %v4332 = vsub.f32 %v4232, %v4298
  %v4333 = vsub.f32 %v4233, %v4302
  %v4334 = vsub.f32 %v4234, %v4306
  %v4335 = vsub.f32 %v4235, %v4310
  %v4336 = vsub.f32 %v4236, %v4314
  %v4337 = vsub.f32 %v4237, %v4318
  %v4338 = vsub.f32 %v4238, %v4322
  %v4339 = vmul.f32 %v4331, 1.442695
  %v4340 = vpow.pop %v4339
  %v4341 = vmul.f32 %v4332, 1.442695
  %v4342 = vpow.pop %v4341
  %v4343 = vmul.f32 %v4333, 1.442695
  %v4344 = vpow.pop %v4343
  %v4345 = vmul.f32 %v4334, 1.442695
  %v4346 = vpow.pop %v4345
  %v4347 = vmul.f32 %v4335, 1.442695
  %v4348 = vpow.pop %v4347
  %v4349 = vmul.f32 %v4336, 1.442695
  %v4350 = vpow.pop %v4349
  %v4351 = vmul.f32 %v4337, 1.442695
  %v4352 = vpow.pop %v4351
  %v4353 = vmul.f32 %v4338, 1.442695
  %v4354 = vpow.pop %v4353
  %4363 = vset.pattern.permute.xlu0 0
  %4364 = vperm.xlu0 %4363, %v4340
  %v4365 = vpop.permute.xlu0 %4364
  %4366 = vset.pattern.permute.xlu0 0
  %4367 = vperm.xlu0 %4366, %v4342
  %v4368 = vpop.permute.xlu0 %4367
  %4369 = vset.pattern.permute.xlu0 0
  %4370 = vperm.xlu0 %4369, %v4344
  %v4371 = vpop.permute.xlu0 %4370
  %4372 = vset.pattern.permute.xlu0 0
  %4373 = vperm.xlu0 %4372, %v4346
  %v4374 = vpop.permute.xlu0 %4373
  %4375 = vset.pattern.permute.xlu0 0
  %4376 = vperm.xlu0 %4375, %v4348
  %v4377 = vpop.permute.xlu0 %4376
  %4378 = vset.pattern.permute.xlu0 0
  %4379 = vperm.xlu0 %4378, %v4350
  %v4380 = vpop.permute.xlu0 %4379
  %4381 = vset.pattern.permute.xlu0 0
  %4382 = vperm.xlu0 %4381, %v4352
  %v4383 = vpop.permute.xlu0 %4382
  %4384 = vset.pattern.permute.xlu0 0
  %4385 = vperm.xlu0 %4384, %v4354
  %v4386 = vpop.permute.xlu0 %4385
  %v4387 = vlaneseq
  %v4388 = vshrl.u32 %v4387, 7
  %v4389 = vsub.s32 %v768, %v4388
  %v4390 = vrot.slane %v4365, %v4389
  %v4391 = vlaneseq
  %v4392 = vshrl.u32 %v4391, 7
  %v4393 = vsub.s32 %v768, %v4392
  %v4394 = vrot.slane %v4368, %v4393
  %v4395 = vlaneseq
  %v4396 = vshrl.u32 %v4395, 7
  %v4397 = vsub.s32 %v768, %v4396
  %v4398 = vrot.slane %v4371, %v4397
  %v4399 = vlaneseq
  %v4400 = vshrl.u32 %v4399, 7
  %v4401 = vsub.s32 %v768, %v4400
  %v4402 = vrot.slane %v4374, %v4401
  %v4403 = vlaneseq
  %v4404 = vshrl.u32 %v4403, 7
  %v4405 = vsub.s32 %v768, %v4404
  %v4406 = vrot.slane %v4377, %v4405
  %v4407 = vlaneseq
  %v4408 = vshrl.u32 %v4407, 7
  %v4409 = vsub.s32 %v768, %v4408
  %v4410 = vrot.slane %v4380, %v4409
  %v4411 = vlaneseq
  %v4412 = vshrl.u32 %v4411, 7
  %v4413 = vsub.s32 %v768, %v4412
  %v4414 = vrot.slane %v4383, %v4413
  %v4415 = vlaneseq
  %v4416 = vshrl.u32 %v4415, 7
  %v4417 = vsub.s32 %v768, %v4416
  %v4418 = vrot.slane %v4386, %v4417
  %v4419 = vsel %vm801, %v4394, %v4390
  %v4420 = vsel %vm803, %v4398, %v4419
  %v4421 = vsel %vm805, %v4402, %v4420
  %v4422 = vsel %vm807, %v4406, %v4421
  %v4423 = vsel %vm809, %v4410, %v4422
  %v4424 = vsel %vm811, %v4414, %v4423
  %v4425 = vsel %vm813, %v4418, %v4424
  %v4427 = vsel %vm816, %v4425, 0.0
  %4428 = vadd.xlane.f32.xlu0 %v4427
  %v4429 = vpop.xlane.xlu0 %4428
  %v4430 = vrcp.pop %v4429
  %v4432 = vlaneseq
  %v4433 = vshrl.u32 %v4432, 7
  %v4434 = vsub.s32 0, %v4433
  %v4435 = vrot.slane %v4430, %v4434
  %v4436 = vlaneseq
  %v4437 = vshrl.u32 %v4436, 7
  %v4438 = vsub.s32 1, %v4437
  %v4439 = vrot.slane %v4430, %v4438
  %v4440 = vlaneseq
  %v4441 = vshrl.u32 %v4440, 7
  %v4442 = vsub.s32 2, %v4441
  %v4443 = vrot.slane %v4430, %v4442
  %v4444 = vlaneseq
  %v4445 = vshrl.u32 %v4444, 7
  %v4446 = vsub.s32 3, %v4445
  %v4447 = vrot.slane %v4430, %v4446
  %v4448 = vlaneseq
  %v4449 = vshrl.u32 %v4448, 7
  %v4450 = vsub.s32 4, %v4449
  %v4451 = vrot.slane %v4430, %v4450
  %v4452 = vlaneseq
  %v4453 = vshrl.u32 %v4452, 7
  %v4454 = vsub.s32 5, %v4453
  %v4455 = vrot.slane %v4430, %v4454
  %v4456 = vlaneseq
  %v4457 = vshrl.u32 %v4456, 7
  %v4458 = vsub.s32 6, %v4457
  %v4459 = vrot.slane %v4430, %v4458
  %v4460 = vlaneseq
  %v4461 = vshrl.u32 %v4460, 7
  %v4462 = vsub.s32 7, %v4461
  %v4463 = vrot.slane %v4430, %v4462
  %v4472 = vmul.f32 %v4340, %v4435
  %v4473 = vmul.f32 %v4342, %v4439
  %v4474 = vmul.f32 %v4344, %v4443
  %v4475 = vmul.f32 %v4346, %v4447
  %v4476 = vmul.f32 %v4348, %v4451
  %v4477 = vmul.f32 %v4350, %v4455
  %v4478 = vmul.f32 %v4352, %v4459
  %v4479 = vmul.f32 %v4354, %v4463
  %4481 = vset.pattern.permute.xlu0 0
  %4482 = vperm.xlu0 %4481, %v4472
  %v4483 = vpop.permute.xlu0 %4482
  %4486 = vset.pattern.permute.xlu0 0
  %4487 = vperm.xlu0 %4486, %v4473
  %v4488 = vpop.permute.xlu0 %4487
  %4491 = vset.pattern.permute.xlu0 0
  %4492 = vperm.xlu0 %4491, %v4474
  %v4493 = vpop.permute.xlu0 %4492
  %4496 = vset.pattern.permute.xlu0 0
  %4497 = vperm.xlu0 %4496, %v4475
  %v4498 = vpop.permute.xlu0 %4497
  %4501 = vset.pattern.permute.xlu0 0
  %4502 = vperm.xlu0 %4501, %v4476
  %v4503 = vpop.permute.xlu0 %4502
  %4506 = vset.pattern.permute.xlu0 0
  %4507 = vperm.xlu0 %4506, %v4477
  %v4508 = vpop.permute.xlu0 %4507
  %4511 = vset.pattern.permute.xlu0 0
  %4512 = vperm.xlu0 %4511, %v4478
  %v4513 = vpop.permute.xlu0 %4512
  %4516 = vset.pattern.permute.xlu0 0
  %4517 = vperm.xlu0 %4516, %v4479
  %v4518 = vpop.permute.xlu0 %4517
  %v4520 = vmul.f32 %v256, %v4483
  %v4521 = vmul.f32 %v261, %v4488
  %v4522 = vmul.f32 %v266, %v4493
  %v4523 = vmul.f32 %v271, %v4498
  %v4524 = vmul.f32 %v276, %v4503
  %v4525 = vmul.f32 %v281, %v4508
  %v4526 = vmul.f32 %v286, %v4513
  %v4527 = vmul.f32 %v291, %v4518
  %v4528 = vsel %vm442, %v4520, 0.0
  %v4529 = vrot.slane %v4528, 4
  %v4530 = vadd.f32 %v4528, %v4529
  %v4531 = vrot.slane %v4530, 2
  %v4532 = vadd.f32 %v4530, %v4531
  %v4533 = vrot.slane %v4532, 1
  %v4534 = vadd.f32 %v4532, %v4533
  %v4535 = vsel %vm442, %v4521, 0.0
  %v4536 = vrot.slane %v4535, 4
  %v4537 = vadd.f32 %v4535, %v4536
  %v4538 = vrot.slane %v4537, 2
  %v4539 = vadd.f32 %v4537, %v4538
  %v4540 = vrot.slane %v4539, 1
  %v4541 = vadd.f32 %v4539, %v4540
  %v4542 = vsel %vm442, %v4522, 0.0
  %v4543 = vrot.slane %v4542, 4
  %v4544 = vadd.f32 %v4542, %v4543
  %v4545 = vrot.slane %v4544, 2
  %v4546 = vadd.f32 %v4544, %v4545
  %v4547 = vrot.slane %v4546, 1
  %v4548 = vadd.f32 %v4546, %v4547
  %v4549 = vsel %vm442, %v4523, 0.0
  %v4550 = vrot.slane %v4549, 4
  %v4551 = vadd.f32 %v4549, %v4550
  %v4552 = vrot.slane %v4551, 2
  %v4553 = vadd.f32 %v4551, %v4552
  %v4554 = vrot.slane %v4553, 1
  %v4555 = vadd.f32 %v4553, %v4554
  %v4556 = vsel %vm442, %v4524, 0.0
  %v4557 = vrot.slane %v4556, 4
  %v4558 = vadd.f32 %v4556, %v4557
  %v4559 = vrot.slane %v4558, 2
  %v4560 = vadd.f32 %v4558, %v4559
  %v4561 = vrot.slane %v4560, 1
  %v4562 = vadd.f32 %v4560, %v4561
  %v4563 = vsel %vm442, %v4525, 0.0
  %v4564 = vrot.slane %v4563, 4
  %v4565 = vadd.f32 %v4563, %v4564
  %v4566 = vrot.slane %v4565, 2
  %v4567 = vadd.f32 %v4565, %v4566
  %v4568 = vrot.slane %v4567, 1
  %v4569 = vadd.f32 %v4567, %v4568
  %v4570 = vsel %vm442, %v4526, 0.0
  %v4571 = vrot.slane %v4570, 4
  %v4572 = vadd.f32 %v4570, %v4571
  %v4573 = vrot.slane %v4572, 2
  %v4574 = vadd.f32 %v4572, %v4573
  %v4575 = vrot.slane %v4574, 1
  %v4576 = vadd.f32 %v4574, %v4575
  %v4577 = vsel %vm442, %v4527, 0.0
  %v4578 = vrot.slane %v4577, 4
  %v4579 = vadd.f32 %v4577, %v4578
  %v4580 = vrot.slane %v4579, 2
  %v4581 = vadd.f32 %v4579, %v4580
  %v4582 = vrot.slane %v4581, 1
  %v4583 = vadd.f32 %v4581, %v4582
  %s4584 = scalar_lea.vmem [#allocation2], 32
  %v4585 = vld [vmem:[%s4584] sm:$0xff]
  %v4587 = vrot.slane %v4585, 1
  %v4588 = vrot.slane %v4585, 2
  %v4589 = vrot.slane %v4585, 3
  %v4590 = vrot.slane %v4585, 4
  %v4591 = vrot.slane %v4585, 5
  %v4592 = vrot.slane %v4585, 6
  %v4593 = vrot.slane %v4585, 7
  %v4602 = vadd.f32 %v4534, %v4585
  %v4603 = vadd.f32 %v4541, %v4587
  %v4604 = vadd.f32 %v4548, %v4588
  %v4605 = vadd.f32 %v4555, %v4589
  %v4606 = vadd.f32 %v4562, %v4590
  %v4607 = vadd.f32 %v4569, %v4591
  %v4608 = vadd.f32 %v4576, %v4592
  %v4609 = vadd.f32 %v4583, %v4593
  %v4610 = vrot.slane %v4058, 1
  %v4611 = vrot.slane %v4058, 2
  %v4612 = vrot.slane %v4058, 3
  %v4613 = vrot.slane %v4058, 4
  %v4614 = vrot.slane %v4058, 5
  %v4615 = vrot.slane %v4058, 6
  %v4616 = vrot.slane %v4058, 7
  %v4625 = vadd.f32 %v4602, %v4058
  %v4626 = vadd.f32 %v4603, %v4610
  %v4627 = vadd.f32 %v4604, %v4611
  %v4628 = vadd.f32 %v4605, %v4612
  %v4629 = vadd.f32 %v4606, %v4613
  %v4630 = vadd.f32 %v4607, %v4614
  %v4631 = vadd.f32 %v4608, %v4615
  %v4632 = vadd.f32 %v4609, %v4616
  %v4633 = vxor.u32 %v4625, 2147483648
  %v4634 = vxor.u32 %v4626, 2147483648
  %v4635 = vxor.u32 %v4627, 2147483648
  %v4636 = vxor.u32 %v4628, 2147483648
  %v4637 = vxor.u32 %v4629, 2147483648
  %v4638 = vxor.u32 %v4630, 2147483648
  %v4639 = vxor.u32 %v4631, 2147483648
  %v4640 = vxor.u32 %v4632, 2147483648
  %v4641 = vmul.f32 %v4633, 1.442695
  %v4642 = vpow.pop %v4641
  %v4643 = vmul.f32 %v4634, 1.442695
  %v4644 = vpow.pop %v4643
  %v4645 = vmul.f32 %v4635, 1.442695
  %v4646 = vpow.pop %v4645
  %v4647 = vmul.f32 %v4636, 1.442695
  %v4648 = vpow.pop %v4647
  %v4649 = vmul.f32 %v4637, 1.442695
  %v4650 = vpow.pop %v4649
  %v4651 = vmul.f32 %v4638, 1.442695
  %v4652 = vpow.pop %v4651
  %v4653 = vmul.f32 %v4639, 1.442695
  %v4654 = vpow.pop %v4653
  %v4655 = vmul.f32 %v4640, 1.442695
  %v4656 = vpow.pop %v4655
  %v4657 = vadd.f32 %v4642, 1.0
  %v4658 = vadd.f32 %v4644, 1.0
  %v4659 = vadd.f32 %v4646, 1.0
  %v4660 = vadd.f32 %v4648, 1.0
  %v4661 = vadd.f32 %v4650, 1.0
  %v4662 = vadd.f32 %v4652, 1.0
  %v4663 = vadd.f32 %v4654, 1.0
  %v4664 = vadd.f32 %v4656, 1.0
  %v4665 = vrcp.pop %v4657
  %v4666 = vmul.f32 1.0, %v4665
  %v4667 = vrcp.pop %v4658
  %v4668 = vmul.f32 1.0, %v4667
  %v4669 = vrcp.pop %v4659
  %v4670 = vmul.f32 1.0, %v4669
  %v4671 = vrcp.pop %v4660
  %v4672 = vmul.f32 1.0, %v4671
  %v4673 = vrcp.pop %v4661
  %v4674 = vmul.f32 1.0, %v4673
  %v4675 = vrcp.pop %v4662
  %v4676 = vmul.f32 1.0, %v4675
  %v4677 = vrcp.pop %v4663
  %v4678 = vmul.f32 1.0, %v4677
  %v4679 = vrcp.pop %v4664
  %v4680 = vmul.f32 1.0, %v4679
  %4681 = vrot.lane.b32.xlu0 %v4058, 64
  %v4682 = vpop.permute.xlu0 %4681
  %4683 = vrot.lane.b32.xlu0 %v4610, 64
  %v4684 = vpop.permute.xlu0 %4683
  %4685 = vrot.lane.b32.xlu0 %v4611, 64
  %v4686 = vpop.permute.xlu0 %4685
  %4687 = vrot.lane.b32.xlu0 %v4612, 64
  %v4688 = vpop.permute.xlu0 %4687
  %4689 = vrot.lane.b32.xlu0 %v4613, 64
  %v4690 = vpop.permute.xlu0 %4689
  %4691 = vrot.lane.b32.xlu0 %v4614, 64
  %v4692 = vpop.permute.xlu0 %4691
  %4693 = vrot.lane.b32.xlu0 %v4615, 64
  %v4694 = vpop.permute.xlu0 %4693
  %4695 = vrot.lane.b32.xlu0 %v4616, 64
  %v4696 = vpop.permute.xlu0 %4695
  %v4705 = vmul.f32 %v4666, %v4682
  %v4706 = vmul.f32 %v4668, %v4684
  %v4707 = vmul.f32 %v4670, %v4686
  %v4708 = vmul.f32 %v4672, %v4688
  %v4709 = vmul.f32 %v4674, %v4690
  %v4710 = vmul.f32 %v4676, %v4692
  %v4711 = vmul.f32 %v4678, %v4694
  %v4712 = vmul.f32 %v4680, %v4696
  %4721 = vrot.lane.b32.xlu0 %v4705, 64
  %v4722 = vpop.permute.xlu0 %4721
  %4723 = vrot.lane.b32.xlu0 %v4706, 64
  %v4724 = vpop.permute.xlu0 %4723
  %4725 = vrot.lane.b32.xlu0 %v4707, 64
  %v4726 = vpop.permute.xlu0 %4725
  %4727 = vrot.lane.b32.xlu0 %v4708, 64
  %v4728 = vpop.permute.xlu0 %4727
  %4729 = vrot.lane.b32.xlu0 %v4709, 64
  %v4730 = vpop.permute.xlu0 %4729
  %4731 = vrot.lane.b32.xlu0 %v4710, 64
  %v4732 = vpop.permute.xlu0 %4731
  %4733 = vrot.lane.b32.xlu0 %v4711, 64
  %v4734 = vpop.permute.xlu0 %4733
  %4735 = vrot.lane.b32.xlu0 %v4712, 64
  %v4736 = vpop.permute.xlu0 %4735
  %v4745 = vadd.f32 %v4602, %v4722
  %v4746 = vadd.f32 %v4603, %v4724
  %v4747 = vadd.f32 %v4604, %v4726
  %v4748 = vadd.f32 %v4605, %v4728
  %v4749 = vadd.f32 %v4606, %v4730
  %v4750 = vadd.f32 %v4607, %v4732
  %v4751 = vadd.f32 %v4608, %v4734
  %v4752 = vadd.f32 %v4609, %v4736
  %v4753 = vtanh.pop %v4745
  %v4754 = vtanh.pop %v4746
  %v4755 = vtanh.pop %v4747
  %v4756 = vtanh.pop %v4748
  %v4757 = vtanh.pop %v4749
  %v4758 = vtanh.pop %v4750
  %v4759 = vtanh.pop %v4751
  %v4760 = vtanh.pop %v4752
  %v4761 = vsub.f32 1.0, %v4666
  %v4762 = vsub.f32 1.0, %v4668
  %v4763 = vsub.f32 1.0, %v4670
  %v4764 = vsub.f32 1.0, %v4672
  %v4765 = vsub.f32 1.0, %v4674
  %v4766 = vsub.f32 1.0, %v4676
  %v4767 = vsub.f32 1.0, %v4678
  %v4768 = vsub.f32 1.0, %v4680
  %4777 = vrot.lane.b32.xlu0 %v4753, 96
  %v4778 = vpop.permute.xlu0 %4777
  %4779 = vrot.lane.b32.xlu0 %v4754, 96
  %v4780 = vpop.permute.xlu0 %4779
  %4781 = vrot.lane.b32.xlu0 %v4755, 96
  %v4782 = vpop.permute.xlu0 %4781
  %4783 = vrot.lane.b32.xlu0 %v4756, 96
  %v4784 = vpop.permute.xlu0 %4783
  %4785 = vrot.lane.b32.xlu0 %v4757, 96
  %v4786 = vpop.permute.xlu0 %4785
  %4787 = vrot.lane.b32.xlu0 %v4758, 96
  %v4788 = vpop.permute.xlu0 %4787
  %4789 = vrot.lane.b32.xlu0 %v4759, 96
  %v4790 = vpop.permute.xlu0 %4789
  %4791 = vrot.lane.b32.xlu0 %v4760, 96
  %v4792 = vpop.permute.xlu0 %4791
  %v4801 = vmul.f32 %v4761, %v4778
  %v4802 = vmul.f32 %v4762, %v4780
  %v4803 = vmul.f32 %v4763, %v4782
  %v4804 = vmul.f32 %v4764, %v4784
  %v4805 = vmul.f32 %v4765, %v4786
  %v4806 = vmul.f32 %v4766, %v4788
  %v4807 = vmul.f32 %v4767, %v4790
  %v4808 = vmul.f32 %v4768, %v4792
  %v4809 = vmul.f32 %v4666, %v3957
  %v4810 = vmul.f32 %v4668, %v3958
  %v4811 = vmul.f32 %v4670, %v3959
  %v4812 = vmul.f32 %v4672, %v3960
  %v4813 = vmul.f32 %v4674, %v3961
  %v4814 = vmul.f32 %v4676, %v3962
  %v4815 = vmul.f32 %v4678, %v3963
  %v4816 = vmul.f32 %v4680, %v3964
  %v4817 = vadd.f32 %v4801, %v4809
  %v4818 = vadd.f32 %v4802, %v4810
  %v4819 = vadd.f32 %v4803, %v4811
  %v4820 = vadd.f32 %v4804, %v4812
  %v4821 = vadd.f32 %v4805, %v4813
  %v4822 = vadd.f32 %v4806, %v4814
  %v4823 = vadd.f32 %v4807, %v4815
  %v4824 = vadd.f32 %v4808, %v4816
  %v4833 = vrot.slane %v4818, 7
  %v4834 = vsel %vm801, %v4833, %v4817
  %v4835 = vrot.slane %v4819, 6
  %v4836 = vsel %vm803, %v4835, %v4834
  %v4837 = vrot.slane %v4820, 5
  %v4838 = vsel %vm805, %v4837, %v4836
  %v4839 = vrot.slane %v4821, 4
  %v4840 = vsel %vm807, %v4839, %v4838
  %v4841 = vrot.slane %v4822, 3
  %v4842 = vsel %vm809, %v4841, %v4840
  %v4843 = vrot.slane %v4823, 2
  %v4844 = vsel %vm811, %v4843, %v4842
  %v4845 = vrot.slane %v4824, 1
  %v4846 = vsel %vm813, %v4845, %v4844
  %4847 = vrot.lane.b32.xlu0 %v4846, 96
  %v4848 = vpop.permute.xlu0 %4847
  %v4849 = vsel %vm458, %v4848, 0
  %4851 = vmatprep.subr.mxu0 0.0
  %4852 = vmatpush1.msra.mxu0 0.0
  %4853 = vmatprep.subr.mxu0 0.0
  %4854 = vmatpush1.msra.mxu0 0.0
  %4855 = vmatprep.subr.mxu0 0.0
  %4856 = vmatpush1.msra.mxu0 0.0
  %4857 = vmatprep.subr.mxu0 0.0
  %4858 = vmatpush1.msra.mxu0 0.0
  %4859 = vmatprep.subr.mxu0 0.0
  %4860 = vmatpush1.msra.mxu0 0.0
  %4861 = vmatprep.subr.mxu0 0.0
  %4862 = vmatpush1.msra.mxu0 0.0
  %4863 = vmatprep.subr.mxu0 0.0
  %4864 = vmatpush1.msra.mxu0 0.0
  %4865 = vmatprep.subr.mxu0 0.0
  %4866 = vmatpush1.msra.mxu0 0.0
  %4867 = vmatprep.subr.mxu0 0.0
  %4868 = vmatpush1.msra.mxu0 0.0
  %4869 = vmatprep.subr.mxu0 0.0
  %4870 = vmatpush1.msra.mxu0 0.0
  %4871 = vmatprep.subr.mxu0 0.0
  %4872 = vmatpush1.msra.mxu0 0.0
  %4873 = vmatprep.subr.mxu0 0.0
  %4874 = vmatpush1.msra.mxu0 0.0
  %4875 = vmatprep.subr.mxu0 0.0
  %4876 = vmatpush1.msra.mxu0 %v29
  %4877 = vmatprep.subr.mxu0 0.0
  %4878 = vmatpush1.msra.mxu0 %v28
  %4879 = vmatprep.subr.mxu0 0.0
  %4880 = vmatpush1.msra.mxu0 %v27
  %4881 = vmatprep.subr.mxu0 0.0
  %4882 = vmatpush1.msra.mxu0 %v26
  %4883 = vmatprep.subr.mxu0 0.0
  %4884 = vmatpush2.msra.mxu0 0.0
  %4885 = vmatprep.subr.mxu0 0.0
  %4886 = vmatpush2.msra.mxu0 0.0
  %4887 = vmatprep.subr.mxu0 0.0
  %4888 = vmatpush2.msra.mxu0 0.0
  %4889 = vmatprep.subr.mxu0 0.0
  %4890 = vmatpush2.msra.mxu0 0.0
  %4891 = vmatprep.subr.mxu0 0.0
  %4892 = vmatpush2.msra.mxu0 0.0
  %4893 = vmatprep.subr.mxu0 0.0
  %4894 = vmatpush2.msra.mxu0 0.0
  %4895 = vmatprep.subr.mxu0 0.0
  %4896 = vmatpush2.msra.mxu0 0.0
  %4897 = vmatprep.subr.mxu0 0.0
  %4898 = vmatpush2.msra.mxu0 0.0
  %4899 = vmatprep.subr.mxu0 0.0
  %4900 = vmatpush2.msra.mxu0 0.0
  %4901 = vmatprep.subr.mxu0 0.0
  %4902 = vmatpush2.msra.mxu0 0.0
  %4903 = vmatprep.subr.mxu0 0.0
  %4904 = vmatpush2.msra.mxu0 0.0
  %4905 = vmatprep.subr.mxu0 0.0
  %4906 = vmatpush2.msra.mxu0 0.0
  %4907 = vmatprep.subr.mxu0 0.0
  %4908 = vmatpush2.msra.mxu0 0.0
  %4909 = vmatprep.subr.mxu0 0.0
  %4910 = vmatpush2.msra.mxu0 0.0
  %4911 = vmatprep.subr.mxu0 0.0
  %4912 = vmatpush2.msra.mxu0 0.0
  %4913 = vmatprep.subr.mxu0 0.0
  %4914 = vmatpush2.msra.mxu0 0.0
  %4915 = vmatprep.mubr.f32.mxu0 0.0
  %4916 = vmatmul.mubr.f32.gmra.mxu0 %v4849
  %v4917 = vpop.f32.mrf.mxu0
  %v4918 = vadd.f32 %v456, %v4917
  %v4919 = vpop.f32.mrf.mxu0
  %4920 = vdwg.mxu0
  %v4922 = vcombine.high %v4918, %v4918
  %v4924 = vunpack.c.l.s4 1966171168
  %v4925 = vunpack.c.0.s8 %v4924
  %v4926 = vlaneseq
  %v4927 = vshrl.u32 %v4926, 7
  %v4928 = vsub.s32 %v4925, %v4927
  %v4929 = vrot.slane %v4918, %v4928
  %v4931 = vunpack.c.l.s4 1966171168
  %v4932 = vunpack.c.0.s8 %v4931
  %v4933 = vlaneseq
  %v4934 = vshrl.u32 %v4933, 7
  %v4935 = vsub.s32 %v4932, %v4934
  %v4936 = vrot.slane %v4922, %v4935
  %v4937 = vcombine.high %v4929, %v4929
  %v4938 = vcombine.high %v4936, %v4936
  %v4940 = vunpack.c.l.s4 1966171168
  %v4941 = vunpack.c.0.s8 %v4940
  %v4942 = vlaneseq
  %v4943 = vshrl.u32 %v4942, 7
  %v4944 = vsub.s32 %v4941, %v4943
  %v4945 = vrot.slane %v4929, %v4944
  %v4947 = vunpack.c.l.s4 1966171168
  %v4948 = vunpack.c.0.s8 %v4947
  %v4949 = vlaneseq
  %v4950 = vshrl.u32 %v4949, 7
  %v4951 = vsub.s32 %v4948, %v4950
  %v4952 = vrot.slane %v4936, %v4951
  %v4954 = vunpack.c.l.s4 1966171168
  %v4955 = vunpack.c.0.s8 %v4954
  %v4956 = vlaneseq
  %v4957 = vshrl.u32 %v4956, 7
  %v4958 = vsub.s32 %v4955, %v4957
  %v4959 = vrot.slane %v4937, %v4958
  %v4961 = vunpack.c.l.s4 1966171168
  %v4962 = vunpack.c.0.s8 %v4961
  %v4963 = vlaneseq
  %v4964 = vshrl.u32 %v4963, 7
  %v4965 = vsub.s32 %v4962, %v4964
  %v4966 = vrot.slane %v4938, %v4965
  %v4967 = vcombine.high %v4945, %v4945
  %v4968 = vcombine.high %v4952, %v4952
  %v4969 = vcombine.high %v4959, %v4959
  %v4970 = vcombine.high %v4966, %v4966
  %v4971 = vlaneseq
  %v4972 = vshrl.u32 %v4971, 7
  %v4973 = vsub.s32 0, %v4972
  %v4974 = vrot.slane %v4945, %v4973
  %v4975 = vlaneseq
  %v4976 = vshrl.u32 %v4975, 7
  %v4977 = vsub.s32 0, %v4976
  %v4978 = vrot.slane %v4959, %v4977
  %v4979 = vlaneseq
  %v4980 = vshrl.u32 %v4979, 7
  %v4981 = vsub.s32 0, %v4980
  %v4982 = vrot.slane %v4967, %v4981
  %v4983 = vlaneseq
  %v4984 = vshrl.u32 %v4983, 7
  %v4985 = vsub.s32 0, %v4984
  %v4986 = vrot.slane %v4969, %v4985
  %v4987 = vlaneseq
  %v4988 = vshrl.u32 %v4987, 7
  %v4989 = vsub.s32 0, %v4988
  %v4990 = vrot.slane %v4952, %v4989
  %v4991 = vlaneseq
  %v4992 = vshrl.u32 %v4991, 7
  %v4993 = vsub.s32 0, %v4992
  %v4994 = vrot.slane %v4966, %v4993
  %v4995 = vlaneseq
  %v4996 = vshrl.u32 %v4995, 7
  %v4997 = vsub.s32 0, %v4996
  %v4998 = vrot.slane %v4968, %v4997
  %v4999 = vlaneseq
  %v5000 = vshrl.u32 %v4999, 7
  %v5001 = vsub.s32 0, %v5000
  %v5002 = vrot.slane %v4970, %v5001
  %v5011 = vadd.f32 %v4974, %v631
  %v5012 = vadd.f32 %v4978, %v633
  %v5013 = vadd.f32 %v4982, %v635
  %v5014 = vadd.f32 %v4986, %v637
  %v5015 = vadd.f32 %v4990, %v639
  %v5016 = vadd.f32 %v4994, %v641
  %v5017 = vadd.f32 %v4998, %v643
  %v5018 = vadd.f32 %v5002, %v645
  %v5019 = vtanh.pop %v5011
  %v5020 = vtanh.pop %v5012
  %v5021 = vtanh.pop %v5013
  %v5022 = vtanh.pop %v5014
  %v5023 = vtanh.pop %v5015
  %v5024 = vtanh.pop %v5016
  %v5025 = vtanh.pop %v5017
  %v5026 = vtanh.pop %v5018
  %v5027 = vmul.f32 %v5019, %v676
  %v5028 = vmul.f32 %v5020, %v676
  %v5029 = vmul.f32 %v5021, %v676
  %v5030 = vmul.f32 %v5022, %v676
  %v5031 = vmul.f32 %v5023, %v676
  %v5032 = vmul.f32 %v5024, %v676
  %v5033 = vmul.f32 %v5025, %v676
  %v5034 = vmul.f32 %v5026, %v676
  %5043 = vrot.lane.b32.xlu0 %v5027, 32
  %v5044 = vpop.permute.xlu0 %5043
  %5045 = vrot.lane.b32.xlu0 %v5028, 32
  %v5046 = vpop.permute.xlu0 %5045
  %5047 = vrot.lane.b32.xlu0 %v5029, 32
  %v5048 = vpop.permute.xlu0 %5047
  %5049 = vrot.lane.b32.xlu0 %v5030, 32
  %v5050 = vpop.permute.xlu0 %5049
  %5051 = vrot.lane.b32.xlu0 %v5031, 32
  %v5052 = vpop.permute.xlu0 %5051
  %5053 = vrot.lane.b32.xlu0 %v5032, 32
  %v5054 = vpop.permute.xlu0 %5053
  %5055 = vrot.lane.b32.xlu0 %v5033, 32
  %v5056 = vpop.permute.xlu0 %5055
  %5057 = vrot.lane.b32.xlu0 %v5034, 32
  %v5058 = vpop.permute.xlu0 %5057
  %v5067 = vsel %vm458, %v5044, 0.0
  %5068 = vadd.xlane.f32.xlu0 %v5067
  %v5069 = vpop.xlane.xlu0 %5068
  %v5070 = vsel %vm458, %v5046, 0.0
  %5071 = vadd.xlane.f32.xlu0 %v5070
  %v5072 = vpop.xlane.xlu0 %5071
  %v5073 = vsel %vm458, %v5048, 0.0
  %5074 = vadd.xlane.f32.xlu0 %v5073
  %v5075 = vpop.xlane.xlu0 %5074
  %v5076 = vsel %vm458, %v5050, 0.0
  %5077 = vadd.xlane.f32.xlu0 %v5076
  %v5078 = vpop.xlane.xlu0 %5077
  %v5079 = vsel %vm458, %v5052, 0.0
  %5080 = vadd.xlane.f32.xlu0 %v5079
  %v5081 = vpop.xlane.xlu0 %5080
  %v5082 = vsel %vm458, %v5054, 0.0
  %5083 = vadd.xlane.f32.xlu0 %v5082
  %v5084 = vpop.xlane.xlu0 %5083
  %v5085 = vsel %vm458, %v5056, 0.0
  %5086 = vadd.xlane.f32.xlu0 %v5085
  %v5087 = vpop.xlane.xlu0 %5086
  %v5088 = vsel %vm458, %v5058, 0.0
  %5089 = vadd.xlane.f32.xlu0 %v5088
  %v5090 = vpop.xlane.xlu0 %5089
  %v5091 = vadd.f32 %v5069, %v749
  %v5092 = vadd.f32 %v5072, %v749
  %v5093 = vadd.f32 %v5075, %v749
  %v5094 = vadd.f32 %v5078, %v749
  %v5095 = vadd.f32 %v5081, %v749
  %v5096 = vadd.f32 %v5084, %v749
  %v5097 = vadd.f32 %v5087, %v749
  %v5098 = vadd.f32 %v5090, %v749
  %v5107 = vlaneseq
  %v5108 = vshrl.u32 %v5107, 7
  %v5109 = vsub.s32 %v768, %v5108
  %v5110 = vrot.slane %v5091, %v5109
  %v5111 = vlaneseq
  %v5112 = vshrl.u32 %v5111, 7
  %v5113 = vsub.s32 %v768, %v5112
  %v5114 = vrot.slane %v5092, %v5113
  %v5115 = vlaneseq
  %v5116 = vshrl.u32 %v5115, 7
  %v5117 = vsub.s32 %v768, %v5116
  %v5118 = vrot.slane %v5093, %v5117
  %v5119 = vlaneseq
  %v5120 = vshrl.u32 %v5119, 7
  %v5121 = vsub.s32 %v768, %v5120
  %v5122 = vrot.slane %v5094, %v5121
  %v5123 = vlaneseq
  %v5124 = vshrl.u32 %v5123, 7
  %v5125 = vsub.s32 %v768, %v5124
  %v5126 = vrot.slane %v5095, %v5125
  %v5127 = vlaneseq
  %v5128 = vshrl.u32 %v5127, 7
  %v5129 = vsub.s32 %v768, %v5128
  %v5130 = vrot.slane %v5096, %v5129
  %v5131 = vlaneseq
  %v5132 = vshrl.u32 %v5131, 7
  %v5133 = vsub.s32 %v768, %v5132
  %v5134 = vrot.slane %v5097, %v5133
  %v5135 = vlaneseq
  %v5136 = vshrl.u32 %v5135, 7
  %v5137 = vsub.s32 %v768, %v5136
  %v5138 = vrot.slane %v5098, %v5137
  %v5139 = vsel %vm801, %v5114, %v5110
  %v5140 = vsel %vm803, %v5118, %v5139
  %v5141 = vsel %vm805, %v5122, %v5140
  %v5142 = vsel %vm807, %v5126, %v5141
  %v5143 = vsel %vm809, %v5130, %v5142
  %v5144 = vsel %vm811, %v5134, %v5143
  %v5145 = vsel %vm813, %v5138, %v5144
  %v5147 = vsel %vm816, %v5145, -inf
  %5148 = vmax.xlane.f32.xlu0 %v5147
  %v5149 = vpop.xlane.xlu0 %5148
  %v5151 = vlaneseq
  %v5152 = vshrl.u32 %v5151, 7
  %v5153 = vsub.s32 0, %v5152
  %v5154 = vrot.slane %v5149, %v5153
  %v5155 = vlaneseq
  %v5156 = vshrl.u32 %v5155, 7
  %v5157 = vsub.s32 1, %v5156
  %v5158 = vrot.slane %v5149, %v5157
  %v5159 = vlaneseq
  %v5160 = vshrl.u32 %v5159, 7
  %v5161 = vsub.s32 2, %v5160
  %v5162 = vrot.slane %v5149, %v5161
  %v5163 = vlaneseq
  %v5164 = vshrl.u32 %v5163, 7
  %v5165 = vsub.s32 3, %v5164
  %v5166 = vrot.slane %v5149, %v5165
  %v5167 = vlaneseq
  %v5168 = vshrl.u32 %v5167, 7
  %v5169 = vsub.s32 4, %v5168
  %v5170 = vrot.slane %v5149, %v5169
  %v5171 = vlaneseq
  %v5172 = vshrl.u32 %v5171, 7
  %v5173 = vsub.s32 5, %v5172
  %v5174 = vrot.slane %v5149, %v5173
  %v5175 = vlaneseq
  %v5176 = vshrl.u32 %v5175, 7
  %v5177 = vsub.s32 6, %v5176
  %v5178 = vrot.slane %v5149, %v5177
  %v5179 = vlaneseq
  %v5180 = vshrl.u32 %v5179, 7
  %v5181 = vsub.s32 7, %v5180
  %v5182 = vrot.slane %v5149, %v5181
  %v5191 = vsub.f32 %v5091, %v5154
  %v5192 = vsub.f32 %v5092, %v5158
  %v5193 = vsub.f32 %v5093, %v5162
  %v5194 = vsub.f32 %v5094, %v5166
  %v5195 = vsub.f32 %v5095, %v5170
  %v5196 = vsub.f32 %v5096, %v5174
  %v5197 = vsub.f32 %v5097, %v5178
  %v5198 = vsub.f32 %v5098, %v5182
  %v5199 = vmul.f32 %v5191, 1.442695
  %v5200 = vpow.pop %v5199
  %v5201 = vmul.f32 %v5192, 1.442695
  %v5202 = vpow.pop %v5201
  %v5203 = vmul.f32 %v5193, 1.442695
  %v5204 = vpow.pop %v5203
  %v5205 = vmul.f32 %v5194, 1.442695
  %v5206 = vpow.pop %v5205
  %v5207 = vmul.f32 %v5195, 1.442695
  %v5208 = vpow.pop %v5207
  %v5209 = vmul.f32 %v5196, 1.442695
  %v5210 = vpow.pop %v5209
  %v5211 = vmul.f32 %v5197, 1.442695
  %v5212 = vpow.pop %v5211
  %v5213 = vmul.f32 %v5198, 1.442695
  %v5214 = vpow.pop %v5213
  %5223 = vset.pattern.permute.xlu0 0
  %5224 = vperm.xlu0 %5223, %v5200
  %v5225 = vpop.permute.xlu0 %5224
  %5226 = vset.pattern.permute.xlu0 0
  %5227 = vperm.xlu0 %5226, %v5202
  %v5228 = vpop.permute.xlu0 %5227
  %5229 = vset.pattern.permute.xlu0 0
  %5230 = vperm.xlu0 %5229, %v5204
  %v5231 = vpop.permute.xlu0 %5230
  %5232 = vset.pattern.permute.xlu0 0
  %5233 = vperm.xlu0 %5232, %v5206
  %v5234 = vpop.permute.xlu0 %5233
  %5235 = vset.pattern.permute.xlu0 0
  %5236 = vperm.xlu0 %5235, %v5208
  %v5237 = vpop.permute.xlu0 %5236
  %5238 = vset.pattern.permute.xlu0 0
  %5239 = vperm.xlu0 %5238, %v5210
  %v5240 = vpop.permute.xlu0 %5239
  %5241 = vset.pattern.permute.xlu0 0
  %5242 = vperm.xlu0 %5241, %v5212
  %v5243 = vpop.permute.xlu0 %5242
  %5244 = vset.pattern.permute.xlu0 0
  %5245 = vperm.xlu0 %5244, %v5214
  %v5246 = vpop.permute.xlu0 %5245
  %v5247 = vlaneseq
  %v5248 = vshrl.u32 %v5247, 7
  %v5249 = vsub.s32 %v768, %v5248
  %v5250 = vrot.slane %v5225, %v5249
  %v5251 = vlaneseq
  %v5252 = vshrl.u32 %v5251, 7
  %v5253 = vsub.s32 %v768, %v5252
  %v5254 = vrot.slane %v5228, %v5253
  %v5255 = vlaneseq
  %v5256 = vshrl.u32 %v5255, 7
  %v5257 = vsub.s32 %v768, %v5256
  %v5258 = vrot.slane %v5231, %v5257
  %v5259 = vlaneseq
  %v5260 = vshrl.u32 %v5259, 7
  %v5261 = vsub.s32 %v768, %v5260
  %v5262 = vrot.slane %v5234, %v5261
  %v5263 = vlaneseq
  %v5264 = vshrl.u32 %v5263, 7
  %v5265 = vsub.s32 %v768, %v5264
  %v5266 = vrot.slane %v5237, %v5265
  %v5267 = vlaneseq
  %v5268 = vshrl.u32 %v5267, 7
  %v5269 = vsub.s32 %v768, %v5268
  %v5270 = vrot.slane %v5240, %v5269
  %v5271 = vlaneseq
  %v5272 = vshrl.u32 %v5271, 7
  %v5273 = vsub.s32 %v768, %v5272
  %v5274 = vrot.slane %v5243, %v5273
  %v5275 = vlaneseq
  %v5276 = vshrl.u32 %v5275, 7
  %v5277 = vsub.s32 %v768, %v5276
  %v5278 = vrot.slane %v5246, %v5277
  %v5279 = vsel %vm801, %v5254, %v5250
  %v5280 = vsel %vm803, %v5258, %v5279
  %v5281 = vsel %vm805, %v5262, %v5280
  %v5282 = vsel %vm807, %v5266, %v5281
  %v5283 = vsel %vm809, %v5270, %v5282
  %v5284 = vsel %vm811, %v5274, %v5283
  %v5285 = vsel %vm813, %v5278, %v5284
  %v5287 = vsel %vm816, %v5285, 0.0
  %5288 = vadd.xlane.f32.xlu0 %v5287
  %v5289 = vpop.xlane.xlu0 %5288
  %v5290 = vrcp.pop %v5289
  %v5292 = vlaneseq
  %v5293 = vshrl.u32 %v5292, 7
  %v5294 = vsub.s32 0, %v5293
  %v5295 = vrot.slane %v5290, %v5294
  %v5296 = vlaneseq
  %v5297 = vshrl.u32 %v5296, 7
  %v5298 = vsub.s32 1, %v5297
  %v5299 = vrot.slane %v5290, %v5298
  %v5300 = vlaneseq
  %v5301 = vshrl.u32 %v5300, 7
  %v5302 = vsub.s32 2, %v5301
  %v5303 = vrot.slane %v5290, %v5302
  %v5304 = vlaneseq
  %v5305 = vshrl.u32 %v5304, 7
  %v5306 = vsub.s32 3, %v5305
  %v5307 = vrot.slane %v5290, %v5306
  %v5308 = vlaneseq
  %v5309 = vshrl.u32 %v5308, 7
  %v5310 = vsub.s32 4, %v5309
  %v5311 = vrot.slane %v5290, %v5310
  %v5312 = vlaneseq
  %v5313 = vshrl.u32 %v5312, 7
  %v5314 = vsub.s32 5, %v5313
  %v5315 = vrot.slane %v5290, %v5314
  %v5316 = vlaneseq
  %v5317 = vshrl.u32 %v5316, 7
  %v5318 = vsub.s32 6, %v5317
  %v5319 = vrot.slane %v5290, %v5318
  %v5320 = vlaneseq
  %v5321 = vshrl.u32 %v5320, 7
  %v5322 = vsub.s32 7, %v5321
  %v5323 = vrot.slane %v5290, %v5322
  %v5332 = vmul.f32 %v5200, %v5295
  %v5333 = vmul.f32 %v5202, %v5299
  %v5334 = vmul.f32 %v5204, %v5303
  %v5335 = vmul.f32 %v5206, %v5307
  %v5336 = vmul.f32 %v5208, %v5311
  %v5337 = vmul.f32 %v5210, %v5315
  %v5338 = vmul.f32 %v5212, %v5319
  %v5339 = vmul.f32 %v5214, %v5323
  %5341 = vset.pattern.permute.xlu0 0
  %5342 = vperm.xlu0 %5341, %v5332
  %v5343 = vpop.permute.xlu0 %5342
  %5346 = vset.pattern.permute.xlu0 0
  %5347 = vperm.xlu0 %5346, %v5333
  %v5348 = vpop.permute.xlu0 %5347
  %5351 = vset.pattern.permute.xlu0 0
  %5352 = vperm.xlu0 %5351, %v5334
  %v5353 = vpop.permute.xlu0 %5352
  %5356 = vset.pattern.permute.xlu0 0
  %5357 = vperm.xlu0 %5356, %v5335
  %v5358 = vpop.permute.xlu0 %5357
  %5361 = vset.pattern.permute.xlu0 0
  %5362 = vperm.xlu0 %5361, %v5336
  %v5363 = vpop.permute.xlu0 %5362
  %5366 = vset.pattern.permute.xlu0 0
  %5367 = vperm.xlu0 %5366, %v5337
  %v5368 = vpop.permute.xlu0 %5367
  %5371 = vset.pattern.permute.xlu0 0
  %5372 = vperm.xlu0 %5371, %v5338
  %v5373 = vpop.permute.xlu0 %5372
  %5376 = vset.pattern.permute.xlu0 0
  %5377 = vperm.xlu0 %5376, %v5339
  %v5378 = vpop.permute.xlu0 %5377
  %v5380 = vmul.f32 %v256, %v5343
  %v5381 = vmul.f32 %v261, %v5348
  %v5382 = vmul.f32 %v266, %v5353
  %v5383 = vmul.f32 %v271, %v5358
  %v5384 = vmul.f32 %v276, %v5363
  %v5385 = vmul.f32 %v281, %v5368
  %v5386 = vmul.f32 %v286, %v5373
  %v5387 = vmul.f32 %v291, %v5378
  %v5388 = vsel %vm442, %v5380, 0.0
  %v5389 = vrot.slane %v5388, 4
  %v5390 = vadd.f32 %v5388, %v5389
  %v5391 = vrot.slane %v5390, 2
  %v5392 = vadd.f32 %v5390, %v5391
  %v5393 = vrot.slane %v5392, 1
  %v5394 = vadd.f32 %v5392, %v5393
  %v5395 = vsel %vm442, %v5381, 0.0
  %v5396 = vrot.slane %v5395, 4
  %v5397 = vadd.f32 %v5395, %v5396
  %v5398 = vrot.slane %v5397, 2
  %v5399 = vadd.f32 %v5397, %v5398
  %v5400 = vrot.slane %v5399, 1
  %v5401 = vadd.f32 %v5399, %v5400
  %v5402 = vsel %vm442, %v5382, 0.0
  %v5403 = vrot.slane %v5402, 4
  %v5404 = vadd.f32 %v5402, %v5403
  %v5405 = vrot.slane %v5404, 2
  %v5406 = vadd.f32 %v5404, %v5405
  %v5407 = vrot.slane %v5406, 1
  %v5408 = vadd.f32 %v5406, %v5407
  %v5409 = vsel %vm442, %v5383, 0.0
  %v5410 = vrot.slane %v5409, 4
  %v5411 = vadd.f32 %v5409, %v5410
  %v5412 = vrot.slane %v5411, 2
  %v5413 = vadd.f32 %v5411, %v5412
  %v5414 = vrot.slane %v5413, 1
  %v5415 = vadd.f32 %v5413, %v5414
  %v5416 = vsel %vm442, %v5384, 0.0
  %v5417 = vrot.slane %v5416, 4
  %v5418 = vadd.f32 %v5416, %v5417
  %v5419 = vrot.slane %v5418, 2
  %v5420 = vadd.f32 %v5418, %v5419
  %v5421 = vrot.slane %v5420, 1
  %v5422 = vadd.f32 %v5420, %v5421
  %v5423 = vsel %vm442, %v5385, 0.0
  %v5424 = vrot.slane %v5423, 4
  %v5425 = vadd.f32 %v5423, %v5424
  %v5426 = vrot.slane %v5425, 2
  %v5427 = vadd.f32 %v5425, %v5426
  %v5428 = vrot.slane %v5427, 1
  %v5429 = vadd.f32 %v5427, %v5428
  %v5430 = vsel %vm442, %v5386, 0.0
  %v5431 = vrot.slane %v5430, 4
  %v5432 = vadd.f32 %v5430, %v5431
  %v5433 = vrot.slane %v5432, 2
  %v5434 = vadd.f32 %v5432, %v5433
  %v5435 = vrot.slane %v5434, 1
  %v5436 = vadd.f32 %v5434, %v5435
  %v5437 = vsel %vm442, %v5387, 0.0
  %v5438 = vrot.slane %v5437, 4
  %v5439 = vadd.f32 %v5437, %v5438
  %v5440 = vrot.slane %v5439, 2
  %v5441 = vadd.f32 %v5439, %v5440
  %v5442 = vrot.slane %v5441, 1
  %v5443 = vadd.f32 %v5441, %v5442
  %s5444 = scalar_lea.vmem [#allocation2], 40
  %v5445 = vld [vmem:[%s5444] sm:$0xff]
  %v5447 = vrot.slane %v5445, 1
  %v5448 = vrot.slane %v5445, 2
  %v5449 = vrot.slane %v5445, 3
  %v5450 = vrot.slane %v5445, 4
  %v5451 = vrot.slane %v5445, 5
  %v5452 = vrot.slane %v5445, 6
  %v5453 = vrot.slane %v5445, 7
  %v5462 = vadd.f32 %v5394, %v5445
  %v5463 = vadd.f32 %v5401, %v5447
  %v5464 = vadd.f32 %v5408, %v5448
  %v5465 = vadd.f32 %v5415, %v5449
  %v5466 = vadd.f32 %v5422, %v5450
  %v5467 = vadd.f32 %v5429, %v5451
  %v5468 = vadd.f32 %v5436, %v5452
  %v5469 = vadd.f32 %v5443, %v5453
  %v5470 = vrot.slane %v4918, 1
  %v5471 = vrot.slane %v4918, 2
  %v5472 = vrot.slane %v4918, 3
  %v5473 = vrot.slane %v4918, 4
  %v5474 = vrot.slane %v4918, 5
  %v5475 = vrot.slane %v4918, 6
  %v5476 = vrot.slane %v4918, 7
  %v5485 = vadd.f32 %v5462, %v4918
  %v5486 = vadd.f32 %v5463, %v5470
  %v5487 = vadd.f32 %v5464, %v5471
  %v5488 = vadd.f32 %v5465, %v5472
  %v5489 = vadd.f32 %v5466, %v5473
  %v5490 = vadd.f32 %v5467, %v5474
  %v5491 = vadd.f32 %v5468, %v5475
  %v5492 = vadd.f32 %v5469, %v5476
  %v5493 = vxor.u32 %v5485, 2147483648
  %v5494 = vxor.u32 %v5486, 2147483648
  %v5495 = vxor.u32 %v5487, 2147483648
  %v5496 = vxor.u32 %v5488, 2147483648
  %v5497 = vxor.u32 %v5489, 2147483648
  %v5498 = vxor.u32 %v5490, 2147483648
  %v5499 = vxor.u32 %v5491, 2147483648
  %v5500 = vxor.u32 %v5492, 2147483648
  %v5501 = vmul.f32 %v5493, 1.442695
  %v5502 = vpow.pop %v5501
  %v5503 = vmul.f32 %v5494, 1.442695
  %v5504 = vpow.pop %v5503
  %v5505 = vmul.f32 %v5495, 1.442695
  %v5506 = vpow.pop %v5505
  %v5507 = vmul.f32 %v5496, 1.442695
  %v5508 = vpow.pop %v5507
  %v5509 = vmul.f32 %v5497, 1.442695
  %v5510 = vpow.pop %v5509
  %v5511 = vmul.f32 %v5498, 1.442695
  %v5512 = vpow.pop %v5511
  %v5513 = vmul.f32 %v5499, 1.442695
  %v5514 = vpow.pop %v5513
  %v5515 = vmul.f32 %v5500, 1.442695
  %v5516 = vpow.pop %v5515
  %v5517 = vadd.f32 %v5502, 1.0
  %v5518 = vadd.f32 %v5504, 1.0
  %v5519 = vadd.f32 %v5506, 1.0
  %v5520 = vadd.f32 %v5508, 1.0
  %v5521 = vadd.f32 %v5510, 1.0
  %v5522 = vadd.f32 %v5512, 1.0
  %v5523 = vadd.f32 %v5514, 1.0
  %v5524 = vadd.f32 %v5516, 1.0
  %v5525 = vrcp.pop %v5517
  %v5526 = vmul.f32 1.0, %v5525
  %v5527 = vrcp.pop %v5518
  %v5528 = vmul.f32 1.0, %v5527
  %v5529 = vrcp.pop %v5519
  %v5530 = vmul.f32 1.0, %v5529
  %v5531 = vrcp.pop %v5520
  %v5532 = vmul.f32 1.0, %v5531
  %v5533 = vrcp.pop %v5521
  %v5534 = vmul.f32 1.0, %v5533
  %v5535 = vrcp.pop %v5522
  %v5536 = vmul.f32 1.0, %v5535
  %v5537 = vrcp.pop %v5523
  %v5538 = vmul.f32 1.0, %v5537
  %v5539 = vrcp.pop %v5524
  %v5540 = vmul.f32 1.0, %v5539
  %5541 = vrot.lane.b32.xlu0 %v4918, 64
  %v5542 = vpop.permute.xlu0 %5541
  %5543 = vrot.lane.b32.xlu0 %v5470, 64
  %v5544 = vpop.permute.xlu0 %5543
  %5545 = vrot.lane.b32.xlu0 %v5471, 64
  %v5546 = vpop.permute.xlu0 %5545
  %5547 = vrot.lane.b32.xlu0 %v5472, 64
  %v5548 = vpop.permute.xlu0 %5547
  %5549 = vrot.lane.b32.xlu0 %v5473, 64
  %v5550 = vpop.permute.xlu0 %5549
  %5551 = vrot.lane.b32.xlu0 %v5474, 64
  %v5552 = vpop.permute.xlu0 %5551
  %5553 = vrot.lane.b32.xlu0 %v5475, 64
  %v5554 = vpop.permute.xlu0 %5553
  %5555 = vrot.lane.b32.xlu0 %v5476, 64
  %v5556 = vpop.permute.xlu0 %5555
  %v5565 = vmul.f32 %v5526, %v5542
  %v5566 = vmul.f32 %v5528, %v5544
  %v5567 = vmul.f32 %v5530, %v5546
  %v5568 = vmul.f32 %v5532, %v5548
  %v5569 = vmul.f32 %v5534, %v5550
  %v5570 = vmul.f32 %v5536, %v5552
  %v5571 = vmul.f32 %v5538, %v5554
  %v5572 = vmul.f32 %v5540, %v5556
  %5581 = vrot.lane.b32.xlu0 %v5565, 64
  %v5582 = vpop.permute.xlu0 %5581
  %5583 = vrot.lane.b32.xlu0 %v5566, 64
  %v5584 = vpop.permute.xlu0 %5583
  %5585 = vrot.lane.b32.xlu0 %v5567, 64
  %v5586 = vpop.permute.xlu0 %5585
  %5587 = vrot.lane.b32.xlu0 %v5568, 64
  %v5588 = vpop.permute.xlu0 %5587
  %5589 = vrot.lane.b32.xlu0 %v5569, 64
  %v5590 = vpop.permute.xlu0 %5589
  %5591 = vrot.lane.b32.xlu0 %v5570, 64
  %v5592 = vpop.permute.xlu0 %5591
  %5593 = vrot.lane.b32.xlu0 %v5571, 64
  %v5594 = vpop.permute.xlu0 %5593
  %5595 = vrot.lane.b32.xlu0 %v5572, 64
  %v5596 = vpop.permute.xlu0 %5595
  %v5605 = vadd.f32 %v5462, %v5582
  %v5606 = vadd.f32 %v5463, %v5584
  %v5607 = vadd.f32 %v5464, %v5586
  %v5608 = vadd.f32 %v5465, %v5588
  %v5609 = vadd.f32 %v5466, %v5590
  %v5610 = vadd.f32 %v5467, %v5592
  %v5611 = vadd.f32 %v5468, %v5594
  %v5612 = vadd.f32 %v5469, %v5596
  %v5613 = vtanh.pop %v5605
  %v5614 = vtanh.pop %v5606
  %v5615 = vtanh.pop %v5607
  %v5616 = vtanh.pop %v5608
  %v5617 = vtanh.pop %v5609
  %v5618 = vtanh.pop %v5610
  %v5619 = vtanh.pop %v5611
  %v5620 = vtanh.pop %v5612
  %v5621 = vsub.f32 1.0, %v5526
  %v5622 = vsub.f32 1.0, %v5528
  %v5623 = vsub.f32 1.0, %v5530
  %v5624 = vsub.f32 1.0, %v5532
  %v5625 = vsub.f32 1.0, %v5534
  %v5626 = vsub.f32 1.0, %v5536
  %v5627 = vsub.f32 1.0, %v5538
  %v5628 = vsub.f32 1.0, %v5540
  %5637 = vrot.lane.b32.xlu0 %v5613, 96
  %v5638 = vpop.permute.xlu0 %5637
  %5639 = vrot.lane.b32.xlu0 %v5614, 96
  %v5640 = vpop.permute.xlu0 %5639
  %5641 = vrot.lane.b32.xlu0 %v5615, 96
  %v5642 = vpop.permute.xlu0 %5641
  %5643 = vrot.lane.b32.xlu0 %v5616, 96
  %v5644 = vpop.permute.xlu0 %5643
  %5645 = vrot.lane.b32.xlu0 %v5617, 96
  %v5646 = vpop.permute.xlu0 %5645
  %5647 = vrot.lane.b32.xlu0 %v5618, 96
  %v5648 = vpop.permute.xlu0 %5647
  %5649 = vrot.lane.b32.xlu0 %v5619, 96
  %v5650 = vpop.permute.xlu0 %5649
  %5651 = vrot.lane.b32.xlu0 %v5620, 96
  %v5652 = vpop.permute.xlu0 %5651
  %v5661 = vmul.f32 %v5621, %v5638
  %v5662 = vmul.f32 %v5622, %v5640
  %v5663 = vmul.f32 %v5623, %v5642
  %v5664 = vmul.f32 %v5624, %v5644
  %v5665 = vmul.f32 %v5625, %v5646
  %v5666 = vmul.f32 %v5626, %v5648
  %v5667 = vmul.f32 %v5627, %v5650
  %v5668 = vmul.f32 %v5628, %v5652
  %v5669 = vmul.f32 %v5526, %v4817
  %v5670 = vmul.f32 %v5528, %v4818
  %v5671 = vmul.f32 %v5530, %v4819
  %v5672 = vmul.f32 %v5532, %v4820
  %v5673 = vmul.f32 %v5534, %v4821
  %v5674 = vmul.f32 %v5536, %v4822
  %v5675 = vmul.f32 %v5538, %v4823
  %v5676 = vmul.f32 %v5540, %v4824
  %v5677 = vadd.f32 %v5661, %v5669
  %v5678 = vadd.f32 %v5662, %v5670
  %v5679 = vadd.f32 %v5663, %v5671
  %v5680 = vadd.f32 %v5664, %v5672
  %v5681 = vadd.f32 %v5665, %v5673
  %v5682 = vadd.f32 %v5666, %v5674
  %v5683 = vadd.f32 %v5667, %v5675
  %v5684 = vadd.f32 %v5668, %v5676
  %v5693 = vrot.slane %v5678, 7
  %v5694 = vsel %vm801, %v5693, %v5677
  %v5695 = vrot.slane %v5679, 6
  %v5696 = vsel %vm803, %v5695, %v5694
  %v5697 = vrot.slane %v5680, 5
  %v5698 = vsel %vm805, %v5697, %v5696
  %v5699 = vrot.slane %v5681, 4
  %v5700 = vsel %vm807, %v5699, %v5698
  %v5701 = vrot.slane %v5682, 3
  %v5702 = vsel %vm809, %v5701, %v5700
  %v5703 = vrot.slane %v5683, 2
  %v5704 = vsel %vm811, %v5703, %v5702
  %v5705 = vrot.slane %v5684, 1
  %v5706 = vsel %vm813, %v5705, %v5704
  %5707 = vrot.lane.b32.xlu0 %v5706, 96
  %v5708 = vpop.permute.xlu0 %5707
  %v5709 = vsel %vm458, %v5708, 0
  %5711 = vmatprep.subr.mxu0 0.0
  %5712 = vmatpush1.msra.mxu0 0.0
  %5713 = vmatprep.subr.mxu0 0.0
  %5714 = vmatpush1.msra.mxu0 0.0
  %5715 = vmatprep.subr.mxu0 0.0
  %5716 = vmatpush1.msra.mxu0 0.0
  %5717 = vmatprep.subr.mxu0 0.0
  %5718 = vmatpush1.msra.mxu0 0.0
  %5719 = vmatprep.subr.mxu0 0.0
  %5720 = vmatpush1.msra.mxu0 0.0
  %5721 = vmatprep.subr.mxu0 0.0
  %5722 = vmatpush1.msra.mxu0 0.0
  %5723 = vmatprep.subr.mxu0 0.0
  %5724 = vmatpush1.msra.mxu0 0.0
  %5725 = vmatprep.subr.mxu0 0.0
  %5726 = vmatpush1.msra.mxu0 0.0
  %5727 = vmatprep.subr.mxu0 0.0
  %5728 = vmatpush1.msra.mxu0 0.0
  %5729 = vmatprep.subr.mxu0 0.0
  %5730 = vmatpush1.msra.mxu0 0.0
  %5731 = vmatprep.subr.mxu0 0.0
  %5732 = vmatpush1.msra.mxu0 0.0
  %5733 = vmatprep.subr.mxu0 0.0
  %5734 = vmatpush1.msra.mxu0 0.0
  %5735 = vmatprep.subr.mxu0 0.0
  %5736 = vmatpush1.msra.mxu0 %v29
  %5737 = vmatprep.subr.mxu0 0.0
  %5738 = vmatpush1.msra.mxu0 %v28
  %5739 = vmatprep.subr.mxu0 0.0
  %5740 = vmatpush1.msra.mxu0 %v27
  %5741 = vmatprep.subr.mxu0 0.0
  %5742 = vmatpush1.msra.mxu0 %v26
  %5743 = vmatprep.subr.mxu0 0.0
  %5744 = vmatpush2.msra.mxu0 0.0
  %5745 = vmatprep.subr.mxu0 0.0
  %5746 = vmatpush2.msra.mxu0 0.0
  %5747 = vmatprep.subr.mxu0 0.0
  %5748 = vmatpush2.msra.mxu0 0.0
  %5749 = vmatprep.subr.mxu0 0.0
  %5750 = vmatpush2.msra.mxu0 0.0
  %5751 = vmatprep.subr.mxu0 0.0
  %5752 = vmatpush2.msra.mxu0 0.0
  %5753 = vmatprep.subr.mxu0 0.0
  %5754 = vmatpush2.msra.mxu0 0.0
  %5755 = vmatprep.subr.mxu0 0.0
  %5756 = vmatpush2.msra.mxu0 0.0
  %5757 = vmatprep.subr.mxu0 0.0
  %5758 = vmatpush2.msra.mxu0 0.0
  %5759 = vmatprep.subr.mxu0 0.0
  %5760 = vmatpush2.msra.mxu0 0.0
  %5761 = vmatprep.subr.mxu0 0.0
  %5762 = vmatpush2.msra.mxu0 0.0
  %5763 = vmatprep.subr.mxu0 0.0
  %5764 = vmatpush2.msra.mxu0 0.0
  %5765 = vmatprep.subr.mxu0 0.0
  %5766 = vmatpush2.msra.mxu0 0.0
  %5767 = vmatprep.subr.mxu0 0.0
  %5768 = vmatpush2.msra.mxu0 0.0
  %5769 = vmatprep.subr.mxu0 0.0
  %5770 = vmatpush2.msra.mxu0 0.0
  %5771 = vmatprep.subr.mxu0 0.0
  %5772 = vmatpush2.msra.mxu0 0.0
  %5773 = vmatprep.subr.mxu0 0.0
  %5774 = vmatpush2.msra.mxu0 0.0
  %5775 = vmatprep.mubr.f32.mxu0 0.0
  %5776 = vmatmul.mubr.f32.gmra.mxu0 %v5709
  %v5777 = vpop.f32.mrf.mxu0
  %v5778 = vadd.f32 %v456, %v5777
  %v5779 = vpop.f32.mrf.mxu0
  %5780 = vdwg.mxu0
  %v5782 = vcombine.high %v5778, %v5778
  %v5784 = vunpack.c.l.s4 1966171168
  %v5785 = vunpack.c.0.s8 %v5784
  %v5786 = vlaneseq
  %v5787 = vshrl.u32 %v5786, 7
  %v5788 = vsub.s32 %v5785, %v5787
  %v5789 = vrot.slane %v5778, %v5788
  %v5791 = vunpack.c.l.s4 1966171168
  %v5792 = vunpack.c.0.s8 %v5791
  %v5793 = vlaneseq
  %v5794 = vshrl.u32 %v5793, 7
  %v5795 = vsub.s32 %v5792, %v5794
  %v5796 = vrot.slane %v5782, %v5795
  %v5797 = vcombine.high %v5789, %v5789
  %v5798 = vcombine.high %v5796, %v5796
  %v5800 = vunpack.c.l.s4 1966171168
  %v5801 = vunpack.c.0.s8 %v5800
  %v5802 = vlaneseq
  %v5803 = vshrl.u32 %v5802, 7
  %v5804 = vsub.s32 %v5801, %v5803
  %v5805 = vrot.slane %v5789, %v5804
  %v5807 = vunpack.c.l.s4 1966171168
  %v5808 = vunpack.c.0.s8 %v5807
  %v5809 = vlaneseq
  %v5810 = vshrl.u32 %v5809, 7
  %v5811 = vsub.s32 %v5808, %v5810
  %v5812 = vrot.slane %v5796, %v5811
  %v5814 = vunpack.c.l.s4 1966171168
  %v5815 = vunpack.c.0.s8 %v5814
  %v5816 = vlaneseq
  %v5817 = vshrl.u32 %v5816, 7
  %v5818 = vsub.s32 %v5815, %v5817
  %v5819 = vrot.slane %v5797, %v5818
  %v5821 = vunpack.c.l.s4 1966171168
  %v5822 = vunpack.c.0.s8 %v5821
  %v5823 = vlaneseq
  %v5824 = vshrl.u32 %v5823, 7
  %v5825 = vsub.s32 %v5822, %v5824
  %v5826 = vrot.slane %v5798, %v5825
  %v5827 = vcombine.high %v5805, %v5805
  %v5828 = vcombine.high %v5812, %v5812
  %v5829 = vcombine.high %v5819, %v5819
  %v5830 = vcombine.high %v5826, %v5826
  %v5831 = vlaneseq
  %v5832 = vshrl.u32 %v5831, 7
  %v5833 = vsub.s32 0, %v5832
  %v5834 = vrot.slane %v5805, %v5833
  %v5835 = vlaneseq
  %v5836 = vshrl.u32 %v5835, 7
  %v5837 = vsub.s32 0, %v5836
  %v5838 = vrot.slane %v5819, %v5837
  %v5839 = vlaneseq
  %v5840 = vshrl.u32 %v5839, 7
  %v5841 = vsub.s32 0, %v5840
  %v5842 = vrot.slane %v5827, %v5841
  %v5843 = vlaneseq
  %v5844 = vshrl.u32 %v5843, 7
  %v5845 = vsub.s32 0, %v5844
  %v5846 = vrot.slane %v5829, %v5845
  %v5847 = vlaneseq
  %v5848 = vshrl.u32 %v5847, 7
  %v5849 = vsub.s32 0, %v5848
  %v5850 = vrot.slane %v5812, %v5849
  %v5851 = vlaneseq
  %v5852 = vshrl.u32 %v5851, 7
  %v5853 = vsub.s32 0, %v5852
  %v5854 = vrot.slane %v5826, %v5853
  %v5855 = vlaneseq
  %v5856 = vshrl.u32 %v5855, 7
  %v5857 = vsub.s32 0, %v5856
  %v5858 = vrot.slane %v5828, %v5857
  %v5859 = vlaneseq
  %v5860 = vshrl.u32 %v5859, 7
  %v5861 = vsub.s32 0, %v5860
  %v5862 = vrot.slane %v5830, %v5861
  %v5871 = vadd.f32 %v5834, %v631
  %v5872 = vadd.f32 %v5838, %v633
  %v5873 = vadd.f32 %v5842, %v635
  %v5874 = vadd.f32 %v5846, %v637
  %v5875 = vadd.f32 %v5850, %v639
  %v5876 = vadd.f32 %v5854, %v641
  %v5877 = vadd.f32 %v5858, %v643
  %v5878 = vadd.f32 %v5862, %v645
  %v5879 = vtanh.pop %v5871
  %v5880 = vtanh.pop %v5872
  %v5881 = vtanh.pop %v5873
  %v5882 = vtanh.pop %v5874
  %v5883 = vtanh.pop %v5875
  %v5884 = vtanh.pop %v5876
  %v5885 = vtanh.pop %v5877
  %v5886 = vtanh.pop %v5878
  %v5887 = vmul.f32 %v5879, %v676
  %v5888 = vmul.f32 %v5880, %v676
  %v5889 = vmul.f32 %v5881, %v676
  %v5890 = vmul.f32 %v5882, %v676
  %v5891 = vmul.f32 %v5883, %v676
  %v5892 = vmul.f32 %v5884, %v676
  %v5893 = vmul.f32 %v5885, %v676
  %v5894 = vmul.f32 %v5886, %v676
  %5903 = vrot.lane.b32.xlu0 %v5887, 32
  %v5904 = vpop.permute.xlu0 %5903
  %5905 = vrot.lane.b32.xlu0 %v5888, 32
  %v5906 = vpop.permute.xlu0 %5905
  %5907 = vrot.lane.b32.xlu0 %v5889, 32
  %v5908 = vpop.permute.xlu0 %5907
  %5909 = vrot.lane.b32.xlu0 %v5890, 32
  %v5910 = vpop.permute.xlu0 %5909
  %5911 = vrot.lane.b32.xlu0 %v5891, 32
  %v5912 = vpop.permute.xlu0 %5911
  %5913 = vrot.lane.b32.xlu0 %v5892, 32
  %v5914 = vpop.permute.xlu0 %5913
  %5915 = vrot.lane.b32.xlu0 %v5893, 32
  %v5916 = vpop.permute.xlu0 %5915
  %5917 = vrot.lane.b32.xlu0 %v5894, 32
  %v5918 = vpop.permute.xlu0 %5917
  %v5927 = vsel %vm458, %v5904, 0.0
  %5928 = vadd.xlane.f32.xlu0 %v5927
  %v5929 = vpop.xlane.xlu0 %5928
  %v5930 = vsel %vm458, %v5906, 0.0
  %5931 = vadd.xlane.f32.xlu0 %v5930
  %v5932 = vpop.xlane.xlu0 %5931
  %v5933 = vsel %vm458, %v5908, 0.0
  %5934 = vadd.xlane.f32.xlu0 %v5933
  %v5935 = vpop.xlane.xlu0 %5934
  %v5936 = vsel %vm458, %v5910, 0.0
  %5937 = vadd.xlane.f32.xlu0 %v5936
  %v5938 = vpop.xlane.xlu0 %5937
  %v5939 = vsel %vm458, %v5912, 0.0
  %5940 = vadd.xlane.f32.xlu0 %v5939
  %v5941 = vpop.xlane.xlu0 %5940
  %v5942 = vsel %vm458, %v5914, 0.0
  %5943 = vadd.xlane.f32.xlu0 %v5942
  %v5944 = vpop.xlane.xlu0 %5943
  %v5945 = vsel %vm458, %v5916, 0.0
  %5946 = vadd.xlane.f32.xlu0 %v5945
  %v5947 = vpop.xlane.xlu0 %5946
  %v5948 = vsel %vm458, %v5918, 0.0
  %5949 = vadd.xlane.f32.xlu0 %v5948
  %v5950 = vpop.xlane.xlu0 %5949
  %v5951 = vadd.f32 %v5929, %v749
  %v5952 = vadd.f32 %v5932, %v749
  %v5953 = vadd.f32 %v5935, %v749
  %v5954 = vadd.f32 %v5938, %v749
  %v5955 = vadd.f32 %v5941, %v749
  %v5956 = vadd.f32 %v5944, %v749
  %v5957 = vadd.f32 %v5947, %v749
  %v5958 = vadd.f32 %v5950, %v749
  %v5967 = vlaneseq
  %v5968 = vshrl.u32 %v5967, 7
  %v5969 = vsub.s32 %v768, %v5968
  %v5970 = vrot.slane %v5951, %v5969
  %v5971 = vlaneseq
  %v5972 = vshrl.u32 %v5971, 7
  %v5973 = vsub.s32 %v768, %v5972
  %v5974 = vrot.slane %v5952, %v5973
  %v5975 = vlaneseq
  %v5976 = vshrl.u32 %v5975, 7
  %v5977 = vsub.s32 %v768, %v5976
  %v5978 = vrot.slane %v5953, %v5977
  %v5979 = vlaneseq
  %v5980 = vshrl.u32 %v5979, 7
  %v5981 = vsub.s32 %v768, %v5980
  %v5982 = vrot.slane %v5954, %v5981
  %v5983 = vlaneseq
  %v5984 = vshrl.u32 %v5983, 7
  %v5985 = vsub.s32 %v768, %v5984
  %v5986 = vrot.slane %v5955, %v5985
  %v5987 = vlaneseq
  %v5988 = vshrl.u32 %v5987, 7
  %v5989 = vsub.s32 %v768, %v5988
  %v5990 = vrot.slane %v5956, %v5989
  %v5991 = vlaneseq
  %v5992 = vshrl.u32 %v5991, 7
  %v5993 = vsub.s32 %v768, %v5992
  %v5994 = vrot.slane %v5957, %v5993
  %v5995 = vlaneseq
  %v5996 = vshrl.u32 %v5995, 7
  %v5997 = vsub.s32 %v768, %v5996
  %v5998 = vrot.slane %v5958, %v5997
  %v5999 = vsel %vm801, %v5974, %v5970
  %v6000 = vsel %vm803, %v5978, %v5999
  %v6001 = vsel %vm805, %v5982, %v6000
  %v6002 = vsel %vm807, %v5986, %v6001
  %v6003 = vsel %vm809, %v5990, %v6002
  %v6004 = vsel %vm811, %v5994, %v6003
  %v6005 = vsel %vm813, %v5998, %v6004
  %v6007 = vsel %vm816, %v6005, -inf
  %6008 = vmax.xlane.f32.xlu0 %v6007
  %v6009 = vpop.xlane.xlu0 %6008
  %v6011 = vlaneseq
  %v6012 = vshrl.u32 %v6011, 7
  %v6013 = vsub.s32 0, %v6012
  %v6014 = vrot.slane %v6009, %v6013
  %v6015 = vlaneseq
  %v6016 = vshrl.u32 %v6015, 7
  %v6017 = vsub.s32 1, %v6016
  %v6018 = vrot.slane %v6009, %v6017
  %v6019 = vlaneseq
  %v6020 = vshrl.u32 %v6019, 7
  %v6021 = vsub.s32 2, %v6020
  %v6022 = vrot.slane %v6009, %v6021
  %v6023 = vlaneseq
  %v6024 = vshrl.u32 %v6023, 7
  %v6025 = vsub.s32 3, %v6024
  %v6026 = vrot.slane %v6009, %v6025
  %v6027 = vlaneseq
  %v6028 = vshrl.u32 %v6027, 7
  %v6029 = vsub.s32 4, %v6028
  %v6030 = vrot.slane %v6009, %v6029
  %v6031 = vlaneseq
  %v6032 = vshrl.u32 %v6031, 7
  %v6033 = vsub.s32 5, %v6032
  %v6034 = vrot.slane %v6009, %v6033
  %v6035 = vlaneseq
  %v6036 = vshrl.u32 %v6035, 7
  %v6037 = vsub.s32 6, %v6036
  %v6038 = vrot.slane %v6009, %v6037
  %v6039 = vlaneseq
  %v6040 = vshrl.u32 %v6039, 7
  %v6041 = vsub.s32 7, %v6040
  %v6042 = vrot.slane %v6009, %v6041
  %v6051 = vsub.f32 %v5951, %v6014
  %v6052 = vsub.f32 %v5952, %v6018
  %v6053 = vsub.f32 %v5953, %v6022
  %v6054 = vsub.f32 %v5954, %v6026
  %v6055 = vsub.f32 %v5955, %v6030
  %v6056 = vsub.f32 %v5956, %v6034
  %v6057 = vsub.f32 %v5957, %v6038
  %v6058 = vsub.f32 %v5958, %v6042
  %v6059 = vmul.f32 %v6051, 1.442695
  %v6060 = vpow.pop %v6059
  %v6061 = vmul.f32 %v6052, 1.442695
  %v6062 = vpow.pop %v6061
  %v6063 = vmul.f32 %v6053, 1.442695
  %v6064 = vpow.pop %v6063
  %v6065 = vmul.f32 %v6054, 1.442695
  %v6066 = vpow.pop %v6065
  %v6067 = vmul.f32 %v6055, 1.442695
  %v6068 = vpow.pop %v6067
  %v6069 = vmul.f32 %v6056, 1.442695
  %v6070 = vpow.pop %v6069
  %v6071 = vmul.f32 %v6057, 1.442695
  %v6072 = vpow.pop %v6071
  %v6073 = vmul.f32 %v6058, 1.442695
  %v6074 = vpow.pop %v6073
  %6083 = vset.pattern.permute.xlu0 0
  %6084 = vperm.xlu0 %6083, %v6060
  %v6085 = vpop.permute.xlu0 %6084
  %6086 = vset.pattern.permute.xlu0 0
  %6087 = vperm.xlu0 %6086, %v6062
  %v6088 = vpop.permute.xlu0 %6087
  %6089 = vset.pattern.permute.xlu0 0
  %6090 = vperm.xlu0 %6089, %v6064
  %v6091 = vpop.permute.xlu0 %6090
  %6092 = vset.pattern.permute.xlu0 0
  %6093 = vperm.xlu0 %6092, %v6066
  %v6094 = vpop.permute.xlu0 %6093
  %6095 = vset.pattern.permute.xlu0 0
  %6096 = vperm.xlu0 %6095, %v6068
  %v6097 = vpop.permute.xlu0 %6096
  %6098 = vset.pattern.permute.xlu0 0
  %6099 = vperm.xlu0 %6098, %v6070
  %v6100 = vpop.permute.xlu0 %6099
  %6101 = vset.pattern.permute.xlu0 0
  %6102 = vperm.xlu0 %6101, %v6072
  %v6103 = vpop.permute.xlu0 %6102
  %6104 = vset.pattern.permute.xlu0 0
  %6105 = vperm.xlu0 %6104, %v6074
  %v6106 = vpop.permute.xlu0 %6105
  %v6107 = vlaneseq
  %v6108 = vshrl.u32 %v6107, 7
  %v6109 = vsub.s32 %v768, %v6108
  %v6110 = vrot.slane %v6085, %v6109
  %v6111 = vlaneseq
  %v6112 = vshrl.u32 %v6111, 7
  %v6113 = vsub.s32 %v768, %v6112
  %v6114 = vrot.slane %v6088, %v6113
  %v6115 = vlaneseq
  %v6116 = vshrl.u32 %v6115, 7
  %v6117 = vsub.s32 %v768, %v6116
  %v6118 = vrot.slane %v6091, %v6117
  %v6119 = vlaneseq
  %v6120 = vshrl.u32 %v6119, 7
  %v6121 = vsub.s32 %v768, %v6120
  %v6122 = vrot.slane %v6094, %v6121
  %v6123 = vlaneseq
  %v6124 = vshrl.u32 %v6123, 7
  %v6125 = vsub.s32 %v768, %v6124
  %v6126 = vrot.slane %v6097, %v6125
  %v6127 = vlaneseq
  %v6128 = vshrl.u32 %v6127, 7
  %v6129 = vsub.s32 %v768, %v6128
  %v6130 = vrot.slane %v6100, %v6129
  %v6131 = vlaneseq
  %v6132 = vshrl.u32 %v6131, 7
  %v6133 = vsub.s32 %v768, %v6132
  %v6134 = vrot.slane %v6103, %v6133
  %v6135 = vlaneseq
  %v6136 = vshrl.u32 %v6135, 7
  %v6137 = vsub.s32 %v768, %v6136
  %v6138 = vrot.slane %v6106, %v6137
  %v6139 = vsel %vm801, %v6114, %v6110
  %v6140 = vsel %vm803, %v6118, %v6139
  %v6141 = vsel %vm805, %v6122, %v6140
  %v6142 = vsel %vm807, %v6126, %v6141
  %v6143 = vsel %vm809, %v6130, %v6142
  %v6144 = vsel %vm811, %v6134, %v6143
  %v6145 = vsel %vm813, %v6138, %v6144
  %v6147 = vsel %vm816, %v6145, 0.0
  %6148 = vadd.xlane.f32.xlu0 %v6147
  %v6149 = vpop.xlane.xlu0 %6148
  %v6150 = vrcp.pop %v6149
  %v6152 = vlaneseq
  %v6153 = vshrl.u32 %v6152, 7
  %v6154 = vsub.s32 0, %v6153
  %v6155 = vrot.slane %v6150, %v6154
  %v6156 = vlaneseq
  %v6157 = vshrl.u32 %v6156, 7
  %v6158 = vsub.s32 1, %v6157
  %v6159 = vrot.slane %v6150, %v6158
  %v6160 = vlaneseq
  %v6161 = vshrl.u32 %v6160, 7
  %v6162 = vsub.s32 2, %v6161
  %v6163 = vrot.slane %v6150, %v6162
  %v6164 = vlaneseq
  %v6165 = vshrl.u32 %v6164, 7
  %v6166 = vsub.s32 3, %v6165
  %v6167 = vrot.slane %v6150, %v6166
  %v6168 = vlaneseq
  %v6169 = vshrl.u32 %v6168, 7
  %v6170 = vsub.s32 4, %v6169
  %v6171 = vrot.slane %v6150, %v6170
  %v6172 = vlaneseq
  %v6173 = vshrl.u32 %v6172, 7
  %v6174 = vsub.s32 5, %v6173
  %v6175 = vrot.slane %v6150, %v6174
  %v6176 = vlaneseq
  %v6177 = vshrl.u32 %v6176, 7
  %v6178 = vsub.s32 6, %v6177
  %v6179 = vrot.slane %v6150, %v6178
  %v6180 = vlaneseq
  %v6181 = vshrl.u32 %v6180, 7
  %v6182 = vsub.s32 7, %v6181
  %v6183 = vrot.slane %v6150, %v6182
  %v6192 = vmul.f32 %v6060, %v6155
  %v6193 = vmul.f32 %v6062, %v6159
  %v6194 = vmul.f32 %v6064, %v6163
  %v6195 = vmul.f32 %v6066, %v6167
  %v6196 = vmul.f32 %v6068, %v6171
  %v6197 = vmul.f32 %v6070, %v6175
  %v6198 = vmul.f32 %v6072, %v6179
  %v6199 = vmul.f32 %v6074, %v6183
  %6201 = vset.pattern.permute.xlu0 0
  %6202 = vperm.xlu0 %6201, %v6192
  %v6203 = vpop.permute.xlu0 %6202
  %6206 = vset.pattern.permute.xlu0 0
  %6207 = vperm.xlu0 %6206, %v6193
  %v6208 = vpop.permute.xlu0 %6207
  %6211 = vset.pattern.permute.xlu0 0
  %6212 = vperm.xlu0 %6211, %v6194
  %v6213 = vpop.permute.xlu0 %6212
  %6216 = vset.pattern.permute.xlu0 0
  %6217 = vperm.xlu0 %6216, %v6195
  %v6218 = vpop.permute.xlu0 %6217
  %6221 = vset.pattern.permute.xlu0 0
  %6222 = vperm.xlu0 %6221, %v6196
  %v6223 = vpop.permute.xlu0 %6222
  %6226 = vset.pattern.permute.xlu0 0
  %6227 = vperm.xlu0 %6226, %v6197
  %v6228 = vpop.permute.xlu0 %6227
  %6231 = vset.pattern.permute.xlu0 0
  %6232 = vperm.xlu0 %6231, %v6198
  %v6233 = vpop.permute.xlu0 %6232
  %6236 = vset.pattern.permute.xlu0 0
  %6237 = vperm.xlu0 %6236, %v6199
  %v6238 = vpop.permute.xlu0 %6237
  %v6240 = vmul.f32 %v256, %v6203
  %v6241 = vmul.f32 %v261, %v6208
  %v6242 = vmul.f32 %v266, %v6213
  %v6243 = vmul.f32 %v271, %v6218
  %v6244 = vmul.f32 %v276, %v6223
  %v6245 = vmul.f32 %v281, %v6228
  %v6246 = vmul.f32 %v286, %v6233
  %v6247 = vmul.f32 %v291, %v6238
  %v6248 = vsel %vm442, %v6240, 0.0
  %v6249 = vrot.slane %v6248, 4
  %v6250 = vadd.f32 %v6248, %v6249
  %v6251 = vrot.slane %v6250, 2
  %v6252 = vadd.f32 %v6250, %v6251
  %v6253 = vrot.slane %v6252, 1
  %v6254 = vadd.f32 %v6252, %v6253
  %v6255 = vsel %vm442, %v6241, 0.0
  %v6256 = vrot.slane %v6255, 4
  %v6257 = vadd.f32 %v6255, %v6256
  %v6258 = vrot.slane %v6257, 2
  %v6259 = vadd.f32 %v6257, %v6258
  %v6260 = vrot.slane %v6259, 1
  %v6261 = vadd.f32 %v6259, %v6260
  %v6262 = vsel %vm442, %v6242, 0.0
  %v6263 = vrot.slane %v6262, 4
  %v6264 = vadd.f32 %v6262, %v6263
  %v6265 = vrot.slane %v6264, 2
  %v6266 = vadd.f32 %v6264, %v6265
  %v6267 = vrot.slane %v6266, 1
  %v6268 = vadd.f32 %v6266, %v6267
  %v6269 = vsel %vm442, %v6243, 0.0
  %v6270 = vrot.slane %v6269, 4
  %v6271 = vadd.f32 %v6269, %v6270
  %v6272 = vrot.slane %v6271, 2
  %v6273 = vadd.f32 %v6271, %v6272
  %v6274 = vrot.slane %v6273, 1
  %v6275 = vadd.f32 %v6273, %v6274
  %v6276 = vsel %vm442, %v6244, 0.0
  %v6277 = vrot.slane %v6276, 4
  %v6278 = vadd.f32 %v6276, %v6277
  %v6279 = vrot.slane %v6278, 2
  %v6280 = vadd.f32 %v6278, %v6279
  %v6281 = vrot.slane %v6280, 1
  %v6282 = vadd.f32 %v6280, %v6281
  %v6283 = vsel %vm442, %v6245, 0.0
  %v6284 = vrot.slane %v6283, 4
  %v6285 = vadd.f32 %v6283, %v6284
  %v6286 = vrot.slane %v6285, 2
  %v6287 = vadd.f32 %v6285, %v6286
  %v6288 = vrot.slane %v6287, 1
  %v6289 = vadd.f32 %v6287, %v6288
  %v6290 = vsel %vm442, %v6246, 0.0
  %v6291 = vrot.slane %v6290, 4
  %v6292 = vadd.f32 %v6290, %v6291
  %v6293 = vrot.slane %v6292, 2
  %v6294 = vadd.f32 %v6292, %v6293
  %v6295 = vrot.slane %v6294, 1
  %v6296 = vadd.f32 %v6294, %v6295
  %v6297 = vsel %vm442, %v6247, 0.0
  %v6298 = vrot.slane %v6297, 4
  %v6299 = vadd.f32 %v6297, %v6298
  %v6300 = vrot.slane %v6299, 2
  %v6301 = vadd.f32 %v6299, %v6300
  %v6302 = vrot.slane %v6301, 1
  %v6303 = vadd.f32 %v6301, %v6302
  %s6304 = scalar_lea.vmem [#allocation2], 48
  %v6305 = vld [vmem:[%s6304] sm:$0xff]
  %v6307 = vrot.slane %v6305, 1
  %v6308 = vrot.slane %v6305, 2
  %v6309 = vrot.slane %v6305, 3
  %v6310 = vrot.slane %v6305, 4
  %v6311 = vrot.slane %v6305, 5
  %v6312 = vrot.slane %v6305, 6
  %v6313 = vrot.slane %v6305, 7
  %v6322 = vadd.f32 %v6254, %v6305
  %v6323 = vadd.f32 %v6261, %v6307
  %v6324 = vadd.f32 %v6268, %v6308
  %v6325 = vadd.f32 %v6275, %v6309
  %v6326 = vadd.f32 %v6282, %v6310
  %v6327 = vadd.f32 %v6289, %v6311
  %v6328 = vadd.f32 %v6296, %v6312
  %v6329 = vadd.f32 %v6303, %v6313
  %v6330 = vrot.slane %v5778, 1
  %v6331 = vrot.slane %v5778, 2
  %v6332 = vrot.slane %v5778, 3
  %v6333 = vrot.slane %v5778, 4
  %v6334 = vrot.slane %v5778, 5
  %v6335 = vrot.slane %v5778, 6
  %v6336 = vrot.slane %v5778, 7
  %v6345 = vadd.f32 %v6322, %v5778
  %v6346 = vadd.f32 %v6323, %v6330
  %v6347 = vadd.f32 %v6324, %v6331
  %v6348 = vadd.f32 %v6325, %v6332
  %v6349 = vadd.f32 %v6326, %v6333
  %v6350 = vadd.f32 %v6327, %v6334
  %v6351 = vadd.f32 %v6328, %v6335
  %v6352 = vadd.f32 %v6329, %v6336
  %v6353 = vxor.u32 %v6345, 2147483648
  %v6354 = vxor.u32 %v6346, 2147483648
  %v6355 = vxor.u32 %v6347, 2147483648
  %v6356 = vxor.u32 %v6348, 2147483648
  %v6357 = vxor.u32 %v6349, 2147483648
  %v6358 = vxor.u32 %v6350, 2147483648
  %v6359 = vxor.u32 %v6351, 2147483648
  %v6360 = vxor.u32 %v6352, 2147483648
  %v6361 = vmul.f32 %v6353, 1.442695
  %v6362 = vpow.pop %v6361
  %v6363 = vmul.f32 %v6354, 1.442695
  %v6364 = vpow.pop %v6363
  %v6365 = vmul.f32 %v6355, 1.442695
  %v6366 = vpow.pop %v6365
  %v6367 = vmul.f32 %v6356, 1.442695
  %v6368 = vpow.pop %v6367
  %v6369 = vmul.f32 %v6357, 1.442695
  %v6370 = vpow.pop %v6369
  %v6371 = vmul.f32 %v6358, 1.442695
  %v6372 = vpow.pop %v6371
  %v6373 = vmul.f32 %v6359, 1.442695
  %v6374 = vpow.pop %v6373
  %v6375 = vmul.f32 %v6360, 1.442695
  %v6376 = vpow.pop %v6375
  %v6377 = vadd.f32 %v6362, 1.0
  %v6378 = vadd.f32 %v6364, 1.0
  %v6379 = vadd.f32 %v6366, 1.0
  %v6380 = vadd.f32 %v6368, 1.0
  %v6381 = vadd.f32 %v6370, 1.0
  %v6382 = vadd.f32 %v6372, 1.0
  %v6383 = vadd.f32 %v6374, 1.0
  %v6384 = vadd.f32 %v6376, 1.0
  %v6385 = vrcp.pop %v6377
  %v6386 = vmul.f32 1.0, %v6385
  %v6387 = vrcp.pop %v6378
  %v6388 = vmul.f32 1.0, %v6387
  %v6389 = vrcp.pop %v6379
  %v6390 = vmul.f32 1.0, %v6389
  %v6391 = vrcp.pop %v6380
  %v6392 = vmul.f32 1.0, %v6391
  %v6393 = vrcp.pop %v6381
  %v6394 = vmul.f32 1.0, %v6393
  %v6395 = vrcp.pop %v6382
  %v6396 = vmul.f32 1.0, %v6395
  %v6397 = vrcp.pop %v6383
  %v6398 = vmul.f32 1.0, %v6397
  %v6399 = vrcp.pop %v6384
  %v6400 = vmul.f32 1.0, %v6399
  %6401 = vrot.lane.b32.xlu0 %v5778, 64
  %v6402 = vpop.permute.xlu0 %6401
  %6403 = vrot.lane.b32.xlu0 %v6330, 64
  %v6404 = vpop.permute.xlu0 %6403
  %6405 = vrot.lane.b32.xlu0 %v6331, 64
  %v6406 = vpop.permute.xlu0 %6405
  %6407 = vrot.lane.b32.xlu0 %v6332, 64
  %v6408 = vpop.permute.xlu0 %6407
  %6409 = vrot.lane.b32.xlu0 %v6333, 64
  %v6410 = vpop.permute.xlu0 %6409
  %6411 = vrot.lane.b32.xlu0 %v6334, 64
  %v6412 = vpop.permute.xlu0 %6411
  %6413 = vrot.lane.b32.xlu0 %v6335, 64
  %v6414 = vpop.permute.xlu0 %6413
  %6415 = vrot.lane.b32.xlu0 %v6336, 64
  %v6416 = vpop.permute.xlu0 %6415
  %v6425 = vmul.f32 %v6386, %v6402
  %v6426 = vmul.f32 %v6388, %v6404
  %v6427 = vmul.f32 %v6390, %v6406
  %v6428 = vmul.f32 %v6392, %v6408
  %v6429 = vmul.f32 %v6394, %v6410
  %v6430 = vmul.f32 %v6396, %v6412
  %v6431 = vmul.f32 %v6398, %v6414
  %v6432 = vmul.f32 %v6400, %v6416
  %6441 = vrot.lane.b32.xlu0 %v6425, 64
  %v6442 = vpop.permute.xlu0 %6441
  %6443 = vrot.lane.b32.xlu0 %v6426, 64
  %v6444 = vpop.permute.xlu0 %6443
  %6445 = vrot.lane.b32.xlu0 %v6427, 64
  %v6446 = vpop.permute.xlu0 %6445
  %6447 = vrot.lane.b32.xlu0 %v6428, 64
  %v6448 = vpop.permute.xlu0 %6447
  %6449 = vrot.lane.b32.xlu0 %v6429, 64
  %v6450 = vpop.permute.xlu0 %6449
  %6451 = vrot.lane.b32.xlu0 %v6430, 64
  %v6452 = vpop.permute.xlu0 %6451
  %6453 = vrot.lane.b32.xlu0 %v6431, 64
  %v6454 = vpop.permute.xlu0 %6453
  %6455 = vrot.lane.b32.xlu0 %v6432, 64
  %v6456 = vpop.permute.xlu0 %6455
  %v6465 = vadd.f32 %v6322, %v6442
  %v6466 = vadd.f32 %v6323, %v6444
  %v6467 = vadd.f32 %v6324, %v6446
  %v6468 = vadd.f32 %v6325, %v6448
  %v6469 = vadd.f32 %v6326, %v6450
  %v6470 = vadd.f32 %v6327, %v6452
  %v6471 = vadd.f32 %v6328, %v6454
  %v6472 = vadd.f32 %v6329, %v6456
  %v6473 = vtanh.pop %v6465
  %v6474 = vtanh.pop %v6466
  %v6475 = vtanh.pop %v6467
  %v6476 = vtanh.pop %v6468
  %v6477 = vtanh.pop %v6469
  %v6478 = vtanh.pop %v6470
  %v6479 = vtanh.pop %v6471
  %v6480 = vtanh.pop %v6472
  %v6481 = vsub.f32 1.0, %v6386
  %v6482 = vsub.f32 1.0, %v6388
  %v6483 = vsub.f32 1.0, %v6390
  %v6484 = vsub.f32 1.0, %v6392
  %v6485 = vsub.f32 1.0, %v6394
  %v6486 = vsub.f32 1.0, %v6396
  %v6487 = vsub.f32 1.0, %v6398
  %v6488 = vsub.f32 1.0, %v6400
  %6497 = vrot.lane.b32.xlu0 %v6473, 96
  %v6498 = vpop.permute.xlu0 %6497
  %6499 = vrot.lane.b32.xlu0 %v6474, 96
  %v6500 = vpop.permute.xlu0 %6499
  %6501 = vrot.lane.b32.xlu0 %v6475, 96
  %v6502 = vpop.permute.xlu0 %6501
  %6503 = vrot.lane.b32.xlu0 %v6476, 96
  %v6504 = vpop.permute.xlu0 %6503
  %6505 = vrot.lane.b32.xlu0 %v6477, 96
  %v6506 = vpop.permute.xlu0 %6505
  %6507 = vrot.lane.b32.xlu0 %v6478, 96
  %v6508 = vpop.permute.xlu0 %6507
  %6509 = vrot.lane.b32.xlu0 %v6479, 96
  %v6510 = vpop.permute.xlu0 %6509
  %6511 = vrot.lane.b32.xlu0 %v6480, 96
  %v6512 = vpop.permute.xlu0 %6511
  %v6521 = vmul.f32 %v6481, %v6498
  %v6522 = vmul.f32 %v6482, %v6500
  %v6523 = vmul.f32 %v6483, %v6502
  %v6524 = vmul.f32 %v6484, %v6504
  %v6525 = vmul.f32 %v6485, %v6506
  %v6526 = vmul.f32 %v6486, %v6508
  %v6527 = vmul.f32 %v6487, %v6510
  %v6528 = vmul.f32 %v6488, %v6512
  %v6529 = vmul.f32 %v6386, %v5677
  %v6530 = vmul.f32 %v6388, %v5678
  %v6531 = vmul.f32 %v6390, %v5679
  %v6532 = vmul.f32 %v6392, %v5680
  %v6533 = vmul.f32 %v6394, %v5681
  %v6534 = vmul.f32 %v6396, %v5682
  %v6535 = vmul.f32 %v6398, %v5683
  %v6536 = vmul.f32 %v6400, %v5684
  %v6537 = vadd.f32 %v6521, %v6529
  %v6538 = vadd.f32 %v6522, %v6530
  %v6539 = vadd.f32 %v6523, %v6531
  %v6540 = vadd.f32 %v6524, %v6532
  %v6541 = vadd.f32 %v6525, %v6533
  %v6542 = vadd.f32 %v6526, %v6534
  %v6543 = vadd.f32 %v6527, %v6535
  %v6544 = vadd.f32 %v6528, %v6536
  %v6553 = vrot.slane %v6538, 7
  %v6554 = vsel %vm801, %v6553, %v6537
  %v6555 = vrot.slane %v6539, 6
  %v6556 = vsel %vm803, %v6555, %v6554
  %v6557 = vrot.slane %v6540, 5
  %v6558 = vsel %vm805, %v6557, %v6556
  %v6559 = vrot.slane %v6541, 4
  %v6560 = vsel %vm807, %v6559, %v6558
  %v6561 = vrot.slane %v6542, 3
  %v6562 = vsel %vm809, %v6561, %v6560
  %v6563 = vrot.slane %v6543, 2
  %v6564 = vsel %vm811, %v6563, %v6562
  %v6565 = vrot.slane %v6544, 1
  %v6566 = vsel %vm813, %v6565, %v6564
  %6567 = vrot.lane.b32.xlu0 %v6566, 96
  %v6568 = vpop.permute.xlu0 %6567
  %v6569 = vsel %vm458, %v6568, 0
  %6571 = vmatprep.subr.mxu0 0.0
  %6572 = vmatpush1.msra.mxu0 0.0
  %6573 = vmatprep.subr.mxu0 0.0
  %6574 = vmatpush1.msra.mxu0 0.0
  %6575 = vmatprep.subr.mxu0 0.0
  %6576 = vmatpush1.msra.mxu0 0.0
  %6577 = vmatprep.subr.mxu0 0.0
  %6578 = vmatpush1.msra.mxu0 0.0
  %6579 = vmatprep.subr.mxu0 0.0
  %6580 = vmatpush1.msra.mxu0 0.0
  %6581 = vmatprep.subr.mxu0 0.0
  %6582 = vmatpush1.msra.mxu0 0.0
  %6583 = vmatprep.subr.mxu0 0.0
  %6584 = vmatpush1.msra.mxu0 0.0
  %6585 = vmatprep.subr.mxu0 0.0
  %6586 = vmatpush1.msra.mxu0 0.0
  %6587 = vmatprep.subr.mxu0 0.0
  %6588 = vmatpush1.msra.mxu0 0.0
  %6589 = vmatprep.subr.mxu0 0.0
  %6590 = vmatpush1.msra.mxu0 0.0
  %6591 = vmatprep.subr.mxu0 0.0
  %6592 = vmatpush1.msra.mxu0 0.0
  %6593 = vmatprep.subr.mxu0 0.0
  %6594 = vmatpush1.msra.mxu0 0.0
  %6595 = vmatprep.subr.mxu0 0.0
  %6596 = vmatpush1.msra.mxu0 %v29
  %6597 = vmatprep.subr.mxu0 0.0
  %6598 = vmatpush1.msra.mxu0 %v28
  %6599 = vmatprep.subr.mxu0 0.0
  %6600 = vmatpush1.msra.mxu0 %v27
  %6601 = vmatprep.subr.mxu0 0.0
  %6602 = vmatpush1.msra.mxu0 %v26
  %6603 = vmatprep.subr.mxu0 0.0
  %6604 = vmatpush2.msra.mxu0 0.0
  %6605 = vmatprep.subr.mxu0 0.0
  %6606 = vmatpush2.msra.mxu0 0.0
  %6607 = vmatprep.subr.mxu0 0.0
  %6608 = vmatpush2.msra.mxu0 0.0
  %6609 = vmatprep.subr.mxu0 0.0
  %6610 = vmatpush2.msra.mxu0 0.0
  %6611 = vmatprep.subr.mxu0 0.0
  %6612 = vmatpush2.msra.mxu0 0.0
  %6613 = vmatprep.subr.mxu0 0.0
  %6614 = vmatpush2.msra.mxu0 0.0
  %6615 = vmatprep.subr.mxu0 0.0
  %6616 = vmatpush2.msra.mxu0 0.0
  %6617 = vmatprep.subr.mxu0 0.0
  %6618 = vmatpush2.msra.mxu0 0.0
  %6619 = vmatprep.subr.mxu0 0.0
  %6620 = vmatpush2.msra.mxu0 0.0
  %6621 = vmatprep.subr.mxu0 0.0
  %6622 = vmatpush2.msra.mxu0 0.0
  %6623 = vmatprep.subr.mxu0 0.0
  %6624 = vmatpush2.msra.mxu0 0.0
  %6625 = vmatprep.subr.mxu0 0.0
  %6626 = vmatpush2.msra.mxu0 0.0
  %6627 = vmatprep.subr.mxu0 0.0
  %6628 = vmatpush2.msra.mxu0 0.0
  %6629 = vmatprep.subr.mxu0 0.0
  %6630 = vmatpush2.msra.mxu0 0.0
  %6631 = vmatprep.subr.mxu0 0.0
  %6632 = vmatpush2.msra.mxu0 0.0
  %6633 = vmatprep.subr.mxu0 0.0
  %6634 = vmatpush2.msra.mxu0 0.0
  %6635 = vmatprep.mubr.f32.mxu0 0.0
  %6636 = vmatmul.mubr.f32.gmra.mxu0 %v6569
  %v6637 = vpop.f32.mrf.mxu0
  %v6638 = vadd.f32 %v456, %v6637
  %v6639 = vpop.f32.mrf.mxu0
  %6640 = vdwg.mxu0
  %v6642 = vcombine.high %v6638, %v6638
  %v6644 = vunpack.c.l.s4 1966171168
  %v6645 = vunpack.c.0.s8 %v6644
  %v6646 = vlaneseq
  %v6647 = vshrl.u32 %v6646, 7
  %v6648 = vsub.s32 %v6645, %v6647
  %v6649 = vrot.slane %v6638, %v6648
  %v6651 = vunpack.c.l.s4 1966171168
  %v6652 = vunpack.c.0.s8 %v6651
  %v6653 = vlaneseq
  %v6654 = vshrl.u32 %v6653, 7
  %v6655 = vsub.s32 %v6652, %v6654
  %v6656 = vrot.slane %v6642, %v6655
  %v6657 = vcombine.high %v6649, %v6649
  %v6658 = vcombine.high %v6656, %v6656
  %v6660 = vunpack.c.l.s4 1966171168
  %v6661 = vunpack.c.0.s8 %v6660
  %v6662 = vlaneseq
  %v6663 = vshrl.u32 %v6662, 7
  %v6664 = vsub.s32 %v6661, %v6663
  %v6665 = vrot.slane %v6649, %v6664
  %v6667 = vunpack.c.l.s4 1966171168
  %v6668 = vunpack.c.0.s8 %v6667
  %v6669 = vlaneseq
  %v6670 = vshrl.u32 %v6669, 7
  %v6671 = vsub.s32 %v6668, %v6670
  %v6672 = vrot.slane %v6656, %v6671
  %v6674 = vunpack.c.l.s4 1966171168
  %v6675 = vunpack.c.0.s8 %v6674
  %v6676 = vlaneseq
  %v6677 = vshrl.u32 %v6676, 7
  %v6678 = vsub.s32 %v6675, %v6677
  %v6679 = vrot.slane %v6657, %v6678
  %v6681 = vunpack.c.l.s4 1966171168
  %v6682 = vunpack.c.0.s8 %v6681
  %v6683 = vlaneseq
  %v6684 = vshrl.u32 %v6683, 7
  %v6685 = vsub.s32 %v6682, %v6684
  %v6686 = vrot.slane %v6658, %v6685
  %v6687 = vcombine.high %v6665, %v6665
  %v6688 = vcombine.high %v6672, %v6672
  %v6689 = vcombine.high %v6679, %v6679
  %v6690 = vcombine.high %v6686, %v6686
  %v6691 = vlaneseq
  %v6692 = vshrl.u32 %v6691, 7
  %v6693 = vsub.s32 0, %v6692
  %v6694 = vrot.slane %v6665, %v6693
  %v6695 = vlaneseq
  %v6696 = vshrl.u32 %v6695, 7
  %v6697 = vsub.s32 0, %v6696
  %v6698 = vrot.slane %v6679, %v6697
  %v6699 = vlaneseq
  %v6700 = vshrl.u32 %v6699, 7
  %v6701 = vsub.s32 0, %v6700
  %v6702 = vrot.slane %v6687, %v6701
  %v6703 = vlaneseq
  %v6704 = vshrl.u32 %v6703, 7
  %v6705 = vsub.s32 0, %v6704
  %v6706 = vrot.slane %v6689, %v6705
  %v6707 = vlaneseq
  %v6708 = vshrl.u32 %v6707, 7
  %v6709 = vsub.s32 0, %v6708
  %v6710 = vrot.slane %v6672, %v6709
  %v6711 = vlaneseq
  %v6712 = vshrl.u32 %v6711, 7
  %v6713 = vsub.s32 0, %v6712
  %v6714 = vrot.slane %v6686, %v6713
  %v6715 = vlaneseq
  %v6716 = vshrl.u32 %v6715, 7
  %v6717 = vsub.s32 0, %v6716
  %v6718 = vrot.slane %v6688, %v6717
  %v6719 = vlaneseq
  %v6720 = vshrl.u32 %v6719, 7
  %v6721 = vsub.s32 0, %v6720
  %v6722 = vrot.slane %v6690, %v6721
  %v6731 = vadd.f32 %v6694, %v631
  %v6732 = vadd.f32 %v6698, %v633
  %v6733 = vadd.f32 %v6702, %v635
  %v6734 = vadd.f32 %v6706, %v637
  %v6735 = vadd.f32 %v6710, %v639
  %v6736 = vadd.f32 %v6714, %v641
  %v6737 = vadd.f32 %v6718, %v643
  %v6738 = vadd.f32 %v6722, %v645
  %v6739 = vtanh.pop %v6731
  %v6740 = vtanh.pop %v6732
  %v6741 = vtanh.pop %v6733
  %v6742 = vtanh.pop %v6734
  %v6743 = vtanh.pop %v6735
  %v6744 = vtanh.pop %v6736
  %v6745 = vtanh.pop %v6737
  %v6746 = vtanh.pop %v6738
  %v6747 = vmul.f32 %v6739, %v676
  %v6748 = vmul.f32 %v6740, %v676
  %v6749 = vmul.f32 %v6741, %v676
  %v6750 = vmul.f32 %v6742, %v676
  %v6751 = vmul.f32 %v6743, %v676
  %v6752 = vmul.f32 %v6744, %v676
  %v6753 = vmul.f32 %v6745, %v676
  %v6754 = vmul.f32 %v6746, %v676
  %6763 = vrot.lane.b32.xlu0 %v6747, 32
  %v6764 = vpop.permute.xlu0 %6763
  %6765 = vrot.lane.b32.xlu0 %v6748, 32
  %v6766 = vpop.permute.xlu0 %6765
  %6767 = vrot.lane.b32.xlu0 %v6749, 32
  %v6768 = vpop.permute.xlu0 %6767
  %6769 = vrot.lane.b32.xlu0 %v6750, 32
  %v6770 = vpop.permute.xlu0 %6769
  %6771 = vrot.lane.b32.xlu0 %v6751, 32
  %v6772 = vpop.permute.xlu0 %6771
  %6773 = vrot.lane.b32.xlu0 %v6752, 32
  %v6774 = vpop.permute.xlu0 %6773
  %6775 = vrot.lane.b32.xlu0 %v6753, 32
  %v6776 = vpop.permute.xlu0 %6775
  %6777 = vrot.lane.b32.xlu0 %v6754, 32
  %v6778 = vpop.permute.xlu0 %6777
  %v6787 = vsel %vm458, %v6764, 0.0
  %6788 = vadd.xlane.f32.xlu0 %v6787
  %v6789 = vpop.xlane.xlu0 %6788
  %v6790 = vsel %vm458, %v6766, 0.0
  %6791 = vadd.xlane.f32.xlu0 %v6790
  %v6792 = vpop.xlane.xlu0 %6791
  %v6793 = vsel %vm458, %v6768, 0.0
  %6794 = vadd.xlane.f32.xlu0 %v6793
  %v6795 = vpop.xlane.xlu0 %6794
  %v6796 = vsel %vm458, %v6770, 0.0
  %6797 = vadd.xlane.f32.xlu0 %v6796
  %v6798 = vpop.xlane.xlu0 %6797
  %v6799 = vsel %vm458, %v6772, 0.0
  %6800 = vadd.xlane.f32.xlu0 %v6799
  %v6801 = vpop.xlane.xlu0 %6800
  %v6802 = vsel %vm458, %v6774, 0.0
  %6803 = vadd.xlane.f32.xlu0 %v6802
  %v6804 = vpop.xlane.xlu0 %6803
  %v6805 = vsel %vm458, %v6776, 0.0
  %6806 = vadd.xlane.f32.xlu0 %v6805
  %v6807 = vpop.xlane.xlu0 %6806
  %v6808 = vsel %vm458, %v6778, 0.0
  %6809 = vadd.xlane.f32.xlu0 %v6808
  %v6810 = vpop.xlane.xlu0 %6809
  %v6811 = vadd.f32 %v6789, %v749
  %v6812 = vadd.f32 %v6792, %v749
  %v6813 = vadd.f32 %v6795, %v749
  %v6814 = vadd.f32 %v6798, %v749
  %v6815 = vadd.f32 %v6801, %v749
  %v6816 = vadd.f32 %v6804, %v749
  %v6817 = vadd.f32 %v6807, %v749
  %v6818 = vadd.f32 %v6810, %v749
  %v6827 = vlaneseq
  %v6828 = vshrl.u32 %v6827, 7
  %v6829 = vsub.s32 %v768, %v6828
  %v6830 = vrot.slane %v6811, %v6829
  %v6831 = vlaneseq
  %v6832 = vshrl.u32 %v6831, 7
  %v6833 = vsub.s32 %v768, %v6832
  %v6834 = vrot.slane %v6812, %v6833
  %v6835 = vlaneseq
  %v6836 = vshrl.u32 %v6835, 7
  %v6837 = vsub.s32 %v768, %v6836
  %v6838 = vrot.slane %v6813, %v6837
  %v6839 = vlaneseq
  %v6840 = vshrl.u32 %v6839, 7
  %v6841 = vsub.s32 %v768, %v6840
  %v6842 = vrot.slane %v6814, %v6841
  %v6843 = vlaneseq
  %v6844 = vshrl.u32 %v6843, 7
  %v6845 = vsub.s32 %v768, %v6844
  %v6846 = vrot.slane %v6815, %v6845
  %v6847 = vlaneseq
  %v6848 = vshrl.u32 %v6847, 7
  %v6849 = vsub.s32 %v768, %v6848
  %v6850 = vrot.slane %v6816, %v6849
  %v6851 = vlaneseq
  %v6852 = vshrl.u32 %v6851, 7
  %v6853 = vsub.s32 %v768, %v6852
  %v6854 = vrot.slane %v6817, %v6853
  %v6855 = vlaneseq
  %v6856 = vshrl.u32 %v6855, 7
  %v6857 = vsub.s32 %v768, %v6856
  %v6858 = vrot.slane %v6818, %v6857
  %v6859 = vsel %vm801, %v6834, %v6830
  %v6860 = vsel %vm803, %v6838, %v6859
  %v6861 = vsel %vm805, %v6842, %v6860
  %v6862 = vsel %vm807, %v6846, %v6861
  %v6863 = vsel %vm809, %v6850, %v6862
  %v6864 = vsel %vm811, %v6854, %v6863
  %v6865 = vsel %vm813, %v6858, %v6864
  %v6867 = vsel %vm816, %v6865, -inf
  %6868 = vmax.xlane.f32.xlu0 %v6867
  %v6869 = vpop.xlane.xlu0 %6868
  %v6871 = vlaneseq
  %v6872 = vshrl.u32 %v6871, 7
  %v6873 = vsub.s32 0, %v6872
  %v6874 = vrot.slane %v6869, %v6873
  %v6875 = vlaneseq
  %v6876 = vshrl.u32 %v6875, 7
  %v6877 = vsub.s32 1, %v6876
  %v6878 = vrot.slane %v6869, %v6877
  %v6879 = vlaneseq
  %v6880 = vshrl.u32 %v6879, 7
  %v6881 = vsub.s32 2, %v6880
  %v6882 = vrot.slane %v6869, %v6881
  %v6883 = vlaneseq
  %v6884 = vshrl.u32 %v6883, 7
  %v6885 = vsub.s32 3, %v6884
  %v6886 = vrot.slane %v6869, %v6885
  %v6887 = vlaneseq
  %v6888 = vshrl.u32 %v6887, 7
  %v6889 = vsub.s32 4, %v6888
  %v6890 = vrot.slane %v6869, %v6889
  %v6891 = vlaneseq
  %v6892 = vshrl.u32 %v6891, 7
  %v6893 = vsub.s32 5, %v6892
  %v6894 = vrot.slane %v6869, %v6893
  %v6895 = vlaneseq
  %v6896 = vshrl.u32 %v6895, 7
  %v6897 = vsub.s32 6, %v6896
  %v6898 = vrot.slane %v6869, %v6897
  %v6899 = vlaneseq
  %v6900 = vshrl.u32 %v6899, 7
  %v6901 = vsub.s32 7, %v6900
  %v6902 = vrot.slane %v6869, %v6901
  %v6911 = vsub.f32 %v6811, %v6874
  %v6912 = vsub.f32 %v6812, %v6878
  %v6913 = vsub.f32 %v6813, %v6882
  %v6914 = vsub.f32 %v6814, %v6886
  %v6915 = vsub.f32 %v6815, %v6890
  %v6916 = vsub.f32 %v6816, %v6894
  %v6917 = vsub.f32 %v6817, %v6898
  %v6918 = vsub.f32 %v6818, %v6902
  %v6919 = vmul.f32 %v6911, 1.442695
  %v6920 = vpow.pop %v6919
  %v6921 = vmul.f32 %v6912, 1.442695
  %v6922 = vpow.pop %v6921
  %v6923 = vmul.f32 %v6913, 1.442695
  %v6924 = vpow.pop %v6923
  %v6925 = vmul.f32 %v6914, 1.442695
  %v6926 = vpow.pop %v6925
  %v6927 = vmul.f32 %v6915, 1.442695
  %v6928 = vpow.pop %v6927
  %v6929 = vmul.f32 %v6916, 1.442695
  %v6930 = vpow.pop %v6929
  %v6931 = vmul.f32 %v6917, 1.442695
  %v6932 = vpow.pop %v6931
  %v6933 = vmul.f32 %v6918, 1.442695
  %v6934 = vpow.pop %v6933
  %6943 = vset.pattern.permute.xlu0 0
  %6944 = vperm.xlu0 %6943, %v6920
  %v6945 = vpop.permute.xlu0 %6944
  %6946 = vset.pattern.permute.xlu0 0
  %6947 = vperm.xlu0 %6946, %v6922
  %v6948 = vpop.permute.xlu0 %6947
  %6949 = vset.pattern.permute.xlu0 0
  %6950 = vperm.xlu0 %6949, %v6924
  %v6951 = vpop.permute.xlu0 %6950
  %6952 = vset.pattern.permute.xlu0 0
  %6953 = vperm.xlu0 %6952, %v6926
  %v6954 = vpop.permute.xlu0 %6953
  %6955 = vset.pattern.permute.xlu0 0
  %6956 = vperm.xlu0 %6955, %v6928
  %v6957 = vpop.permute.xlu0 %6956
  %6958 = vset.pattern.permute.xlu0 0
  %6959 = vperm.xlu0 %6958, %v6930
  %v6960 = vpop.permute.xlu0 %6959
  %6961 = vset.pattern.permute.xlu0 0
  %6962 = vperm.xlu0 %6961, %v6932
  %v6963 = vpop.permute.xlu0 %6962
  %6964 = vset.pattern.permute.xlu0 0
  %6965 = vperm.xlu0 %6964, %v6934
  %v6966 = vpop.permute.xlu0 %6965
  %v6967 = vlaneseq
  %v6968 = vshrl.u32 %v6967, 7
  %v6969 = vsub.s32 %v768, %v6968
  %v6970 = vrot.slane %v6945, %v6969
  %v6971 = vlaneseq
  %v6972 = vshrl.u32 %v6971, 7
  %v6973 = vsub.s32 %v768, %v6972
  %v6974 = vrot.slane %v6948, %v6973
  %v6975 = vlaneseq
  %v6976 = vshrl.u32 %v6975, 7
  %v6977 = vsub.s32 %v768, %v6976
  %v6978 = vrot.slane %v6951, %v6977
  %v6979 = vlaneseq
  %v6980 = vshrl.u32 %v6979, 7
  %v6981 = vsub.s32 %v768, %v6980
  %v6982 = vrot.slane %v6954, %v6981
  %v6983 = vlaneseq
  %v6984 = vshrl.u32 %v6983, 7
  %v6985 = vsub.s32 %v768, %v6984
  %v6986 = vrot.slane %v6957, %v6985
  %v6987 = vlaneseq
  %v6988 = vshrl.u32 %v6987, 7
  %v6989 = vsub.s32 %v768, %v6988
  %v6990 = vrot.slane %v6960, %v6989
  %v6991 = vlaneseq
  %v6992 = vshrl.u32 %v6991, 7
  %v6993 = vsub.s32 %v768, %v6992
  %v6994 = vrot.slane %v6963, %v6993
  %v6995 = vlaneseq
  %v6996 = vshrl.u32 %v6995, 7
  %v6997 = vsub.s32 %v768, %v6996
  %v6998 = vrot.slane %v6966, %v6997
  %v6999 = vsel %vm801, %v6974, %v6970
  %v7000 = vsel %vm803, %v6978, %v6999
  %v7001 = vsel %vm805, %v6982, %v7000
  %v7002 = vsel %vm807, %v6986, %v7001
  %v7003 = vsel %vm809, %v6990, %v7002
  %v7004 = vsel %vm811, %v6994, %v7003
  %v7005 = vsel %vm813, %v6998, %v7004
  %v7007 = vsel %vm816, %v7005, 0.0
  %7008 = vadd.xlane.f32.xlu0 %v7007
  %v7009 = vpop.xlane.xlu0 %7008
  %v7010 = vrcp.pop %v7009
  %v7012 = vlaneseq
  %v7013 = vshrl.u32 %v7012, 7
  %v7014 = vsub.s32 0, %v7013
  %v7015 = vrot.slane %v7010, %v7014
  %v7016 = vlaneseq
  %v7017 = vshrl.u32 %v7016, 7
  %v7018 = vsub.s32 1, %v7017
  %v7019 = vrot.slane %v7010, %v7018
  %v7020 = vlaneseq
  %v7021 = vshrl.u32 %v7020, 7
  %v7022 = vsub.s32 2, %v7021
  %v7023 = vrot.slane %v7010, %v7022
  %v7024 = vlaneseq
  %v7025 = vshrl.u32 %v7024, 7
  %v7026 = vsub.s32 3, %v7025
  %v7027 = vrot.slane %v7010, %v7026
  %v7028 = vlaneseq
  %v7029 = vshrl.u32 %v7028, 7
  %v7030 = vsub.s32 4, %v7029
  %v7031 = vrot.slane %v7010, %v7030
  %v7032 = vlaneseq
  %v7033 = vshrl.u32 %v7032, 7
  %v7034 = vsub.s32 5, %v7033
  %v7035 = vrot.slane %v7010, %v7034
  %v7036 = vlaneseq
  %v7037 = vshrl.u32 %v7036, 7
  %v7038 = vsub.s32 6, %v7037
  %v7039 = vrot.slane %v7010, %v7038
  %v7040 = vlaneseq
  %v7041 = vshrl.u32 %v7040, 7
  %v7042 = vsub.s32 7, %v7041
  %v7043 = vrot.slane %v7010, %v7042
  %v7052 = vmul.f32 %v6920, %v7015
  %v7053 = vmul.f32 %v6922, %v7019
  %v7054 = vmul.f32 %v6924, %v7023
  %v7055 = vmul.f32 %v6926, %v7027
  %v7056 = vmul.f32 %v6928, %v7031
  %v7057 = vmul.f32 %v6930, %v7035
  %v7058 = vmul.f32 %v6932, %v7039
  %v7059 = vmul.f32 %v6934, %v7043
  %7061 = vset.pattern.permute.xlu0 0
  %7062 = vperm.xlu0 %7061, %v7052
  %v7063 = vpop.permute.xlu0 %7062
  %7066 = vset.pattern.permute.xlu0 0
  %7067 = vperm.xlu0 %7066, %v7053
  %v7068 = vpop.permute.xlu0 %7067
  %7071 = vset.pattern.permute.xlu0 0
  %7072 = vperm.xlu0 %7071, %v7054
  %v7073 = vpop.permute.xlu0 %7072
  %7076 = vset.pattern.permute.xlu0 0
  %7077 = vperm.xlu0 %7076, %v7055
  %v7078 = vpop.permute.xlu0 %7077
  %7081 = vset.pattern.permute.xlu0 0
  %7082 = vperm.xlu0 %7081, %v7056
  %v7083 = vpop.permute.xlu0 %7082
  %7086 = vset.pattern.permute.xlu0 0
  %7087 = vperm.xlu0 %7086, %v7057
  %v7088 = vpop.permute.xlu0 %7087
  %7091 = vset.pattern.permute.xlu0 0
  %7092 = vperm.xlu0 %7091, %v7058
  %v7093 = vpop.permute.xlu0 %7092
  %7096 = vset.pattern.permute.xlu0 0
  %7097 = vperm.xlu0 %7096, %v7059
  %v7098 = vpop.permute.xlu0 %7097
  %v7100 = vmul.f32 %v256, %v7063
  %v7101 = vmul.f32 %v261, %v7068
  %v7102 = vmul.f32 %v266, %v7073
  %v7103 = vmul.f32 %v271, %v7078
  %v7104 = vmul.f32 %v276, %v7083
  %v7105 = vmul.f32 %v281, %v7088
  %v7106 = vmul.f32 %v286, %v7093
  %v7107 = vmul.f32 %v291, %v7098
  %v7108 = vsel %vm442, %v7100, 0.0
  %v7109 = vrot.slane %v7108, 4
  %v7110 = vadd.f32 %v7108, %v7109
  %v7111 = vrot.slane %v7110, 2
  %v7112 = vadd.f32 %v7110, %v7111
  %v7113 = vrot.slane %v7112, 1
  %v7114 = vadd.f32 %v7112, %v7113
  %v7115 = vsel %vm442, %v7101, 0.0
  %v7116 = vrot.slane %v7115, 4
  %v7117 = vadd.f32 %v7115, %v7116
  %v7118 = vrot.slane %v7117, 2
  %v7119 = vadd.f32 %v7117, %v7118
  %v7120 = vrot.slane %v7119, 1
  %v7121 = vadd.f32 %v7119, %v7120
  %v7122 = vsel %vm442, %v7102, 0.0
  %v7123 = vrot.slane %v7122, 4
  %v7124 = vadd.f32 %v7122, %v7123
  %v7125 = vrot.slane %v7124, 2
  %v7126 = vadd.f32 %v7124, %v7125
  %v7127 = vrot.slane %v7126, 1
  %v7128 = vadd.f32 %v7126, %v7127
  %v7129 = vsel %vm442, %v7103, 0.0
  %v7130 = vrot.slane %v7129, 4
  %v7131 = vadd.f32 %v7129, %v7130
  %v7132 = vrot.slane %v7131, 2
  %v7133 = vadd.f32 %v7131, %v7132
  %v7134 = vrot.slane %v7133, 1
  %v7135 = vadd.f32 %v7133, %v7134
  %v7136 = vsel %vm442, %v7104, 0.0
  %v7137 = vrot.slane %v7136, 4
  %v7138 = vadd.f32 %v7136, %v7137
  %v7139 = vrot.slane %v7138, 2
  %v7140 = vadd.f32 %v7138, %v7139
  %v7141 = vrot.slane %v7140, 1
  %v7142 = vadd.f32 %v7140, %v7141
  %v7143 = vsel %vm442, %v7105, 0.0
  %v7144 = vrot.slane %v7143, 4
  %v7145 = vadd.f32 %v7143, %v7144
  %v7146 = vrot.slane %v7145, 2
  %v7147 = vadd.f32 %v7145, %v7146
  %v7148 = vrot.slane %v7147, 1
  %v7149 = vadd.f32 %v7147, %v7148
  %v7150 = vsel %vm442, %v7106, 0.0
  %v7151 = vrot.slane %v7150, 4
  %v7152 = vadd.f32 %v7150, %v7151
  %v7153 = vrot.slane %v7152, 2
  %v7154 = vadd.f32 %v7152, %v7153
  %v7155 = vrot.slane %v7154, 1
  %v7156 = vadd.f32 %v7154, %v7155
  %v7157 = vsel %vm442, %v7107, 0.0
  %v7158 = vrot.slane %v7157, 4
  %v7159 = vadd.f32 %v7157, %v7158
  %v7160 = vrot.slane %v7159, 2
  %v7161 = vadd.f32 %v7159, %v7160
  %v7162 = vrot.slane %v7161, 1
  %v7163 = vadd.f32 %v7161, %v7162
  %s7164 = scalar_lea.vmem [#allocation2], 56
  %v7165 = vld [vmem:[%s7164] sm:$0xff]
  %v7167 = vrot.slane %v7165, 1
  %v7168 = vrot.slane %v7165, 2
  %v7169 = vrot.slane %v7165, 3
  %v7170 = vrot.slane %v7165, 4
  %v7171 = vrot.slane %v7165, 5
  %v7172 = vrot.slane %v7165, 6
  %v7173 = vrot.slane %v7165, 7
  %v7182 = vadd.f32 %v7114, %v7165
  %v7183 = vadd.f32 %v7121, %v7167
  %v7184 = vadd.f32 %v7128, %v7168
  %v7185 = vadd.f32 %v7135, %v7169
  %v7186 = vadd.f32 %v7142, %v7170
  %v7187 = vadd.f32 %v7149, %v7171
  %v7188 = vadd.f32 %v7156, %v7172
  %v7189 = vadd.f32 %v7163, %v7173
  %v7190 = vrot.slane %v6638, 1
  %v7191 = vrot.slane %v6638, 2
  %v7192 = vrot.slane %v6638, 3
  %v7193 = vrot.slane %v6638, 4
  %v7194 = vrot.slane %v6638, 5
  %v7195 = vrot.slane %v6638, 6
  %v7196 = vrot.slane %v6638, 7
  %v7205 = vadd.f32 %v7182, %v6638
  %v7206 = vadd.f32 %v7183, %v7190
  %v7207 = vadd.f32 %v7184, %v7191
  %v7208 = vadd.f32 %v7185, %v7192
  %v7209 = vadd.f32 %v7186, %v7193
  %v7210 = vadd.f32 %v7187, %v7194
  %v7211 = vadd.f32 %v7188, %v7195
  %v7212 = vadd.f32 %v7189, %v7196
  %v7213 = vxor.u32 %v7205, 2147483648
  %v7214 = vxor.u32 %v7206, 2147483648
  %v7215 = vxor.u32 %v7207, 2147483648
  %v7216 = vxor.u32 %v7208, 2147483648
  %v7217 = vxor.u32 %v7209, 2147483648
  %v7218 = vxor.u32 %v7210, 2147483648
  %v7219 = vxor.u32 %v7211, 2147483648
  %v7220 = vxor.u32 %v7212, 2147483648
  %v7221 = vmul.f32 %v7213, 1.442695
  %v7222 = vpow.pop %v7221
  %v7223 = vmul.f32 %v7214, 1.442695
  %v7224 = vpow.pop %v7223
  %v7225 = vmul.f32 %v7215, 1.442695
  %v7226 = vpow.pop %v7225
  %v7227 = vmul.f32 %v7216, 1.442695
  %v7228 = vpow.pop %v7227
  %v7229 = vmul.f32 %v7217, 1.442695
  %v7230 = vpow.pop %v7229
  %v7231 = vmul.f32 %v7218, 1.442695
  %v7232 = vpow.pop %v7231
  %v7233 = vmul.f32 %v7219, 1.442695
  %v7234 = vpow.pop %v7233
  %v7235 = vmul.f32 %v7220, 1.442695
  %v7236 = vpow.pop %v7235
  %v7237 = vadd.f32 %v7222, 1.0
  %v7238 = vadd.f32 %v7224, 1.0
  %v7239 = vadd.f32 %v7226, 1.0
  %v7240 = vadd.f32 %v7228, 1.0
  %v7241 = vadd.f32 %v7230, 1.0
  %v7242 = vadd.f32 %v7232, 1.0
  %v7243 = vadd.f32 %v7234, 1.0
  %v7244 = vadd.f32 %v7236, 1.0
  %v7245 = vrcp.pop %v7237
  %v7246 = vmul.f32 1.0, %v7245
  %v7247 = vrcp.pop %v7238
  %v7248 = vmul.f32 1.0, %v7247
  %v7249 = vrcp.pop %v7239
  %v7250 = vmul.f32 1.0, %v7249
  %v7251 = vrcp.pop %v7240
  %v7252 = vmul.f32 1.0, %v7251
  %v7253 = vrcp.pop %v7241
  %v7254 = vmul.f32 1.0, %v7253
  %v7255 = vrcp.pop %v7242
  %v7256 = vmul.f32 1.0, %v7255
  %v7257 = vrcp.pop %v7243
  %v7258 = vmul.f32 1.0, %v7257
  %v7259 = vrcp.pop %v7244
  %v7260 = vmul.f32 1.0, %v7259
  %7261 = vrot.lane.b32.xlu0 %v6638, 64
  %v7262 = vpop.permute.xlu0 %7261
  %7263 = vrot.lane.b32.xlu0 %v7190, 64
  %v7264 = vpop.permute.xlu0 %7263
  %7265 = vrot.lane.b32.xlu0 %v7191, 64
  %v7266 = vpop.permute.xlu0 %7265
  %7267 = vrot.lane.b32.xlu0 %v7192, 64
  %v7268 = vpop.permute.xlu0 %7267
  %7269 = vrot.lane.b32.xlu0 %v7193, 64
  %v7270 = vpop.permute.xlu0 %7269
  %7271 = vrot.lane.b32.xlu0 %v7194, 64
  %v7272 = vpop.permute.xlu0 %7271
  %7273 = vrot.lane.b32.xlu0 %v7195, 64
  %v7274 = vpop.permute.xlu0 %7273
  %7275 = vrot.lane.b32.xlu0 %v7196, 64
  %v7276 = vpop.permute.xlu0 %7275
  %v7285 = vmul.f32 %v7246, %v7262
  %v7286 = vmul.f32 %v7248, %v7264
  %v7287 = vmul.f32 %v7250, %v7266
  %v7288 = vmul.f32 %v7252, %v7268
  %v7289 = vmul.f32 %v7254, %v7270
  %v7290 = vmul.f32 %v7256, %v7272
  %v7291 = vmul.f32 %v7258, %v7274
  %v7292 = vmul.f32 %v7260, %v7276
  %7301 = vrot.lane.b32.xlu0 %v7285, 64
  %v7302 = vpop.permute.xlu0 %7301
  %7303 = vrot.lane.b32.xlu0 %v7286, 64
  %v7304 = vpop.permute.xlu0 %7303
  %7305 = vrot.lane.b32.xlu0 %v7287, 64
  %v7306 = vpop.permute.xlu0 %7305
  %7307 = vrot.lane.b32.xlu0 %v7288, 64
  %v7308 = vpop.permute.xlu0 %7307
  %7309 = vrot.lane.b32.xlu0 %v7289, 64
  %v7310 = vpop.permute.xlu0 %7309
  %7311 = vrot.lane.b32.xlu0 %v7290, 64
  %v7312 = vpop.permute.xlu0 %7311
  %7313 = vrot.lane.b32.xlu0 %v7291, 64
  %v7314 = vpop.permute.xlu0 %7313
  %7315 = vrot.lane.b32.xlu0 %v7292, 64
  %v7316 = vpop.permute.xlu0 %7315
  %v7325 = vadd.f32 %v7182, %v7302
  %v7326 = vadd.f32 %v7183, %v7304
  %v7327 = vadd.f32 %v7184, %v7306
  %v7328 = vadd.f32 %v7185, %v7308
  %v7329 = vadd.f32 %v7186, %v7310
  %v7330 = vadd.f32 %v7187, %v7312
  %v7331 = vadd.f32 %v7188, %v7314
  %v7332 = vadd.f32 %v7189, %v7316
  %v7333 = vtanh.pop %v7325
  %v7334 = vtanh.pop %v7326
  %v7335 = vtanh.pop %v7327
  %v7336 = vtanh.pop %v7328
  %v7337 = vtanh.pop %v7329
  %v7338 = vtanh.pop %v7330
  %v7339 = vtanh.pop %v7331
  %v7340 = vtanh.pop %v7332
  %v7341 = vsub.f32 1.0, %v7246
  %v7342 = vsub.f32 1.0, %v7248
  %v7343 = vsub.f32 1.0, %v7250
  %v7344 = vsub.f32 1.0, %v7252
  %v7345 = vsub.f32 1.0, %v7254
  %v7346 = vsub.f32 1.0, %v7256
  %v7347 = vsub.f32 1.0, %v7258
  %v7348 = vsub.f32 1.0, %v7260
  %7357 = vrot.lane.b32.xlu0 %v7333, 96
  %v7358 = vpop.permute.xlu0 %7357
  %7359 = vrot.lane.b32.xlu0 %v7334, 96
  %v7360 = vpop.permute.xlu0 %7359
  %7361 = vrot.lane.b32.xlu0 %v7335, 96
  %v7362 = vpop.permute.xlu0 %7361
  %7363 = vrot.lane.b32.xlu0 %v7336, 96
  %v7364 = vpop.permute.xlu0 %7363
  %7365 = vrot.lane.b32.xlu0 %v7337, 96
  %v7366 = vpop.permute.xlu0 %7365
  %7367 = vrot.lane.b32.xlu0 %v7338, 96
  %v7368 = vpop.permute.xlu0 %7367
  %7369 = vrot.lane.b32.xlu0 %v7339, 96
  %v7370 = vpop.permute.xlu0 %7369
  %7371 = vrot.lane.b32.xlu0 %v7340, 96
  %v7372 = vpop.permute.xlu0 %7371
  %v7381 = vmul.f32 %v7341, %v7358
  %v7382 = vmul.f32 %v7342, %v7360
  %v7383 = vmul.f32 %v7343, %v7362
  %v7384 = vmul.f32 %v7344, %v7364
  %v7385 = vmul.f32 %v7345, %v7366
  %v7386 = vmul.f32 %v7346, %v7368
  %v7387 = vmul.f32 %v7347, %v7370
  %v7388 = vmul.f32 %v7348, %v7372
  %v7389 = vmul.f32 %v7246, %v6537
  %v7390 = vmul.f32 %v7248, %v6538
  %v7391 = vmul.f32 %v7250, %v6539
  %v7392 = vmul.f32 %v7252, %v6540
  %v7393 = vmul.f32 %v7254, %v6541
  %v7394 = vmul.f32 %v7256, %v6542
  %v7395 = vmul.f32 %v7258, %v6543
  %v7396 = vmul.f32 %v7260, %v6544
  %v7397 = vadd.f32 %v7381, %v7389
  %v7398 = vadd.f32 %v7382, %v7390
  %v7399 = vadd.f32 %v7383, %v7391
  %v7400 = vadd.f32 %v7384, %v7392
  %v7401 = vadd.f32 %v7385, %v7393
  %v7402 = vadd.f32 %v7386, %v7394
  %v7403 = vadd.f32 %v7387, %v7395
  %v7404 = vadd.f32 %v7388, %v7396
  %v7406 = vlaneseq
  %v7407 = vshrl.u32 %v7406, 7
  %v7408 = vsub.s32 0, %v7407
  %v7409 = vrot.slane %v44, %v7408
  %v7419 = vrot.slane %v7398, 7
  %v7420 = vsel %vm801, %v7419, %v7397
  %v7421 = vrot.slane %v7399, 6
  %v7422 = vsel %vm803, %v7421, %v7420
  %v7423 = vrot.slane %v7400, 5
  %v7424 = vsel %vm805, %v7423, %v7422
  %v7425 = vrot.slane %v7401, 4
  %v7426 = vsel %vm807, %v7425, %v7424
  %v7427 = vrot.slane %v7402, 3
  %v7428 = vsel %vm809, %v7427, %v7426
  %v7429 = vrot.slane %v7403, 2
  %v7430 = vsel %vm811, %v7429, %v7428
  %v7431 = vrot.slane %v7404, 1
  %v7432 = vsel %vm813, %v7431, %v7430
  %7433 = vrot.lane.b32.xlu0 %v7432, 96
  %v7434 = vpop.permute.xlu0 %7433
  %v7435 = vsel %vm458, %v7434, 0
  %7437 = vmatprep.subr.mxu0 0.0
  %7438 = vmatpush1.msra.mxu0 0.0
  %7439 = vmatprep.subr.mxu0 0.0
  %7440 = vmatpush1.msra.mxu0 0.0
  %7441 = vmatprep.subr.mxu0 0.0
  %7442 = vmatpush1.msra.mxu0 0.0
  %7443 = vmatprep.subr.mxu0 0.0
  %7444 = vmatpush1.msra.mxu0 0.0
  %7445 = vmatprep.subr.mxu0 0.0
  %7446 = vmatpush1.msra.mxu0 0.0
  %7447 = vmatprep.subr.mxu0 0.0
  %7448 = vmatpush1.msra.mxu0 0.0
  %7449 = vmatprep.subr.mxu0 0.0
  %7450 = vmatpush1.msra.mxu0 0.0
  %7451 = vmatprep.subr.mxu0 0.0
  %7452 = vmatpush1.msra.mxu0 0.0
  %7453 = vmatprep.subr.mxu0 0.0
  %7454 = vmatpush1.msra.mxu0 0.0
  %7455 = vmatprep.subr.mxu0 0.0
  %7456 = vmatpush1.msra.mxu0 0.0
  %7457 = vmatprep.subr.mxu0 0.0
  %7458 = vmatpush1.msra.mxu0 0.0
  %7459 = vmatprep.subr.mxu0 0.0
  %7460 = vmatpush1.msra.mxu0 0.0
  %7461 = vmatprep.subr.mxu0 0.0
  %7462 = vmatpush1.msra.mxu0 %v33
  %7463 = vmatprep.subr.mxu0 0.0
  %7464 = vmatpush1.msra.mxu0 %v32
  %7465 = vmatprep.subr.mxu0 0.0
  %7466 = vmatpush1.msra.mxu0 %v31
  %7467 = vmatprep.subr.mxu0 0.0
  %7468 = vmatpush1.msra.mxu0 %v30
  %7469 = vmatprep.subr.mxu0 0.0
  %7470 = vmatpush2.msra.mxu0 0.0
  %7471 = vmatprep.subr.mxu0 0.0
  %7472 = vmatpush2.msra.mxu0 0.0
  %7473 = vmatprep.subr.mxu0 0.0
  %7474 = vmatpush2.msra.mxu0 0.0
  %7475 = vmatprep.subr.mxu0 0.0
  %7476 = vmatpush2.msra.mxu0 0.0
  %7477 = vmatprep.subr.mxu0 0.0
  %7478 = vmatpush2.msra.mxu0 0.0
  %7479 = vmatprep.subr.mxu0 0.0
  %7480 = vmatpush2.msra.mxu0 0.0
  %7481 = vmatprep.subr.mxu0 0.0
  %7482 = vmatpush2.msra.mxu0 0.0
  %7483 = vmatprep.subr.mxu0 0.0
  %7484 = vmatpush2.msra.mxu0 0.0
  %7485 = vmatprep.subr.mxu0 0.0
  %7486 = vmatpush2.msra.mxu0 0.0
  %7487 = vmatprep.subr.mxu0 0.0
  %7488 = vmatpush2.msra.mxu0 0.0
  %7489 = vmatprep.subr.mxu0 0.0
  %7490 = vmatpush2.msra.mxu0 0.0
  %7491 = vmatprep.subr.mxu0 0.0
  %7492 = vmatpush2.msra.mxu0 0.0
  %7493 = vmatprep.subr.mxu0 0.0
  %7494 = vmatpush2.msra.mxu0 0.0
  %7495 = vmatprep.subr.mxu0 0.0
  %7496 = vmatpush2.msra.mxu0 0.0
  %7497 = vmatprep.subr.mxu0 0.0
  %7498 = vmatpush2.msra.mxu0 0.0
  %7499 = vmatprep.subr.mxu0 0.0
  %7500 = vmatpush2.msra.mxu0 0.0
  %7501 = vmatprep.mubr.f32.mxu0 0.0
  %7502 = vmatmul.mubr.f32.gmra.mxu0 %v7435
  %v7503 = vpop.f32.mrf.mxu0
  %v7504 = vadd.f32 %v7409, %v7503
  %v7505 = vpop.f32.mrf.mxu0
  %7506 = vdwg.mxu0
  %v7507 = vadd.s32 %v768, 4294967295
  %v7508 = vlaneseq
  %v7509 = vshrl.u32 %v7508, 7
  %v7510 = vsub.s32 %v7507, %v7509
  %v7511 = vrot.slane %v7063, %v7510
  %v7512 = vlaneseq
  %v7513 = vshrl.u32 %v7512, 7
  %v7514 = vsub.s32 %v7507, %v7513
  %v7515 = vrot.slane %v7068, %v7514
  %v7516 = vlaneseq
  %v7517 = vshrl.u32 %v7516, 7
  %v7518 = vsub.s32 %v7507, %v7517
  %v7519 = vrot.slane %v7073, %v7518
  %v7520 = vlaneseq
  %v7521 = vshrl.u32 %v7520, 7
  %v7522 = vsub.s32 %v7507, %v7521
  %v7523 = vrot.slane %v7078, %v7522
  %v7524 = vlaneseq
  %v7525 = vshrl.u32 %v7524, 7
  %v7526 = vsub.s32 %v7507, %v7525
  %v7527 = vrot.slane %v7083, %v7526
  %v7528 = vlaneseq
  %v7529 = vshrl.u32 %v7528, 7
  %v7530 = vsub.s32 %v7507, %v7529
  %v7531 = vrot.slane %v7088, %v7530
  %v7532 = vlaneseq
  %v7533 = vshrl.u32 %v7532, 7
  %v7534 = vsub.s32 %v7507, %v7533
  %v7535 = vrot.slane %v7093, %v7534
  %v7536 = vlaneseq
  %v7537 = vshrl.u32 %v7536, 7
  %v7538 = vsub.s32 %v7507, %v7537
  %v7539 = vrot.slane %v7098, %v7538
  %v7540 = vsel %vm801, %v7515, %v7511
  %v7541 = vsel %vm803, %v7519, %v7540
  %v7542 = vsel %vm805, %v7523, %v7541
  %v7543 = vsel %vm807, %v7527, %v7542
  %v7544 = vsel %vm809, %v7531, %v7543
  %v7545 = vsel %vm811, %v7535, %v7544
  %v7546 = vsel %vm813, %v7539, %v7545
  %vm7548 = vcmask 7168
  %v7549 = vsel %vm7548, %v7504, %v7546
  %vm7550 = vcmask 72704
  %v7551 = vsel %vm7550, %v7549, 0.0
  %7552 = vst [vmem:[%s7] sm:$0xff] %v7551
  // Predicated region
  $region30: #{decoder_forward.1} parent=0 // pred_check
    _
  $region31: #{decoder_forward.1} parent=0 // pred_check_branch
    %7554 = sbr.rel (0) target = $region33
  $region32: #{decoder_forward.1} parent=0 // pred_region
    _
  $region33: #{decoder_forward.1} parent=0 // pred_fallthru
    _
  // Predicated region
  $region34: #{decoder_forward.1} parent=0 // pred_check
    _
  $region35: #{decoder_forward.1} parent=0 // pred_check_branch
    %7556 = sbr.rel (0) target = $region37
  $region36: #{decoder_forward.1} parent=0 // pred_region
    _
  $region37: #{decoder_forward.1} parent=0 // pred_fallthru
    _

</llo_original>
